<compile_context>
chip_gen: v7x
topology: tpu7x:2x2x1
jax: 0.10.0
libtpu: 0.0.40
codegen_flags: <defaults>
</compile_context>

<pallas_src>
import numpy as np

import jax
import jax.numpy as jnp
from jax.experimental import pallas as pl
from jax.experimental.pallas import tpu as pltpu

# ---------------- SDE / sampler constants (VP-SDE defaults) ----------------
BETA_MIN = 0.1
BETA_MAX = 20.0
SDE_T = 1.0          # sde.T
SAMPLING_EPS = 1e-3  # sde.sampling_epsilon
NUM_STEPS = 10       # fixed RK4 steps (replaces adaptive RK45)
NUM_STAGES = 3 * NUM_STEPS   # (t0, t0+dt/2, t0+dt) per step; k2/k3 share mid
HIDDEN = 32          # synthetic score-model hidden width
C_PAD = 8            # channel axis padded to one f32 sublane tile
MAX_TILE_P = 512     # lane-tile cap: keeps unrolled body under the vreg file


# ---------------- trace-time (float64) VP-SDE coefficient schedule ----------
def _vpsde_coeffs(t):
    """Return (beta(t), 1/std(t)) computed in float64."""
    t = np.float64(t)
    beta = BETA_MIN + t * (BETA_MAX - BETA_MIN)
    log_mean_coeff = -0.25 * t * t * (BETA_MAX - BETA_MIN) - 0.5 * t * BETA_MIN
    # std = sqrt(1 - exp(2*lmc)); -expm1 avoids cancellation near t -> eps.
    inv_std = 1.0 / np.sqrt(-np.expm1(2.0 * log_mean_coeff))
    return float(beta), float(inv_std)


def _rk4_schedule():
    dt = float((np.float64(SAMPLING_EPS) - np.float64(SDE_T)) / NUM_STEPS)
    ts, betas, inv_stds = [], [], []
    for i in range(NUM_STEPS):
        t0 = np.float64(SDE_T) + i * np.float64(dt)
        for t in (t0, t0 + 0.5 * dt, t0 + dt):
            b, s = _vpsde_coeffs(t)
            ts.append(float(t))
            betas.append(b)
            inv_stds.append(s)
    return dt, np.array(ts), np.array(betas), np.array(inv_stds)


DT, STAGE_T, STAGE_BETA, STAGE_INV_STD = _rk4_schedule()


# ------------------------------ Pallas kernel -------------------------------
def _make_sampler_kernel(c_out, neg_half_beta):
    """Fused RK4 probability-flow sampler over one (C_PAD, tile_P) pixel slab.

    Per-stage tables (resident in VMEM for the whole integration):
      w1a_ref: (NUM_STAGES, HIDDEN, C_PAD) bf16  -- [w1^T | b1 + t*wt | 0]
      w2s_ref: (NUM_STAGES, C_PAD, HIDDEN) bf16  -- (0.5*beta*inv_std) * w2^T, pad rows 0
      c2_ref : (NUM_STAGES, C_PAD, 1)      f32   -- scaled b2; ones-row entry = 0.5*beta
    State x: (C_PAD, P) f32 with rows [x_0..x_{C-1}, 1, 0, 0, 0].
    drift = neg_half_beta*x + W2S @ relu(W1A @ x) + c2   (exactly 0 on pad/1 rows)
    """

    def kernel(x_ref, w1a_ref, w2s_ref, c2_ref, out_ref):
        def drift(x, s):
            h = jnp.dot(w1a_ref[s], x.astype(jnp.bfloat16),
                        preferred_element_type=jnp.float32)        # (H, P)
            h = jnp.maximum(h, 0.0)
            d = jnp.dot(w2s_ref[s], h.astype(jnp.bfloat16),
                        preferred_element_type=jnp.float32)        # (C_PAD, P)
            return d + c2_ref[s] + neg_half_beta[s] * x

        x = x_ref[...]                                              # (C_PAD, P) f32
        for step in range(NUM_STEPS):                               # unrolled
            s0 = 3 * step
            k1 = drift(x, s0)
            acc = k1
            k2 = drift(x + (0.5 * DT) * k1, s0 + 1)
            acc = acc + 2.0 * k2
            k3 = drift(x + (0.5 * DT) * k2, s0 + 1)
            acc = acc + 2.0 * k3
            k4 = drift(x + DT * k3, s0 + 2)
            x = x + (DT / 6.0) * (acc + k4)

        # Final rescale to image range; store only the real channels (lane-dense).
        out_ref[...] = (x[:c_out, :] + 1.0) * 0.5

    return kernel


def _pick_tile(p):
    for t in (MAX_TILE_P, 384, 256, 128):
        if p % t == 0:
            return t
    return p  # full-extent block (always legal)


# ------------------------------ ODE sampler ---------------------------------
@jax.jit
def probability_flow_sample(noise_nchw, params):
    """Probability-flow ODE sampler (fixed-step RK4). Returns samples in NCHW."""
    B, C, H, W = noise_nchw.shape
    P = B * H * W
    w1, b1, wt, w2, b2 = params
    hdim = w1.shape[1]

    # --- fold the f64 stage schedule into per-stage weight/bias tables -------
    t_s = jnp.asarray(STAGE_T, jnp.float32)[:, None]                       # (NS,1)
    scale_s = jnp.asarray(0.5 * STAGE_BETA * STAGE_INV_STD, jnp.float32)   # (NS,)
    half_beta_s = jnp.asarray(0.5 * STAGE_BETA, jnp.float32)               # (NS,)

    # Augmented first layer: cols 0..C-1 = w1^T, col C = b1 + t*wt, rest 0.
    w1T = jnp.transpose(w1)                                                # (hdim, C)
    bias_cols = jnp.reshape(b1, (1, hdim)) + t_s * jnp.reshape(wt, (1, hdim))
    w1a = jnp.concatenate([
        jnp.broadcast_to(w1T[None], (NUM_STAGES, hdim, C)),
        bias_cols[:, :, None],
        jnp.zeros((NUM_STAGES, hdim, C_PAD - C - 1), jnp.float32),
    ], axis=2).astype(jnp.bfloat16)                                        # (NS,hdim,C_PAD)

    # Scaled second layer: rows 0..C-1 = (0.5*beta*inv_std)*w2^T, pad rows 0.
    w2T = jnp.transpose(w2)                                                # (C, hdim)
    w2s = jnp.concatenate([
        scale_s[:, None, None] * jnp.broadcast_to(w2T[None], (NUM_STAGES, C, hdim)),
        jnp.zeros((NUM_STAGES, C_PAD - C, hdim), jnp.float32),
    ], axis=1).astype(jnp.bfloat16)                                        # (NS,C_PAD,hdim)

    # Per-stage drift constant: real rows = scale*b2; ones-row = 0.5*beta
    # (makes the constant-1 channel an exact fixed point of the drift).
    c2 = jnp.concatenate([
        scale_s[:, None] * jnp.reshape(b2, (1, C)),
        half_beta_s[:, None],
        jnp.zeros((NUM_STAGES, C_PAD - C - 1), jnp.float32),
    ], axis=1)[:, :, None]                                                 # (NS,C_PAD,1)

    # NCHW -> (C_PAD, P): pixels on the lane axis; row C carries the constant 1.
    x = jnp.transpose(noise_nchw, (1, 0, 2, 3)).reshape(C, P).astype(jnp.float32)
    x_aug = jnp.concatenate([
        x,
        jnp.ones((1, P), jnp.float32),
        jnp.zeros((C_PAD - C - 1, P), jnp.float32),
    ], axis=0)                                                             # (C_PAD, P)

    tile_p = _pick_tile(P)
    grid = (P // tile_p,)

    kernel = _make_sampler_kernel(C, tuple(float(-0.5 * b) for b in STAGE_BETA))

    out = pl.pallas_call(
        kernel,
        out_shape=jax.ShapeDtypeStruct((C, P), jnp.float32),
        grid_spec=pltpu.PrefetchScalarGridSpec(
            num_scalar_prefetch=0,
            grid=grid,
            in_specs=[
                pl.BlockSpec((C_PAD, tile_p), lambda i: (0, i)),            # x_aug
                pl.BlockSpec((NUM_STAGES, hdim, C_PAD), lambda i: (0, 0, 0)),  # W1 table
                pl.BlockSpec((NUM_STAGES, C_PAD, hdim), lambda i: (0, 0, 0)),  # W2 table
                pl.BlockSpec((NUM_STAGES, C_PAD, 1), lambda i: (0, 0, 0)),     # c2 table
            ],
            out_specs=pl.BlockSpec((C, tile_p), lambda i: (0, i)),
        ),
        compiler_params=pltpu.CompilerParams(
            dimension_semantics=("parallel",)),
    )(x_aug, w1a, w2s, c2)

    # (C, P) -> NCHW.
    return out.reshape(C, B, H, W).transpose(1, 0, 2, 3)


# ------------------------------ Driver ---------------------------------------
def init_params(key, c, hidden):
    k1, k2, k3 = jax.random.split(key, 3)
    w1 = jax.random.normal(k1, (c, hidden), jnp.float32) / jnp.sqrt(c)
    b1 = jnp.zeros((1, hidden), jnp.float32)
    wt = jax.random.normal(k2, (1, hidden), jnp.float32) * 0.1
    w2 = jax.random.normal(k3, (hidden, c), jnp.float32) / jnp.sqrt(hidden)
    b2 = jnp.zeros((1, c), jnp.float32)
    return (w1, b1, wt, w2, b2)


if __name__ == "__main__":
    key = jax.random.PRNGKey(0)
    k_noise, k_params = jax.random.split(key)

    shape = (2, 4, 16, 16)  # (B, C, H, W), NCHW like the PyTorch module
    # prior_sampling for VP-SDE: standard normal
    noise = jax.random.normal(k_noise, shape, jnp.float32)
    params = init_params(k_params, shape[1], HIDDEN)

    samples = probability_flow_sample(noise, params)
    samples = jax.block_until_ready(samples)

    nfe = 4 * NUM_STEPS  # RK4: 4 drift (score-model) evaluations per step
    assert samples.shape == shape and samples.dtype == jnp.float32
    assert bool(jnp.all(jnp.isfinite(samples)))
    print("KERNEL_OK")
</pallas_src>

<mosaic_0001>
module attributes {stable_mosaic.version = 11 : i64} {
  func.func @kernel(%arg0: i32, %arg1: memref<8x512xf32, #tpu.memory_space<vmem>>, %arg2: memref<30x32x8xbf16, #tpu.memory_space<vmem>>, %arg3: memref<30x8x32xbf16, #tpu.memory_space<vmem>>, %arg4: memref<30x8x1xf32, #tpu.memory_space<vmem>>, %arg5: memref<4x512xf32, #tpu.memory_space<vmem>>) attributes {dimension_semantics = [#tpu.dimension_semantics<parallel>], iteration_bounds = array<i64: 1>, scalar_prefetch = 0 : i64, scratch_operands = 0 : i64, tpu.core_type = #tpu.core_type<tc>, window_params = [{transform_indices = @transform_0, window_bounds = array<i64: 8, 512>}, {pipeline_mode = #tpu.pipeline_mode<synchronous>, transform_indices = @transform_1, window_bounds = array<i64: 30, 32, 8>}, {pipeline_mode = #tpu.pipeline_mode<synchronous>, transform_indices = @transform_2, window_bounds = array<i64: 30, 8, 32>}, {pipeline_mode = #tpu.pipeline_mode<synchronous>, transform_indices = @transform_3, window_bounds = array<i64: 30, 8, 1>}, {transform_indices = @transform_4, window_bounds = array<i64: 4, 512>}]} {
    %c0 = arith.constant 0 : index
    %c0_0 = arith.constant 0 : index
    %0 = vector.load %arg1[%c0, %c0_0] : memref<8x512xf32, #tpu.memory_space<vmem>>, vector<8x512xf32>
    %c0_1 = arith.constant 0 : index
    %c0_2 = arith.constant 0 : index
    %c0_3 = arith.constant 0 : index
    %1 = vector.load %arg2[%c0_1, %c0_2, %c0_3] : memref<30x32x8xbf16, #tpu.memory_space<vmem>>, vector<1x32x8xbf16>
    %2 = vector.shape_cast %1 : vector<1x32x8xbf16> to vector<32x8xbf16>
    %3 = arith.truncf %0 : vector<8x512xf32> to vector<8x512xbf16>
    %cst = arith.constant dense<0.000000e+00> : vector<32x512xf32>
    %4 = tpu.matmul %2, %3, %cst {dimension_numbers = #tpu.dot_dimension_numbers<[1], [0], [0], [1], [0, 0, 1, 1], [], []>} : vector<32x8xbf16>, vector<8x512xbf16>, vector<32x512xf32> -> vector<32x512xf32>
    %cst_4 = arith.constant 0.000000e+00 : f32
    %5 = vector.broadcast %cst_4 : f32 to vector<32x512xf32>
    %6 = arith.maximumf %4, %5 : vector<32x512xf32>
    %c0_5 = arith.constant 0 : index
    %c0_6 = arith.constant 0 : index
    %c0_7 = arith.constant 0 : index
    %7 = vector.load %arg3[%c0_5, %c0_6, %c0_7] : memref<30x8x32xbf16, #tpu.memory_space<vmem>>, vector<1x8x32xbf16>
    %8 = vector.shape_cast %7 : vector<1x8x32xbf16> to vector<8x32xbf16>
    %9 = arith.truncf %6 : vector<32x512xf32> to vector<32x512xbf16>
    %cst_8 = arith.constant dense<0.000000e+00> : vector<8x512xf32>
    %10 = tpu.matmul %8, %9, %cst_8 {dimension_numbers = #tpu.dot_dimension_numbers<[1], [0], [0], [1], [0, 0, 1, 1], [], []>} : vector<8x32xbf16>, vector<32x512xbf16>, vector<8x512xf32> -> vector<8x512xf32>
    %c0_9 = arith.constant 0 : index
    %c0_10 = arith.constant 0 : index
    %c0_11 = arith.constant 0 : index
    %11 = vector.load %arg4[%c0_9, %c0_10, %c0_11] : memref<30x8x1xf32, #tpu.memory_space<vmem>>, vector<1x8x1xf32>
    %12 = vector.shape_cast %11 : vector<1x8x1xf32> to vector<8x1xf32>
    %13 = vector.broadcast %12 : vector<8x1xf32> to vector<8x512xf32>
    %14 = arith.addf %10, %13 : vector<8x512xf32>
    %cst_12 = arith.constant -1.000000e+01 : f32
    %15 = vector.broadcast %cst_12 : f32 to vector<8x512xf32>
    %16 = arith.mulf %15, %0 : vector<8x512xf32>
    %17 = arith.addf %14, %16 : vector<8x512xf32>
    %cst_13 = arith.constant -4.995000e-02 : f32
    %18 = vector.broadcast %cst_13 : f32 to vector<8x512xf32>
    %19 = arith.mulf %18, %17 : vector<8x512xf32>
    %20 = arith.addf %0, %19 : vector<8x512xf32>
    %c1 = arith.constant 1 : index
    %c0_14 = arith.constant 0 : index
    %c0_15 = arith.constant 0 : index
    %21 = vector.load %arg2[%c1, %c0_14, %c0_15] : memref<30x32x8xbf16, #tpu.memory_space<vmem>>, vector<1x32x8xbf16>
    %22 = vector.shape_cast %21 : vector<1x32x8xbf16> to vector<32x8xbf16>
    %23 = arith.truncf %20 : vector<8x512xf32> to vector<8x512xbf16>
    %cst_16 = arith.constant dense<0.000000e+00> : vector<32x512xf32>
    %24 = tpu.matmul %22, %23, %cst_16 {dimension_numbers = #tpu.dot_dimension_numbers<[1], [0], [0], [1], [0, 0, 1, 1], [], []>} : vector<32x8xbf16>, vector<8x512xbf16>, vector<32x512xf32> -> vector<32x512xf32>
    %cst_17 = arith.constant 0.000000e+00 : f32
    %25 = vector.broadcast %cst_17 : f32 to vector<32x512xf32>
    %26 = arith.maximumf %24, %25 : vector<32x512xf32>
    %c1_18 = arith.constant 1 : index
    %c0_19 = arith.constant 0 : index
    %c0_20 = arith.constant 0 : index
    %27 = vector.load %arg3[%c1_18, %c0_19, %c0_20] : memref<30x8x32xbf16, #tpu.memory_space<vmem>>, vector<1x8x32xbf16>
    %28 = vector.shape_cast %27 : vector<1x8x32xbf16> to vector<8x32xbf16>
    %29 = arith.truncf %26 : vector<32x512xf32> to vector<32x512xbf16>
    %cst_21 = arith.constant dense<0.000000e+00> : vector<8x512xf32>
    %30 = tpu.matmul %28, %29, %cst_21 {dimension_numbers = #tpu.dot_dimension_numbers<[1], [0], [0], [1], [0, 0, 1, 1], [], []>} : vector<8x32xbf16>, vector<32x512xbf16>, vector<8x512xf32> -> vector<8x512xf32>
    %c1_22 = arith.constant 1 : index
    %c0_23 = arith.constant 0 : index
    %c0_24 = arith.constant 0 : index
    %31 = vector.load %arg4[%c1_22, %c0_23, %c0_24] : memref<30x8x1xf32, #tpu.memory_space<vmem>>, vector<1x8x1xf32>
    %32 = vector.shape_cast %31 : vector<1x8x1xf32> to vector<8x1xf32>
    %33 = vector.broadcast %32 : vector<8x1xf32> to vector<8x512xf32>
    %34 = arith.addf %30, %33 : vector<8x512xf32>
    %cst_25 = arith.constant -9.50299739 : f32
    %35 = vector.broadcast %cst_25 : f32 to vector<8x512xf32>
    %36 = arith.mulf %35, %20 : vector<8x512xf32>
    %37 = arith.addf %34, %36 : vector<8x512xf32>
    %cst_26 = arith.constant 2.000000e+00 : f32
    %38 = vector.broadcast %cst_26 : f32 to vector<8x512xf32>
    %39 = arith.mulf %38, %37 : vector<8x512xf32>
    %40 = arith.addf %17, %39 : vector<8x512xf32>
    %cst_27 = arith.constant -4.995000e-02 : f32
    %41 = vector.broadcast %cst_27 : f32 to vector<8x512xf32>
    %42 = arith.mulf %41, %37 : vector<8x512xf32>
    %43 = arith.addf %0, %42 : vector<8x512xf32>
    %c1_28 = arith.constant 1 : index
    %c0_29 = arith.constant 0 : index
    %c0_30 = arith.constant 0 : index
    %44 = vector.load %arg2[%c1_28, %c0_29, %c0_30] : memref<30x32x8xbf16, #tpu.memory_space<vmem>>, vector<1x32x8xbf16>
    %45 = vector.shape_cast %44 : vector<1x32x8xbf16> to vector<32x8xbf16>
    %46 = arith.truncf %43 : vector<8x512xf32> to vector<8x512xbf16>
    %cst_31 = arith.constant dense<0.000000e+00> : vector<32x512xf32>
    %47 = tpu.matmul %45, %46, %cst_31 {dimension_numbers = #tpu.dot_dimension_numbers<[1], [0], [0], [1], [0, 0, 1, 1], [], []>} : vector<32x8xbf16>, vector<8x512xbf16>, vector<32x512xf32> -> vector<32x512xf32>
    %cst_32 = arith.constant 0.000000e+00 : f32
    %48 = vector.broadcast %cst_32 : f32 to vector<32x512xf32>
    %49 = arith.maximumf %47, %48 : vector<32x512xf32>
    %c1_33 = arith.constant 1 : index
    %c0_34 = arith.constant 0 : index
    %c0_35 = arith.constant 0 : index
    %50 = vector.load %arg3[%c1_33, %c0_34, %c0_35] : memref<30x8x32xbf16, #tpu.memory_space<vmem>>, vector<1x8x32xbf16>
    %51 = vector.shape_cast %50 : vector<1x8x32xbf16> to vector<8x32xbf16>
    %52 = arith.truncf %49 : vector<32x512xf32> to vector<32x512xbf16>
    %cst_36 = arith.constant dense<0.000000e+00> : vector<8x512xf32>
    %53 = tpu.matmul %51, %52, %cst_36 {dimension_numbers = #tpu.dot_dimension_numbers<[1], [0], [0], [1], [0, 0, 1, 1], [], []>} : vector<8x32xbf16>, vector<32x512xbf16>, vector<8x512xf32> -> vector<8x512xf32>
    %c1_37 = arith.constant 1 : index
    %c0_38 = arith.constant 0 : index
    %c0_39 = arith.constant 0 : index
    %54 = vector.load %arg4[%c1_37, %c0_38, %c0_39] : memref<30x8x1xf32, #tpu.memory_space<vmem>>, vector<1x8x1xf32>
    %55 = vector.shape_cast %54 : vector<1x8x1xf32> to vector<8x1xf32>
    %56 = vector.broadcast %55 : vector<8x1xf32> to vector<8x512xf32>
    %57 = arith.addf %53, %56 : vector<8x512xf32>
    %cst_40 = arith.constant -9.50299739 : f32
    %58 = vector.broadcast %cst_40 : f32 to vector<8x512xf32>
    %59 = arith.mulf %58, %43 : vector<8x512xf32>
    %60 = arith.addf %57, %59 : vector<8x512xf32>
    %cst_41 = arith.constant 2.000000e+00 : f32
    %61 = vector.broadcast %cst_41 : f32 to vector<8x512xf32>
    %62 = arith.mulf %61, %60 : vector<8x512xf32>
    %63 = arith.addf %40, %62 : vector<8x512xf32>
    %cst_42 = arith.constant -0.0998999997 : f32
    %64 = vector.broadcast %cst_42 : f32 to vector<8x512xf32>
    %65 = arith.mulf %64, %60 : vector<8x512xf32>
    %66 = arith.addf %0, %65 : vector<8x512xf32>
    %c2 = arith.constant 2 : index
    %c0_43 = arith.constant 0 : index
    %c0_44 = arith.constant 0 : index
    %67 = vector.load %arg2[%c2, %c0_43, %c0_44] : memref<30x32x8xbf16, #tpu.memory_space<vmem>>, vector<1x32x8xbf16>
    %68 = vector.shape_cast %67 : vector<1x32x8xbf16> to vector<32x8xbf16>
    %69 = arith.truncf %66 : vector<8x512xf32> to vector<8x512xbf16>
    %cst_45 = arith.constant dense<0.000000e+00> : vector<32x512xf32>
    %70 = tpu.matmul %68, %69, %cst_45 {dimension_numbers = #tpu.dot_dimension_numbers<[1], [0], [0], [1], [0, 0, 1, 1], [], []>} : vector<32x8xbf16>, vector<8x512xbf16>, vector<32x512xf32> -> vector<32x512xf32>
    %cst_46 = arith.constant 0.000000e+00 : f32
    %71 = vector.broadcast %cst_46 : f32 to vector<32x512xf32>
    %72 = arith.maximumf %70, %71 : vector<32x512xf32>
    %c2_47 = arith.constant 2 : index
    %c0_48 = arith.constant 0 : index
    %c0_49 = arith.constant 0 : index
    %73 = vector.load %arg3[%c2_47, %c0_48, %c0_49] : memref<30x8x32xbf16, #tpu.memory_space<vmem>>, vector<1x8x32xbf16>
    %74 = vector.shape_cast %73 : vector<1x8x32xbf16> to vector<8x32xbf16>
    %75 = arith.truncf %72 : vector<32x512xf32> to vector<32x512xbf16>
    %cst_50 = arith.constant dense<0.000000e+00> : vector<8x512xf32>
    %76 = tpu.matmul %74, %75, %cst_50 {dimension_numbers = #tpu.dot_dimension_numbers<[1], [0], [0], [1], [0, 0, 1, 1], [], []>} : vector<8x32xbf16>, vector<32x512xbf16>, vector<8x512xf32> -> vector<8x512xf32>
    %c2_51 = arith.constant 2 : index
    %c0_52 = arith.constant 0 : index
    %c0_53 = arith.constant 0 : index
    %77 = vector.load %arg4[%c2_51, %c0_52, %c0_53] : memref<30x8x1xf32, #tpu.memory_space<vmem>>, vector<1x8x1xf32>
    %78 = vector.shape_cast %77 : vector<1x8x1xf32> to vector<8x1xf32>
    %79 = vector.broadcast %78 : vector<8x1xf32> to vector<8x512xf32>
    %80 = arith.addf %76, %79 : vector<8x512xf32>
    %cst_54 = arith.constant -9.00599479 : f32
    %81 = vector.broadcast %cst_54 : f32 to vector<8x512xf32>
    %82 = arith.mulf %81, %66 : vector<8x512xf32>
    %83 = arith.addf %80, %82 : vector<8x512xf32>
    %84 = arith.addf %63, %83 : vector<8x512xf32>
    %cst_55 = arith.constant -1.665000e-02 : f32
    %85 = vector.broadcast %cst_55 : f32 to vector<8x512xf32>
    %86 = arith.mulf %85, %84 : vector<8x512xf32>
    %87 = arith.addf %0, %86 : vector<8x512xf32>
    %c3 = arith.constant 3 : index
    %c0_56 = arith.constant 0 : index
    %c0_57 = arith.constant 0 : index
    %88 = vector.load %arg2[%c3, %c0_56, %c0_57] : memref<30x32x8xbf16, #tpu.memory_space<vmem>>, vector<1x32x8xbf16>
    %89 = vector.shape_cast %88 : vector<1x32x8xbf16> to vector<32x8xbf16>
    %90 = arith.truncf %87 : vector<8x512xf32> to vector<8x512xbf16>
    %cst_58 = arith.constant dense<0.000000e+00> : vector<32x512xf32>
    %91 = tpu.matmul %89, %90, %cst_58 {dimension_numbers = #tpu.dot_dimension_numbers<[1], [0], [0], [1], [0, 0, 1, 1], [], []>} : vector<32x8xbf16>, vector<8x512xbf16>, vector<32x512xf32> -> vector<32x512xf32>
    %cst_59 = arith.constant 0.000000e+00 : f32
    %92 = vector.broadcast %cst_59 : f32 to vector<32x512xf32>
    %93 = arith.maximumf %91, %92 : vector<32x512xf32>
    %c3_60 = arith.constant 3 : index
    %c0_61 = arith.constant 0 : index
    %c0_62 = arith.constant 0 : index
    %94 = vector.load %arg3[%c3_60, %c0_61, %c0_62] : memref<30x8x32xbf16, #tpu.memory_space<vmem>>, vector<1x8x32xbf16>
    %95 = vector.shape_cast %94 : vector<1x8x32xbf16> to vector<8x32xbf16>
    %96 = arith.truncf %93 : vector<32x512xf32> to vector<32x512xbf16>
    %cst_63 = arith.constant dense<0.000000e+00> : vector<8x512xf32>
    %97 = tpu.matmul %95, %96, %cst_63 {dimension_numbers = #tpu.dot_dimension_numbers<[1], [0], [0], [1], [0, 0, 1, 1], [], []>} : vector<8x32xbf16>, vector<32x512xbf16>, vector<8x512xf32> -> vector<8x512xf32>
    %c3_64 = arith.constant 3 : index
    %c0_65 = arith.constant 0 : index
    %c0_66 = arith.constant 0 : index
    %98 = vector.load %arg4[%c3_64, %c0_65, %c0_66] : memref<30x8x1xf32, #tpu.memory_space<vmem>>, vector<1x8x1xf32>
    %99 = vector.shape_cast %98 : vector<1x8x1xf32> to vector<8x1xf32>
    %100 = vector.broadcast %99 : vector<8x1xf32> to vector<8x512xf32>
    %101 = arith.addf %97, %100 : vector<8x512xf32>
    %cst_67 = arith.constant -9.00599479 : f32
    %102 = vector.broadcast %cst_67 : f32 to vector<8x512xf32>
    %103 = arith.mulf %102, %87 : vector<8x512xf32>
    %104 = arith.addf %101, %103 : vector<8x512xf32>
    %cst_68 = arith.constant -4.995000e-02 : f32
    %105 = vector.broadcast %cst_68 : f32 to vector<8x512xf32>
    %106 = arith.mulf %105, %104 : vector<8x512xf32>
    %107 = arith.addf %87, %106 : vector<8x512xf32>
    %c4 = arith.constant 4 : index
    %c0_69 = arith.constant 0 : index
    %c0_70 = arith.constant 0 : index
    %108 = vector.load %arg2[%c4, %c0_69, %c0_70] : memref<30x32x8xbf16, #tpu.memory_space<vmem>>, vector<1x32x8xbf16>
    %109 = vector.shape_cast %108 : vector<1x32x8xbf16> to vector<32x8xbf16>
    %110 = arith.truncf %107 : vector<8x512xf32> to vector<8x512xbf16>
    %cst_71 = arith.constant dense<0.000000e+00> : vector<32x512xf32>
    %111 = tpu.matmul %109, %110, %cst_71 {dimension_numbers = #tpu.dot_dimension_numbers<[1], [0], [0], [1], [0, 0, 1, 1], [], []>} : vector<32x8xbf16>, vector<8x512xbf16>, vector<32x512xf32> -> vector<32x512xf32>
    %cst_72 = arith.constant 0.000000e+00 : f32
    %112 = vector.broadcast %cst_72 : f32 to vector<32x512xf32>
    %113 = arith.maximumf %111, %112 : vector<32x512xf32>
    %c4_73 = arith.constant 4 : index
    %c0_74 = arith.constant 0 : index
    %c0_75 = arith.constant 0 : index
    %114 = vector.load %arg3[%c4_73, %c0_74, %c0_75] : memref<30x8x32xbf16, #tpu.memory_space<vmem>>, vector<1x8x32xbf16>
    %115 = vector.shape_cast %114 : vector<1x8x32xbf16> to vector<8x32xbf16>
    %116 = arith.truncf %113 : vector<32x512xf32> to vector<32x512xbf16>
    %cst_76 = arith.constant dense<0.000000e+00> : vector<8x512xf32>
    %117 = tpu.matmul %115, %116, %cst_76 {dimension_numbers = #tpu.dot_dimension_numbers<[1], [0], [0], [1], [0, 0, 1, 1], [], []>} : vector<8x32xbf16>, vector<32x512xbf16>, vector<8x512xf32> -> vector<8x512xf32>
    %c4_77 = arith.constant 4 : index
    %c0_78 = arith.constant 0 : index
    %c0_79 = arith.constant 0 : index
    %118 = vector.load %arg4[%c4_77, %c0_78, %c0_79] : memref<30x8x1xf32, #tpu.memory_space<vmem>>, vector<1x8x1xf32>
    %119 = vector.shape_cast %118 : vector<1x8x1xf32> to vector<8x1xf32>
    %120 = vector.broadcast %119 : vector<8x1xf32> to vector<8x512xf32>
    %121 = arith.addf %117, %120 : vector<8x512xf32>
    %cst_80 = arith.constant -8.50899219 : f32
    %122 = vector.broadcast %cst_80 : f32 to vector<8x512xf32>
    %123 = arith.mulf %122, %107 : vector<8x512xf32>
    %124 = arith.addf %121, %123 : vector<8x512xf32>
    %cst_81 = arith.constant 2.000000e+00 : f32
    %125 = vector.broadcast %cst_81 : f32 to vector<8x512xf32>
    %126 = arith.mulf %125, %124 : vector<8x512xf32>
    %127 = arith.addf %104, %126 : vector<8x512xf32>
    %cst_82 = arith.constant -4.995000e-02 : f32
    %128 = vector.broadcast %cst_82 : f32 to vector<8x512xf32>
    %129 = arith.mulf %128, %124 : vector<8x512xf32>
    %130 = arith.addf %87, %129 : vector<8x512xf32>
    %c4_83 = arith.constant 4 : index
    %c0_84 = arith.constant 0 : index
    %c0_85 = arith.constant 0 : index
    %131 = vector.load %arg2[%c4_83, %c0_84, %c0_85] : memref<30x32x8xbf16, #tpu.memory_space<vmem>>, vector<1x32x8xbf16>
    %132 = vector.shape_cast %131 : vector<1x32x8xbf16> to vector<32x8xbf16>
    %133 = arith.truncf %130 : vector<8x512xf32> to vector<8x512xbf16>
    %cst_86 = arith.constant dense<0.000000e+00> : vector<32x512xf32>
    %134 = tpu.matmul %132, %133, %cst_86 {dimension_numbers = #tpu.dot_dimension_numbers<[1], [0], [0], [1], [0, 0, 1, 1], [], []>} : vector<32x8xbf16>, vector<8x512xbf16>, vector<32x512xf32> -> vector<32x512xf32>
    %cst_87 = arith.constant 0.000000e+00 : f32
    %135 = vector.broadcast %cst_87 : f32 to vector<32x512xf32>
    %136 = arith.maximumf %134, %135 : vector<32x512xf32>
    %c4_88 = arith.constant 4 : index
    %c0_89 = arith.constant 0 : index
    %c0_90 = arith.constant 0 : index
    %137 = vector.load %arg3[%c4_88, %c0_89, %c0_90] : memref<30x8x32xbf16, #tpu.memory_space<vmem>>, vector<1x8x32xbf16>
    %138 = vector.shape_cast %137 : vector<1x8x32xbf16> to vector<8x32xbf16>
    %139 = arith.truncf %136 : vector<32x512xf32> to vector<32x512xbf16>
    %cst_91 = arith.constant dense<0.000000e+00> : vector<8x512xf32>
    %140 = tpu.matmul %138, %139, %cst_91 {dimension_numbers = #tpu.dot_dimension_numbers<[1], [0], [0], [1], [0, 0, 1, 1], [], []>} : vector<8x32xbf16>, vector<32x512xbf16>, vector<8x512xf32> -> vector<8x512xf32>
    %c4_92 = arith.constant 4 : index
    %c0_93 = arith.constant 0 : index
    %c0_94 = arith.constant 0 : index
    %141 = vector.load %arg4[%c4_92, %c0_93, %c0_94] : memref<30x8x1xf32, #tpu.memory_space<vmem>>, vector<1x8x1xf32>
    %142 = vector.shape_cast %141 : vector<1x8x1xf32> to vector<8x1xf32>
    %143 = vector.broadcast %142 : vector<8x1xf32> to vector<8x512xf32>
    %144 = arith.addf %140, %143 : vector<8x512xf32>
    %cst_95 = arith.constant -8.50899219 : f32
    %145 = vector.broadcast %cst_95 : f32 to vector<8x512xf32>
    %146 = arith.mulf %145, %130 : vector<8x512xf32>
    %147 = arith.addf %144, %146 : vector<8x512xf32>
    %cst_96 = arith.constant 2.000000e+00 : f32
    %148 = vector.broadcast %cst_96 : f32 to vector<8x512xf32>
    %149 = arith.mulf %148, %147 : vector<8x512xf32>
    %150 = arith.addf %127, %149 : vector<8x512xf32>
    %cst_97 = arith.constant -0.0998999997 : f32
    %151 = vector.broadcast %cst_97 : f32 to vector<8x512xf32>
    %152 = arith.mulf %151, %147 : vector<8x512xf32>
    %153 = arith.addf %87, %152 : vector<8x512xf32>
    %c5 = arith.constant 5 : index
    %c0_98 = arith.constant 0 : index
    %c0_99 = arith.constant 0 : index
    %154 = vector.load %arg2[%c5, %c0_98, %c0_99] : memref<30x32x8xbf16, #tpu.memory_space<vmem>>, vector<1x32x8xbf16>
    %155 = vector.shape_cast %154 : vector<1x32x8xbf16> to vector<32x8xbf16>
    %156 = arith.truncf %153 : vector<8x512xf32> to vector<8x512xbf16>
    %cst_100 = arith.constant dense<0.000000e+00> : vector<32x512xf32>
    %157 = tpu.matmul %155, %156, %cst_100 {dimension_numbers = #tpu.dot_dimension_numbers<[1], [0], [0], [1], [0, 0, 1, 1], [], []>} : vector<32x8xbf16>, vector<8x512xbf16>, vector<32x512xf32> -> vector<32x512xf32>
    %cst_101 = arith.constant 0.000000e+00 : f32
    %158 = vector.broadcast %cst_101 : f32 to vector<32x512xf32>
    %159 = arith.maximumf %157, %158 : vector<32x512xf32>
    %c5_102 = arith.constant 5 : index
    %c0_103 = arith.constant 0 : index
    %c0_104 = arith.constant 0 : index
    %160 = vector.load %arg3[%c5_102, %c0_103, %c0_104] : memref<30x8x32xbf16, #tpu.memory_space<vmem>>, vector<1x8x32xbf16>
    %161 = vector.shape_cast %160 : vector<1x8x32xbf16> to vector<8x32xbf16>
    %162 = arith.truncf %159 : vector<32x512xf32> to vector<32x512xbf16>
    %cst_105 = arith.constant dense<0.000000e+00> : vector<8x512xf32>
    %163 = tpu.matmul %161, %162, %cst_105 {dimension_numbers = #tpu.dot_dimension_numbers<[1], [0], [0], [1], [0, 0, 1, 1], [], []>} : vector<8x32xbf16>, vector<32x512xbf16>, vector<8x512xf32> -> vector<8x512xf32>
    %c5_106 = arith.constant 5 : index
    %c0_107 = arith.constant 0 : index
    %c0_108 = arith.constant 0 : index
    %164 = vector.load %arg4[%c5_106, %c0_107, %c0_108] : memref<30x8x1xf32, #tpu.memory_space<vmem>>, vector<1x8x1xf32>
    %165 = vector.shape_cast %164 : vector<1x8x1xf32> to vector<8x1xf32>
    %166 = vector.broadcast %165 : vector<8x1xf32> to vector<8x512xf32>
    %167 = arith.addf %163, %166 : vector<8x512xf32>
    %cst_109 = arith.constant -8.011990e+00 : f32
    %168 = vector.broadcast %cst_109 : f32 to vector<8x512xf32>
    %169 = arith.mulf %168, %153 : vector<8x512xf32>
    %170 = arith.addf %167, %169 : vector<8x512xf32>
    %171 = arith.addf %150, %170 : vector<8x512xf32>
    %cst_110 = arith.constant -1.665000e-02 : f32
    %172 = vector.broadcast %cst_110 : f32 to vector<8x512xf32>
    %173 = arith.mulf %172, %171 : vector<8x512xf32>
    %174 = arith.addf %87, %173 : vector<8x512xf32>
    %c6 = arith.constant 6 : index
    %c0_111 = arith.constant 0 : index
    %c0_112 = arith.constant 0 : index
    %175 = vector.load %arg2[%c6, %c0_111, %c0_112] : memref<30x32x8xbf16, #tpu.memory_space<vmem>>, vector<1x32x8xbf16>
    %176 = vector.shape_cast %175 : vector<1x32x8xbf16> to vector<32x8xbf16>
    %177 = arith.truncf %174 : vector<8x512xf32> to vector<8x512xbf16>
    %cst_113 = arith.constant dense<0.000000e+00> : vector<32x512xf32>
    %178 = tpu.matmul %176, %177, %cst_113 {dimension_numbers = #tpu.dot_dimension_numbers<[1], [0], [0], [1], [0, 0, 1, 1], [], []>} : vector<32x8xbf16>, vector<8x512xbf16>, vector<32x512xf32> -> vector<32x512xf32>
    %cst_114 = arith.constant 0.000000e+00 : f32
    %179 = vector.broadcast %cst_114 : f32 to vector<32x512xf32>
    %180 = arith.maximumf %178, %179 : vector<32x512xf32>
    %c6_115 = arith.constant 6 : index
    %c0_116 = arith.constant 0 : index
    %c0_117 = arith.constant 0 : index
    %181 = vector.load %arg3[%c6_115, %c0_116, %c0_117] : memref<30x8x32xbf16, #tpu.memory_space<vmem>>, vector<1x8x32xbf16>
    %182 = vector.shape_cast %181 : vector<1x8x32xbf16> to vector<8x32xbf16>
    %183 = arith.truncf %180 : vector<32x512xf32> to vector<32x512xbf16>
    %cst_118 = arith.constant dense<0.000000e+00> : vector<8x512xf32>
    %184 = tpu.matmul %182, %183, %cst_118 {dimension_numbers = #tpu.dot_dimension_numbers<[1], [0], [0], [1], [0, 0, 1, 1], [], []>} : vector<8x32xbf16>, vector<32x512xbf16>, vector<8x512xf32> -> vector<8x512xf32>
    %c6_119 = arith.constant 6 : index
    %c0_120 = arith.constant 0 : index
    %c0_121 = arith.constant 0 : index
    %185 = vector.load %arg4[%c6_119, %c0_120, %c0_121] : memref<30x8x1xf32, #tpu.memory_space<vmem>>, vector<1x8x1xf32>
    %186 = vector.shape_cast %185 : vector<1x8x1xf32> to vector<8x1xf32>
    %187 = vector.broadcast %186 : vector<8x1xf32> to vector<8x512xf32>
    %188 = arith.addf %184, %187 : vector<8x512xf32>
    %cst_122 = arith.constant -8.011990e+00 : f32
    %189 = vector.broadcast %cst_122 : f32 to vector<8x512xf32>
    %190 = arith.mulf %189, %174 : vector<8x512xf32>
    %191 = arith.addf %188, %190 : vector<8x512xf32>
    %cst_123 = arith.constant -4.995000e-02 : f32
    %192 = vector.broadcast %cst_123 : f32 to vector<8x512xf32>
    %193 = arith.mulf %192, %191 : vector<8x512xf32>
    %194 = arith.addf %174, %193 : vector<8x512xf32>
    %c7 = arith.constant 7 : index
    %c0_124 = arith.constant 0 : index
    %c0_125 = arith.constant 0 : index
    %195 = vector.load %arg2[%c7, %c0_124, %c0_125] : memref<30x32x8xbf16, #tpu.memory_space<vmem>>, vector<1x32x8xbf16>
    %196 = vector.shape_cast %195 : vector<1x32x8xbf16> to vector<32x8xbf16>
    %197 = arith.truncf %194 : vector<8x512xf32> to vector<8x512xbf16>
    %cst_126 = arith.constant dense<0.000000e+00> : vector<32x512xf32>
    %198 = tpu.matmul %196, %197, %cst_126 {dimension_numbers = #tpu.dot_dimension_numbers<[1], [0], [0], [1], [0, 0, 1, 1], [], []>} : vector<32x8xbf16>, vector<8x512xbf16>, vector<32x512xf32> -> vector<32x512xf32>
    %cst_127 = arith.constant 0.000000e+00 : f32
    %199 = vector.broadcast %cst_127 : f32 to vector<32x512xf32>
    %200 = arith.maximumf %198, %199 : vector<32x512xf32>
    %c7_128 = arith.constant 7 : index
    %c0_129 = arith.constant 0 : index
    %c0_130 = arith.constant 0 : index
    %201 = vector.load %arg3[%c7_128, %c0_129, %c0_130] : memref<30x8x32xbf16, #tpu.memory_space<vmem>>, vector<1x8x32xbf16>
    %202 = vector.shape_cast %201 : vector<1x8x32xbf16> to vector<8x32xbf16>
    %203 = arith.truncf %200 : vector<32x512xf32> to vector<32x512xbf16>
    %cst_131 = arith.constant dense<0.000000e+00> : vector<8x512xf32>
    %204 = tpu.matmul %202, %203, %cst_131 {dimension_numbers = #tpu.dot_dimension_numbers<[1], [0], [0], [1], [0, 0, 1, 1], [], []>} : vector<8x32xbf16>, vector<32x512xbf16>, vector<8x512xf32> -> vector<8x512xf32>
    %c7_132 = arith.constant 7 : index
    %c0_133 = arith.constant 0 : index
    %c0_134 = arith.constant 0 : index
    %205 = vector.load %arg4[%c7_132, %c0_133, %c0_134] : memref<30x8x1xf32, #tpu.memory_space<vmem>>, vector<1x8x1xf32>
    %206 = vector.shape_cast %205 : vector<1x8x1xf32> to vector<8x1xf32>
    %207 = vector.broadcast %206 : vector<8x1xf32> to vector<8x512xf32>
    %208 = arith.addf %204, %207 : vector<8x512xf32>
    %cst_135 = arith.constant -7.51498747 : f32
    %209 = vector.broadcast %cst_135 : f32 to vector<8x512xf32>
    %210 = arith.mulf %209, %194 : vector<8x512xf32>
    %211 = arith.addf %208, %210 : vector<8x512xf32>
    %cst_136 = arith.constant 2.000000e+00 : f32
    %212 = vector.broadcast %cst_136 : f32 to vector<8x512xf32>
    %213 = arith.mulf %212, %211 : vector<8x512xf32>
    %214 = arith.addf %191, %213 : vector<8x512xf32>
    %cst_137 = arith.constant -4.995000e-02 : f32
    %215 = vector.broadcast %cst_137 : f32 to vector<8x512xf32>
    %216 = arith.mulf %215, %211 : vector<8x512xf32>
    %217 = arith.addf %174, %216 : vector<8x512xf32>
    %c7_138 = arith.constant 7 : index
    %c0_139 = arith.constant 0 : index
    %c0_140 = arith.constant 0 : index
    %218 = vector.load %arg2[%c7_138, %c0_139, %c0_140] : memref<30x32x8xbf16, #tpu.memory_space<vmem>>, vector<1x32x8xbf16>
    %219 = vector.shape_cast %218 : vector<1x32x8xbf16> to vector<32x8xbf16>
    %220 = arith.truncf %217 : vector<8x512xf32> to vector<8x512xbf16>
    %cst_141 = arith.constant dense<0.000000e+00> : vector<32x512xf32>
    %221 = tpu.matmul %219, %220, %cst_141 {dimension_numbers = #tpu.dot_dimension_numbers<[1], [0], [0], [1], [0, 0, 1, 1], [], []>} : vector<32x8xbf16>, vector<8x512xbf16>, vector<32x512xf32> -> vector<32x512xf32>
    %cst_142 = arith.constant 0.000000e+00 : f32
    %222 = vector.broadcast %cst_142 : f32 to vector<32x512xf32>
    %223 = arith.maximumf %221, %222 : vector<32x512xf32>
    %c7_143 = arith.constant 7 : index
    %c0_144 = arith.constant 0 : index
    %c0_145 = arith.constant 0 : index
    %224 = vector.load %arg3[%c7_143, %c0_144, %c0_145] : memref<30x8x32xbf16, #tpu.memory_space<vmem>>, vector<1x8x32xbf16>
    %225 = vector.shape_cast %224 : vector<1x8x32xbf16> to vector<8x32xbf16>
    %226 = arith.truncf %223 : vector<32x512xf32> to vector<32x512xbf16>
    %cst_146 = arith.constant dense<0.000000e+00> : vector<8x512xf32>
    %227 = tpu.matmul %225, %226, %cst_146 {dimension_numbers = #tpu.dot_dimension_numbers<[1], [0], [0], [1], [0, 0, 1, 1], [], []>} : vector<8x32xbf16>, vector<32x512xbf16>, vector<8x512xf32> -> vector<8x512xf32>
    %c7_147 = arith.constant 7 : index
    %c0_148 = arith.constant 0 : index
    %c0_149 = arith.constant 0 : index
    %228 = vector.load %arg4[%c7_147, %c0_148, %c0_149] : memref<30x8x1xf32, #tpu.memory_space<vmem>>, vector<1x8x1xf32>
    %229 = vector.shape_cast %228 : vector<1x8x1xf32> to vector<8x1xf32>
    %230 = vector.broadcast %229 : vector<8x1xf32> to vector<8x512xf32>
    %231 = arith.addf %227, %230 : vector<8x512xf32>
    %cst_150 = arith.constant -7.51498747 : f32
    %232 = vector.broadcast %cst_150 : f32 to vector<8x512xf32>
    %233 = arith.mulf %232, %217 : vector<8x512xf32>
    %234 = arith.addf %231, %233 : vector<8x512xf32>
    %cst_151 = arith.constant 2.000000e+00 : f32
    %235 = vector.broadcast %cst_151 : f32 to vector<8x512xf32>
    %236 = arith.mulf %235, %234 : vector<8x512xf32>
    %237 = arith.addf %214, %236 : vector<8x512xf32>
    %cst_152 = arith.constant -0.0998999997 : f32
    %238 = vector.broadcast %cst_152 : f32 to vector<8x512xf32>
    %239 = arith.mulf %238, %234 : vector<8x512xf32>
    %240 = arith.addf %174, %239 : vector<8x512xf32>
    %c8 = arith.constant 8 : index
    %c0_153 = arith.constant 0 : index
    %c0_154 = arith.constant 0 : index
    %241 = vector.load %arg2[%c8, %c0_153, %c0_154] : memref<30x32x8xbf16, #tpu.memory_space<vmem>>, vector<1x32x8xbf16>
    %242 = vector.shape_cast %241 : vector<1x32x8xbf16> to vector<32x8xbf16>
    %243 = arith.truncf %240 : vector<8x512xf32> to vector<8x512xbf16>
    %cst_155 = arith.constant dense<0.000000e+00> : vector<32x512xf32>
    %244 = tpu.matmul %242, %243, %cst_155 {dimension_numbers = #tpu.dot_dimension_numbers<[1], [0], [0], [1], [0, 0, 1, 1], [], []>} : vector<32x8xbf16>, vector<8x512xbf16>, vector<32x512xf32> -> vector<32x512xf32>
    %cst_156 = arith.constant 0.000000e+00 : f32
    %245 = vector.broadcast %cst_156 : f32 to vector<32x512xf32>
    %246 = arith.maximumf %244, %245 : vector<32x512xf32>
    %c8_157 = arith.constant 8 : index
    %c0_158 = arith.constant 0 : index
    %c0_159 = arith.constant 0 : index
    %247 = vector.load %arg3[%c8_157, %c0_158, %c0_159] : memref<30x8x32xbf16, #tpu.memory_space<vmem>>, vector<1x8x32xbf16>
    %248 = vector.shape_cast %247 : vector<1x8x32xbf16> to vector<8x32xbf16>
    %249 = arith.truncf %246 : vector<32x512xf32> to vector<32x512xbf16>
    %cst_160 = arith.constant dense<0.000000e+00> : vector<8x512xf32>
    %250 = tpu.matmul %248, %249, %cst_160 {dimension_numbers = #tpu.dot_dimension_numbers<[1], [0], [0], [1], [0, 0, 1, 1], [], []>} : vector<8x32xbf16>, vector<32x512xbf16>, vector<8x512xf32> -> vector<8x512xf32>
    %c8_161 = arith.constant 8 : index
    %c0_162 = arith.constant 0 : index
    %c0_163 = arith.constant 0 : index
    %251 = vector.load %arg4[%c8_161, %c0_162, %c0_163] : memref<30x8x1xf32, #tpu.memory_space<vmem>>, vector<1x8x1xf32>
    %252 = vector.shape_cast %251 : vector<1x8x1xf32> to vector<8x1xf32>
    %253 = vector.broadcast %252 : vector<8x1xf32> to vector<8x512xf32>
    %254 = arith.addf %250, %253 : vector<8x512xf32>
    %cst_164 = arith.constant -7.01798487 : f32
    %255 = vector.broadcast %cst_164 : f32 to vector<8x512xf32>
    %256 = arith.mulf %255, %240 : vector<8x512xf32>
    %257 = arith.addf %254, %256 : vector<8x512xf32>
    %258 = arith.addf %237, %257 : vector<8x512xf32>
    %cst_165 = arith.constant -1.665000e-02 : f32
    %259 = vector.broadcast %cst_165 : f32 to vector<8x512xf32>
    %260 = arith.mulf %259, %258 : vector<8x512xf32>
    %261 = arith.addf %174, %260 : vector<8x512xf32>
    %c9 = arith.constant 9 : index
    %c0_166 = arith.constant 0 : index
    %c0_167 = arith.constant 0 : index
    %262 = vector.load %arg2[%c9, %c0_166, %c0_167] : memref<30x32x8xbf16, #tpu.memory_space<vmem>>, vector<1x32x8xbf16>
    %263 = vector.shape_cast %262 : vector<1x32x8xbf16> to vector<32x8xbf16>
    %264 = arith.truncf %261 : vector<8x512xf32> to vector<8x512xbf16>
    %cst_168 = arith.constant dense<0.000000e+00> : vector<32x512xf32>
    %265 = tpu.matmul %263, %264, %cst_168 {dimension_numbers = #tpu.dot_dimension_numbers<[1], [0], [0], [1], [0, 0, 1, 1], [], []>} : vector<32x8xbf16>, vector<8x512xbf16>, vector<32x512xf32> -> vector<32x512xf32>
    %cst_169 = arith.constant 0.000000e+00 : f32
    %266 = vector.broadcast %cst_169 : f32 to vector<32x512xf32>
    %267 = arith.maximumf %265, %266 : vector<32x512xf32>
    %c9_170 = arith.constant 9 : index
    %c0_171 = arith.constant 0 : index
    %c0_172 = arith.constant 0 : index
    %268 = vector.load %arg3[%c9_170, %c0_171, %c0_172] : memref<30x8x32xbf16, #tpu.memory_space<vmem>>, vector<1x8x32xbf16>
    %269 = vector.shape_cast %268 : vector<1x8x32xbf16> to vector<8x32xbf16>
    %270 = arith.truncf %267 : vector<32x512xf32> to vector<32x512xbf16>
    %cst_173 = arith.constant dense<0.000000e+00> : vector<8x512xf32>
    %271 = tpu.matmul %269, %270, %cst_173 {dimension_numbers = #tpu.dot_dimension_numbers<[1], [0], [0], [1], [0, 0, 1, 1], [], []>} : vector<8x32xbf16>, vector<32x512xbf16>, vector<8x512xf32> -> vector<8x512xf32>
    %c9_174 = arith.constant 9 : index
    %c0_175 = arith.constant 0 : index
    %c0_176 = arith.constant 0 : index
    %272 = vector.load %arg4[%c9_174, %c0_175, %c0_176] : memref<30x8x1xf32, #tpu.memory_space<vmem>>, vector<1x8x1xf32>
    %273 = vector.shape_cast %272 : vector<1x8x1xf32> to vector<8x1xf32>
    %274 = vector.broadcast %273 : vector<8x1xf32> to vector<8x512xf32>
    %275 = arith.addf %271, %274 : vector<8x512xf32>
    %cst_177 = arith.constant -7.01798487 : f32
    %276 = vector.broadcast %cst_177 : f32 to vector<8x512xf32>
    %277 = arith.mulf %276, %261 : vector<8x512xf32>
    %278 = arith.addf %275, %277 : vector<8x512xf32>
    %cst_178 = arith.constant -4.995000e-02 : f32
    %279 = vector.broadcast %cst_178 : f32 to vector<8x512xf32>
    %280 = arith.mulf %279, %278 : vector<8x512xf32>
    %281 = arith.addf %261, %280 : vector<8x512xf32>
    %c10 = arith.constant 10 : index
    %c0_179 = arith.constant 0 : index
    %c0_180 = arith.constant 0 : index
    %282 = vector.load %arg2[%c10, %c0_179, %c0_180] : memref<30x32x8xbf16, #tpu.memory_space<vmem>>, vector<1x32x8xbf16>
    %283 = vector.shape_cast %282 : vector<1x32x8xbf16> to vector<32x8xbf16>
    %284 = arith.truncf %281 : vector<8x512xf32> to vector<8x512xbf16>
    %cst_181 = arith.constant dense<0.000000e+00> : vector<32x512xf32>
    %285 = tpu.matmul %283, %284, %cst_181 {dimension_numbers = #tpu.dot_dimension_numbers<[1], [0], [0], [1], [0, 0, 1, 1], [], []>} : vector<32x8xbf16>, vector<8x512xbf16>, vector<32x512xf32> -> vector<32x512xf32>
    %cst_182 = arith.constant 0.000000e+00 : f32
    %286 = vector.broadcast %cst_182 : f32 to vector<32x512xf32>
    %287 = arith.maximumf %285, %286 : vector<32x512xf32>
    %c10_183 = arith.constant 10 : index
    %c0_184 = arith.constant 0 : index
    %c0_185 = arith.constant 0 : index
    %288 = vector.load %arg3[%c10_183, %c0_184, %c0_185] : memref<30x8x32xbf16, #tpu.memory_space<vmem>>, vector<1x8x32xbf16>
    %289 = vector.shape_cast %288 : vector<1x8x32xbf16> to vector<8x32xbf16>
    %290 = arith.truncf %287 : vector<32x512xf32> to vector<32x512xbf16>
    %cst_186 = arith.constant dense<0.000000e+00> : vector<8x512xf32>
    %291 = tpu.matmul %289, %290, %cst_186 {dimension_numbers = #tpu.dot_dimension_numbers<[1], [0], [0], [1], [0, 0, 1, 1], [], []>} : vector<8x32xbf16>, vector<32x512xbf16>, vector<8x512xf32> -> vector<8x512xf32>
    %c10_187 = arith.constant 10 : index
    %c0_188 = arith.constant 0 : index
    %c0_189 = arith.constant 0 : index
    %292 = vector.load %arg4[%c10_187, %c0_188, %c0_189] : memref<30x8x1xf32, #tpu.memory_space<vmem>>, vector<1x8x1xf32>
    %293 = vector.shape_cast %292 : vector<1x8x1xf32> to vector<8x1xf32>
    %294 = vector.broadcast %293 : vector<8x1xf32> to vector<8x512xf32>
    %295 = arith.addf %291, %294 : vector<8x512xf32>
    %cst_190 = arith.constant -6.52098227 : f32
    %296 = vector.broadcast %cst_190 : f32 to vector<8x512xf32>
    %297 = arith.mulf %296, %281 : vector<8x512xf32>
    %298 = arith.addf %295, %297 : vector<8x512xf32>
    %cst_191 = arith.constant 2.000000e+00 : f32
    %299 = vector.broadcast %cst_191 : f32 to vector<8x512xf32>
    %300 = arith.mulf %299, %298 : vector<8x512xf32>
    %301 = arith.addf %278, %300 : vector<8x512xf32>
    %cst_192 = arith.constant -4.995000e-02 : f32
    %302 = vector.broadcast %cst_192 : f32 to vector<8x512xf32>
    %303 = arith.mulf %302, %298 : vector<8x512xf32>
    %304 = arith.addf %261, %303 : vector<8x512xf32>
    %c10_193 = arith.constant 10 : index
    %c0_194 = arith.constant 0 : index
    %c0_195 = arith.constant 0 : index
    %305 = vector.load %arg2[%c10_193, %c0_194, %c0_195] : memref<30x32x8xbf16, #tpu.memory_space<vmem>>, vector<1x32x8xbf16>
    %306 = vector.shape_cast %305 : vector<1x32x8xbf16> to vector<32x8xbf16>
    %307 = arith.truncf %304 : vector<8x512xf32> to vector<8x512xbf16>
    %cst_196 = arith.constant dense<0.000000e+00> : vector<32x512xf32>
    %308 = tpu.matmul %306, %307, %cst_196 {dimension_numbers = #tpu.dot_dimension_numbers<[1], [0], [0], [1], [0, 0, 1, 1], [], []>} : vector<32x8xbf16>, vector<8x512xbf16>, vector<32x512xf32> -> vector<32x512xf32>
    %cst_197 = arith.constant 0.000000e+00 : f32
    %309 = vector.broadcast %cst_197 : f32 to vector<32x512xf32>
    %310 = arith.maximumf %308, %309 : vector<32x512xf32>
    %c10_198 = arith.constant 10 : index
    %c0_199 = arith.constant 0 : index
    %c0_200 = arith.constant 0 : index
    %311 = vector.load %arg3[%c10_198, %c0_199, %c0_200] : memref<30x8x32xbf16, #tpu.memory_space<vmem>>, vector<1x8x32xbf16>
    %312 = vector.shape_cast %311 : vector<1x8x32xbf16> to vector<8x32xbf16>
    %313 = arith.truncf %310 : vector<32x512xf32> to vector<32x512xbf16>
    %cst_201 = arith.constant dense<0.000000e+00> : vector<8x512xf32>
    %314 = tpu.matmul %312, %313, %cst_201 {dimension_numbers = #tpu.dot_dimension_numbers<[1], [0], [0], [1], [0, 0, 1, 1], [], []>} : vector<8x32xbf16>, vector<32x512xbf16>, vector<8x512xf32> -> vector<8x512xf32>
    %c10_202 = arith.constant 10 : index
    %c0_203 = arith.constant 0 : index
    %c0_204 = arith.constant 0 : index
    %315 = vector.load %arg4[%c10_202, %c0_203, %c0_204] : memref<30x8x1xf32, #tpu.memory_space<vmem>>, vector<1x8x1xf32>
    %316 = vector.shape_cast %315 : vector<1x8x1xf32> to vector<8x1xf32>
    %317 = vector.broadcast %316 : vector<8x1xf32> to vector<8x512xf32>
    %318 = arith.addf %314, %317 : vector<8x512xf32>
    %cst_205 = arith.constant -6.52098227 : f32
    %319 = vector.broadcast %cst_205 : f32 to vector<8x512xf32>
    %320 = arith.mulf %319, %304 : vector<8x512xf32>
    %321 = arith.addf %318, %320 : vector<8x512xf32>
    %cst_206 = arith.constant 2.000000e+00 : f32
    %322 = vector.broadcast %cst_206 : f32 to vector<8x512xf32>
    %323 = arith.mulf %322, %321 : vector<8x512xf32>
    %324 = arith.addf %301, %323 : vector<8x512xf32>
    %cst_207 = arith.constant -0.0998999997 : f32
    %325 = vector.broadcast %cst_207 : f32 to vector<8x512xf32>
    %326 = arith.mulf %325, %321 : vector<8x512xf32>
    %327 = arith.addf %261, %326 : vector<8x512xf32>
    %c11 = arith.constant 11 : index
    %c0_208 = arith.constant 0 : index
    %c0_209 = arith.constant 0 : index
    %328 = vector.load %arg2[%c11, %c0_208, %c0_209] : memref<30x32x8xbf16, #tpu.memory_space<vmem>>, vector<1x32x8xbf16>
    %329 = vector.shape_cast %328 : vector<1x32x8xbf16> to vector<32x8xbf16>
    %330 = arith.truncf %327 : vector<8x512xf32> to vector<8x512xbf16>
    %cst_210 = arith.constant dense<0.000000e+00> : vector<32x512xf32>
    %331 = tpu.matmul %329, %330, %cst_210 {dimension_numbers = #tpu.dot_dimension_numbers<[1], [0], [0], [1], [0, 0, 1, 1], [], []>} : vector<32x8xbf16>, vector<8x512xbf16>, vector<32x512xf32> -> vector<32x512xf32>
    %cst_211 = arith.constant 0.000000e+00 : f32
    %332 = vector.broadcast %cst_211 : f32 to vector<32x512xf32>
    %333 = arith.maximumf %331, %332 : vector<32x512xf32>
    %c11_212 = arith.constant 11 : index
    %c0_213 = arith.constant 0 : index
    %c0_214 = arith.constant 0 : index
    %334 = vector.load %arg3[%c11_212, %c0_213, %c0_214] : memref<30x8x32xbf16, #tpu.memory_space<vmem>>, vector<1x8x32xbf16>
    %335 = vector.shape_cast %334 : vector<1x8x32xbf16> to vector<8x32xbf16>
    %336 = arith.truncf %333 : vector<32x512xf32> to vector<32x512xbf16>
    %cst_215 = arith.constant dense<0.000000e+00> : vector<8x512xf32>
    %337 = tpu.matmul %335, %336, %cst_215 {dimension_numbers = #tpu.dot_dimension_numbers<[1], [0], [0], [1], [0, 0, 1, 1], [], []>} : vector<8x32xbf16>, vector<32x512xbf16>, vector<8x512xf32> -> vector<8x512xf32>
    %c11_216 = arith.constant 11 : index
    %c0_217 = arith.constant 0 : index
    %c0_218 = arith.constant 0 : index
    %338 = vector.load %arg4[%c11_216, %c0_217, %c0_218] : memref<30x8x1xf32, #tpu.memory_space<vmem>>, vector<1x8x1xf32>
    %339 = vector.shape_cast %338 : vector<1x8x1xf32> to vector<8x1xf32>
    %340 = vector.broadcast %339 : vector<8x1xf32> to vector<8x512xf32>
    %341 = arith.addf %337, %340 : vector<8x512xf32>
    %cst_219 = arith.constant -6.023980e+00 : f32
    %342 = vector.broadcast %cst_219 : f32 to vector<8x512xf32>
    %343 = arith.mulf %342, %327 : vector<8x512xf32>
    %344 = arith.addf %341, %343 : vector<8x512xf32>
    %345 = arith.addf %324, %344 : vector<8x512xf32>
    %cst_220 = arith.constant -1.665000e-02 : f32
    %346 = vector.broadcast %cst_220 : f32 to vector<8x512xf32>
    %347 = arith.mulf %346, %345 : vector<8x512xf32>
    %348 = arith.addf %261, %347 : vector<8x512xf32>
    %c12 = arith.constant 12 : index
    %c0_221 = arith.constant 0 : index
    %c0_222 = arith.constant 0 : index
    %349 = vector.load %arg2[%c12, %c0_221, %c0_222] : memref<30x32x8xbf16, #tpu.memory_space<vmem>>, vector<1x32x8xbf16>
    %350 = vector.shape_cast %349 : vector<1x32x8xbf16> to vector<32x8xbf16>
    %351 = arith.truncf %348 : vector<8x512xf32> to vector<8x512xbf16>
    %cst_223 = arith.constant dense<0.000000e+00> : vector<32x512xf32>
    %352 = tpu.matmul %350, %351, %cst_223 {dimension_numbers = #tpu.dot_dimension_numbers<[1], [0], [0], [1], [0, 0, 1, 1], [], []>} : vector<32x8xbf16>, vector<8x512xbf16>, vector<32x512xf32> -> vector<32x512xf32>
    %cst_224 = arith.constant 0.000000e+00 : f32
    %353 = vector.broadcast %cst_224 : f32 to vector<32x512xf32>
    %354 = arith.maximumf %352, %353 : vector<32x512xf32>
    %c12_225 = arith.constant 12 : index
    %c0_226 = arith.constant 0 : index
    %c0_227 = arith.constant 0 : index
    %355 = vector.load %arg3[%c12_225, %c0_226, %c0_227] : memref<30x8x32xbf16, #tpu.memory_space<vmem>>, vector<1x8x32xbf16>
    %356 = vector.shape_cast %355 : vector<1x8x32xbf16> to vector<8x32xbf16>
    %357 = arith.truncf %354 : vector<32x512xf32> to vector<32x512xbf16>
    %cst_228 = arith.constant dense<0.000000e+00> : vector<8x512xf32>
    %358 = tpu.matmul %356, %357, %cst_228 {dimension_numbers = #tpu.dot_dimension_numbers<[1], [0], [0], [1], [0, 0, 1, 1], [], []>} : vector<8x32xbf16>, vector<32x512xbf16>, vector<8x512xf32> -> vector<8x512xf32>
    %c12_229 = arith.constant 12 : index
    %c0_230 = arith.constant 0 : index
    %c0_231 = arith.constant 0 : index
    %359 = vector.load %arg4[%c12_229, %c0_230, %c0_231] : memref<30x8x1xf32, #tpu.memory_space<vmem>>, vector<1x8x1xf32>
    %360 = vector.shape_cast %359 : vector<1x8x1xf32> to vector<8x1xf32>
    %361 = vector.broadcast %360 : vector<8x1xf32> to vector<8x512xf32>
    %362 = arith.addf %358, %361 : vector<8x512xf32>
    %cst_232 = arith.constant -6.023980e+00 : f32
    %363 = vector.broadcast %cst_232 : f32 to vector<8x512xf32>
    %364 = arith.mulf %363, %348 : vector<8x512xf32>
    %365 = arith.addf %362, %364 : vector<8x512xf32>
    %cst_233 = arith.constant -4.995000e-02 : f32
    %366 = vector.broadcast %cst_233 : f32 to vector<8x512xf32>
    %367 = arith.mulf %366, %365 : vector<8x512xf32>
    %368 = arith.addf %348, %367 : vector<8x512xf32>
    %c13 = arith.constant 13 : index
    %c0_234 = arith.constant 0 : index
    %c0_235 = arith.constant 0 : index
    %369 = vector.load %arg2[%c13, %c0_234, %c0_235] : memref<30x32x8xbf16, #tpu.memory_space<vmem>>, vector<1x32x8xbf16>
    %370 = vector.shape_cast %369 : vector<1x32x8xbf16> to vector<32x8xbf16>
    %371 = arith.truncf %368 : vector<8x512xf32> to vector<8x512xbf16>
    %cst_236 = arith.constant dense<0.000000e+00> : vector<32x512xf32>
    %372 = tpu.matmul %370, %371, %cst_236 {dimension_numbers = #tpu.dot_dimension_numbers<[1], [0], [0], [1], [0, 0, 1, 1], [], []>} : vector<32x8xbf16>, vector<8x512xbf16>, vector<32x512xf32> -> vector<32x512xf32>
    %cst_237 = arith.constant 0.000000e+00 : f32
    %373 = vector.broadcast %cst_237 : f32 to vector<32x512xf32>
    %374 = arith.maximumf %372, %373 : vector<32x512xf32>
    %c13_238 = arith.constant 13 : index
    %c0_239 = arith.constant 0 : index
    %c0_240 = arith.constant 0 : index
    %375 = vector.load %arg3[%c13_238, %c0_239, %c0_240] : memref<30x8x32xbf16, #tpu.memory_space<vmem>>, vector<1x8x32xbf16>
    %376 = vector.shape_cast %375 : vector<1x8x32xbf16> to vector<8x32xbf16>
    %377 = arith.truncf %374 : vector<32x512xf32> to vector<32x512xbf16>
    %cst_241 = arith.constant dense<0.000000e+00> : vector<8x512xf32>
    %378 = tpu.matmul %376, %377, %cst_241 {dimension_numbers = #tpu.dot_dimension_numbers<[1], [0], [0], [1], [0, 0, 1, 1], [], []>} : vector<8x32xbf16>, vector<32x512xbf16>, vector<8x512xf32> -> vector<8x512xf32>
    %c13_242 = arith.constant 13 : index
    %c0_243 = arith.constant 0 : index
    %c0_244 = arith.constant 0 : index
    %379 = vector.load %arg4[%c13_242, %c0_243, %c0_244] : memref<30x8x1xf32, #tpu.memory_space<vmem>>, vector<1x8x1xf32>
    %380 = vector.shape_cast %379 : vector<1x8x1xf32> to vector<8x1xf32>
    %381 = vector.broadcast %380 : vector<8x1xf32> to vector<8x512xf32>
    %382 = arith.addf %378, %381 : vector<8x512xf32>
    %cst_245 = arith.constant -5.52697754 : f32
    %383 = vector.broadcast %cst_245 : f32 to vector<8x512xf32>
    %384 = arith.mulf %383, %368 : vector<8x512xf32>
    %385 = arith.addf %382, %384 : vector<8x512xf32>
    %cst_246 = arith.constant 2.000000e+00 : f32
    %386 = vector.broadcast %cst_246 : f32 to vector<8x512xf32>
    %387 = arith.mulf %386, %385 : vector<8x512xf32>
    %388 = arith.addf %365, %387 : vector<8x512xf32>
    %cst_247 = arith.constant -4.995000e-02 : f32
    %389 = vector.broadcast %cst_247 : f32 to vector<8x512xf32>
    %390 = arith.mulf %389, %385 : vector<8x512xf32>
    %391 = arith.addf %348, %390 : vector<8x512xf32>
    %c13_248 = arith.constant 13 : index
    %c0_249 = arith.constant 0 : index
    %c0_250 = arith.constant 0 : index
    %392 = vector.load %arg2[%c13_248, %c0_249, %c0_250] : memref<30x32x8xbf16, #tpu.memory_space<vmem>>, vector<1x32x8xbf16>
    %393 = vector.shape_cast %392 : vector<1x32x8xbf16> to vector<32x8xbf16>
    %394 = arith.truncf %391 : vector<8x512xf32> to vector<8x512xbf16>
    %cst_251 = arith.constant dense<0.000000e+00> : vector<32x512xf32>
    %395 = tpu.matmul %393, %394, %cst_251 {dimension_numbers = #tpu.dot_dimension_numbers<[1], [0], [0], [1], [0, 0, 1, 1], [], []>} : vector<32x8xbf16>, vector<8x512xbf16>, vector<32x512xf32> -> vector<32x512xf32>
    %cst_252 = arith.constant 0.000000e+00 : f32
    %396 = vector.broadcast %cst_252 : f32 to vector<32x512xf32>
    %397 = arith.maximumf %395, %396 : vector<32x512xf32>
    %c13_253 = arith.constant 13 : index
    %c0_254 = arith.constant 0 : index
    %c0_255 = arith.constant 0 : index
    %398 = vector.load %arg3[%c13_253, %c0_254, %c0_255] : memref<30x8x32xbf16, #tpu.memory_space<vmem>>, vector<1x8x32xbf16>
    %399 = vector.shape_cast %398 : vector<1x8x32xbf16> to vector<8x32xbf16>
    %400 = arith.truncf %397 : vector<32x512xf32> to vector<32x512xbf16>
    %cst_256 = arith.constant dense<0.000000e+00> : vector<8x512xf32>
    %401 = tpu.matmul %399, %400, %cst_256 {dimension_numbers = #tpu.dot_dimension_numbers<[1], [0], [0], [1], [0, 0, 1, 1], [], []>} : vector<8x32xbf16>, vector<32x512xbf16>, vector<8x512xf32> -> vector<8x512xf32>
    %c13_257 = arith.constant 13 : index
    %c0_258 = arith.constant 0 : index
    %c0_259 = arith.constant 0 : index
    %402 = vector.load %arg4[%c13_257, %c0_258, %c0_259] : memref<30x8x1xf32, #tpu.memory_space<vmem>>, vector<1x8x1xf32>
    %403 = vector.shape_cast %402 : vector<1x8x1xf32> to vector<8x1xf32>
    %404 = vector.broadcast %403 : vector<8x1xf32> to vector<8x512xf32>
    %405 = arith.addf %401, %404 : vector<8x512xf32>
    %cst_260 = arith.constant -5.52697754 : f32
    %406 = vector.broadcast %cst_260 : f32 to vector<8x512xf32>
    %407 = arith.mulf %406, %391 : vector<8x512xf32>
    %408 = arith.addf %405, %407 : vector<8x512xf32>
    %cst_261 = arith.constant 2.000000e+00 : f32
    %409 = vector.broadcast %cst_261 : f32 to vector<8x512xf32>
    %410 = arith.mulf %409, %408 : vector<8x512xf32>
    %411 = arith.addf %388, %410 : vector<8x512xf32>
    %cst_262 = arith.constant -0.0998999997 : f32
    %412 = vector.broadcast %cst_262 : f32 to vector<8x512xf32>
    %413 = arith.mulf %412, %408 : vector<8x512xf32>
    %414 = arith.addf %348, %413 : vector<8x512xf32>
    %c14 = arith.constant 14 : index
    %c0_263 = arith.constant 0 : index
    %c0_264 = arith.constant 0 : index
    %415 = vector.load %arg2[%c14, %c0_263, %c0_264] : memref<30x32x8xbf16, #tpu.memory_space<vmem>>, vector<1x32x8xbf16>
    %416 = vector.shape_cast %415 : vector<1x32x8xbf16> to vector<32x8xbf16>
    %417 = arith.truncf %414 : vector<8x512xf32> to vector<8x512xbf16>
    %cst_265 = arith.constant dense<0.000000e+00> : vector<32x512xf32>
    %418 = tpu.matmul %416, %417, %cst_265 {dimension_numbers = #tpu.dot_dimension_numbers<[1], [0], [0], [1], [0, 0, 1, 1], [], []>} : vector<32x8xbf16>, vector<8x512xbf16>, vector<32x512xf32> -> vector<32x512xf32>
    %cst_266 = arith.constant 0.000000e+00 : f32
    %419 = vector.broadcast %cst_266 : f32 to vector<32x512xf32>
    %420 = arith.maximumf %418, %419 : vector<32x512xf32>
    %c14_267 = arith.constant 14 : index
    %c0_268 = arith.constant 0 : index
    %c0_269 = arith.constant 0 : index
    %421 = vector.load %arg3[%c14_267, %c0_268, %c0_269] : memref<30x8x32xbf16, #tpu.memory_space<vmem>>, vector<1x8x32xbf16>
    %422 = vector.shape_cast %421 : vector<1x8x32xbf16> to vector<8x32xbf16>
    %423 = arith.truncf %420 : vector<32x512xf32> to vector<32x512xbf16>
    %cst_270 = arith.constant dense<0.000000e+00> : vector<8x512xf32>
    %424 = tpu.matmul %422, %423, %cst_270 {dimension_numbers = #tpu.dot_dimension_numbers<[1], [0], [0], [1], [0, 0, 1, 1], [], []>} : vector<8x32xbf16>, vector<32x512xbf16>, vector<8x512xf32> -> vector<8x512xf32>
    %c14_271 = arith.constant 14 : index
    %c0_272 = arith.constant 0 : index
    %c0_273 = arith.constant 0 : index
    %425 = vector.load %arg4[%c14_271, %c0_272, %c0_273] : memref<30x8x1xf32, #tpu.memory_space<vmem>>, vector<1x8x1xf32>
    %426 = vector.shape_cast %425 : vector<1x8x1xf32> to vector<8x1xf32>
    %427 = vector.broadcast %426 : vector<8x1xf32> to vector<8x512xf32>
    %428 = arith.addf %424, %427 : vector<8x512xf32>
    %cst_274 = arith.constant -5.02997494 : f32
    %429 = vector.broadcast %cst_274 : f32 to vector<8x512xf32>
    %430 = arith.mulf %429, %414 : vector<8x512xf32>
    %431 = arith.addf %428, %430 : vector<8x512xf32>
    %432 = arith.addf %411, %431 : vector<8x512xf32>
    %cst_275 = arith.constant -1.665000e-02 : f32
    %433 = vector.broadcast %cst_275 : f32 to vector<8x512xf32>
    %434 = arith.mulf %433, %432 : vector<8x512xf32>
    %435 = arith.addf %348, %434 : vector<8x512xf32>
    %c15 = arith.constant 15 : index
    %c0_276 = arith.constant 0 : index
    %c0_277 = arith.constant 0 : index
    %436 = vector.load %arg2[%c15, %c0_276, %c0_277] : memref<30x32x8xbf16, #tpu.memory_space<vmem>>, vector<1x32x8xbf16>
    %437 = vector.shape_cast %436 : vector<1x32x8xbf16> to vector<32x8xbf16>
    %438 = arith.truncf %435 : vector<8x512xf32> to vector<8x512xbf16>
    %cst_278 = arith.constant dense<0.000000e+00> : vector<32x512xf32>
    %439 = tpu.matmul %437, %438, %cst_278 {dimension_numbers = #tpu.dot_dimension_numbers<[1], [0], [0], [1], [0, 0, 1, 1], [], []>} : vector<32x8xbf16>, vector<8x512xbf16>, vector<32x512xf32> -> vector<32x512xf32>
    %cst_279 = arith.constant 0.000000e+00 : f32
    %440 = vector.broadcast %cst_279 : f32 to vector<32x512xf32>
    %441 = arith.maximumf %439, %440 : vector<32x512xf32>
    %c15_280 = arith.constant 15 : index
    %c0_281 = arith.constant 0 : index
    %c0_282 = arith.constant 0 : index
    %442 = vector.load %arg3[%c15_280, %c0_281, %c0_282] : memref<30x8x32xbf16, #tpu.memory_space<vmem>>, vector<1x8x32xbf16>
    %443 = vector.shape_cast %442 : vector<1x8x32xbf16> to vector<8x32xbf16>
    %444 = arith.truncf %441 : vector<32x512xf32> to vector<32x512xbf16>
    %cst_283 = arith.constant dense<0.000000e+00> : vector<8x512xf32>
    %445 = tpu.matmul %443, %444, %cst_283 {dimension_numbers = #tpu.dot_dimension_numbers<[1], [0], [0], [1], [0, 0, 1, 1], [], []>} : vector<8x32xbf16>, vector<32x512xbf16>, vector<8x512xf32> -> vector<8x512xf32>
    %c15_284 = arith.constant 15 : index
    %c0_285 = arith.constant 0 : index
    %c0_286 = arith.constant 0 : index
    %446 = vector.load %arg4[%c15_284, %c0_285, %c0_286] : memref<30x8x1xf32, #tpu.memory_space<vmem>>, vector<1x8x1xf32>
    %447 = vector.shape_cast %446 : vector<1x8x1xf32> to vector<8x1xf32>
    %448 = vector.broadcast %447 : vector<8x1xf32> to vector<8x512xf32>
    %449 = arith.addf %445, %448 : vector<8x512xf32>
    %cst_287 = arith.constant -5.02997494 : f32
    %450 = vector.broadcast %cst_287 : f32 to vector<8x512xf32>
    %451 = arith.mulf %450, %435 : vector<8x512xf32>
    %452 = arith.addf %449, %451 : vector<8x512xf32>
    %cst_288 = arith.constant -4.995000e-02 : f32
    %453 = vector.broadcast %cst_288 : f32 to vector<8x512xf32>
    %454 = arith.mulf %453, %452 : vector<8x512xf32>
    %455 = arith.addf %435, %454 : vector<8x512xf32>
    %c16 = arith.constant 16 : index
    %c0_289 = arith.constant 0 : index
    %c0_290 = arith.constant 0 : index
    %456 = vector.load %arg2[%c16, %c0_289, %c0_290] : memref<30x32x8xbf16, #tpu.memory_space<vmem>>, vector<1x32x8xbf16>
    %457 = vector.shape_cast %456 : vector<1x32x8xbf16> to vector<32x8xbf16>
    %458 = arith.truncf %455 : vector<8x512xf32> to vector<8x512xbf16>
    %cst_291 = arith.constant dense<0.000000e+00> : vector<32x512xf32>
    %459 = tpu.matmul %457, %458, %cst_291 {dimension_numbers = #tpu.dot_dimension_numbers<[1], [0], [0], [1], [0, 0, 1, 1], [], []>} : vector<32x8xbf16>, vector<8x512xbf16>, vector<32x512xf32> -> vector<32x512xf32>
    %cst_292 = arith.constant 0.000000e+00 : f32
    %460 = vector.broadcast %cst_292 : f32 to vector<32x512xf32>
    %461 = arith.maximumf %459, %460 : vector<32x512xf32>
    %c16_293 = arith.constant 16 : index
    %c0_294 = arith.constant 0 : index
    %c0_295 = arith.constant 0 : index
    %462 = vector.load %arg3[%c16_293, %c0_294, %c0_295] : memref<30x8x32xbf16, #tpu.memory_space<vmem>>, vector<1x8x32xbf16>
    %463 = vector.shape_cast %462 : vector<1x8x32xbf16> to vector<8x32xbf16>
    %464 = arith.truncf %461 : vector<32x512xf32> to vector<32x512xbf16>
    %cst_296 = arith.constant dense<0.000000e+00> : vector<8x512xf32>
    %465 = tpu.matmul %463, %464, %cst_296 {dimension_numbers = #tpu.dot_dimension_numbers<[1], [0], [0], [1], [0, 0, 1, 1], [], []>} : vector<8x32xbf16>, vector<32x512xbf16>, vector<8x512xf32> -> vector<8x512xf32>
    %c16_297 = arith.constant 16 : index
    %c0_298 = arith.constant 0 : index
    %c0_299 = arith.constant 0 : index
    %466 = vector.load %arg4[%c16_297, %c0_298, %c0_299] : memref<30x8x1xf32, #tpu.memory_space<vmem>>, vector<1x8x1xf32>
    %467 = vector.shape_cast %466 : vector<1x8x1xf32> to vector<8x1xf32>
    %468 = vector.broadcast %467 : vector<8x1xf32> to vector<8x512xf32>
    %469 = arith.addf %465, %468 : vector<8x512xf32>
    %cst_300 = arith.constant -4.53297234 : f32
    %470 = vector.broadcast %cst_300 : f32 to vector<8x512xf32>
    %471 = arith.mulf %470, %455 : vector<8x512xf32>
    %472 = arith.addf %469, %471 : vector<8x512xf32>
    %cst_301 = arith.constant 2.000000e+00 : f32
    %473 = vector.broadcast %cst_301 : f32 to vector<8x512xf32>
    %474 = arith.mulf %473, %472 : vector<8x512xf32>
    %475 = arith.addf %452, %474 : vector<8x512xf32>
    %cst_302 = arith.constant -4.995000e-02 : f32
    %476 = vector.broadcast %cst_302 : f32 to vector<8x512xf32>
    %477 = arith.mulf %476, %472 : vector<8x512xf32>
    %478 = arith.addf %435, %477 : vector<8x512xf32>
    %c16_303 = arith.constant 16 : index
    %c0_304 = arith.constant 0 : index
    %c0_305 = arith.constant 0 : index
    %479 = vector.load %arg2[%c16_303, %c0_304, %c0_305] : memref<30x32x8xbf16, #tpu.memory_space<vmem>>, vector<1x32x8xbf16>
    %480 = vector.shape_cast %479 : vector<1x32x8xbf16> to vector<32x8xbf16>
    %481 = arith.truncf %478 : vector<8x512xf32> to vector<8x512xbf16>
    %cst_306 = arith.constant dense<0.000000e+00> : vector<32x512xf32>
    %482 = tpu.matmul %480, %481, %cst_306 {dimension_numbers = #tpu.dot_dimension_numbers<[1], [0], [0], [1], [0, 0, 1, 1], [], []>} : vector<32x8xbf16>, vector<8x512xbf16>, vector<32x512xf32> -> vector<32x512xf32>
    %cst_307 = arith.constant 0.000000e+00 : f32
    %483 = vector.broadcast %cst_307 : f32 to vector<32x512xf32>
    %484 = arith.maximumf %482, %483 : vector<32x512xf32>
    %c16_308 = arith.constant 16 : index
    %c0_309 = arith.constant 0 : index
    %c0_310 = arith.constant 0 : index
    %485 = vector.load %arg3[%c16_308, %c0_309, %c0_310] : memref<30x8x32xbf16, #tpu.memory_space<vmem>>, vector<1x8x32xbf16>
    %486 = vector.shape_cast %485 : vector<1x8x32xbf16> to vector<8x32xbf16>
    %487 = arith.truncf %484 : vector<32x512xf32> to vector<32x512xbf16>
    %cst_311 = arith.constant dense<0.000000e+00> : vector<8x512xf32>
    %488 = tpu.matmul %486, %487, %cst_311 {dimension_numbers = #tpu.dot_dimension_numbers<[1], [0], [0], [1], [0, 0, 1, 1], [], []>} : vector<8x32xbf16>, vector<32x512xbf16>, vector<8x512xf32> -> vector<8x512xf32>
    %c16_312 = arith.constant 16 : index
    %c0_313 = arith.constant 0 : index
    %c0_314 = arith.constant 0 : index
    %489 = vector.load %arg4[%c16_312, %c0_313, %c0_314] : memref<30x8x1xf32, #tpu.memory_space<vmem>>, vector<1x8x1xf32>
    %490 = vector.shape_cast %489 : vector<1x8x1xf32> to vector<8x1xf32>
    %491 = vector.broadcast %490 : vector<8x1xf32> to vector<8x512xf32>
    %492 = arith.addf %488, %491 : vector<8x512xf32>
    %cst_315 = arith.constant -4.53297234 : f32
    %493 = vector.broadcast %cst_315 : f32 to vector<8x512xf32>
    %494 = arith.mulf %493, %478 : vector<8x512xf32>
    %495 = arith.addf %492, %494 : vector<8x512xf32>
    %cst_316 = arith.constant 2.000000e+00 : f32
    %496 = vector.broadcast %cst_316 : f32 to vector<8x512xf32>
    %497 = arith.mulf %496, %495 : vector<8x512xf32>
    %498 = arith.addf %475, %497 : vector<8x512xf32>
    %cst_317 = arith.constant -0.0998999997 : f32
    %499 = vector.broadcast %cst_317 : f32 to vector<8x512xf32>
    %500 = arith.mulf %499, %495 : vector<8x512xf32>
    %501 = arith.addf %435, %500 : vector<8x512xf32>
    %c17 = arith.constant 17 : index
    %c0_318 = arith.constant 0 : index
    %c0_319 = arith.constant 0 : index
    %502 = vector.load %arg2[%c17, %c0_318, %c0_319] : memref<30x32x8xbf16, #tpu.memory_space<vmem>>, vector<1x32x8xbf16>
    %503 = vector.shape_cast %502 : vector<1x32x8xbf16> to vector<32x8xbf16>
    %504 = arith.truncf %501 : vector<8x512xf32> to vector<8x512xbf16>
    %cst_320 = arith.constant dense<0.000000e+00> : vector<32x512xf32>
    %505 = tpu.matmul %503, %504, %cst_320 {dimension_numbers = #tpu.dot_dimension_numbers<[1], [0], [0], [1], [0, 0, 1, 1], [], []>} : vector<32x8xbf16>, vector<8x512xbf16>, vector<32x512xf32> -> vector<32x512xf32>
    %cst_321 = arith.constant 0.000000e+00 : f32
    %506 = vector.broadcast %cst_321 : f32 to vector<32x512xf32>
    %507 = arith.maximumf %505, %506 : vector<32x512xf32>
    %c17_322 = arith.constant 17 : index
    %c0_323 = arith.constant 0 : index
    %c0_324 = arith.constant 0 : index
    %508 = vector.load %arg3[%c17_322, %c0_323, %c0_324] : memref<30x8x32xbf16, #tpu.memory_space<vmem>>, vector<1x8x32xbf16>
    %509 = vector.shape_cast %508 : vector<1x8x32xbf16> to vector<8x32xbf16>
    %510 = arith.truncf %507 : vector<32x512xf32> to vector<32x512xbf16>
    %cst_325 = arith.constant dense<0.000000e+00> : vector<8x512xf32>
    %511 = tpu.matmul %509, %510, %cst_325 {dimension_numbers = #tpu.dot_dimension_numbers<[1], [0], [0], [1], [0, 0, 1, 1], [], []>} : vector<8x32xbf16>, vector<32x512xbf16>, vector<8x512xf32> -> vector<8x512xf32>
    %c17_326 = arith.constant 17 : index
    %c0_327 = arith.constant 0 : index
    %c0_328 = arith.constant 0 : index
    %512 = vector.load %arg4[%c17_326, %c0_327, %c0_328] : memref<30x8x1xf32, #tpu.memory_space<vmem>>, vector<1x8x1xf32>
    %513 = vector.shape_cast %512 : vector<1x8x1xf32> to vector<8x1xf32>
    %514 = vector.broadcast %513 : vector<8x1xf32> to vector<8x512xf32>
    %515 = arith.addf %511, %514 : vector<8x512xf32>
    %cst_329 = arith.constant -4.035970e+00 : f32
    %516 = vector.broadcast %cst_329 : f32 to vector<8x512xf32>
    %517 = arith.mulf %516, %501 : vector<8x512xf32>
    %518 = arith.addf %515, %517 : vector<8x512xf32>
    %519 = arith.addf %498, %518 : vector<8x512xf32>
    %cst_330 = arith.constant -1.665000e-02 : f32
    %520 = vector.broadcast %cst_330 : f32 to vector<8x512xf32>
    %521 = arith.mulf %520, %519 : vector<8x512xf32>
    %522 = arith.addf %435, %521 : vector<8x512xf32>
    %c18 = arith.constant 18 : index
    %c0_331 = arith.constant 0 : index
    %c0_332 = arith.constant 0 : index
    %523 = vector.load %arg2[%c18, %c0_331, %c0_332] : memref<30x32x8xbf16, #tpu.memory_space<vmem>>, vector<1x32x8xbf16>
    %524 = vector.shape_cast %523 : vector<1x32x8xbf16> to vector<32x8xbf16>
    %525 = arith.truncf %522 : vector<8x512xf32> to vector<8x512xbf16>
    %cst_333 = arith.constant dense<0.000000e+00> : vector<32x512xf32>
    %526 = tpu.matmul %524, %525, %cst_333 {dimension_numbers = #tpu.dot_dimension_numbers<[1], [0], [0], [1], [0, 0, 1, 1], [], []>} : vector<32x8xbf16>, vector<8x512xbf16>, vector<32x512xf32> -> vector<32x512xf32>
    %cst_334 = arith.constant 0.000000e+00 : f32
    %527 = vector.broadcast %cst_334 : f32 to vector<32x512xf32>
    %528 = arith.maximumf %526, %527 : vector<32x512xf32>
    %c18_335 = arith.constant 18 : index
    %c0_336 = arith.constant 0 : index
    %c0_337 = arith.constant 0 : index
    %529 = vector.load %arg3[%c18_335, %c0_336, %c0_337] : memref<30x8x32xbf16, #tpu.memory_space<vmem>>, vector<1x8x32xbf16>
    %530 = vector.shape_cast %529 : vector<1x8x32xbf16> to vector<8x32xbf16>
    %531 = arith.truncf %528 : vector<32x512xf32> to vector<32x512xbf16>
    %cst_338 = arith.constant dense<0.000000e+00> : vector<8x512xf32>
    %532 = tpu.matmul %530, %531, %cst_338 {dimension_numbers = #tpu.dot_dimension_numbers<[1], [0], [0], [1], [0, 0, 1, 1], [], []>} : vector<8x32xbf16>, vector<32x512xbf16>, vector<8x512xf32> -> vector<8x512xf32>
    %c18_339 = arith.constant 18 : index
    %c0_340 = arith.constant 0 : index
    %c0_341 = arith.constant 0 : index
    %533 = vector.load %arg4[%c18_339, %c0_340, %c0_341] : memref<30x8x1xf32, #tpu.memory_space<vmem>>, vector<1x8x1xf32>
    %534 = vector.shape_cast %533 : vector<1x8x1xf32> to vector<8x1xf32>
    %535 = vector.broadcast %534 : vector<8x1xf32> to vector<8x512xf32>
    %536 = arith.addf %532, %535 : vector<8x512xf32>
    %cst_342 = arith.constant -4.035970e+00 : f32
    %537 = vector.broadcast %cst_342 : f32 to vector<8x512xf32>
    %538 = arith.mulf %537, %522 : vector<8x512xf32>
    %539 = arith.addf %536, %538 : vector<8x512xf32>
    %cst_343 = arith.constant -4.995000e-02 : f32
    %540 = vector.broadcast %cst_343 : f32 to vector<8x512xf32>
    %541 = arith.mulf %540, %539 : vector<8x512xf32>
    %542 = arith.addf %522, %541 : vector<8x512xf32>
    %c19 = arith.constant 19 : index
    %c0_344 = arith.constant 0 : index
    %c0_345 = arith.constant 0 : index
    %543 = vector.load %arg2[%c19, %c0_344, %c0_345] : memref<30x32x8xbf16, #tpu.memory_space<vmem>>, vector<1x32x8xbf16>
    %544 = vector.shape_cast %543 : vector<1x32x8xbf16> to vector<32x8xbf16>
    %545 = arith.truncf %542 : vector<8x512xf32> to vector<8x512xbf16>
    %cst_346 = arith.constant dense<0.000000e+00> : vector<32x512xf32>
    %546 = tpu.matmul %544, %545, %cst_346 {dimension_numbers = #tpu.dot_dimension_numbers<[1], [0], [0], [1], [0, 0, 1, 1], [], []>} : vector<32x8xbf16>, vector<8x512xbf16>, vector<32x512xf32> -> vector<32x512xf32>
    %cst_347 = arith.constant 0.000000e+00 : f32
    %547 = vector.broadcast %cst_347 : f32 to vector<32x512xf32>
    %548 = arith.maximumf %546, %547 : vector<32x512xf32>
    %c19_348 = arith.constant 19 : index
    %c0_349 = arith.constant 0 : index
    %c0_350 = arith.constant 0 : index
    %549 = vector.load %arg3[%c19_348, %c0_349, %c0_350] : memref<30x8x32xbf16, #tpu.memory_space<vmem>>, vector<1x8x32xbf16>
    %550 = vector.shape_cast %549 : vector<1x8x32xbf16> to vector<8x32xbf16>
    %551 = arith.truncf %548 : vector<32x512xf32> to vector<32x512xbf16>
    %cst_351 = arith.constant dense<0.000000e+00> : vector<8x512xf32>
    %552 = tpu.matmul %550, %551, %cst_351 {dimension_numbers = #tpu.dot_dimension_numbers<[1], [0], [0], [1], [0, 0, 1, 1], [], []>} : vector<8x32xbf16>, vector<32x512xbf16>, vector<8x512xf32> -> vector<8x512xf32>
    %c19_352 = arith.constant 19 : index
    %c0_353 = arith.constant 0 : index
    %c0_354 = arith.constant 0 : index
    %553 = vector.load %arg4[%c19_352, %c0_353, %c0_354] : memref<30x8x1xf32, #tpu.memory_space<vmem>>, vector<1x8x1xf32>
    %554 = vector.shape_cast %553 : vector<1x8x1xf32> to vector<8x1xf32>
    %555 = vector.broadcast %554 : vector<8x1xf32> to vector<8x512xf32>
    %556 = arith.addf %552, %555 : vector<8x512xf32>
    %cst_355 = arith.constant -3.53896761 : f32
    %557 = vector.broadcast %cst_355 : f32 to vector<8x512xf32>
    %558 = arith.mulf %557, %542 : vector<8x512xf32>
    %559 = arith.addf %556, %558 : vector<8x512xf32>
    %cst_356 = arith.constant 2.000000e+00 : f32
    %560 = vector.broadcast %cst_356 : f32 to vector<8x512xf32>
    %561 = arith.mulf %560, %559 : vector<8x512xf32>
    %562 = arith.addf %539, %561 : vector<8x512xf32>
    %cst_357 = arith.constant -4.995000e-02 : f32
    %563 = vector.broadcast %cst_357 : f32 to vector<8x512xf32>
    %564 = arith.mulf %563, %559 : vector<8x512xf32>
    %565 = arith.addf %522, %564 : vector<8x512xf32>
    %c19_358 = arith.constant 19 : index
    %c0_359 = arith.constant 0 : index
    %c0_360 = arith.constant 0 : index
    %566 = vector.load %arg2[%c19_358, %c0_359, %c0_360] : memref<30x32x8xbf16, #tpu.memory_space<vmem>>, vector<1x32x8xbf16>
    %567 = vector.shape_cast %566 : vector<1x32x8xbf16> to vector<32x8xbf16>
    %568 = arith.truncf %565 : vector<8x512xf32> to vector<8x512xbf16>
    %cst_361 = arith.constant dense<0.000000e+00> : vector<32x512xf32>
    %569 = tpu.matmul %567, %568, %cst_361 {dimension_numbers = #tpu.dot_dimension_numbers<[1], [0], [0], [1], [0, 0, 1, 1], [], []>} : vector<32x8xbf16>, vector<8x512xbf16>, vector<32x512xf32> -> vector<32x512xf32>
    %cst_362 = arith.constant 0.000000e+00 : f32
    %570 = vector.broadcast %cst_362 : f32 to vector<32x512xf32>
    %571 = arith.maximumf %569, %570 : vector<32x512xf32>
    %c19_363 = arith.constant 19 : index
    %c0_364 = arith.constant 0 : index
    %c0_365 = arith.constant 0 : index
    %572 = vector.load %arg3[%c19_363, %c0_364, %c0_365] : memref<30x8x32xbf16, #tpu.memory_space<vmem>>, vector<1x8x32xbf16>
    %573 = vector.shape_cast %572 : vector<1x8x32xbf16> to vector<8x32xbf16>
    %574 = arith.truncf %571 : vector<32x512xf32> to vector<32x512xbf16>
    %cst_366 = arith.constant dense<0.000000e+00> : vector<8x512xf32>
    %575 = tpu.matmul %573, %574, %cst_366 {dimension_numbers = #tpu.dot_dimension_numbers<[1], [0], [0], [1], [0, 0, 1, 1], [], []>} : vector<8x32xbf16>, vector<32x512xbf16>, vector<8x512xf32> -> vector<8x512xf32>
    %c19_367 = arith.constant 19 : index
    %c0_368 = arith.constant 0 : index
    %c0_369 = arith.constant 0 : index
    %576 = vector.load %arg4[%c19_367, %c0_368, %c0_369] : memref<30x8x1xf32, #tpu.memory_space<vmem>>, vector<1x8x1xf32>
    %577 = vector.shape_cast %576 : vector<1x8x1xf32> to vector<8x1xf32>
    %578 = vector.broadcast %577 : vector<8x1xf32> to vector<8x512xf32>
    %579 = arith.addf %575, %578 : vector<8x512xf32>
    %cst_370 = arith.constant -3.53896761 : f32
    %580 = vector.broadcast %cst_370 : f32 to vector<8x512xf32>
    %581 = arith.mulf %580, %565 : vector<8x512xf32>
    %582 = arith.addf %579, %581 : vector<8x512xf32>
    %cst_371 = arith.constant 2.000000e+00 : f32
    %583 = vector.broadcast %cst_371 : f32 to vector<8x512xf32>
    %584 = arith.mulf %583, %582 : vector<8x512xf32>
    %585 = arith.addf %562, %584 : vector<8x512xf32>
    %cst_372 = arith.constant -0.0998999997 : f32
    %586 = vector.broadcast %cst_372 : f32 to vector<8x512xf32>
    %587 = arith.mulf %586, %582 : vector<8x512xf32>
    %588 = arith.addf %522, %587 : vector<8x512xf32>
    %c20 = arith.constant 20 : index
    %c0_373 = arith.constant 0 : index
    %c0_374 = arith.constant 0 : index
    %589 = vector.load %arg2[%c20, %c0_373, %c0_374] : memref<30x32x8xbf16, #tpu.memory_space<vmem>>, vector<1x32x8xbf16>
    %590 = vector.shape_cast %589 : vector<1x32x8xbf16> to vector<32x8xbf16>
    %591 = arith.truncf %588 : vector<8x512xf32> to vector<8x512xbf16>
    %cst_375 = arith.constant dense<0.000000e+00> : vector<32x512xf32>
    %592 = tpu.matmul %590, %591, %cst_375 {dimension_numbers = #tpu.dot_dimension_numbers<[1], [0], [0], [1], [0, 0, 1, 1], [], []>} : vector<32x8xbf16>, vector<8x512xbf16>, vector<32x512xf32> -> vector<32x512xf32>
    %cst_376 = arith.constant 0.000000e+00 : f32
    %593 = vector.broadcast %cst_376 : f32 to vector<32x512xf32>
    %594 = arith.maximumf %592, %593 : vector<32x512xf32>
    %c20_377 = arith.constant 20 : index
    %c0_378 = arith.constant 0 : index
    %c0_379 = arith.constant 0 : index
    %595 = vector.load %arg3[%c20_377, %c0_378, %c0_379] : memref<30x8x32xbf16, #tpu.memory_space<vmem>>, vector<1x8x32xbf16>
    %596 = vector.shape_cast %595 : vector<1x8x32xbf16> to vector<8x32xbf16>
    %597 = arith.truncf %594 : vector<32x512xf32> to vector<32x512xbf16>
    %cst_380 = arith.constant dense<0.000000e+00> : vector<8x512xf32>
    %598 = tpu.matmul %596, %597, %cst_380 {dimension_numbers = #tpu.dot_dimension_numbers<[1], [0], [0], [1], [0, 0, 1, 1], [], []>} : vector<8x32xbf16>, vector<32x512xbf16>, vector<8x512xf32> -> vector<8x512xf32>
    %c20_381 = arith.constant 20 : index
    %c0_382 = arith.constant 0 : index
    %c0_383 = arith.constant 0 : index
    %599 = vector.load %arg4[%c20_381, %c0_382, %c0_383] : memref<30x8x1xf32, #tpu.memory_space<vmem>>, vector<1x8x1xf32>
    %600 = vector.shape_cast %599 : vector<1x8x1xf32> to vector<8x1xf32>
    %601 = vector.broadcast %600 : vector<8x1xf32> to vector<8x512xf32>
    %602 = arith.addf %598, %601 : vector<8x512xf32>
    %cst_384 = arith.constant -3.04196501 : f32
    %603 = vector.broadcast %cst_384 : f32 to vector<8x512xf32>
    %604 = arith.mulf %603, %588 : vector<8x512xf32>
    %605 = arith.addf %602, %604 : vector<8x512xf32>
    %606 = arith.addf %585, %605 : vector<8x512xf32>
    %cst_385 = arith.constant -1.665000e-02 : f32
    %607 = vector.broadcast %cst_385 : f32 to vector<8x512xf32>
    %608 = arith.mulf %607, %606 : vector<8x512xf32>
    %609 = arith.addf %522, %608 : vector<8x512xf32>
    %c21 = arith.constant 21 : index
    %c0_386 = arith.constant 0 : index
    %c0_387 = arith.constant 0 : index
    %610 = vector.load %arg2[%c21, %c0_386, %c0_387] : memref<30x32x8xbf16, #tpu.memory_space<vmem>>, vector<1x32x8xbf16>
    %611 = vector.shape_cast %610 : vector<1x32x8xbf16> to vector<32x8xbf16>
    %612 = arith.truncf %609 : vector<8x512xf32> to vector<8x512xbf16>
    %cst_388 = arith.constant dense<0.000000e+00> : vector<32x512xf32>
    %613 = tpu.matmul %611, %612, %cst_388 {dimension_numbers = #tpu.dot_dimension_numbers<[1], [0], [0], [1], [0, 0, 1, 1], [], []>} : vector<32x8xbf16>, vector<8x512xbf16>, vector<32x512xf32> -> vector<32x512xf32>
    %cst_389 = arith.constant 0.000000e+00 : f32
    %614 = vector.broadcast %cst_389 : f32 to vector<32x512xf32>
    %615 = arith.maximumf %613, %614 : vector<32x512xf32>
    %c21_390 = arith.constant 21 : index
    %c0_391 = arith.constant 0 : index
    %c0_392 = arith.constant 0 : index
    %616 = vector.load %arg3[%c21_390, %c0_391, %c0_392] : memref<30x8x32xbf16, #tpu.memory_space<vmem>>, vector<1x8x32xbf16>
    %617 = vector.shape_cast %616 : vector<1x8x32xbf16> to vector<8x32xbf16>
    %618 = arith.truncf %615 : vector<32x512xf32> to vector<32x512xbf16>
    %cst_393 = arith.constant dense<0.000000e+00> : vector<8x512xf32>
    %619 = tpu.matmul %617, %618, %cst_393 {dimension_numbers = #tpu.dot_dimension_numbers<[1], [0], [0], [1], [0, 0, 1, 1], [], []>} : vector<8x32xbf16>, vector<32x512xbf16>, vector<8x512xf32> -> vector<8x512xf32>
    %c21_394 = arith.constant 21 : index
    %c0_395 = arith.constant 0 : index
    %c0_396 = arith.constant 0 : index
    %620 = vector.load %arg4[%c21_394, %c0_395, %c0_396] : memref<30x8x1xf32, #tpu.memory_space<vmem>>, vector<1x8x1xf32>
    %621 = vector.shape_cast %620 : vector<1x8x1xf32> to vector<8x1xf32>
    %622 = vector.broadcast %621 : vector<8x1xf32> to vector<8x512xf32>
    %623 = arith.addf %619, %622 : vector<8x512xf32>
    %cst_397 = arith.constant -3.04196501 : f32
    %624 = vector.broadcast %cst_397 : f32 to vector<8x512xf32>
    %625 = arith.mulf %624, %609 : vector<8x512xf32>
    %626 = arith.addf %623, %625 : vector<8x512xf32>
    %cst_398 = arith.constant -4.995000e-02 : f32
    %627 = vector.broadcast %cst_398 : f32 to vector<8x512xf32>
    %628 = arith.mulf %627, %626 : vector<8x512xf32>
    %629 = arith.addf %609, %628 : vector<8x512xf32>
    %c22 = arith.constant 22 : index
    %c0_399 = arith.constant 0 : index
    %c0_400 = arith.constant 0 : index
    %630 = vector.load %arg2[%c22, %c0_399, %c0_400] : memref<30x32x8xbf16, #tpu.memory_space<vmem>>, vector<1x32x8xbf16>
    %631 = vector.shape_cast %630 : vector<1x32x8xbf16> to vector<32x8xbf16>
    %632 = arith.truncf %629 : vector<8x512xf32> to vector<8x512xbf16>
    %cst_401 = arith.constant dense<0.000000e+00> : vector<32x512xf32>
    %633 = tpu.matmul %631, %632, %cst_401 {dimension_numbers = #tpu.dot_dimension_numbers<[1], [0], [0], [1], [0, 0, 1, 1], [], []>} : vector<32x8xbf16>, vector<8x512xbf16>, vector<32x512xf32> -> vector<32x512xf32>
    %cst_402 = arith.constant 0.000000e+00 : f32
    %634 = vector.broadcast %cst_402 : f32 to vector<32x512xf32>
    %635 = arith.maximumf %633, %634 : vector<32x512xf32>
    %c22_403 = arith.constant 22 : index
    %c0_404 = arith.constant 0 : index
    %c0_405 = arith.constant 0 : index
    %636 = vector.load %arg3[%c22_403, %c0_404, %c0_405] : memref<30x8x32xbf16, #tpu.memory_space<vmem>>, vector<1x8x32xbf16>
    %637 = vector.shape_cast %636 : vector<1x8x32xbf16> to vector<8x32xbf16>
    %638 = arith.truncf %635 : vector<32x512xf32> to vector<32x512xbf16>
    %cst_406 = arith.constant dense<0.000000e+00> : vector<8x512xf32>
    %639 = tpu.matmul %637, %638, %cst_406 {dimension_numbers = #tpu.dot_dimension_numbers<[1], [0], [0], [1], [0, 0, 1, 1], [], []>} : vector<8x32xbf16>, vector<32x512xbf16>, vector<8x512xf32> -> vector<8x512xf32>
    %c22_407 = arith.constant 22 : index
    %c0_408 = arith.constant 0 : index
    %c0_409 = arith.constant 0 : index
    %640 = vector.load %arg4[%c22_407, %c0_408, %c0_409] : memref<30x8x1xf32, #tpu.memory_space<vmem>>, vector<1x8x1xf32>
    %641 = vector.shape_cast %640 : vector<1x8x1xf32> to vector<8x1xf32>
    %642 = vector.broadcast %641 : vector<8x1xf32> to vector<8x512xf32>
    %643 = arith.addf %639, %642 : vector<8x512xf32>
    %cst_410 = arith.constant -2.54496241 : f32
    %644 = vector.broadcast %cst_410 : f32 to vector<8x512xf32>
    %645 = arith.mulf %644, %629 : vector<8x512xf32>
    %646 = arith.addf %643, %645 : vector<8x512xf32>
    %cst_411 = arith.constant 2.000000e+00 : f32
    %647 = vector.broadcast %cst_411 : f32 to vector<8x512xf32>
    %648 = arith.mulf %647, %646 : vector<8x512xf32>
    %649 = arith.addf %626, %648 : vector<8x512xf32>
    %cst_412 = arith.constant -4.995000e-02 : f32
    %650 = vector.broadcast %cst_412 : f32 to vector<8x512xf32>
    %651 = arith.mulf %650, %646 : vector<8x512xf32>
    %652 = arith.addf %609, %651 : vector<8x512xf32>
    %c22_413 = arith.constant 22 : index
    %c0_414 = arith.constant 0 : index
    %c0_415 = arith.constant 0 : index
    %653 = vector.load %arg2[%c22_413, %c0_414, %c0_415] : memref<30x32x8xbf16, #tpu.memory_space<vmem>>, vector<1x32x8xbf16>
    %654 = vector.shape_cast %653 : vector<1x32x8xbf16> to vector<32x8xbf16>
    %655 = arith.truncf %652 : vector<8x512xf32> to vector<8x512xbf16>
    %cst_416 = arith.constant dense<0.000000e+00> : vector<32x512xf32>
    %656 = tpu.matmul %654, %655, %cst_416 {dimension_numbers = #tpu.dot_dimension_numbers<[1], [0], [0], [1], [0, 0, 1, 1], [], []>} : vector<32x8xbf16>, vector<8x512xbf16>, vector<32x512xf32> -> vector<32x512xf32>
    %cst_417 = arith.constant 0.000000e+00 : f32
    %657 = vector.broadcast %cst_417 : f32 to vector<32x512xf32>
    %658 = arith.maximumf %656, %657 : vector<32x512xf32>
    %c22_418 = arith.constant 22 : index
    %c0_419 = arith.constant 0 : index
    %c0_420 = arith.constant 0 : index
    %659 = vector.load %arg3[%c22_418, %c0_419, %c0_420] : memref<30x8x32xbf16, #tpu.memory_space<vmem>>, vector<1x8x32xbf16>
    %660 = vector.shape_cast %659 : vector<1x8x32xbf16> to vector<8x32xbf16>
    %661 = arith.truncf %658 : vector<32x512xf32> to vector<32x512xbf16>
    %cst_421 = arith.constant dense<0.000000e+00> : vector<8x512xf32>
    %662 = tpu.matmul %660, %661, %cst_421 {dimension_numbers = #tpu.dot_dimension_numbers<[1], [0], [0], [1], [0, 0, 1, 1], [], []>} : vector<8x32xbf16>, vector<32x512xbf16>, vector<8x512xf32> -> vector<8x512xf32>
    %c22_422 = arith.constant 22 : index
    %c0_423 = arith.constant 0 : index
    %c0_424 = arith.constant 0 : index
    %663 = vector.load %arg4[%c22_422, %c0_423, %c0_424] : memref<30x8x1xf32, #tpu.memory_space<vmem>>, vector<1x8x1xf32>
    %664 = vector.shape_cast %663 : vector<1x8x1xf32> to vector<8x1xf32>
    %665 = vector.broadcast %664 : vector<8x1xf32> to vector<8x512xf32>
    %666 = arith.addf %662, %665 : vector<8x512xf32>
    %cst_425 = arith.constant -2.54496241 : f32
    %667 = vector.broadcast %cst_425 : f32 to vector<8x512xf32>
    %668 = arith.mulf %667, %652 : vector<8x512xf32>
    %669 = arith.addf %666, %668 : vector<8x512xf32>
    %cst_426 = arith.constant 2.000000e+00 : f32
    %670 = vector.broadcast %cst_426 : f32 to vector<8x512xf32>
    %671 = arith.mulf %670, %669 : vector<8x512xf32>
    %672 = arith.addf %649, %671 : vector<8x512xf32>
    %cst_427 = arith.constant -0.0998999997 : f32
    %673 = vector.broadcast %cst_427 : f32 to vector<8x512xf32>
    %674 = arith.mulf %673, %669 : vector<8x512xf32>
    %675 = arith.addf %609, %674 : vector<8x512xf32>
    %c23 = arith.constant 23 : index
    %c0_428 = arith.constant 0 : index
    %c0_429 = arith.constant 0 : index
    %676 = vector.load %arg2[%c23, %c0_428, %c0_429] : memref<30x32x8xbf16, #tpu.memory_space<vmem>>, vector<1x32x8xbf16>
    %677 = vector.shape_cast %676 : vector<1x32x8xbf16> to vector<32x8xbf16>
    %678 = arith.truncf %675 : vector<8x512xf32> to vector<8x512xbf16>
    %cst_430 = arith.constant dense<0.000000e+00> : vector<32x512xf32>
    %679 = tpu.matmul %677, %678, %cst_430 {dimension_numbers = #tpu.dot_dimension_numbers<[1], [0], [0], [1], [0, 0, 1, 1], [], []>} : vector<32x8xbf16>, vector<8x512xbf16>, vector<32x512xf32> -> vector<32x512xf32>
    %cst_431 = arith.constant 0.000000e+00 : f32
    %680 = vector.broadcast %cst_431 : f32 to vector<32x512xf32>
    %681 = arith.maximumf %679, %680 : vector<32x512xf32>
    %c23_432 = arith.constant 23 : index
    %c0_433 = arith.constant 0 : index
    %c0_434 = arith.constant 0 : index
    %682 = vector.load %arg3[%c23_432, %c0_433, %c0_434] : memref<30x8x32xbf16, #tpu.memory_space<vmem>>, vector<1x8x32xbf16>
    %683 = vector.shape_cast %682 : vector<1x8x32xbf16> to vector<8x32xbf16>
    %684 = arith.truncf %681 : vector<32x512xf32> to vector<32x512xbf16>
    %cst_435 = arith.constant dense<0.000000e+00> : vector<8x512xf32>
    %685 = tpu.matmul %683, %684, %cst_435 {dimension_numbers = #tpu.dot_dimension_numbers<[1], [0], [0], [1], [0, 0, 1, 1], [], []>} : vector<8x32xbf16>, vector<32x512xbf16>, vector<8x512xf32> -> vector<8x512xf32>
    %c23_436 = arith.constant 23 : index
    %c0_437 = arith.constant 0 : index
    %c0_438 = arith.constant 0 : index
    %686 = vector.load %arg4[%c23_436, %c0_437, %c0_438] : memref<30x8x1xf32, #tpu.memory_space<vmem>>, vector<1x8x1xf32>
    %687 = vector.shape_cast %686 : vector<1x8x1xf32> to vector<8x1xf32>
    %688 = vector.broadcast %687 : vector<8x1xf32> to vector<8x512xf32>
    %689 = arith.addf %685, %688 : vector<8x512xf32>
    %cst_439 = arith.constant -2.047960e+00 : f32
    %690 = vector.broadcast %cst_439 : f32 to vector<8x512xf32>
    %691 = arith.mulf %690, %675 : vector<8x512xf32>
    %692 = arith.addf %689, %691 : vector<8x512xf32>
    %693 = arith.addf %672, %692 : vector<8x512xf32>
    %cst_440 = arith.constant -1.665000e-02 : f32
    %694 = vector.broadcast %cst_440 : f32 to vector<8x512xf32>
    %695 = arith.mulf %694, %693 : vector<8x512xf32>
    %696 = arith.addf %609, %695 : vector<8x512xf32>
    %c24 = arith.constant 24 : index
    %c0_441 = arith.constant 0 : index
    %c0_442 = arith.constant 0 : index
    %697 = vector.load %arg2[%c24, %c0_441, %c0_442] : memref<30x32x8xbf16, #tpu.memory_space<vmem>>, vector<1x32x8xbf16>
    %698 = vector.shape_cast %697 : vector<1x32x8xbf16> to vector<32x8xbf16>
    %699 = arith.truncf %696 : vector<8x512xf32> to vector<8x512xbf16>
    %cst_443 = arith.constant dense<0.000000e+00> : vector<32x512xf32>
    %700 = tpu.matmul %698, %699, %cst_443 {dimension_numbers = #tpu.dot_dimension_numbers<[1], [0], [0], [1], [0, 0, 1, 1], [], []>} : vector<32x8xbf16>, vector<8x512xbf16>, vector<32x512xf32> -> vector<32x512xf32>
    %cst_444 = arith.constant 0.000000e+00 : f32
    %701 = vector.broadcast %cst_444 : f32 to vector<32x512xf32>
    %702 = arith.maximumf %700, %701 : vector<32x512xf32>
    %c24_445 = arith.constant 24 : index
    %c0_446 = arith.constant 0 : index
    %c0_447 = arith.constant 0 : index
    %703 = vector.load %arg3[%c24_445, %c0_446, %c0_447] : memref<30x8x32xbf16, #tpu.memory_space<vmem>>, vector<1x8x32xbf16>
    %704 = vector.shape_cast %703 : vector<1x8x32xbf16> to vector<8x32xbf16>
    %705 = arith.truncf %702 : vector<32x512xf32> to vector<32x512xbf16>
    %cst_448 = arith.constant dense<0.000000e+00> : vector<8x512xf32>
    %706 = tpu.matmul %704, %705, %cst_448 {dimension_numbers = #tpu.dot_dimension_numbers<[1], [0], [0], [1], [0, 0, 1, 1], [], []>} : vector<8x32xbf16>, vector<32x512xbf16>, vector<8x512xf32> -> vector<8x512xf32>
    %c24_449 = arith.constant 24 : index
    %c0_450 = arith.constant 0 : index
    %c0_451 = arith.constant 0 : index
    %707 = vector.load %arg4[%c24_449, %c0_450, %c0_451] : memref<30x8x1xf32, #tpu.memory_space<vmem>>, vector<1x8x1xf32>
    %708 = vector.shape_cast %707 : vector<1x8x1xf32> to vector<8x1xf32>
    %709 = vector.broadcast %708 : vector<8x1xf32> to vector<8x512xf32>
    %710 = arith.addf %706, %709 : vector<8x512xf32>
    %cst_452 = arith.constant -2.047960e+00 : f32
    %711 = vector.broadcast %cst_452 : f32 to vector<8x512xf32>
    %712 = arith.mulf %711, %696 : vector<8x512xf32>
    %713 = arith.addf %710, %712 : vector<8x512xf32>
    %cst_453 = arith.constant -4.995000e-02 : f32
    %714 = vector.broadcast %cst_453 : f32 to vector<8x512xf32>
    %715 = arith.mulf %714, %713 : vector<8x512xf32>
    %716 = arith.addf %696, %715 : vector<8x512xf32>
    %c25 = arith.constant 25 : index
    %c0_454 = arith.constant 0 : index
    %c0_455 = arith.constant 0 : index
    %717 = vector.load %arg2[%c25, %c0_454, %c0_455] : memref<30x32x8xbf16, #tpu.memory_space<vmem>>, vector<1x32x8xbf16>
    %718 = vector.shape_cast %717 : vector<1x32x8xbf16> to vector<32x8xbf16>
    %719 = arith.truncf %716 : vector<8x512xf32> to vector<8x512xbf16>
    %cst_456 = arith.constant dense<0.000000e+00> : vector<32x512xf32>
    %720 = tpu.matmul %718, %719, %cst_456 {dimension_numbers = #tpu.dot_dimension_numbers<[1], [0], [0], [1], [0, 0, 1, 1], [], []>} : vector<32x8xbf16>, vector<8x512xbf16>, vector<32x512xf32> -> vector<32x512xf32>
    %cst_457 = arith.constant 0.000000e+00 : f32
    %721 = vector.broadcast %cst_457 : f32 to vector<32x512xf32>
    %722 = arith.maximumf %720, %721 : vector<32x512xf32>
    %c25_458 = arith.constant 25 : index
    %c0_459 = arith.constant 0 : index
    %c0_460 = arith.constant 0 : index
    %723 = vector.load %arg3[%c25_458, %c0_459, %c0_460] : memref<30x8x32xbf16, #tpu.memory_space<vmem>>, vector<1x8x32xbf16>
    %724 = vector.shape_cast %723 : vector<1x8x32xbf16> to vector<8x32xbf16>
    %725 = arith.truncf %722 : vector<32x512xf32> to vector<32x512xbf16>
    %cst_461 = arith.constant dense<0.000000e+00> : vector<8x512xf32>
    %726 = tpu.matmul %724, %725, %cst_461 {dimension_numbers = #tpu.dot_dimension_numbers<[1], [0], [0], [1], [0, 0, 1, 1], [], []>} : vector<8x32xbf16>, vector<32x512xbf16>, vector<8x512xf32> -> vector<8x512xf32>
    %c25_462 = arith.constant 25 : index
    %c0_463 = arith.constant 0 : index
    %c0_464 = arith.constant 0 : index
    %727 = vector.load %arg4[%c25_462, %c0_463, %c0_464] : memref<30x8x1xf32, #tpu.memory_space<vmem>>, vector<1x8x1xf32>
    %728 = vector.shape_cast %727 : vector<1x8x1xf32> to vector<8x1xf32>
    %729 = vector.broadcast %728 : vector<8x1xf32> to vector<8x512xf32>
    %730 = arith.addf %726, %729 : vector<8x512xf32>
    %cst_465 = arith.constant -1.55095744 : f32
    %731 = vector.broadcast %cst_465 : f32 to vector<8x512xf32>
    %732 = arith.mulf %731, %716 : vector<8x512xf32>
    %733 = arith.addf %730, %732 : vector<8x512xf32>
    %cst_466 = arith.constant 2.000000e+00 : f32
    %734 = vector.broadcast %cst_466 : f32 to vector<8x512xf32>
    %735 = arith.mulf %734, %733 : vector<8x512xf32>
    %736 = arith.addf %713, %735 : vector<8x512xf32>
    %cst_467 = arith.constant -4.995000e-02 : f32
    %737 = vector.broadcast %cst_467 : f32 to vector<8x512xf32>
    %738 = arith.mulf %737, %733 : vector<8x512xf32>
    %739 = arith.addf %696, %738 : vector<8x512xf32>
    %c25_468 = arith.constant 25 : index
    %c0_469 = arith.constant 0 : index
    %c0_470 = arith.constant 0 : index
    %740 = vector.load %arg2[%c25_468, %c0_469, %c0_470] : memref<30x32x8xbf16, #tpu.memory_space<vmem>>, vector<1x32x8xbf16>
    %741 = vector.shape_cast %740 : vector<1x32x8xbf16> to vector<32x8xbf16>
    %742 = arith.truncf %739 : vector<8x512xf32> to vector<8x512xbf16>
    %cst_471 = arith.constant dense<0.000000e+00> : vector<32x512xf32>
    %743 = tpu.matmul %741, %742, %cst_471 {dimension_numbers = #tpu.dot_dimension_numbers<[1], [0], [0], [1], [0, 0, 1, 1], [], []>} : vector<32x8xbf16>, vector<8x512xbf16>, vector<32x512xf32> -> vector<32x512xf32>
    %cst_472 = arith.constant 0.000000e+00 : f32
    %744 = vector.broadcast %cst_472 : f32 to vector<32x512xf32>
    %745 = arith.maximumf %743, %744 : vector<32x512xf32>
    %c25_473 = arith.constant 25 : index
    %c0_474 = arith.constant 0 : index
    %c0_475 = arith.constant 0 : index
    %746 = vector.load %arg3[%c25_473, %c0_474, %c0_475] : memref<30x8x32xbf16, #tpu.memory_space<vmem>>, vector<1x8x32xbf16>
    %747 = vector.shape_cast %746 : vector<1x8x32xbf16> to vector<8x32xbf16>
    %748 = arith.truncf %745 : vector<32x512xf32> to vector<32x512xbf16>
    %cst_476 = arith.constant dense<0.000000e+00> : vector<8x512xf32>
    %749 = tpu.matmul %747, %748, %cst_476 {dimension_numbers = #tpu.dot_dimension_numbers<[1], [0], [0], [1], [0, 0, 1, 1], [], []>} : vector<8x32xbf16>, vector<32x512xbf16>, vector<8x512xf32> -> vector<8x512xf32>
    %c25_477 = arith.constant 25 : index
    %c0_478 = arith.constant 0 : index
    %c0_479 = arith.constant 0 : index
    %750 = vector.load %arg4[%c25_477, %c0_478, %c0_479] : memref<30x8x1xf32, #tpu.memory_space<vmem>>, vector<1x8x1xf32>
    %751 = vector.shape_cast %750 : vector<1x8x1xf32> to vector<8x1xf32>
    %752 = vector.broadcast %751 : vector<8x1xf32> to vector<8x512xf32>
    %753 = arith.addf %749, %752 : vector<8x512xf32>
    %cst_480 = arith.constant -1.55095744 : f32
    %754 = vector.broadcast %cst_480 : f32 to vector<8x512xf32>
    %755 = arith.mulf %754, %739 : vector<8x512xf32>
    %756 = arith.addf %753, %755 : vector<8x512xf32>
    %cst_481 = arith.constant 2.000000e+00 : f32
    %757 = vector.broadcast %cst_481 : f32 to vector<8x512xf32>
    %758 = arith.mulf %757, %756 : vector<8x512xf32>
    %759 = arith.addf %736, %758 : vector<8x512xf32>
    %cst_482 = arith.constant -0.0998999997 : f32
    %760 = vector.broadcast %cst_482 : f32 to vector<8x512xf32>
    %761 = arith.mulf %760, %756 : vector<8x512xf32>
    %762 = arith.addf %696, %761 : vector<8x512xf32>
    %c26 = arith.constant 26 : index
    %c0_483 = arith.constant 0 : index
    %c0_484 = arith.constant 0 : index
    %763 = vector.load %arg2[%c26, %c0_483, %c0_484] : memref<30x32x8xbf16, #tpu.memory_space<vmem>>, vector<1x32x8xbf16>
    %764 = vector.shape_cast %763 : vector<1x32x8xbf16> to vector<32x8xbf16>
    %765 = arith.truncf %762 : vector<8x512xf32> to vector<8x512xbf16>
    %cst_485 = arith.constant dense<0.000000e+00> : vector<32x512xf32>
    %766 = tpu.matmul %764, %765, %cst_485 {dimension_numbers = #tpu.dot_dimension_numbers<[1], [0], [0], [1], [0, 0, 1, 1], [], []>} : vector<32x8xbf16>, vector<8x512xbf16>, vector<32x512xf32> -> vector<32x512xf32>
    %cst_486 = arith.constant 0.000000e+00 : f32
    %767 = vector.broadcast %cst_486 : f32 to vector<32x512xf32>
    %768 = arith.maximumf %766, %767 : vector<32x512xf32>
    %c26_487 = arith.constant 26 : index
    %c0_488 = arith.constant 0 : index
    %c0_489 = arith.constant 0 : index
    %769 = vector.load %arg3[%c26_487, %c0_488, %c0_489] : memref<30x8x32xbf16, #tpu.memory_space<vmem>>, vector<1x8x32xbf16>
    %770 = vector.shape_cast %769 : vector<1x8x32xbf16> to vector<8x32xbf16>
    %771 = arith.truncf %768 : vector<32x512xf32> to vector<32x512xbf16>
    %cst_490 = arith.constant dense<0.000000e+00> : vector<8x512xf32>
    %772 = tpu.matmul %770, %771, %cst_490 {dimension_numbers = #tpu.dot_dimension_numbers<[1], [0], [0], [1], [0, 0, 1, 1], [], []>} : vector<8x32xbf16>, vector<32x512xbf16>, vector<8x512xf32> -> vector<8x512xf32>
    %c26_491 = arith.constant 26 : index
    %c0_492 = arith.constant 0 : index
    %c0_493 = arith.constant 0 : index
    %773 = vector.load %arg4[%c26_491, %c0_492, %c0_493] : memref<30x8x1xf32, #tpu.memory_space<vmem>>, vector<1x8x1xf32>
    %774 = vector.shape_cast %773 : vector<1x8x1xf32> to vector<8x1xf32>
    %775 = vector.broadcast %774 : vector<8x1xf32> to vector<8x512xf32>
    %776 = arith.addf %772, %775 : vector<8x512xf32>
    %cst_494 = arith.constant -1.05395496 : f32
    %777 = vector.broadcast %cst_494 : f32 to vector<8x512xf32>
    %778 = arith.mulf %777, %762 : vector<8x512xf32>
    %779 = arith.addf %776, %778 : vector<8x512xf32>
    %780 = arith.addf %759, %779 : vector<8x512xf32>
    %cst_495 = arith.constant -1.665000e-02 : f32
    %781 = vector.broadcast %cst_495 : f32 to vector<8x512xf32>
    %782 = arith.mulf %781, %780 : vector<8x512xf32>
    %783 = arith.addf %696, %782 : vector<8x512xf32>
    %c27 = arith.constant 27 : index
    %c0_496 = arith.constant 0 : index
    %c0_497 = arith.constant 0 : index
    %784 = vector.load %arg2[%c27, %c0_496, %c0_497] : memref<30x32x8xbf16, #tpu.memory_space<vmem>>, vector<1x32x8xbf16>
    %785 = vector.shape_cast %784 : vector<1x32x8xbf16> to vector<32x8xbf16>
    %786 = arith.truncf %783 : vector<8x512xf32> to vector<8x512xbf16>
    %cst_498 = arith.constant dense<0.000000e+00> : vector<32x512xf32>
    %787 = tpu.matmul %785, %786, %cst_498 {dimension_numbers = #tpu.dot_dimension_numbers<[1], [0], [0], [1], [0, 0, 1, 1], [], []>} : vector<32x8xbf16>, vector<8x512xbf16>, vector<32x512xf32> -> vector<32x512xf32>
    %cst_499 = arith.constant 0.000000e+00 : f32
    %788 = vector.broadcast %cst_499 : f32 to vector<32x512xf32>
    %789 = arith.maximumf %787, %788 : vector<32x512xf32>
    %c27_500 = arith.constant 27 : index
    %c0_501 = arith.constant 0 : index
    %c0_502 = arith.constant 0 : index
    %790 = vector.load %arg3[%c27_500, %c0_501, %c0_502] : memref<30x8x32xbf16, #tpu.memory_space<vmem>>, vector<1x8x32xbf16>
    %791 = vector.shape_cast %790 : vector<1x8x32xbf16> to vector<8x32xbf16>
    %792 = arith.truncf %789 : vector<32x512xf32> to vector<32x512xbf16>
    %cst_503 = arith.constant dense<0.000000e+00> : vector<8x512xf32>
    %793 = tpu.matmul %791, %792, %cst_503 {dimension_numbers = #tpu.dot_dimension_numbers<[1], [0], [0], [1], [0, 0, 1, 1], [], []>} : vector<8x32xbf16>, vector<32x512xbf16>, vector<8x512xf32> -> vector<8x512xf32>
    %c27_504 = arith.constant 27 : index
    %c0_505 = arith.constant 0 : index
    %c0_506 = arith.constant 0 : index
    %794 = vector.load %arg4[%c27_504, %c0_505, %c0_506] : memref<30x8x1xf32, #tpu.memory_space<vmem>>, vector<1x8x1xf32>
    %795 = vector.shape_cast %794 : vector<1x8x1xf32> to vector<8x1xf32>
    %796 = vector.broadcast %795 : vector<8x1xf32> to vector<8x512xf32>
    %797 = arith.addf %793, %796 : vector<8x512xf32>
    %cst_507 = arith.constant -1.05395496 : f32
    %798 = vector.broadcast %cst_507 : f32 to vector<8x512xf32>
    %799 = arith.mulf %798, %783 : vector<8x512xf32>
    %800 = arith.addf %797, %799 : vector<8x512xf32>
    %cst_508 = arith.constant -4.995000e-02 : f32
    %801 = vector.broadcast %cst_508 : f32 to vector<8x512xf32>
    %802 = arith.mulf %801, %800 : vector<8x512xf32>
    %803 = arith.addf %783, %802 : vector<8x512xf32>
    %c28 = arith.constant 28 : index
    %c0_509 = arith.constant 0 : index
    %c0_510 = arith.constant 0 : index
    %804 = vector.load %arg2[%c28, %c0_509, %c0_510] : memref<30x32x8xbf16, #tpu.memory_space<vmem>>, vector<1x32x8xbf16>
    %805 = vector.shape_cast %804 : vector<1x32x8xbf16> to vector<32x8xbf16>
    %806 = arith.truncf %803 : vector<8x512xf32> to vector<8x512xbf16>
    %cst_511 = arith.constant dense<0.000000e+00> : vector<32x512xf32>
    %807 = tpu.matmul %805, %806, %cst_511 {dimension_numbers = #tpu.dot_dimension_numbers<[1], [0], [0], [1], [0, 0, 1, 1], [], []>} : vector<32x8xbf16>, vector<8x512xbf16>, vector<32x512xf32> -> vector<32x512xf32>
    %cst_512 = arith.constant 0.000000e+00 : f32
    %808 = vector.broadcast %cst_512 : f32 to vector<32x512xf32>
    %809 = arith.maximumf %807, %808 : vector<32x512xf32>
    %c28_513 = arith.constant 28 : index
    %c0_514 = arith.constant 0 : index
    %c0_515 = arith.constant 0 : index
    %810 = vector.load %arg3[%c28_513, %c0_514, %c0_515] : memref<30x8x32xbf16, #tpu.memory_space<vmem>>, vector<1x8x32xbf16>
    %811 = vector.shape_cast %810 : vector<1x8x32xbf16> to vector<8x32xbf16>
    %812 = arith.truncf %809 : vector<32x512xf32> to vector<32x512xbf16>
    %cst_516 = arith.constant dense<0.000000e+00> : vector<8x512xf32>
    %813 = tpu.matmul %811, %812, %cst_516 {dimension_numbers = #tpu.dot_dimension_numbers<[1], [0], [0], [1], [0, 0, 1, 1], [], []>} : vector<8x32xbf16>, vector<32x512xbf16>, vector<8x512xf32> -> vector<8x512xf32>
    %c28_517 = arith.constant 28 : index
    %c0_518 = arith.constant 0 : index
    %c0_519 = arith.constant 0 : index
    %814 = vector.load %arg4[%c28_517, %c0_518, %c0_519] : memref<30x8x1xf32, #tpu.memory_space<vmem>>, vector<1x8x1xf32>
    %815 = vector.shape_cast %814 : vector<1x8x1xf32> to vector<8x1xf32>
    %816 = vector.broadcast %815 : vector<8x1xf32> to vector<8x512xf32>
    %817 = arith.addf %813, %816 : vector<8x512xf32>
    %cst_520 = arith.constant -0.556952477 : f32
    %818 = vector.broadcast %cst_520 : f32 to vector<8x512xf32>
    %819 = arith.mulf %818, %803 : vector<8x512xf32>
    %820 = arith.addf %817, %819 : vector<8x512xf32>
    %cst_521 = arith.constant 2.000000e+00 : f32
    %821 = vector.broadcast %cst_521 : f32 to vector<8x512xf32>
    %822 = arith.mulf %821, %820 : vector<8x512xf32>
    %823 = arith.addf %800, %822 : vector<8x512xf32>
    %cst_522 = arith.constant -4.995000e-02 : f32
    %824 = vector.broadcast %cst_522 : f32 to vector<8x512xf32>
    %825 = arith.mulf %824, %820 : vector<8x512xf32>
    %826 = arith.addf %783, %825 : vector<8x512xf32>
    %c28_523 = arith.constant 28 : index
    %c0_524 = arith.constant 0 : index
    %c0_525 = arith.constant 0 : index
    %827 = vector.load %arg2[%c28_523, %c0_524, %c0_525] : memref<30x32x8xbf16, #tpu.memory_space<vmem>>, vector<1x32x8xbf16>
    %828 = vector.shape_cast %827 : vector<1x32x8xbf16> to vector<32x8xbf16>
    %829 = arith.truncf %826 : vector<8x512xf32> to vector<8x512xbf16>
    %cst_526 = arith.constant dense<0.000000e+00> : vector<32x512xf32>
    %830 = tpu.matmul %828, %829, %cst_526 {dimension_numbers = #tpu.dot_dimension_numbers<[1], [0], [0], [1], [0, 0, 1, 1], [], []>} : vector<32x8xbf16>, vector<8x512xbf16>, vector<32x512xf32> -> vector<32x512xf32>
    %cst_527 = arith.constant 0.000000e+00 : f32
    %831 = vector.broadcast %cst_527 : f32 to vector<32x512xf32>
    %832 = arith.maximumf %830, %831 : vector<32x512xf32>
    %c28_528 = arith.constant 28 : index
    %c0_529 = arith.constant 0 : index
    %c0_530 = arith.constant 0 : index
    %833 = vector.load %arg3[%c28_528, %c0_529, %c0_530] : memref<30x8x32xbf16, #tpu.memory_space<vmem>>, vector<1x8x32xbf16>
    %834 = vector.shape_cast %833 : vector<1x8x32xbf16> to vector<8x32xbf16>
    %835 = arith.truncf %832 : vector<32x512xf32> to vector<32x512xbf16>
    %cst_531 = arith.constant dense<0.000000e+00> : vector<8x512xf32>
    %836 = tpu.matmul %834, %835, %cst_531 {dimension_numbers = #tpu.dot_dimension_numbers<[1], [0], [0], [1], [0, 0, 1, 1], [], []>} : vector<8x32xbf16>, vector<32x512xbf16>, vector<8x512xf32> -> vector<8x512xf32>
    %c28_532 = arith.constant 28 : index
    %c0_533 = arith.constant 0 : index
    %c0_534 = arith.constant 0 : index
    %837 = vector.load %arg4[%c28_532, %c0_533, %c0_534] : memref<30x8x1xf32, #tpu.memory_space<vmem>>, vector<1x8x1xf32>
    %838 = vector.shape_cast %837 : vector<1x8x1xf32> to vector<8x1xf32>
    %839 = vector.broadcast %838 : vector<8x1xf32> to vector<8x512xf32>
    %840 = arith.addf %836, %839 : vector<8x512xf32>
    %cst_535 = arith.constant -0.556952477 : f32
    %841 = vector.broadcast %cst_535 : f32 to vector<8x512xf32>
    %842 = arith.mulf %841, %826 : vector<8x512xf32>
    %843 = arith.addf %840, %842 : vector<8x512xf32>
    %cst_536 = arith.constant 2.000000e+00 : f32
    %844 = vector.broadcast %cst_536 : f32 to vector<8x512xf32>
    %845 = arith.mulf %844, %843 : vector<8x512xf32>
    %846 = arith.addf %823, %845 : vector<8x512xf32>
    %cst_537 = arith.constant -0.0998999997 : f32
    %847 = vector.broadcast %cst_537 : f32 to vector<8x512xf32>
    %848 = arith.mulf %847, %843 : vector<8x512xf32>
    %849 = arith.addf %783, %848 : vector<8x512xf32>
    %c29 = arith.constant 29 : index
    %c0_538 = arith.constant 0 : index
    %c0_539 = arith.constant 0 : index
    %850 = vector.load %arg2[%c29, %c0_538, %c0_539] : memref<30x32x8xbf16, #tpu.memory_space<vmem>>, vector<1x32x8xbf16>
    %851 = vector.shape_cast %850 : vector<1x32x8xbf16> to vector<32x8xbf16>
    %852 = arith.truncf %849 : vector<8x512xf32> to vector<8x512xbf16>
    %cst_540 = arith.constant dense<0.000000e+00> : vector<32x512xf32>
    %853 = tpu.matmul %851, %852, %cst_540 {dimension_numbers = #tpu.dot_dimension_numbers<[1], [0], [0], [1], [0, 0, 1, 1], [], []>} : vector<32x8xbf16>, vector<8x512xbf16>, vector<32x512xf32> -> vector<32x512xf32>
    %cst_541 = arith.constant 0.000000e+00 : f32
    %854 = vector.broadcast %cst_541 : f32 to vector<32x512xf32>
    %855 = arith.maximumf %853, %854 : vector<32x512xf32>
    %c29_542 = arith.constant 29 : index
    %c0_543 = arith.constant 0 : index
    %c0_544 = arith.constant 0 : index
    %856 = vector.load %arg3[%c29_542, %c0_543, %c0_544] : memref<30x8x32xbf16, #tpu.memory_space<vmem>>, vector<1x8x32xbf16>
    %857 = vector.shape_cast %856 : vector<1x8x32xbf16> to vector<8x32xbf16>
    %858 = arith.truncf %855 : vector<32x512xf32> to vector<32x512xbf16>
    %cst_545 = arith.constant dense<0.000000e+00> : vector<8x512xf32>
    %859 = tpu.matmul %857, %858, %cst_545 {dimension_numbers = #tpu.dot_dimension_numbers<[1], [0], [0], [1], [0, 0, 1, 1], [], []>} : vector<8x32xbf16>, vector<32x512xbf16>, vector<8x512xf32> -> vector<8x512xf32>
    %c29_546 = arith.constant 29 : index
    %c0_547 = arith.constant 0 : index
    %c0_548 = arith.constant 0 : index
    %860 = vector.load %arg4[%c29_546, %c0_547, %c0_548] : memref<30x8x1xf32, #tpu.memory_space<vmem>>, vector<1x8x1xf32>
    %861 = vector.shape_cast %860 : vector<1x8x1xf32> to vector<8x1xf32>
    %862 = vector.broadcast %861 : vector<8x1xf32> to vector<8x512xf32>
    %863 = arith.addf %859, %862 : vector<8x512xf32>
    %cst_549 = arith.constant -5.995000e-02 : f32
    %864 = vector.broadcast %cst_549 : f32 to vector<8x512xf32>
    %865 = arith.mulf %864, %849 : vector<8x512xf32>
    %866 = arith.addf %863, %865 : vector<8x512xf32>
    %867 = arith.addf %846, %866 : vector<8x512xf32>
    %cst_550 = arith.constant -1.665000e-02 : f32
    %868 = vector.broadcast %cst_550 : f32 to vector<8x512xf32>
    %869 = arith.mulf %868, %867 : vector<8x512xf32>
    %870 = arith.addf %783, %869 : vector<8x512xf32>
    %871 = vector.extract_strided_slice %870 {offsets = [0, 0], sizes = [4, 512], strides = [1, 1]} : vector<8x512xf32> to vector<4x512xf32>
    %cst_551 = arith.constant 1.000000e+00 : f32
    %872 = vector.broadcast %cst_551 : f32 to vector<4x512xf32>
    %873 = arith.addf %871, %872 : vector<4x512xf32>
    %cst_552 = arith.constant 5.000000e-01 : f32
    %874 = vector.broadcast %cst_552 : f32 to vector<4x512xf32>
    %875 = arith.mulf %873, %874 : vector<4x512xf32>
    %c0_553 = arith.constant 0 : index
    %c0_554 = arith.constant 0 : index
    %876 = vector.load %arg5[%c0_553, %c0_554] : memref<4x512xf32, #tpu.memory_space<vmem>>, vector<4x512xf32>
    tpu.vector_store %arg5[%c0_553, %c0_554], %875 {strides = array<i32>} : memref<4x512xf32, #tpu.memory_space<vmem>>, vector<4x512xf32>,
    return
  }
  func.func @transform_0(%arg0: i32) -> (i32, i32) {
    %c0_i32 = arith.constant 0 : i32
    %c0_i32_0 = arith.constant 0 : i32
    return %c0_i32, %arg0 : i32, i32
  }
  func.func @transform_1(%arg0: i32) -> (i32, i32, i32) {
    %c0_i32 = arith.constant 0 : i32
    %c0_i32_0 = arith.constant 0 : i32
    %c0_i32_1 = arith.constant 0 : i32
    %c0_i32_2 = arith.constant 0 : i32
    return %c0_i32, %c0_i32_0, %c0_i32_1 : i32, i32, i32
  }
  func.func @transform_2(%arg0: i32) -> (i32, i32, i32) {
    %c0_i32 = arith.constant 0 : i32
    %c0_i32_0 = arith.constant 0 : i32
    %c0_i32_1 = arith.constant 0 : i32
    %c0_i32_2 = arith.constant 0 : i32
    return %c0_i32, %c0_i32_0, %c0_i32_1 : i32, i32, i32
  }
  func.func @transform_3(%arg0: i32) -> (i32, i32, i32) {
    %c0_i32 = arith.constant 0 : i32
    %c0_i32_0 = arith.constant 0 : i32
    %c0_i32_1 = arith.constant 0 : i32
    %c0_i32_2 = arith.constant 0 : i32
    return %c0_i32, %c0_i32_0, %c0_i32_1 : i32, i32, i32
  }
  func.func @transform_4(%arg0: i32) -> (i32, i32) {
    %c0_i32 = arith.constant 0 : i32
    %c0_i32_0 = arith.constant 0 : i32
    return %c0_i32, %arg0 : i32, i32
  }
}

</mosaic_0001>

<llo_original>
// kernel: probability_flow_sample.1
$region0: #{probability_flow_sample.1}
  #allocation0 [shape = 'u32[]', space=smem, size = 0x4, offset = 0x4, fixed_abs, tag = 'smem constant byte address 0x4 - core index']
  #allocation1 [shape = 'u32[144,128]{1,0:T(1,128)}', space=vmem, size = 0x12000, scoped, tag = 'internal scratch']
  %s0 = inlined_call_operand.vmem [shape: f32[8,512], index: 0, kind: input, shape index: {}]
  %s1 = inlined_call_operand.vmem [shape: bf16[30,32,8], index: 1, kind: input, shape index: {}]
  %s2 = inlined_call_operand.vmem [shape: bf16[30,8,32], index: 2, kind: input, shape index: {}]
  %s3 = inlined_call_operand.vmem [shape: f32[30,8,1], index: 3, kind: input, shape index: {}]
  %s4 = inlined_call_operand.vmem [shape: f32[4,512], index: 4, kind: output, shape index: {}]
  %s5 = sld [smem:[#allocation0]]
  $region26: #{probability_flow_sample.1} parent=0
    _
  %s7 = ssub.s32 1, %s5
  %s8 = scalar_select 0, %s7, %s5
  // Predicated region
  $region2: #{probability_flow_sample.1} parent=0 // pred_check
    _
  $region3: #{probability_flow_sample.1} parent=0 // pred_check_branch
    %10 = sbr.rel (0) target = $region5
  $region4: #{probability_flow_sample.1} parent=0 // pred_region
    _
  $region5: #{probability_flow_sample.1} parent=0 // pred_fallthru
    _
  // Predicated region
  $region6: #{probability_flow_sample.1} parent=0 // pred_check
    _
  $region7: #{probability_flow_sample.1} parent=0 // pred_check_branch
    %12 = sbr.rel (0) target = $region9
  $region8: #{probability_flow_sample.1} parent=0 // pred_region
    _
  $region9: #{probability_flow_sample.1} parent=0 // pred_fallthru
    _
  // Predicated region
  $region10: #{probability_flow_sample.1} parent=0 // pred_check
    _
  $region11: #{probability_flow_sample.1} parent=0 // pred_check_branch
    %14 = sbr.rel (0) target = $region13
  $region12: #{probability_flow_sample.1} parent=0 // pred_region
    _
  $region13: #{probability_flow_sample.1} parent=0 // pred_fallthru
    _
  // Predicated region
  $region14: #{probability_flow_sample.1} parent=0 // pred_check
    _
  $region15: #{probability_flow_sample.1} parent=0 // pred_check_branch
    %16 = sbr.rel (0) target = $region17
  $region16: #{probability_flow_sample.1} parent=0 // pred_region
    _
  $region17: #{probability_flow_sample.1} parent=0 // pred_fallthru
    _
  %v18 = vld [vmem:[%s0] sm:$0xff]
  %v19 = vld [vmem:[%s0 + $0x8] sm:$0xff]
  %v20 = vld [vmem:[%s0 + $0x10] sm:$0xff]
  %v21 = vld [vmem:[%s0 + $0x18] sm:$0xff]
  %v22 = vld [vmem:[%s1] sm:$0xf]
  %v23 = vld [vmem:[%s1 + $0x4] sm:$0xf]
  %v24 = vld [vmem:[%s1 + $0x8] sm:$0xf]
  %v25 = vld [vmem:[%s1 + $0xc] sm:$0xf]
  %v26 = vpack.c.bf16 %v18, %v18
  %v27 = vpack.c.bf16 %v19, %v19
  %v28 = vpack.c.bf16 %v20, %v20
  %v29 = vpack.c.bf16 %v21, %v21
  %v34 = vunpack.c.l.b16 %v22
  %v35 = vunpack.c.l.b16 %v23
  %v36 = vunpack.c.l.b16 %v24
  %v37 = vunpack.c.l.b16 %v25
  %v38 = vpack.c.b16 %v35, %v34
  %v39 = vpack.c.b16 %v37, %v36
  %vm40 = vcmask 64512
  %v42 = vsel %vm40, %v38, 0
  %v45 = vsel %vm40, %v39, 0
  %vm47 = vcmask 1043456
  %v49 = vsel %vm47, %v26, 0
  %v52 = vsel %vm47, %v27, 0
  %v55 = vsel %vm47, %v28, 0
  %v58 = vsel %vm47, %v29, 0
  %60 = vmatprep.subr.bf16.mxu0 %v52
  %61 = vmatpush1.bf16.msra.mxu0 %v49
  %62 = vmatprep.subr.bf16.mxu0 0
  %63 = vmatpush1.bf16.msra.mxu0 0
  %64 = vmatprep.subr.bf16.mxu0 0
  %65 = vmatpush1.bf16.msra.mxu0 0
  %66 = vmatprep.subr.bf16.mxu0 0
  %67 = vmatpush1.bf16.msra.mxu0 0
  %68 = vmatprep.subr.bf16.mxu0 0
  %69 = vmatpush1.bf16.msra.mxu0 0
  %70 = vmatprep.subr.bf16.mxu0 0
  %71 = vmatpush1.bf16.msra.mxu0 0
  %72 = vmatprep.subr.bf16.mxu0 0
  %73 = vmatpush1.bf16.msra.mxu0 0
  %74 = vmatprep.subr.bf16.mxu0 0
  %75 = vmatpush1.bf16.msra.mxu0 0
  %76 = vmatprep.subr.bf16.mxu0 0
  %77 = vmatpush1.bf16.msra.mxu0 0
  %78 = vmatprep.subr.bf16.mxu0 0
  %79 = vmatpush1.bf16.msra.mxu0 0
  %80 = vmatprep.subr.bf16.mxu0 0
  %81 = vmatpush1.bf16.msra.mxu0 0
  %82 = vmatprep.subr.bf16.mxu0 0
  %83 = vmatpush1.bf16.msra.mxu0 0
  %84 = vmatprep.subr.bf16.mxu0 0
  %85 = vmatpush1.bf16.msra.mxu0 0
  %86 = vmatprep.subr.bf16.mxu0 0
  %87 = vmatpush1.bf16.msra.mxu0 0
  %88 = vmatprep.subr.bf16.mxu0 0
  %89 = vmatpush1.bf16.msra.mxu0 0
  %90 = vmatprep.subr.bf16.mxu0 0
  %91 = vmatpush1.bf16.msra.mxu0 0
  %92 = vmatprep.mubr.bf16.mxu0 0
  %93 = vmatmul.mubr.bf16.gmra.mrb[0].mxu0 %v42
  %v94 = vpop.f32.mrb[0].mxu0
  %v95 = vadd.f32 0.0, %v94
  %v96 = vpop.f32.mrb[0].mxu0
  %v97 = vadd.f32 0.0, %v96
  %v98 = vpop.f32.mrb[0].mxu0
  %v99 = vadd.f32 0.0, %v98
  %v100 = vpop.f32.mrb[0].mxu0
  %v101 = vadd.f32 0.0, %v100
  %102 = vmatprep.mubr.bf16.mxu0 0
  %103 = vmatmul.mubr.bf16.gmra.mrb[0].mxu0 %v45
  %v104 = vpop.f32.mrb[0].mxu0
  %v105 = vadd.f32 0.0, %v104
  %v106 = vpop.f32.mrb[0].mxu0
  %v107 = vadd.f32 0.0, %v106
  %v108 = vpop.f32.mrb[0].mxu0
  %v109 = vadd.f32 0.0, %v108
  %v110 = vpop.f32.mrb[0].mxu0
  %v111 = vadd.f32 0.0, %v110
  %112 = vdwg.mxu0
  %113 = vmatprep.subr.bf16.mxu0 %v58
  %114 = vmatpush1.bf16.msra.mxu0 %v55
  %115 = vmatprep.subr.bf16.mxu0 0
  %116 = vmatpush1.bf16.msra.mxu0 0
  %117 = vmatprep.subr.bf16.mxu0 0
  %118 = vmatpush1.bf16.msra.mxu0 0
  %119 = vmatprep.subr.bf16.mxu0 0
  %120 = vmatpush1.bf16.msra.mxu0 0
  %121 = vmatprep.subr.bf16.mxu0 0
  %122 = vmatpush1.bf16.msra.mxu0 0
  %123 = vmatprep.subr.bf16.mxu0 0
  %124 = vmatpush1.bf16.msra.mxu0 0
  %125 = vmatprep.subr.bf16.mxu0 0
  %126 = vmatpush1.bf16.msra.mxu0 0
  %127 = vmatprep.subr.bf16.mxu0 0
  %128 = vmatpush1.bf16.msra.mxu0 0
  %129 = vmatprep.subr.bf16.mxu0 0
  %130 = vmatpush1.bf16.msra.mxu0 0
  %131 = vmatprep.subr.bf16.mxu0 0
  %132 = vmatpush1.bf16.msra.mxu0 0
  %133 = vmatprep.subr.bf16.mxu0 0
  %134 = vmatpush1.bf16.msra.mxu0 0
  %135 = vmatprep.subr.bf16.mxu0 0
  %136 = vmatpush1.bf16.msra.mxu0 0
  %137 = vmatprep.subr.bf16.mxu0 0
  %138 = vmatpush1.bf16.msra.mxu0 0
  %139 = vmatprep.subr.bf16.mxu0 0
  %140 = vmatpush1.bf16.msra.mxu0 0
  %141 = vmatprep.subr.bf16.mxu0 0
  %142 = vmatpush1.bf16.msra.mxu0 0
  %143 = vmatprep.subr.bf16.mxu0 0
  %144 = vmatpush1.bf16.msra.mxu0 0
  %145 = vmatprep.mubr.bf16.mxu0 0
  %146 = vmatmul.mubr.bf16.gmra.mrb[0].mxu0 %v42
  %v147 = vpop.f32.mrb[0].mxu0
  %v148 = vadd.f32 0.0, %v147
  %v149 = vpop.f32.mrb[0].mxu0
  %v150 = vadd.f32 0.0, %v149
  %v151 = vpop.f32.mrb[0].mxu0
  %v152 = vadd.f32 0.0, %v151
  %v153 = vpop.f32.mrb[0].mxu0
  %v154 = vadd.f32 0.0, %v153
  %155 = vmatprep.mubr.bf16.mxu0 0
  %156 = vmatmul.mubr.bf16.gmra.mrb[0].mxu0 %v45
  %v157 = vpop.f32.mrb[0].mxu0
  %v158 = vadd.f32 0.0, %v157
  %v159 = vpop.f32.mrb[0].mxu0
  %v160 = vadd.f32 0.0, %v159
  %v161 = vpop.f32.mrb[0].mxu0
  %v162 = vadd.f32 0.0, %v161
  %v163 = vpop.f32.mrb[0].mxu0
  %v164 = vadd.f32 0.0, %v163
  %165 = vdwg.mxu0
  %v166 = vmax.f32 %v95, 0.0
  %v167 = vmax.f32 %v97, 0.0
  %v168 = vmax.f32 %v148, 0.0
  %v169 = vmax.f32 %v150, 0.0
  %v170 = vmax.f32 %v99, 0.0
  %v171 = vmax.f32 %v101, 0.0
  %v172 = vmax.f32 %v152, 0.0
  %v173 = vmax.f32 %v154, 0.0
  %v174 = vmax.f32 %v105, 0.0
  %v175 = vmax.f32 %v107, 0.0
  %v176 = vmax.f32 %v158, 0.0
  %v177 = vmax.f32 %v160, 0.0
  %v178 = vmax.f32 %v109, 0.0
  %v179 = vmax.f32 %v111, 0.0
  %v180 = vmax.f32 %v162, 0.0
  %v181 = vmax.f32 %v164, 0.0
  %v182 = vld [vmem:[%s2] sm:$0xf]
  %v183 = vpack.c.bf16 %v170, %v166
  %v184 = vpack.c.bf16 %v171, %v167
  %v185 = vpack.c.bf16 %v172, %v168
  %v186 = vpack.c.bf16 %v173, %v169
  %v187 = vpack.c.bf16 %v178, %v174
  %v188 = vpack.c.bf16 %v179, %v175
  %v189 = vpack.c.bf16 %v180, %v176
  %v190 = vpack.c.bf16 %v181, %v177
  %v191 = vld [vmem:[%s3] sm:$0xff]
  %193 = vset.pattern.permute.xlu0 0
  %194 = vperm.xlu0 %193, %v191
  %v195 = vpop.permute.xlu0 %194
  %vm197 = vcmask 261120
  %v199 = vsel %vm197, %v182, 0
  %201 = vmatprep.subr.bf16.mxu0 %v184
  %202 = vmatpush1.bf16.msra.mxu0 %v183
  %203 = vmatprep.subr.bf16.mxu0 %v188
  %204 = vmatpush1.bf16.msra.mxu0 %v187
  %205 = vmatprep.subr.bf16.mxu0 0
  %206 = vmatpush1.bf16.msra.mxu0 0
  %207 = vmatprep.subr.bf16.mxu0 0
  %208 = vmatpush1.bf16.msra.mxu0 0
  %209 = vmatprep.subr.bf16.mxu0 0
  %210 = vmatpush1.bf16.msra.mxu0 0
  %211 = vmatprep.subr.bf16.mxu0 0
  %212 = vmatpush1.bf16.msra.mxu0 0
  %213 = vmatprep.subr.bf16.mxu0 0
  %214 = vmatpush1.bf16.msra.mxu0 0
  %215 = vmatprep.subr.bf16.mxu0 0
  %216 = vmatpush1.bf16.msra.mxu0 0
  %217 = vmatprep.subr.bf16.mxu0 0
  %218 = vmatpush1.bf16.msra.mxu0 0
  %219 = vmatprep.subr.bf16.mxu0 0
  %220 = vmatpush1.bf16.msra.mxu0 0
  %221 = vmatprep.subr.bf16.mxu0 0
  %222 = vmatpush1.bf16.msra.mxu0 0
  %223 = vmatprep.subr.bf16.mxu0 0
  %224 = vmatpush1.bf16.msra.mxu0 0
  %225 = vmatprep.subr.bf16.mxu0 0
  %226 = vmatpush1.bf16.msra.mxu0 0
  %227 = vmatprep.subr.bf16.mxu0 0
  %228 = vmatpush1.bf16.msra.mxu0 0
  %229 = vmatprep.subr.bf16.mxu0 0
  %230 = vmatpush1.bf16.msra.mxu0 0
  %231 = vmatprep.subr.bf16.mxu0 0
  %232 = vmatpush1.bf16.msra.mxu0 0
  %233 = vmatprep.mubr.bf16.mxu0 0
  %234 = vmatmul.mubr.bf16.gmra.mrb[0].mxu0 %v199
  %v235 = vpop.f32.mrb[0].mxu0
  %v236 = vadd.f32 %v195, %v235
  %v237 = vpop.f32.mrb[0].mxu0
  %v238 = vadd.f32 %v195, %v237
  %v239 = vpop.f32.mrb[0].mxu0
  %v240 = vpop.f32.mrb[0].mxu0
  %241 = vdwg.mxu0
  %242 = vmatprep.subr.bf16.mxu0 %v186
  %243 = vmatpush1.bf16.msra.mxu0 %v185
  %244 = vmatprep.subr.bf16.mxu0 %v190
  %245 = vmatpush1.bf16.msra.mxu0 %v189
  %246 = vmatprep.subr.bf16.mxu0 0
  %247 = vmatpush1.bf16.msra.mxu0 0
  %248 = vmatprep.subr.bf16.mxu0 0
  %249 = vmatpush1.bf16.msra.mxu0 0
  %250 = vmatprep.subr.bf16.mxu0 0
  %251 = vmatpush1.bf16.msra.mxu0 0
  %252 = vmatprep.subr.bf16.mxu0 0
  %253 = vmatpush1.bf16.msra.mxu0 0
  %254 = vmatprep.subr.bf16.mxu0 0
  %255 = vmatpush1.bf16.msra.mxu0 0
  %256 = vmatprep.subr.bf16.mxu0 0
  %257 = vmatpush1.bf16.msra.mxu0 0
  %258 = vmatprep.subr.bf16.mxu0 0
  %259 = vmatpush1.bf16.msra.mxu0 0
  %260 = vmatprep.subr.bf16.mxu0 0
  %261 = vmatpush1.bf16.msra.mxu0 0
  %262 = vmatprep.subr.bf16.mxu0 0
  %263 = vmatpush1.bf16.msra.mxu0 0
  %264 = vmatprep.subr.bf16.mxu0 0
  %265 = vmatpush1.bf16.msra.mxu0 0
  %266 = vmatprep.subr.bf16.mxu0 0
  %267 = vmatpush1.bf16.msra.mxu0 0
  %268 = vmatprep.subr.bf16.mxu0 0
  %269 = vmatpush1.bf16.msra.mxu0 0
  %270 = vmatprep.subr.bf16.mxu0 0
  %271 = vmatpush1.bf16.msra.mxu0 0
  %272 = vmatprep.subr.bf16.mxu0 0
  %273 = vmatpush1.bf16.msra.mxu0 0
  %274 = vmatprep.mubr.bf16.mxu0 0
  %275 = vmatmul.mubr.bf16.gmra.mrb[0].mxu0 %v199
  %v276 = vpop.f32.mrb[0].mxu0
  %v277 = vadd.f32 %v195, %v276
  %v278 = vpop.f32.mrb[0].mxu0
  %v279 = vadd.f32 %v195, %v278
  %v280 = vpop.f32.mrb[0].mxu0
  %v281 = vpop.f32.mrb[0].mxu0
  %282 = vdwg.mxu0
  %v283 = vmul.f32 %v18, -10.0
  %v284 = vmul.f32 %v19, -10.0
  %v285 = vmul.f32 %v20, -10.0
  %v286 = vmul.f32 %v21, -10.0
  %v287 = vadd.f32 %v236, %v283
  %v288 = vadd.f32 %v238, %v284
  %v289 = vadd.f32 %v277, %v285
  %v290 = vadd.f32 %v279, %v286
  %v291 = vmul.f32 %v287, -0.04995
  %v292 = vmul.f32 %v288, -0.04995
  %v293 = vmul.f32 %v289, -0.04995
  %v294 = vmul.f32 %v290, -0.04995
  %v295 = vadd.f32 %v18, %v291
  %v296 = vadd.f32 %v19, %v292
  %v297 = vadd.f32 %v20, %v293
  %v298 = vadd.f32 %v21, %v294
  %s299 = scalar_lea.vmem %s1, 16
  %v300 = vld [vmem:[%s299] sm:$0xf]
  %v301 = vld [vmem:[%s299 + $0x4] sm:$0xf]
  %v302 = vld [vmem:[%s299 + $0x8] sm:$0xf]
  %v303 = vld [vmem:[%s299 + $0xc] sm:$0xf]
  %v304 = vpack.c.bf16 %v295, %v295
  %v305 = vpack.c.bf16 %v296, %v296
  %v306 = vpack.c.bf16 %v297, %v297
  %v307 = vpack.c.bf16 %v298, %v298
  %v312 = vunpack.c.l.b16 %v300
  %v313 = vunpack.c.l.b16 %v301
  %v314 = vunpack.c.l.b16 %v302
  %v315 = vunpack.c.l.b16 %v303
  %v316 = vpack.c.b16 %v313, %v312
  %v317 = vpack.c.b16 %v315, %v314
  %v319 = vsel %vm40, %v316, 0
  %v322 = vsel %vm40, %v317, 0
  %v325 = vsel %vm47, %v304, 0
  %v328 = vsel %vm47, %v305, 0
  %v331 = vsel %vm47, %v306, 0
  %v334 = vsel %vm47, %v307, 0
  %336 = vmatprep.subr.bf16.mxu0 %v328
  %337 = vmatpush1.bf16.msra.mxu0 %v325
  %338 = vmatprep.subr.bf16.mxu0 0
  %339 = vmatpush1.bf16.msra.mxu0 0
  %340 = vmatprep.subr.bf16.mxu0 0
  %341 = vmatpush1.bf16.msra.mxu0 0
  %342 = vmatprep.subr.bf16.mxu0 0
  %343 = vmatpush1.bf16.msra.mxu0 0
  %344 = vmatprep.subr.bf16.mxu0 0
  %345 = vmatpush1.bf16.msra.mxu0 0
  %346 = vmatprep.subr.bf16.mxu0 0
  %347 = vmatpush1.bf16.msra.mxu0 0
  %348 = vmatprep.subr.bf16.mxu0 0
  %349 = vmatpush1.bf16.msra.mxu0 0
  %350 = vmatprep.subr.bf16.mxu0 0
  %351 = vmatpush1.bf16.msra.mxu0 0
  %352 = vmatprep.subr.bf16.mxu0 0
  %353 = vmatpush1.bf16.msra.mxu0 0
  %354 = vmatprep.subr.bf16.mxu0 0
  %355 = vmatpush1.bf16.msra.mxu0 0
  %356 = vmatprep.subr.bf16.mxu0 0
  %357 = vmatpush1.bf16.msra.mxu0 0
  %358 = vmatprep.subr.bf16.mxu0 0
  %359 = vmatpush1.bf16.msra.mxu0 0
  %360 = vmatprep.subr.bf16.mxu0 0
  %361 = vmatpush1.bf16.msra.mxu0 0
  %362 = vmatprep.subr.bf16.mxu0 0
  %363 = vmatpush1.bf16.msra.mxu0 0
  %364 = vmatprep.subr.bf16.mxu0 0
  %365 = vmatpush1.bf16.msra.mxu0 0
  %366 = vmatprep.subr.bf16.mxu0 0
  %367 = vmatpush1.bf16.msra.mxu0 0
  %368 = vmatprep.mubr.bf16.mxu0 0
  %369 = vmatmul.mubr.bf16.gmra.mrb[0].mxu0 %v319
  %v370 = vpop.f32.mrb[0].mxu0
  %v371 = vadd.f32 0.0, %v370
  %v372 = vpop.f32.mrb[0].mxu0
  %v373 = vadd.f32 0.0, %v372
  %v374 = vpop.f32.mrb[0].mxu0
  %v375 = vadd.f32 0.0, %v374
  %v376 = vpop.f32.mrb[0].mxu0
  %v377 = vadd.f32 0.0, %v376
  %378 = vmatprep.mubr.bf16.mxu0 0
  %379 = vmatmul.mubr.bf16.gmra.mrb[0].mxu0 %v322
  %v380 = vpop.f32.mrb[0].mxu0
  %v381 = vadd.f32 0.0, %v380
  %v382 = vpop.f32.mrb[0].mxu0
  %v383 = vadd.f32 0.0, %v382
  %v384 = vpop.f32.mrb[0].mxu0
  %v385 = vadd.f32 0.0, %v384
  %v386 = vpop.f32.mrb[0].mxu0
  %v387 = vadd.f32 0.0, %v386
  %388 = vdwg.mxu0
  %389 = vmatprep.subr.bf16.mxu0 %v334
  %390 = vmatpush1.bf16.msra.mxu0 %v331
  %391 = vmatprep.subr.bf16.mxu0 0
  %392 = vmatpush1.bf16.msra.mxu0 0
  %393 = vmatprep.subr.bf16.mxu0 0
  %394 = vmatpush1.bf16.msra.mxu0 0
  %395 = vmatprep.subr.bf16.mxu0 0
  %396 = vmatpush1.bf16.msra.mxu0 0
  %397 = vmatprep.subr.bf16.mxu0 0
  %398 = vmatpush1.bf16.msra.mxu0 0
  %399 = vmatprep.subr.bf16.mxu0 0
  %400 = vmatpush1.bf16.msra.mxu0 0
  %401 = vmatprep.subr.bf16.mxu0 0
  %402 = vmatpush1.bf16.msra.mxu0 0
  %403 = vmatprep.subr.bf16.mxu0 0
  %404 = vmatpush1.bf16.msra.mxu0 0
  %405 = vmatprep.subr.bf16.mxu0 0
  %406 = vmatpush1.bf16.msra.mxu0 0
  %407 = vmatprep.subr.bf16.mxu0 0
  %408 = vmatpush1.bf16.msra.mxu0 0
  %409 = vmatprep.subr.bf16.mxu0 0
  %410 = vmatpush1.bf16.msra.mxu0 0
  %411 = vmatprep.subr.bf16.mxu0 0
  %412 = vmatpush1.bf16.msra.mxu0 0
  %413 = vmatprep.subr.bf16.mxu0 0
  %414 = vmatpush1.bf16.msra.mxu0 0
  %415 = vmatprep.subr.bf16.mxu0 0
  %416 = vmatpush1.bf16.msra.mxu0 0
  %417 = vmatprep.subr.bf16.mxu0 0
  %418 = vmatpush1.bf16.msra.mxu0 0
  %419 = vmatprep.subr.bf16.mxu0 0
  %420 = vmatpush1.bf16.msra.mxu0 0
  %421 = vmatprep.mubr.bf16.mxu0 0
  %422 = vmatmul.mubr.bf16.gmra.mrb[0].mxu0 %v319
  %v423 = vpop.f32.mrb[0].mxu0
  %v424 = vadd.f32 0.0, %v423
  %v425 = vpop.f32.mrb[0].mxu0
  %v426 = vadd.f32 0.0, %v425
  %v427 = vpop.f32.mrb[0].mxu0
  %v428 = vadd.f32 0.0, %v427
  %v429 = vpop.f32.mrb[0].mxu0
  %v430 = vadd.f32 0.0, %v429
  %431 = vmatprep.mubr.bf16.mxu0 0
  %432 = vmatmul.mubr.bf16.gmra.mrb[0].mxu0 %v322
  %v433 = vpop.f32.mrb[0].mxu0
  %v434 = vadd.f32 0.0, %v433
  %v435 = vpop.f32.mrb[0].mxu0
  %v436 = vadd.f32 0.0, %v435
  %v437 = vpop.f32.mrb[0].mxu0
  %v438 = vadd.f32 0.0, %v437
  %v439 = vpop.f32.mrb[0].mxu0
  %v440 = vadd.f32 0.0, %v439
  %441 = vdwg.mxu0
  %v442 = vmax.f32 %v371, 0.0
  %v443 = vmax.f32 %v373, 0.0
  %v444 = vmax.f32 %v424, 0.0
  %v445 = vmax.f32 %v426, 0.0
  %v446 = vmax.f32 %v375, 0.0
  %v447 = vmax.f32 %v377, 0.0
  %v448 = vmax.f32 %v428, 0.0
  %v449 = vmax.f32 %v430, 0.0
  %v450 = vmax.f32 %v381, 0.0
  %v451 = vmax.f32 %v383, 0.0
  %v452 = vmax.f32 %v434, 0.0
  %v453 = vmax.f32 %v436, 0.0
  %v454 = vmax.f32 %v385, 0.0
  %v455 = vmax.f32 %v387, 0.0
  %v456 = vmax.f32 %v438, 0.0
  %v457 = vmax.f32 %v440, 0.0
  %s458 = scalar_lea.vmem %s2, 4
  %v459 = vld [vmem:[%s458] sm:$0xf]
  %v460 = vpack.c.bf16 %v446, %v442
  %v461 = vpack.c.bf16 %v447, %v443
  %v462 = vpack.c.bf16 %v448, %v444
  %v463 = vpack.c.bf16 %v449, %v445
  %v464 = vpack.c.bf16 %v454, %v450
  %v465 = vpack.c.bf16 %v455, %v451
  %v466 = vpack.c.bf16 %v456, %v452
  %v467 = vpack.c.bf16 %v457, %v453
  %s468 = scalar_lea.vmem %s3, 8
  %v469 = vld [vmem:[%s468] sm:$0xff]
  %471 = vset.pattern.permute.xlu0 0
  %472 = vperm.xlu0 %471, %v469
  %v473 = vpop.permute.xlu0 %472
  %v476 = vsel %vm197, %v459, 0
  %478 = vmatprep.subr.bf16.mxu0 %v461
  %479 = vmatpush1.bf16.msra.mxu0 %v460
  %480 = vmatprep.subr.bf16.mxu0 %v465
  %481 = vmatpush1.bf16.msra.mxu0 %v464
  %482 = vmatprep.subr.bf16.mxu0 0
  %483 = vmatpush1.bf16.msra.mxu0 0
  %484 = vmatprep.subr.bf16.mxu0 0
  %485 = vmatpush1.bf16.msra.mxu0 0
  %486 = vmatprep.subr.bf16.mxu0 0
  %487 = vmatpush1.bf16.msra.mxu0 0
  %488 = vmatprep.subr.bf16.mxu0 0
  %489 = vmatpush1.bf16.msra.mxu0 0
  %490 = vmatprep.subr.bf16.mxu0 0
  %491 = vmatpush1.bf16.msra.mxu0 0
  %492 = vmatprep.subr.bf16.mxu0 0
  %493 = vmatpush1.bf16.msra.mxu0 0
  %494 = vmatprep.subr.bf16.mxu0 0
  %495 = vmatpush1.bf16.msra.mxu0 0
  %496 = vmatprep.subr.bf16.mxu0 0
  %497 = vmatpush1.bf16.msra.mxu0 0
  %498 = vmatprep.subr.bf16.mxu0 0
  %499 = vmatpush1.bf16.msra.mxu0 0
  %500 = vmatprep.subr.bf16.mxu0 0
  %501 = vmatpush1.bf16.msra.mxu0 0
  %502 = vmatprep.subr.bf16.mxu0 0
  %503 = vmatpush1.bf16.msra.mxu0 0
  %504 = vmatprep.subr.bf16.mxu0 0
  %505 = vmatpush1.bf16.msra.mxu0 0
  %506 = vmatprep.subr.bf16.mxu0 0
  %507 = vmatpush1.bf16.msra.mxu0 0
  %508 = vmatprep.subr.bf16.mxu0 0
  %509 = vmatpush1.bf16.msra.mxu0 0
  %510 = vmatprep.mubr.bf16.mxu0 0
  %511 = vmatmul.mubr.bf16.gmra.mrb[0].mxu0 %v476
  %v512 = vpop.f32.mrb[0].mxu0
  %v513 = vadd.f32 %v473, %v512
  %v514 = vpop.f32.mrb[0].mxu0
  %v515 = vadd.f32 %v473, %v514
  %v516 = vpop.f32.mrb[0].mxu0
  %v517 = vpop.f32.mrb[0].mxu0
  %518 = vdwg.mxu0
  %519 = vmatprep.subr.bf16.mxu0 %v463
  %520 = vmatpush1.bf16.msra.mxu0 %v462
  %521 = vmatprep.subr.bf16.mxu0 %v467
  %522 = vmatpush1.bf16.msra.mxu0 %v466
  %523 = vmatprep.subr.bf16.mxu0 0
  %524 = vmatpush1.bf16.msra.mxu0 0
  %525 = vmatprep.subr.bf16.mxu0 0
  %526 = vmatpush1.bf16.msra.mxu0 0
  %527 = vmatprep.subr.bf16.mxu0 0
  %528 = vmatpush1.bf16.msra.mxu0 0
  %529 = vmatprep.subr.bf16.mxu0 0
  %530 = vmatpush1.bf16.msra.mxu0 0
  %531 = vmatprep.subr.bf16.mxu0 0
  %532 = vmatpush1.bf16.msra.mxu0 0
  %533 = vmatprep.subr.bf16.mxu0 0
  %534 = vmatpush1.bf16.msra.mxu0 0
  %535 = vmatprep.subr.bf16.mxu0 0
  %536 = vmatpush1.bf16.msra.mxu0 0
  %537 = vmatprep.subr.bf16.mxu0 0
  %538 = vmatpush1.bf16.msra.mxu0 0
  %539 = vmatprep.subr.bf16.mxu0 0
  %540 = vmatpush1.bf16.msra.mxu0 0
  %541 = vmatprep.subr.bf16.mxu0 0
  %542 = vmatpush1.bf16.msra.mxu0 0
  %543 = vmatprep.subr.bf16.mxu0 0
  %544 = vmatpush1.bf16.msra.mxu0 0
  %545 = vmatprep.subr.bf16.mxu0 0
  %546 = vmatpush1.bf16.msra.mxu0 0
  %547 = vmatprep.subr.bf16.mxu0 0
  %548 = vmatpush1.bf16.msra.mxu0 0
  %549 = vmatprep.subr.bf16.mxu0 0
  %550 = vmatpush1.bf16.msra.mxu0 0
  %551 = vmatprep.mubr.bf16.mxu0 0
  %552 = vmatmul.mubr.bf16.gmra.mrb[0].mxu0 %v476
  %v553 = vpop.f32.mrb[0].mxu0
  %v554 = vadd.f32 %v473, %v553
  %v555 = vpop.f32.mrb[0].mxu0
  %v556 = vadd.f32 %v473, %v555
  %v557 = vpop.f32.mrb[0].mxu0
  %v558 = vpop.f32.mrb[0].mxu0
  %559 = vdwg.mxu0
  %v560 = vmul.f32 %v295, -9.502997
  %v561 = vmul.f32 %v296, -9.502997
  %v562 = vmul.f32 %v297, -9.502997
  %v563 = vmul.f32 %v298, -9.502997
  %v564 = vadd.f32 %v513, %v560
  %v565 = vadd.f32 %v515, %v561
  %v566 = vadd.f32 %v554, %v562
  %v567 = vadd.f32 %v556, %v563
  %v568 = vmul.f32 %v564, 2.0
  %v569 = vmul.f32 %v565, 2.0
  %v570 = vmul.f32 %v566, 2.0
  %v571 = vmul.f32 %v567, 2.0
  %v572 = vadd.f32 %v287, %v568
  %v573 = vadd.f32 %v288, %v569
  %v574 = vadd.f32 %v289, %v570
  %v575 = vadd.f32 %v290, %v571
  %v576 = vmul.f32 %v564, -0.04995
  %v577 = vmul.f32 %v565, -0.04995
  %v578 = vmul.f32 %v566, -0.04995
  %v579 = vmul.f32 %v567, -0.04995
  %v580 = vadd.f32 %v18, %v576
  %v581 = vadd.f32 %v19, %v577
  %v582 = vadd.f32 %v20, %v578
  %v583 = vadd.f32 %v21, %v579
  %v584 = vpack.c.bf16 %v580, %v580
  %v585 = vpack.c.bf16 %v581, %v581
  %v586 = vpack.c.bf16 %v582, %v582
  %v587 = vpack.c.bf16 %v583, %v583
  %v589 = vsel %vm47, %v584, 0
  %v592 = vsel %vm47, %v585, 0
  %v595 = vsel %vm47, %v586, 0
  %v598 = vsel %vm47, %v587, 0
  %600 = vmatprep.subr.bf16.mxu0 %v592
  %601 = vmatpush1.bf16.msra.mxu0 %v589
  %602 = vmatprep.subr.bf16.mxu0 0
  %603 = vmatpush1.bf16.msra.mxu0 0
  %604 = vmatprep.subr.bf16.mxu0 0
  %605 = vmatpush1.bf16.msra.mxu0 0
  %606 = vmatprep.subr.bf16.mxu0 0
  %607 = vmatpush1.bf16.msra.mxu0 0
  %608 = vmatprep.subr.bf16.mxu0 0
  %609 = vmatpush1.bf16.msra.mxu0 0
  %610 = vmatprep.subr.bf16.mxu0 0
  %611 = vmatpush1.bf16.msra.mxu0 0
  %612 = vmatprep.subr.bf16.mxu0 0
  %613 = vmatpush1.bf16.msra.mxu0 0
  %614 = vmatprep.subr.bf16.mxu0 0
  %615 = vmatpush1.bf16.msra.mxu0 0
  %616 = vmatprep.subr.bf16.mxu0 0
  %617 = vmatpush1.bf16.msra.mxu0 0
  %618 = vmatprep.subr.bf16.mxu0 0
  %619 = vmatpush1.bf16.msra.mxu0 0
  %620 = vmatprep.subr.bf16.mxu0 0
  %621 = vmatpush1.bf16.msra.mxu0 0
  %622 = vmatprep.subr.bf16.mxu0 0
  %623 = vmatpush1.bf16.msra.mxu0 0
  %624 = vmatprep.subr.bf16.mxu0 0
  %625 = vmatpush1.bf16.msra.mxu0 0
  %626 = vmatprep.subr.bf16.mxu0 0
  %627 = vmatpush1.bf16.msra.mxu0 0
  %628 = vmatprep.subr.bf16.mxu0 0
  %629 = vmatpush1.bf16.msra.mxu0 0
  %630 = vmatprep.subr.bf16.mxu0 0
  %631 = vmatpush1.bf16.msra.mxu0 0
  %632 = vmatprep.mubr.bf16.mxu0 0
  %633 = vmatmul.mubr.bf16.gmra.mrb[0].mxu0 %v319
  %v634 = vpop.f32.mrb[0].mxu0
  %v635 = vadd.f32 0.0, %v634
  %v636 = vpop.f32.mrb[0].mxu0
  %v637 = vadd.f32 0.0, %v636
  %v638 = vpop.f32.mrb[0].mxu0
  %v639 = vadd.f32 0.0, %v638
  %v640 = vpop.f32.mrb[0].mxu0
  %v641 = vadd.f32 0.0, %v640
  %642 = vmatprep.mubr.bf16.mxu0 0
  %643 = vmatmul.mubr.bf16.gmra.mrb[0].mxu0 %v322
  %v644 = vpop.f32.mrb[0].mxu0
  %v645 = vadd.f32 0.0, %v644
  %v646 = vpop.f32.mrb[0].mxu0
  %v647 = vadd.f32 0.0, %v646
  %v648 = vpop.f32.mrb[0].mxu0
  %v649 = vadd.f32 0.0, %v648
  %v650 = vpop.f32.mrb[0].mxu0
  %v651 = vadd.f32 0.0, %v650
  %652 = vdwg.mxu0
  %653 = vmatprep.subr.bf16.mxu0 %v598
  %654 = vmatpush1.bf16.msra.mxu0 %v595
  %655 = vmatprep.subr.bf16.mxu0 0
  %656 = vmatpush1.bf16.msra.mxu0 0
  %657 = vmatprep.subr.bf16.mxu0 0
  %658 = vmatpush1.bf16.msra.mxu0 0
  %659 = vmatprep.subr.bf16.mxu0 0
  %660 = vmatpush1.bf16.msra.mxu0 0
  %661 = vmatprep.subr.bf16.mxu0 0
  %662 = vmatpush1.bf16.msra.mxu0 0
  %663 = vmatprep.subr.bf16.mxu0 0
  %664 = vmatpush1.bf16.msra.mxu0 0
  %665 = vmatprep.subr.bf16.mxu0 0
  %666 = vmatpush1.bf16.msra.mxu0 0
  %667 = vmatprep.subr.bf16.mxu0 0
  %668 = vmatpush1.bf16.msra.mxu0 0
  %669 = vmatprep.subr.bf16.mxu0 0
  %670 = vmatpush1.bf16.msra.mxu0 0
  %671 = vmatprep.subr.bf16.mxu0 0
  %672 = vmatpush1.bf16.msra.mxu0 0
  %673 = vmatprep.subr.bf16.mxu0 0
  %674 = vmatpush1.bf16.msra.mxu0 0
  %675 = vmatprep.subr.bf16.mxu0 0
  %676 = vmatpush1.bf16.msra.mxu0 0
  %677 = vmatprep.subr.bf16.mxu0 0
  %678 = vmatpush1.bf16.msra.mxu0 0
  %679 = vmatprep.subr.bf16.mxu0 0
  %680 = vmatpush1.bf16.msra.mxu0 0
  %681 = vmatprep.subr.bf16.mxu0 0
  %682 = vmatpush1.bf16.msra.mxu0 0
  %683 = vmatprep.subr.bf16.mxu0 0
  %684 = vmatpush1.bf16.msra.mxu0 0
  %685 = vmatprep.mubr.bf16.mxu0 0
  %686 = vmatmul.mubr.bf16.gmra.mrb[0].mxu0 %v319
  %v687 = vpop.f32.mrb[0].mxu0
  %v688 = vadd.f32 0.0, %v687
  %v689 = vpop.f32.mrb[0].mxu0
  %v690 = vadd.f32 0.0, %v689
  %v691 = vpop.f32.mrb[0].mxu0
  %v692 = vadd.f32 0.0, %v691
  %v693 = vpop.f32.mrb[0].mxu0
  %v694 = vadd.f32 0.0, %v693
  %695 = vmatprep.mubr.bf16.mxu0 0
  %696 = vmatmul.mubr.bf16.gmra.mrb[0].mxu0 %v322
  %v697 = vpop.f32.mrb[0].mxu0
  %v698 = vadd.f32 0.0, %v697
  %v699 = vpop.f32.mrb[0].mxu0
  %v700 = vadd.f32 0.0, %v699
  %v701 = vpop.f32.mrb[0].mxu0
  %v702 = vadd.f32 0.0, %v701
  %v703 = vpop.f32.mrb[0].mxu0
  %v704 = vadd.f32 0.0, %v703
  %705 = vdwg.mxu0
  %v706 = vmax.f32 %v635, 0.0
  %v707 = vmax.f32 %v637, 0.0
  %v708 = vmax.f32 %v688, 0.0
  %v709 = vmax.f32 %v690, 0.0
  %v710 = vmax.f32 %v639, 0.0
  %v711 = vmax.f32 %v641, 0.0
  %v712 = vmax.f32 %v692, 0.0
  %v713 = vmax.f32 %v694, 0.0
  %v714 = vmax.f32 %v645, 0.0
  %v715 = vmax.f32 %v647, 0.0
  %v716 = vmax.f32 %v698, 0.0
  %v717 = vmax.f32 %v700, 0.0
  %v718 = vmax.f32 %v649, 0.0
  %v719 = vmax.f32 %v651, 0.0
  %v720 = vmax.f32 %v702, 0.0
  %v721 = vmax.f32 %v704, 0.0
  %v722 = vpack.c.bf16 %v710, %v706
  %v723 = vpack.c.bf16 %v711, %v707
  %v724 = vpack.c.bf16 %v712, %v708
  %v725 = vpack.c.bf16 %v713, %v709
  %v726 = vpack.c.bf16 %v718, %v714
  %v727 = vpack.c.bf16 %v719, %v715
  %v728 = vpack.c.bf16 %v720, %v716
  %v729 = vpack.c.bf16 %v721, %v717
  %730 = vmatprep.subr.bf16.mxu0 %v723
  %731 = vmatpush1.bf16.msra.mxu0 %v722
  %732 = vmatprep.subr.bf16.mxu0 %v727
  %733 = vmatpush1.bf16.msra.mxu0 %v726
  %734 = vmatprep.subr.bf16.mxu0 0
  %735 = vmatpush1.bf16.msra.mxu0 0
  %736 = vmatprep.subr.bf16.mxu0 0
  %737 = vmatpush1.bf16.msra.mxu0 0
  %738 = vmatprep.subr.bf16.mxu0 0
  %739 = vmatpush1.bf16.msra.mxu0 0
  %740 = vmatprep.subr.bf16.mxu0 0
  %741 = vmatpush1.bf16.msra.mxu0 0
  %742 = vmatprep.subr.bf16.mxu0 0
  %743 = vmatpush1.bf16.msra.mxu0 0
  %744 = vmatprep.subr.bf16.mxu0 0
  %745 = vmatpush1.bf16.msra.mxu0 0
  %746 = vmatprep.subr.bf16.mxu0 0
  %747 = vmatpush1.bf16.msra.mxu0 0
  %748 = vmatprep.subr.bf16.mxu0 0
  %749 = vmatpush1.bf16.msra.mxu0 0
  %750 = vmatprep.subr.bf16.mxu0 0
  %751 = vmatpush1.bf16.msra.mxu0 0
  %752 = vmatprep.subr.bf16.mxu0 0
  %753 = vmatpush1.bf16.msra.mxu0 0
  %754 = vmatprep.subr.bf16.mxu0 0
  %755 = vmatpush1.bf16.msra.mxu0 0
  %756 = vmatprep.subr.bf16.mxu0 0
  %757 = vmatpush1.bf16.msra.mxu0 0
  %758 = vmatprep.subr.bf16.mxu0 0
  %759 = vmatpush1.bf16.msra.mxu0 0
  %760 = vmatprep.subr.bf16.mxu0 0
  %761 = vmatpush1.bf16.msra.mxu0 0
  %762 = vmatprep.mubr.bf16.mxu0 0
  %763 = vmatmul.mubr.bf16.gmra.mrb[0].mxu0 %v476
  %v764 = vpop.f32.mrb[0].mxu0
  %v765 = vadd.f32 %v473, %v764
  %v766 = vpop.f32.mrb[0].mxu0
  %v767 = vadd.f32 %v473, %v766
  %v768 = vpop.f32.mrb[0].mxu0
  %v769 = vpop.f32.mrb[0].mxu0
  %770 = vdwg.mxu0
  %771 = vmatprep.subr.bf16.mxu0 %v725
  %772 = vmatpush1.bf16.msra.mxu0 %v724
  %773 = vmatprep.subr.bf16.mxu0 %v729
  %774 = vmatpush1.bf16.msra.mxu0 %v728
  %775 = vmatprep.subr.bf16.mxu0 0
  %776 = vmatpush1.bf16.msra.mxu0 0
  %777 = vmatprep.subr.bf16.mxu0 0
  %778 = vmatpush1.bf16.msra.mxu0 0
  %779 = vmatprep.subr.bf16.mxu0 0
  %780 = vmatpush1.bf16.msra.mxu0 0
  %781 = vmatprep.subr.bf16.mxu0 0
  %782 = vmatpush1.bf16.msra.mxu0 0
  %783 = vmatprep.subr.bf16.mxu0 0
  %784 = vmatpush1.bf16.msra.mxu0 0
  %785 = vmatprep.subr.bf16.mxu0 0
  %786 = vmatpush1.bf16.msra.mxu0 0
  %787 = vmatprep.subr.bf16.mxu0 0
  %788 = vmatpush1.bf16.msra.mxu0 0
  %789 = vmatprep.subr.bf16.mxu0 0
  %790 = vmatpush1.bf16.msra.mxu0 0
  %791 = vmatprep.subr.bf16.mxu0 0
  %792 = vmatpush1.bf16.msra.mxu0 0
  %793 = vmatprep.subr.bf16.mxu0 0
  %794 = vmatpush1.bf16.msra.mxu0 0
  %795 = vmatprep.subr.bf16.mxu0 0
  %796 = vmatpush1.bf16.msra.mxu0 0
  %797 = vmatprep.subr.bf16.mxu0 0
  %798 = vmatpush1.bf16.msra.mxu0 0
  %799 = vmatprep.subr.bf16.mxu0 0
  %800 = vmatpush1.bf16.msra.mxu0 0
  %801 = vmatprep.subr.bf16.mxu0 0
  %802 = vmatpush1.bf16.msra.mxu0 0
  %803 = vmatprep.mubr.bf16.mxu0 0
  %804 = vmatmul.mubr.bf16.gmra.mrb[0].mxu0 %v476
  %v805 = vpop.f32.mrb[0].mxu0
  %v806 = vadd.f32 %v473, %v805
  %v807 = vpop.f32.mrb[0].mxu0
  %v808 = vadd.f32 %v473, %v807
  %v809 = vpop.f32.mrb[0].mxu0
  %v810 = vpop.f32.mrb[0].mxu0
  %811 = vdwg.mxu0
  %v812 = vmul.f32 %v580, -9.502997
  %v813 = vmul.f32 %v581, -9.502997
  %v814 = vmul.f32 %v582, -9.502997
  %v815 = vmul.f32 %v583, -9.502997
  %v816 = vadd.f32 %v765, %v812
  %v817 = vadd.f32 %v767, %v813
  %v818 = vadd.f32 %v806, %v814
  %v819 = vadd.f32 %v808, %v815
  %v820 = vmul.f32 %v816, 2.0
  %v821 = vmul.f32 %v817, 2.0
  %v822 = vmul.f32 %v818, 2.0
  %v823 = vmul.f32 %v819, 2.0
  %v824 = vadd.f32 %v572, %v820
  %v825 = vadd.f32 %v573, %v821
  %v826 = vadd.f32 %v574, %v822
  %v827 = vadd.f32 %v575, %v823
  %v828 = vmul.f32 %v816, -0.0999
  %v829 = vmul.f32 %v817, -0.0999
  %v830 = vmul.f32 %v818, -0.0999
  %v831 = vmul.f32 %v819, -0.0999
  %v832 = vadd.f32 %v18, %v828
  %v833 = vadd.f32 %v19, %v829
  %v834 = vadd.f32 %v20, %v830
  %v835 = vadd.f32 %v21, %v831
  %s836 = scalar_lea.vmem %s1, 32
  %v837 = vld [vmem:[%s836] sm:$0xf]
  %v838 = vld [vmem:[%s836 + $0x4] sm:$0xf]
  %v839 = vld [vmem:[%s836 + $0x8] sm:$0xf]
  %v840 = vld [vmem:[%s836 + $0xc] sm:$0xf]
  %v841 = vpack.c.bf16 %v832, %v832
  %v842 = vpack.c.bf16 %v833, %v833
  %v843 = vpack.c.bf16 %v834, %v834
  %v844 = vpack.c.bf16 %v835, %v835
  %v849 = vunpack.c.l.b16 %v837
  %v850 = vunpack.c.l.b16 %v838
  %v851 = vunpack.c.l.b16 %v839
  %v852 = vunpack.c.l.b16 %v840
  %v853 = vpack.c.b16 %v850, %v849
  %v854 = vpack.c.b16 %v852, %v851
  %v856 = vsel %vm40, %v853, 0
  %v859 = vsel %vm40, %v854, 0
  %v862 = vsel %vm47, %v841, 0
  %v865 = vsel %vm47, %v842, 0
  %v868 = vsel %vm47, %v843, 0
  %v871 = vsel %vm47, %v844, 0
  %873 = vmatprep.subr.bf16.mxu0 %v865
  %874 = vmatpush1.bf16.msra.mxu0 %v862
  %875 = vmatprep.subr.bf16.mxu0 0
  %876 = vmatpush1.bf16.msra.mxu0 0
  %877 = vmatprep.subr.bf16.mxu0 0
  %878 = vmatpush1.bf16.msra.mxu0 0
  %879 = vmatprep.subr.bf16.mxu0 0
  %880 = vmatpush1.bf16.msra.mxu0 0
  %881 = vmatprep.subr.bf16.mxu0 0
  %882 = vmatpush1.bf16.msra.mxu0 0
  %883 = vmatprep.subr.bf16.mxu0 0
  %884 = vmatpush1.bf16.msra.mxu0 0
  %885 = vmatprep.subr.bf16.mxu0 0
  %886 = vmatpush1.bf16.msra.mxu0 0
  %887 = vmatprep.subr.bf16.mxu0 0
  %888 = vmatpush1.bf16.msra.mxu0 0
  %889 = vmatprep.subr.bf16.mxu0 0
  %890 = vmatpush1.bf16.msra.mxu0 0
  %891 = vmatprep.subr.bf16.mxu0 0
  %892 = vmatpush1.bf16.msra.mxu0 0
  %893 = vmatprep.subr.bf16.mxu0 0
  %894 = vmatpush1.bf16.msra.mxu0 0
  %895 = vmatprep.subr.bf16.mxu0 0
  %896 = vmatpush1.bf16.msra.mxu0 0
  %897 = vmatprep.subr.bf16.mxu0 0
  %898 = vmatpush1.bf16.msra.mxu0 0
  %899 = vmatprep.subr.bf16.mxu0 0
  %900 = vmatpush1.bf16.msra.mxu0 0
  %901 = vmatprep.subr.bf16.mxu0 0
  %902 = vmatpush1.bf16.msra.mxu0 0
  %903 = vmatprep.subr.bf16.mxu0 0
  %904 = vmatpush1.bf16.msra.mxu0 0
  %905 = vmatprep.mubr.bf16.mxu0 0
  %906 = vmatmul.mubr.bf16.gmra.mrb[0].mxu0 %v856
  %v907 = vpop.f32.mrb[0].mxu0
  %v908 = vadd.f32 0.0, %v907
  %v909 = vpop.f32.mrb[0].mxu0
  %v910 = vadd.f32 0.0, %v909
  %v911 = vpop.f32.mrb[0].mxu0
  %v912 = vadd.f32 0.0, %v911
  %v913 = vpop.f32.mrb[0].mxu0
  %v914 = vadd.f32 0.0, %v913
  %915 = vmatprep.mubr.bf16.mxu0 0
  %916 = vmatmul.mubr.bf16.gmra.mrb[0].mxu0 %v859
  %v917 = vpop.f32.mrb[0].mxu0
  %v918 = vadd.f32 0.0, %v917
  %v919 = vpop.f32.mrb[0].mxu0
  %v920 = vadd.f32 0.0, %v919
  %v921 = vpop.f32.mrb[0].mxu0
  %v922 = vadd.f32 0.0, %v921
  %v923 = vpop.f32.mrb[0].mxu0
  %v924 = vadd.f32 0.0, %v923
  %925 = vdwg.mxu0
  %926 = vmatprep.subr.bf16.mxu0 %v871
  %927 = vmatpush1.bf16.msra.mxu0 %v868
  %928 = vmatprep.subr.bf16.mxu0 0
  %929 = vmatpush1.bf16.msra.mxu0 0
  %930 = vmatprep.subr.bf16.mxu0 0
  %931 = vmatpush1.bf16.msra.mxu0 0
  %932 = vmatprep.subr.bf16.mxu0 0
  %933 = vmatpush1.bf16.msra.mxu0 0
  %934 = vmatprep.subr.bf16.mxu0 0
  %935 = vmatpush1.bf16.msra.mxu0 0
  %936 = vmatprep.subr.bf16.mxu0 0
  %937 = vmatpush1.bf16.msra.mxu0 0
  %938 = vmatprep.subr.bf16.mxu0 0
  %939 = vmatpush1.bf16.msra.mxu0 0
  %940 = vmatprep.subr.bf16.mxu0 0
  %941 = vmatpush1.bf16.msra.mxu0 0
  %942 = vmatprep.subr.bf16.mxu0 0
  %943 = vmatpush1.bf16.msra.mxu0 0
  %944 = vmatprep.subr.bf16.mxu0 0
  %945 = vmatpush1.bf16.msra.mxu0 0
  %946 = vmatprep.subr.bf16.mxu0 0
  %947 = vmatpush1.bf16.msra.mxu0 0
  %948 = vmatprep.subr.bf16.mxu0 0
  %949 = vmatpush1.bf16.msra.mxu0 0
  %950 = vmatprep.subr.bf16.mxu0 0
  %951 = vmatpush1.bf16.msra.mxu0 0
  %952 = vmatprep.subr.bf16.mxu0 0
  %953 = vmatpush1.bf16.msra.mxu0 0
  %954 = vmatprep.subr.bf16.mxu0 0
  %955 = vmatpush1.bf16.msra.mxu0 0
  %956 = vmatprep.subr.bf16.mxu0 0
  %957 = vmatpush1.bf16.msra.mxu0 0
  %958 = vmatprep.mubr.bf16.mxu0 0
  %959 = vmatmul.mubr.bf16.gmra.mrb[0].mxu0 %v856
  %v960 = vpop.f32.mrb[0].mxu0
  %v961 = vadd.f32 0.0, %v960
  %v962 = vpop.f32.mrb[0].mxu0
  %v963 = vadd.f32 0.0, %v962
  %v964 = vpop.f32.mrb[0].mxu0
  %v965 = vadd.f32 0.0, %v964
  %v966 = vpop.f32.mrb[0].mxu0
  %v967 = vadd.f32 0.0, %v966
  %968 = vmatprep.mubr.bf16.mxu0 0
  %969 = vmatmul.mubr.bf16.gmra.mrb[0].mxu0 %v859
  %v970 = vpop.f32.mrb[0].mxu0
  %v971 = vadd.f32 0.0, %v970
  %v972 = vpop.f32.mrb[0].mxu0
  %v973 = vadd.f32 0.0, %v972
  %v974 = vpop.f32.mrb[0].mxu0
  %v975 = vadd.f32 0.0, %v974
  %v976 = vpop.f32.mrb[0].mxu0
  %v977 = vadd.f32 0.0, %v976
  %978 = vdwg.mxu0
  %v979 = vmax.f32 %v908, 0.0
  %v980 = vmax.f32 %v910, 0.0
  %v981 = vmax.f32 %v961, 0.0
  %v982 = vmax.f32 %v963, 0.0
  %v983 = vmax.f32 %v912, 0.0
  %v984 = vmax.f32 %v914, 0.0
  %v985 = vmax.f32 %v965, 0.0
  %v986 = vmax.f32 %v967, 0.0
  %v987 = vmax.f32 %v918, 0.0
  %v988 = vmax.f32 %v920, 0.0
  %v989 = vmax.f32 %v971, 0.0
  %v990 = vmax.f32 %v973, 0.0
  %v991 = vmax.f32 %v922, 0.0
  %v992 = vmax.f32 %v924, 0.0
  %v993 = vmax.f32 %v975, 0.0
  %v994 = vmax.f32 %v977, 0.0
  %s995 = scalar_lea.vmem %s2, 8
  %v996 = vld [vmem:[%s995] sm:$0xf]
  %v997 = vpack.c.bf16 %v983, %v979
  %v998 = vpack.c.bf16 %v984, %v980
  %v999 = vpack.c.bf16 %v985, %v981
  %v1000 = vpack.c.bf16 %v986, %v982
  %v1001 = vpack.c.bf16 %v991, %v987
  %v1002 = vpack.c.bf16 %v992, %v988
  %v1003 = vpack.c.bf16 %v993, %v989
  %v1004 = vpack.c.bf16 %v994, %v990
  %s1005 = scalar_lea.vmem %s3, 16
  %v1006 = vld [vmem:[%s1005] sm:$0xff]
  %1008 = vset.pattern.permute.xlu0 0
  %1009 = vperm.xlu0 %1008, %v1006
  %v1010 = vpop.permute.xlu0 %1009
  %v1013 = vsel %vm197, %v996, 0
  %1015 = vmatprep.subr.bf16.mxu0 %v998
  %1016 = vmatpush1.bf16.msra.mxu0 %v997
  %1017 = vmatprep.subr.bf16.mxu0 %v1002
  %1018 = vmatpush1.bf16.msra.mxu0 %v1001
  %1019 = vmatprep.subr.bf16.mxu0 0
  %1020 = vmatpush1.bf16.msra.mxu0 0
  %1021 = vmatprep.subr.bf16.mxu0 0
  %1022 = vmatpush1.bf16.msra.mxu0 0
  %1023 = vmatprep.subr.bf16.mxu0 0
  %1024 = vmatpush1.bf16.msra.mxu0 0
  %1025 = vmatprep.subr.bf16.mxu0 0
  %1026 = vmatpush1.bf16.msra.mxu0 0
  %1027 = vmatprep.subr.bf16.mxu0 0
  %1028 = vmatpush1.bf16.msra.mxu0 0
  %1029 = vmatprep.subr.bf16.mxu0 0
  %1030 = vmatpush1.bf16.msra.mxu0 0
  %1031 = vmatprep.subr.bf16.mxu0 0
  %1032 = vmatpush1.bf16.msra.mxu0 0
  %1033 = vmatprep.subr.bf16.mxu0 0
  %1034 = vmatpush1.bf16.msra.mxu0 0
  %1035 = vmatprep.subr.bf16.mxu0 0
  %1036 = vmatpush1.bf16.msra.mxu0 0
  %1037 = vmatprep.subr.bf16.mxu0 0
  %1038 = vmatpush1.bf16.msra.mxu0 0
  %1039 = vmatprep.subr.bf16.mxu0 0
  %1040 = vmatpush1.bf16.msra.mxu0 0
  %1041 = vmatprep.subr.bf16.mxu0 0
  %1042 = vmatpush1.bf16.msra.mxu0 0
  %1043 = vmatprep.subr.bf16.mxu0 0
  %1044 = vmatpush1.bf16.msra.mxu0 0
  %1045 = vmatprep.subr.bf16.mxu0 0
  %1046 = vmatpush1.bf16.msra.mxu0 0
  %1047 = vmatprep.mubr.bf16.mxu0 0
  %1048 = vmatmul.mubr.bf16.gmra.mrb[0].mxu0 %v1013
  %v1049 = vpop.f32.mrb[0].mxu0
  %v1050 = vadd.f32 %v1010, %v1049
  %v1051 = vpop.f32.mrb[0].mxu0
  %v1052 = vadd.f32 %v1010, %v1051
  %v1053 = vpop.f32.mrb[0].mxu0
  %v1054 = vpop.f32.mrb[0].mxu0
  %1055 = vdwg.mxu0
  %1056 = vmatprep.subr.bf16.mxu0 %v1000
  %1057 = vmatpush1.bf16.msra.mxu0 %v999
  %1058 = vmatprep.subr.bf16.mxu0 %v1004
  %1059 = vmatpush1.bf16.msra.mxu0 %v1003
  %1060 = vmatprep.subr.bf16.mxu0 0
  %1061 = vmatpush1.bf16.msra.mxu0 0
  %1062 = vmatprep.subr.bf16.mxu0 0
  %1063 = vmatpush1.bf16.msra.mxu0 0
  %1064 = vmatprep.subr.bf16.mxu0 0
  %1065 = vmatpush1.bf16.msra.mxu0 0
  %1066 = vmatprep.subr.bf16.mxu0 0
  %1067 = vmatpush1.bf16.msra.mxu0 0
  %1068 = vmatprep.subr.bf16.mxu0 0
  %1069 = vmatpush1.bf16.msra.mxu0 0
  %1070 = vmatprep.subr.bf16.mxu0 0
  %1071 = vmatpush1.bf16.msra.mxu0 0
  %1072 = vmatprep.subr.bf16.mxu0 0
  %1073 = vmatpush1.bf16.msra.mxu0 0
  %1074 = vmatprep.subr.bf16.mxu0 0
  %1075 = vmatpush1.bf16.msra.mxu0 0
  %1076 = vmatprep.subr.bf16.mxu0 0
  %1077 = vmatpush1.bf16.msra.mxu0 0
  %1078 = vmatprep.subr.bf16.mxu0 0
  %1079 = vmatpush1.bf16.msra.mxu0 0
  %1080 = vmatprep.subr.bf16.mxu0 0
  %1081 = vmatpush1.bf16.msra.mxu0 0
  %1082 = vmatprep.subr.bf16.mxu0 0
  %1083 = vmatpush1.bf16.msra.mxu0 0
  %1084 = vmatprep.subr.bf16.mxu0 0
  %1085 = vmatpush1.bf16.msra.mxu0 0
  %1086 = vmatprep.subr.bf16.mxu0 0
  %1087 = vmatpush1.bf16.msra.mxu0 0
  %1088 = vmatprep.mubr.bf16.mxu0 0
  %1089 = vmatmul.mubr.bf16.gmra.mrb[0].mxu0 %v1013
  %v1090 = vpop.f32.mrb[0].mxu0
  %v1091 = vadd.f32 %v1010, %v1090
  %v1092 = vpop.f32.mrb[0].mxu0
  %v1093 = vadd.f32 %v1010, %v1092
  %v1094 = vpop.f32.mrb[0].mxu0
  %v1095 = vpop.f32.mrb[0].mxu0
  %1096 = vdwg.mxu0
  %v1097 = vmul.f32 %v832, -9.005995
  %v1098 = vmul.f32 %v833, -9.005995
  %v1099 = vmul.f32 %v834, -9.005995
  %v1100 = vmul.f32 %v835, -9.005995
  %v1101 = vadd.f32 %v1050, %v1097
  %v1102 = vadd.f32 %v1052, %v1098
  %v1103 = vadd.f32 %v1091, %v1099
  %v1104 = vadd.f32 %v1093, %v1100
  %v1105 = vadd.f32 %v824, %v1101
  %v1106 = vadd.f32 %v825, %v1102
  %v1107 = vadd.f32 %v826, %v1103
  %v1108 = vadd.f32 %v827, %v1104
  %v1109 = vmul.f32 %v1105, -0.01665
  %v1110 = vmul.f32 %v1106, -0.01665
  %v1111 = vmul.f32 %v1107, -0.01665
  %v1112 = vmul.f32 %v1108, -0.01665
  %v1113 = vadd.f32 %v18, %v1109
  %v1114 = vadd.f32 %v19, %v1110
  %v1115 = vadd.f32 %v20, %v1111
  %v1116 = vadd.f32 %v21, %v1112
  %s1117 = scalar_lea.vmem %s1, 48
  %v1118 = vld [vmem:[%s1117] sm:$0xf]
  %v1119 = vld [vmem:[%s1117 + $0x4] sm:$0xf]
  %v1120 = vld [vmem:[%s1117 + $0x8] sm:$0xf]
  %v1121 = vld [vmem:[%s1117 + $0xc] sm:$0xf]
  %v1122 = vpack.c.bf16 %v1113, %v1113
  %v1123 = vpack.c.bf16 %v1114, %v1114
  %v1124 = vpack.c.bf16 %v1115, %v1115
  %v1125 = vpack.c.bf16 %v1116, %v1116
  %v1130 = vunpack.c.l.b16 %v1118
  %v1131 = vunpack.c.l.b16 %v1119
  %v1132 = vunpack.c.l.b16 %v1120
  %v1133 = vunpack.c.l.b16 %v1121
  %v1134 = vpack.c.b16 %v1131, %v1130
  %v1135 = vpack.c.b16 %v1133, %v1132
  %v1137 = vsel %vm40, %v1134, 0
  %v1140 = vsel %vm40, %v1135, 0
  %v1143 = vsel %vm47, %v1122, 0
  %v1146 = vsel %vm47, %v1123, 0
  %v1149 = vsel %vm47, %v1124, 0
  %v1152 = vsel %vm47, %v1125, 0
  %1154 = vmatprep.subr.bf16.mxu0 %v1146
  %1155 = vmatpush1.bf16.msra.mxu0 %v1143
  %1156 = vmatprep.subr.bf16.mxu0 0
  %1157 = vmatpush1.bf16.msra.mxu0 0
  %1158 = vmatprep.subr.bf16.mxu0 0
  %1159 = vmatpush1.bf16.msra.mxu0 0
  %1160 = vmatprep.subr.bf16.mxu0 0
  %1161 = vmatpush1.bf16.msra.mxu0 0
  %1162 = vmatprep.subr.bf16.mxu0 0
  %1163 = vmatpush1.bf16.msra.mxu0 0
  %1164 = vmatprep.subr.bf16.mxu0 0
  %1165 = vmatpush1.bf16.msra.mxu0 0
  %1166 = vmatprep.subr.bf16.mxu0 0
  %1167 = vmatpush1.bf16.msra.mxu0 0
  %1168 = vmatprep.subr.bf16.mxu0 0
  %1169 = vmatpush1.bf16.msra.mxu0 0
  %1170 = vmatprep.subr.bf16.mxu0 0
  %1171 = vmatpush1.bf16.msra.mxu0 0
  %1172 = vmatprep.subr.bf16.mxu0 0
  %1173 = vmatpush1.bf16.msra.mxu0 0
  %1174 = vmatprep.subr.bf16.mxu0 0
  %1175 = vmatpush1.bf16.msra.mxu0 0
  %1176 = vmatprep.subr.bf16.mxu0 0
  %1177 = vmatpush1.bf16.msra.mxu0 0
  %1178 = vmatprep.subr.bf16.mxu0 0
  %1179 = vmatpush1.bf16.msra.mxu0 0
  %1180 = vmatprep.subr.bf16.mxu0 0
  %1181 = vmatpush1.bf16.msra.mxu0 0
  %1182 = vmatprep.subr.bf16.mxu0 0
  %1183 = vmatpush1.bf16.msra.mxu0 0
  %1184 = vmatprep.subr.bf16.mxu0 0
  %1185 = vmatpush1.bf16.msra.mxu0 0
  %1186 = vmatprep.mubr.bf16.mxu0 0
  %1187 = vmatmul.mubr.bf16.gmra.mrb[0].mxu0 %v1137
  %v1188 = vpop.f32.mrb[0].mxu0
  %v1189 = vadd.f32 0.0, %v1188
  %v1190 = vpop.f32.mrb[0].mxu0
  %v1191 = vadd.f32 0.0, %v1190
  %v1192 = vpop.f32.mrb[0].mxu0
  %v1193 = vadd.f32 0.0, %v1192
  %v1194 = vpop.f32.mrb[0].mxu0
  %v1195 = vadd.f32 0.0, %v1194
  %1196 = vmatprep.mubr.bf16.mxu0 0
  %1197 = vmatmul.mubr.bf16.gmra.mrb[0].mxu0 %v1140
  %v1198 = vpop.f32.mrb[0].mxu0
  %v1199 = vadd.f32 0.0, %v1198
  %v1200 = vpop.f32.mrb[0].mxu0
  %v1201 = vadd.f32 0.0, %v1200
  %v1202 = vpop.f32.mrb[0].mxu0
  %v1203 = vadd.f32 0.0, %v1202
  %v1204 = vpop.f32.mrb[0].mxu0
  %v1205 = vadd.f32 0.0, %v1204
  %1206 = vdwg.mxu0
  %1207 = vmatprep.subr.bf16.mxu0 %v1152
  %1208 = vmatpush1.bf16.msra.mxu0 %v1149
  %1209 = vmatprep.subr.bf16.mxu0 0
  %1210 = vmatpush1.bf16.msra.mxu0 0
  %1211 = vmatprep.subr.bf16.mxu0 0
  %1212 = vmatpush1.bf16.msra.mxu0 0
  %1213 = vmatprep.subr.bf16.mxu0 0
  %1214 = vmatpush1.bf16.msra.mxu0 0
  %1215 = vmatprep.subr.bf16.mxu0 0
  %1216 = vmatpush1.bf16.msra.mxu0 0
  %1217 = vmatprep.subr.bf16.mxu0 0
  %1218 = vmatpush1.bf16.msra.mxu0 0
  %1219 = vmatprep.subr.bf16.mxu0 0
  %1220 = vmatpush1.bf16.msra.mxu0 0
  %1221 = vmatprep.subr.bf16.mxu0 0
  %1222 = vmatpush1.bf16.msra.mxu0 0
  %1223 = vmatprep.subr.bf16.mxu0 0
  %1224 = vmatpush1.bf16.msra.mxu0 0
  %1225 = vmatprep.subr.bf16.mxu0 0
  %1226 = vmatpush1.bf16.msra.mxu0 0
  %1227 = vmatprep.subr.bf16.mxu0 0
  %1228 = vmatpush1.bf16.msra.mxu0 0
  %1229 = vmatprep.subr.bf16.mxu0 0
  %1230 = vmatpush1.bf16.msra.mxu0 0
  %1231 = vmatprep.subr.bf16.mxu0 0
  %1232 = vmatpush1.bf16.msra.mxu0 0
  %1233 = vmatprep.subr.bf16.mxu0 0
  %1234 = vmatpush1.bf16.msra.mxu0 0
  %1235 = vmatprep.subr.bf16.mxu0 0
  %1236 = vmatpush1.bf16.msra.mxu0 0
  %1237 = vmatprep.subr.bf16.mxu0 0
  %1238 = vmatpush1.bf16.msra.mxu0 0
  %1239 = vmatprep.mubr.bf16.mxu0 0
  %1240 = vmatmul.mubr.bf16.gmra.mrb[0].mxu0 %v1137
  %v1241 = vpop.f32.mrb[0].mxu0
  %v1242 = vadd.f32 0.0, %v1241
  %v1243 = vpop.f32.mrb[0].mxu0
  %v1244 = vadd.f32 0.0, %v1243
  %v1245 = vpop.f32.mrb[0].mxu0
  %v1246 = vadd.f32 0.0, %v1245
  %v1247 = vpop.f32.mrb[0].mxu0
  %v1248 = vadd.f32 0.0, %v1247
  %1249 = vmatprep.mubr.bf16.mxu0 0
  %1250 = vmatmul.mubr.bf16.gmra.mrb[0].mxu0 %v1140
  %v1251 = vpop.f32.mrb[0].mxu0
  %v1252 = vadd.f32 0.0, %v1251
  %v1253 = vpop.f32.mrb[0].mxu0
  %v1254 = vadd.f32 0.0, %v1253
  %v1255 = vpop.f32.mrb[0].mxu0
  %v1256 = vadd.f32 0.0, %v1255
  %v1257 = vpop.f32.mrb[0].mxu0
  %v1258 = vadd.f32 0.0, %v1257
  %1259 = vdwg.mxu0
  %v1260 = vmax.f32 %v1189, 0.0
  %v1261 = vmax.f32 %v1191, 0.0
  %v1262 = vmax.f32 %v1242, 0.0
  %v1263 = vmax.f32 %v1244, 0.0
  %v1264 = vmax.f32 %v1193, 0.0
  %v1265 = vmax.f32 %v1195, 0.0
  %v1266 = vmax.f32 %v1246, 0.0
  %v1267 = vmax.f32 %v1248, 0.0
  %v1268 = vmax.f32 %v1199, 0.0
  %v1269 = vmax.f32 %v1201, 0.0
  %v1270 = vmax.f32 %v1252, 0.0
  %v1271 = vmax.f32 %v1254, 0.0
  %v1272 = vmax.f32 %v1203, 0.0
  %v1273 = vmax.f32 %v1205, 0.0
  %v1274 = vmax.f32 %v1256, 0.0
  %v1275 = vmax.f32 %v1258, 0.0
  %s1276 = scalar_lea.vmem %s2, 12
  %v1277 = vld [vmem:[%s1276] sm:$0xf]
  %v1278 = vpack.c.bf16 %v1264, %v1260
  %v1279 = vpack.c.bf16 %v1265, %v1261
  %v1280 = vpack.c.bf16 %v1266, %v1262
  %v1281 = vpack.c.bf16 %v1267, %v1263
  %v1282 = vpack.c.bf16 %v1272, %v1268
  %v1283 = vpack.c.bf16 %v1273, %v1269
  %v1284 = vpack.c.bf16 %v1274, %v1270
  %v1285 = vpack.c.bf16 %v1275, %v1271
  %s1286 = scalar_lea.vmem %s3, 24
  %v1287 = vld [vmem:[%s1286] sm:$0xff]
  %1289 = vset.pattern.permute.xlu0 0
  %1290 = vperm.xlu0 %1289, %v1287
  %v1291 = vpop.permute.xlu0 %1290
  %v1294 = vsel %vm197, %v1277, 0
  %1296 = vmatprep.subr.bf16.mxu0 %v1279
  %1297 = vmatpush1.bf16.msra.mxu0 %v1278
  %1298 = vmatprep.subr.bf16.mxu0 %v1283
  %1299 = vmatpush1.bf16.msra.mxu0 %v1282
  %1300 = vmatprep.subr.bf16.mxu0 0
  %1301 = vmatpush1.bf16.msra.mxu0 0
  %1302 = vmatprep.subr.bf16.mxu0 0
  %1303 = vmatpush1.bf16.msra.mxu0 0
  %1304 = vmatprep.subr.bf16.mxu0 0
  %1305 = vmatpush1.bf16.msra.mxu0 0
  %1306 = vmatprep.subr.bf16.mxu0 0
  %1307 = vmatpush1.bf16.msra.mxu0 0
  %1308 = vmatprep.subr.bf16.mxu0 0
  %1309 = vmatpush1.bf16.msra.mxu0 0
  %1310 = vmatprep.subr.bf16.mxu0 0
  %1311 = vmatpush1.bf16.msra.mxu0 0
  %1312 = vmatprep.subr.bf16.mxu0 0
  %1313 = vmatpush1.bf16.msra.mxu0 0
  %1314 = vmatprep.subr.bf16.mxu0 0
  %1315 = vmatpush1.bf16.msra.mxu0 0
  %1316 = vmatprep.subr.bf16.mxu0 0
  %1317 = vmatpush1.bf16.msra.mxu0 0
  %1318 = vmatprep.subr.bf16.mxu0 0
  %1319 = vmatpush1.bf16.msra.mxu0 0
  %1320 = vmatprep.subr.bf16.mxu0 0
  %1321 = vmatpush1.bf16.msra.mxu0 0
  %1322 = vmatprep.subr.bf16.mxu0 0
  %1323 = vmatpush1.bf16.msra.mxu0 0
  %1324 = vmatprep.subr.bf16.mxu0 0
  %1325 = vmatpush1.bf16.msra.mxu0 0
  %1326 = vmatprep.subr.bf16.mxu0 0
  %1327 = vmatpush1.bf16.msra.mxu0 0
  %1328 = vmatprep.mubr.bf16.mxu0 0
  %1329 = vmatmul.mubr.bf16.gmra.mrb[0].mxu0 %v1294
  %v1330 = vpop.f32.mrb[0].mxu0
  %v1331 = vadd.f32 %v1291, %v1330
  %v1332 = vpop.f32.mrb[0].mxu0
  %v1333 = vadd.f32 %v1291, %v1332
  %v1334 = vpop.f32.mrb[0].mxu0
  %v1335 = vpop.f32.mrb[0].mxu0
  %1336 = vdwg.mxu0
  %1337 = vmatprep.subr.bf16.mxu0 %v1281
  %1338 = vmatpush1.bf16.msra.mxu0 %v1280
  %1339 = vmatprep.subr.bf16.mxu0 %v1285
  %1340 = vmatpush1.bf16.msra.mxu0 %v1284
  %1341 = vmatprep.subr.bf16.mxu0 0
  %1342 = vmatpush1.bf16.msra.mxu0 0
  %1343 = vmatprep.subr.bf16.mxu0 0
  %1344 = vmatpush1.bf16.msra.mxu0 0
  %1345 = vmatprep.subr.bf16.mxu0 0
  %1346 = vmatpush1.bf16.msra.mxu0 0
  %1347 = vmatprep.subr.bf16.mxu0 0
  %1348 = vmatpush1.bf16.msra.mxu0 0
  %1349 = vmatprep.subr.bf16.mxu0 0
  %1350 = vmatpush1.bf16.msra.mxu0 0
  %1351 = vmatprep.subr.bf16.mxu0 0
  %1352 = vmatpush1.bf16.msra.mxu0 0
  %1353 = vmatprep.subr.bf16.mxu0 0
  %1354 = vmatpush1.bf16.msra.mxu0 0
  %1355 = vmatprep.subr.bf16.mxu0 0
  %1356 = vmatpush1.bf16.msra.mxu0 0
  %1357 = vmatprep.subr.bf16.mxu0 0
  %1358 = vmatpush1.bf16.msra.mxu0 0
  %1359 = vmatprep.subr.bf16.mxu0 0
  %1360 = vmatpush1.bf16.msra.mxu0 0
  %1361 = vmatprep.subr.bf16.mxu0 0
  %1362 = vmatpush1.bf16.msra.mxu0 0
  %1363 = vmatprep.subr.bf16.mxu0 0
  %1364 = vmatpush1.bf16.msra.mxu0 0
  %1365 = vmatprep.subr.bf16.mxu0 0
  %1366 = vmatpush1.bf16.msra.mxu0 0
  %1367 = vmatprep.subr.bf16.mxu0 0
  %1368 = vmatpush1.bf16.msra.mxu0 0
  %1369 = vmatprep.mubr.bf16.mxu0 0
  %1370 = vmatmul.mubr.bf16.gmra.mrb[0].mxu0 %v1294
  %v1371 = vpop.f32.mrb[0].mxu0
  %v1372 = vadd.f32 %v1291, %v1371
  %v1373 = vpop.f32.mrb[0].mxu0
  %v1374 = vadd.f32 %v1291, %v1373
  %v1375 = vpop.f32.mrb[0].mxu0
  %v1376 = vpop.f32.mrb[0].mxu0
  %1377 = vdwg.mxu0
  %v1378 = vmul.f32 %v1113, -9.005995
  %v1379 = vmul.f32 %v1114, -9.005995
  %v1380 = vmul.f32 %v1115, -9.005995
  %v1381 = vmul.f32 %v1116, -9.005995
  %v1382 = vadd.f32 %v1331, %v1378
  %v1383 = vadd.f32 %v1333, %v1379
  %v1384 = vadd.f32 %v1372, %v1380
  %v1385 = vadd.f32 %v1374, %v1381
  %v1386 = vmul.f32 %v1382, -0.04995
  %v1387 = vmul.f32 %v1383, -0.04995
  %v1388 = vmul.f32 %v1384, -0.04995
  %v1389 = vmul.f32 %v1385, -0.04995
  %v1390 = vadd.f32 %v1113, %v1386
  %v1391 = vadd.f32 %v1114, %v1387
  %v1392 = vadd.f32 %v1115, %v1388
  %v1393 = vadd.f32 %v1116, %v1389
  %s1394 = scalar_lea.vmem %s1, 64
  %v1395 = vld [vmem:[%s1394] sm:$0xf]
  %v1396 = vld [vmem:[%s1394 + $0x4] sm:$0xf]
  %v1397 = vld [vmem:[%s1394 + $0x8] sm:$0xf]
  %v1398 = vld [vmem:[%s1394 + $0xc] sm:$0xf]
  %v1399 = vpack.c.bf16 %v1390, %v1390
  %v1400 = vpack.c.bf16 %v1391, %v1391
  %v1401 = vpack.c.bf16 %v1392, %v1392
  %v1402 = vpack.c.bf16 %v1393, %v1393
  %v1407 = vunpack.c.l.b16 %v1395
  %v1408 = vunpack.c.l.b16 %v1396
  %v1409 = vunpack.c.l.b16 %v1397
  %v1410 = vunpack.c.l.b16 %v1398
  %v1411 = vpack.c.b16 %v1408, %v1407
  %v1412 = vpack.c.b16 %v1410, %v1409
  %v1414 = vsel %vm40, %v1411, 0
  %v1417 = vsel %vm40, %v1412, 0
  %v1420 = vsel %vm47, %v1399, 0
  %v1423 = vsel %vm47, %v1400, 0
  %v1426 = vsel %vm47, %v1401, 0
  %v1429 = vsel %vm47, %v1402, 0
  %1431 = vmatprep.subr.bf16.mxu0 %v1423
  %1432 = vmatpush1.bf16.msra.mxu0 %v1420
  %1433 = vmatprep.subr.bf16.mxu0 0
  %1434 = vmatpush1.bf16.msra.mxu0 0
  %1435 = vmatprep.subr.bf16.mxu0 0
  %1436 = vmatpush1.bf16.msra.mxu0 0
  %1437 = vmatprep.subr.bf16.mxu0 0
  %1438 = vmatpush1.bf16.msra.mxu0 0
  %1439 = vmatprep.subr.bf16.mxu0 0
  %1440 = vmatpush1.bf16.msra.mxu0 0
  %1441 = vmatprep.subr.bf16.mxu0 0
  %1442 = vmatpush1.bf16.msra.mxu0 0
  %1443 = vmatprep.subr.bf16.mxu0 0
  %1444 = vmatpush1.bf16.msra.mxu0 0
  %1445 = vmatprep.subr.bf16.mxu0 0
  %1446 = vmatpush1.bf16.msra.mxu0 0
  %1447 = vmatprep.subr.bf16.mxu0 0
  %1448 = vmatpush1.bf16.msra.mxu0 0
  %1449 = vmatprep.subr.bf16.mxu0 0
  %1450 = vmatpush1.bf16.msra.mxu0 0
  %1451 = vmatprep.subr.bf16.mxu0 0
  %1452 = vmatpush1.bf16.msra.mxu0 0
  %1453 = vmatprep.subr.bf16.mxu0 0
  %1454 = vmatpush1.bf16.msra.mxu0 0
  %1455 = vmatprep.subr.bf16.mxu0 0
  %1456 = vmatpush1.bf16.msra.mxu0 0
  %1457 = vmatprep.subr.bf16.mxu0 0
  %1458 = vmatpush1.bf16.msra.mxu0 0
  %1459 = vmatprep.subr.bf16.mxu0 0
  %1460 = vmatpush1.bf16.msra.mxu0 0
  %1461 = vmatprep.subr.bf16.mxu0 0
  %1462 = vmatpush1.bf16.msra.mxu0 0
  %1463 = vmatprep.mubr.bf16.mxu0 0
  %1464 = vmatmul.mubr.bf16.gmra.mrb[0].mxu0 %v1414
  %v1465 = vpop.f32.mrb[0].mxu0
  %v1466 = vadd.f32 0.0, %v1465
  %v1467 = vpop.f32.mrb[0].mxu0
  %v1468 = vadd.f32 0.0, %v1467
  %v1469 = vpop.f32.mrb[0].mxu0
  %v1470 = vadd.f32 0.0, %v1469
  %v1471 = vpop.f32.mrb[0].mxu0
  %v1472 = vadd.f32 0.0, %v1471
  %1473 = vmatprep.mubr.bf16.mxu0 0
  %1474 = vmatmul.mubr.bf16.gmra.mrb[0].mxu0 %v1417
  %v1475 = vpop.f32.mrb[0].mxu0
  %v1476 = vadd.f32 0.0, %v1475
  %v1477 = vpop.f32.mrb[0].mxu0
  %v1478 = vadd.f32 0.0, %v1477
  %v1479 = vpop.f32.mrb[0].mxu0
  %v1480 = vadd.f32 0.0, %v1479
  %v1481 = vpop.f32.mrb[0].mxu0
  %v1482 = vadd.f32 0.0, %v1481
  %1483 = vdwg.mxu0
  %1484 = vmatprep.subr.bf16.mxu0 %v1429
  %1485 = vmatpush1.bf16.msra.mxu0 %v1426
  %1486 = vmatprep.subr.bf16.mxu0 0
  %1487 = vmatpush1.bf16.msra.mxu0 0
  %1488 = vmatprep.subr.bf16.mxu0 0
  %1489 = vmatpush1.bf16.msra.mxu0 0
  %1490 = vmatprep.subr.bf16.mxu0 0
  %1491 = vmatpush1.bf16.msra.mxu0 0
  %1492 = vmatprep.subr.bf16.mxu0 0
  %1493 = vmatpush1.bf16.msra.mxu0 0
  %1494 = vmatprep.subr.bf16.mxu0 0
  %1495 = vmatpush1.bf16.msra.mxu0 0
  %1496 = vmatprep.subr.bf16.mxu0 0
  %1497 = vmatpush1.bf16.msra.mxu0 0
  %1498 = vmatprep.subr.bf16.mxu0 0
  %1499 = vmatpush1.bf16.msra.mxu0 0
  %1500 = vmatprep.subr.bf16.mxu0 0
  %1501 = vmatpush1.bf16.msra.mxu0 0
  %1502 = vmatprep.subr.bf16.mxu0 0
  %1503 = vmatpush1.bf16.msra.mxu0 0
  %1504 = vmatprep.subr.bf16.mxu0 0
  %1505 = vmatpush1.bf16.msra.mxu0 0
  %1506 = vmatprep.subr.bf16.mxu0 0
  %1507 = vmatpush1.bf16.msra.mxu0 0
  %1508 = vmatprep.subr.bf16.mxu0 0
  %1509 = vmatpush1.bf16.msra.mxu0 0
  %1510 = vmatprep.subr.bf16.mxu0 0
  %1511 = vmatpush1.bf16.msra.mxu0 0
  %1512 = vmatprep.subr.bf16.mxu0 0
  %1513 = vmatpush1.bf16.msra.mxu0 0
  %1514 = vmatprep.subr.bf16.mxu0 0
  %1515 = vmatpush1.bf16.msra.mxu0 0
  %1516 = vmatprep.mubr.bf16.mxu0 0
  %1517 = vmatmul.mubr.bf16.gmra.mrb[0].mxu0 %v1414
  %v1518 = vpop.f32.mrb[0].mxu0
  %v1519 = vadd.f32 0.0, %v1518
  %v1520 = vpop.f32.mrb[0].mxu0
  %v1521 = vadd.f32 0.0, %v1520
  %v1522 = vpop.f32.mrb[0].mxu0
  %v1523 = vadd.f32 0.0, %v1522
  %v1524 = vpop.f32.mrb[0].mxu0
  %v1525 = vadd.f32 0.0, %v1524
  %1526 = vmatprep.mubr.bf16.mxu0 0
  %1527 = vmatmul.mubr.bf16.gmra.mrb[0].mxu0 %v1417
  %v1528 = vpop.f32.mrb[0].mxu0
  %v1529 = vadd.f32 0.0, %v1528
  %v1530 = vpop.f32.mrb[0].mxu0
  %v1531 = vadd.f32 0.0, %v1530
  %v1532 = vpop.f32.mrb[0].mxu0
  %v1533 = vadd.f32 0.0, %v1532
  %v1534 = vpop.f32.mrb[0].mxu0
  %v1535 = vadd.f32 0.0, %v1534
  %1536 = vdwg.mxu0
  %v1537 = vmax.f32 %v1466, 0.0
  %v1538 = vmax.f32 %v1468, 0.0
  %v1539 = vmax.f32 %v1519, 0.0
  %v1540 = vmax.f32 %v1521, 0.0
  %v1541 = vmax.f32 %v1470, 0.0
  %v1542 = vmax.f32 %v1472, 0.0
  %v1543 = vmax.f32 %v1523, 0.0
  %v1544 = vmax.f32 %v1525, 0.0
  %v1545 = vmax.f32 %v1476, 0.0
  %v1546 = vmax.f32 %v1478, 0.0
  %v1547 = vmax.f32 %v1529, 0.0
  %v1548 = vmax.f32 %v1531, 0.0
  %v1549 = vmax.f32 %v1480, 0.0
  %v1550 = vmax.f32 %v1482, 0.0
  %v1551 = vmax.f32 %v1533, 0.0
  %v1552 = vmax.f32 %v1535, 0.0
  %s1553 = scalar_lea.vmem %s2, 16
  %v1554 = vld [vmem:[%s1553] sm:$0xf]
  %v1555 = vpack.c.bf16 %v1541, %v1537
  %v1556 = vpack.c.bf16 %v1542, %v1538
  %v1557 = vpack.c.bf16 %v1543, %v1539
  %v1558 = vpack.c.bf16 %v1544, %v1540
  %v1559 = vpack.c.bf16 %v1549, %v1545
  %v1560 = vpack.c.bf16 %v1550, %v1546
  %v1561 = vpack.c.bf16 %v1551, %v1547
  %v1562 = vpack.c.bf16 %v1552, %v1548
  %s1563 = scalar_lea.vmem %s3, 32
  %v1564 = vld [vmem:[%s1563] sm:$0xff]
  %1566 = vset.pattern.permute.xlu0 0
  %1567 = vperm.xlu0 %1566, %v1564
  %v1568 = vpop.permute.xlu0 %1567
  %v1571 = vsel %vm197, %v1554, 0
  %1573 = vmatprep.subr.bf16.mxu0 %v1556
  %1574 = vmatpush1.bf16.msra.mxu0 %v1555
  %1575 = vmatprep.subr.bf16.mxu0 %v1560
  %1576 = vmatpush1.bf16.msra.mxu0 %v1559
  %1577 = vmatprep.subr.bf16.mxu0 0
  %1578 = vmatpush1.bf16.msra.mxu0 0
  %1579 = vmatprep.subr.bf16.mxu0 0
  %1580 = vmatpush1.bf16.msra.mxu0 0
  %1581 = vmatprep.subr.bf16.mxu0 0
  %1582 = vmatpush1.bf16.msra.mxu0 0
  %1583 = vmatprep.subr.bf16.mxu0 0
  %1584 = vmatpush1.bf16.msra.mxu0 0
  %1585 = vmatprep.subr.bf16.mxu0 0
  %1586 = vmatpush1.bf16.msra.mxu0 0
  %1587 = vmatprep.subr.bf16.mxu0 0
  %1588 = vmatpush1.bf16.msra.mxu0 0
  %1589 = vmatprep.subr.bf16.mxu0 0
  %1590 = vmatpush1.bf16.msra.mxu0 0
  %1591 = vmatprep.subr.bf16.mxu0 0
  %1592 = vmatpush1.bf16.msra.mxu0 0
  %1593 = vmatprep.subr.bf16.mxu0 0
  %1594 = vmatpush1.bf16.msra.mxu0 0
  %1595 = vmatprep.subr.bf16.mxu0 0
  %1596 = vmatpush1.bf16.msra.mxu0 0
  %1597 = vmatprep.subr.bf16.mxu0 0
  %1598 = vmatpush1.bf16.msra.mxu0 0
  %1599 = vmatprep.subr.bf16.mxu0 0
  %1600 = vmatpush1.bf16.msra.mxu0 0
  %1601 = vmatprep.subr.bf16.mxu0 0
  %1602 = vmatpush1.bf16.msra.mxu0 0
  %1603 = vmatprep.subr.bf16.mxu0 0
  %1604 = vmatpush1.bf16.msra.mxu0 0
  %1605 = vmatprep.mubr.bf16.mxu0 0
  %1606 = vmatmul.mubr.bf16.gmra.mrb[0].mxu0 %v1571
  %v1607 = vpop.f32.mrb[0].mxu0
  %v1608 = vadd.f32 %v1568, %v1607
  %v1609 = vpop.f32.mrb[0].mxu0
  %v1610 = vadd.f32 %v1568, %v1609
  %v1611 = vpop.f32.mrb[0].mxu0
  %v1612 = vpop.f32.mrb[0].mxu0
  %1613 = vdwg.mxu0
  %1614 = vmatprep.subr.bf16.mxu0 %v1558
  %1615 = vmatpush1.bf16.msra.mxu0 %v1557
  %1616 = vmatprep.subr.bf16.mxu0 %v1562
  %1617 = vmatpush1.bf16.msra.mxu0 %v1561
  %1618 = vmatprep.subr.bf16.mxu0 0
  %1619 = vmatpush1.bf16.msra.mxu0 0
  %1620 = vmatprep.subr.bf16.mxu0 0
  %1621 = vmatpush1.bf16.msra.mxu0 0
  %1622 = vmatprep.subr.bf16.mxu0 0
  %1623 = vmatpush1.bf16.msra.mxu0 0
  %1624 = vmatprep.subr.bf16.mxu0 0
  %1625 = vmatpush1.bf16.msra.mxu0 0
  %1626 = vmatprep.subr.bf16.mxu0 0
  %1627 = vmatpush1.bf16.msra.mxu0 0
  %1628 = vmatprep.subr.bf16.mxu0 0
  %1629 = vmatpush1.bf16.msra.mxu0 0
  %1630 = vmatprep.subr.bf16.mxu0 0
  %1631 = vmatpush1.bf16.msra.mxu0 0
  %1632 = vmatprep.subr.bf16.mxu0 0
  %1633 = vmatpush1.bf16.msra.mxu0 0
  %1634 = vmatprep.subr.bf16.mxu0 0
  %1635 = vmatpush1.bf16.msra.mxu0 0
  %1636 = vmatprep.subr.bf16.mxu0 0
  %1637 = vmatpush1.bf16.msra.mxu0 0
  %1638 = vmatprep.subr.bf16.mxu0 0
  %1639 = vmatpush1.bf16.msra.mxu0 0
  %1640 = vmatprep.subr.bf16.mxu0 0
  %1641 = vmatpush1.bf16.msra.mxu0 0
  %1642 = vmatprep.subr.bf16.mxu0 0
  %1643 = vmatpush1.bf16.msra.mxu0 0
  %1644 = vmatprep.subr.bf16.mxu0 0
  %1645 = vmatpush1.bf16.msra.mxu0 0
  %1646 = vmatprep.mubr.bf16.mxu0 0
  %1647 = vmatmul.mubr.bf16.gmra.mrb[0].mxu0 %v1571
  %v1648 = vpop.f32.mrb[0].mxu0
  %v1649 = vadd.f32 %v1568, %v1648
  %v1650 = vpop.f32.mrb[0].mxu0
  %v1651 = vadd.f32 %v1568, %v1650
  %v1652 = vpop.f32.mrb[0].mxu0
  %v1653 = vpop.f32.mrb[0].mxu0
  %1654 = vdwg.mxu0
  %v1655 = vmul.f32 %v1390, -8.508992
  %v1656 = vmul.f32 %v1391, -8.508992
  %v1657 = vmul.f32 %v1392, -8.508992
  %v1658 = vmul.f32 %v1393, -8.508992
  %v1659 = vadd.f32 %v1608, %v1655
  %v1660 = vadd.f32 %v1610, %v1656
  %v1661 = vadd.f32 %v1649, %v1657
  %v1662 = vadd.f32 %v1651, %v1658
  %v1663 = vmul.f32 %v1659, 2.0
  %v1664 = vmul.f32 %v1660, 2.0
  %v1665 = vmul.f32 %v1661, 2.0
  %v1666 = vmul.f32 %v1662, 2.0
  %v1667 = vadd.f32 %v1382, %v1663
  %v1668 = vadd.f32 %v1383, %v1664
  %v1669 = vadd.f32 %v1384, %v1665
  %v1670 = vadd.f32 %v1385, %v1666
  %v1671 = vmul.f32 %v1659, -0.04995
  %v1672 = vmul.f32 %v1660, -0.04995
  %v1673 = vmul.f32 %v1661, -0.04995
  %v1674 = vmul.f32 %v1662, -0.04995
  %v1675 = vadd.f32 %v1113, %v1671
  %v1676 = vadd.f32 %v1114, %v1672
  %v1677 = vadd.f32 %v1115, %v1673
  %v1678 = vadd.f32 %v1116, %v1674
  %v1679 = vpack.c.bf16 %v1675, %v1675
  %v1680 = vpack.c.bf16 %v1676, %v1676
  %v1681 = vpack.c.bf16 %v1677, %v1677
  %v1682 = vpack.c.bf16 %v1678, %v1678
  %v1684 = vsel %vm47, %v1679, 0
  %v1687 = vsel %vm47, %v1680, 0
  %v1690 = vsel %vm47, %v1681, 0
  %v1693 = vsel %vm47, %v1682, 0
  %1695 = vmatprep.subr.bf16.mxu0 %v1687
  %1696 = vmatpush1.bf16.msra.mxu0 %v1684
  %1697 = vmatprep.subr.bf16.mxu0 0
  %1698 = vmatpush1.bf16.msra.mxu0 0
  %1699 = vmatprep.subr.bf16.mxu0 0
  %1700 = vmatpush1.bf16.msra.mxu0 0
  %1701 = vmatprep.subr.bf16.mxu0 0
  %1702 = vmatpush1.bf16.msra.mxu0 0
  %1703 = vmatprep.subr.bf16.mxu0 0
  %1704 = vmatpush1.bf16.msra.mxu0 0
  %1705 = vmatprep.subr.bf16.mxu0 0
  %1706 = vmatpush1.bf16.msra.mxu0 0
  %1707 = vmatprep.subr.bf16.mxu0 0
  %1708 = vmatpush1.bf16.msra.mxu0 0
  %1709 = vmatprep.subr.bf16.mxu0 0
  %1710 = vmatpush1.bf16.msra.mxu0 0
  %1711 = vmatprep.subr.bf16.mxu0 0
  %1712 = vmatpush1.bf16.msra.mxu0 0
  %1713 = vmatprep.subr.bf16.mxu0 0
  %1714 = vmatpush1.bf16.msra.mxu0 0
  %1715 = vmatprep.subr.bf16.mxu0 0
  %1716 = vmatpush1.bf16.msra.mxu0 0
  %1717 = vmatprep.subr.bf16.mxu0 0
  %1718 = vmatpush1.bf16.msra.mxu0 0
  %1719 = vmatprep.subr.bf16.mxu0 0
  %1720 = vmatpush1.bf16.msra.mxu0 0
  %1721 = vmatprep.subr.bf16.mxu0 0
  %1722 = vmatpush1.bf16.msra.mxu0 0
  %1723 = vmatprep.subr.bf16.mxu0 0
  %1724 = vmatpush1.bf16.msra.mxu0 0
  %1725 = vmatprep.subr.bf16.mxu0 0
  %1726 = vmatpush1.bf16.msra.mxu0 0
  %1727 = vmatprep.mubr.bf16.mxu0 0
  %1728 = vmatmul.mubr.bf16.gmra.mrb[0].mxu0 %v1414
  %v1729 = vpop.f32.mrb[0].mxu0
  %v1730 = vadd.f32 0.0, %v1729
  %v1731 = vpop.f32.mrb[0].mxu0
  %v1732 = vadd.f32 0.0, %v1731
  %v1733 = vpop.f32.mrb[0].mxu0
  %v1734 = vadd.f32 0.0, %v1733
  %v1735 = vpop.f32.mrb[0].mxu0
  %v1736 = vadd.f32 0.0, %v1735
  %1737 = vmatprep.mubr.bf16.mxu0 0
  %1738 = vmatmul.mubr.bf16.gmra.mrb[0].mxu0 %v1417
  %v1739 = vpop.f32.mrb[0].mxu0
  %v1740 = vadd.f32 0.0, %v1739
  %v1741 = vpop.f32.mrb[0].mxu0
  %v1742 = vadd.f32 0.0, %v1741
  %v1743 = vpop.f32.mrb[0].mxu0
  %v1744 = vadd.f32 0.0, %v1743
  %v1745 = vpop.f32.mrb[0].mxu0
  %v1746 = vadd.f32 0.0, %v1745
  %1747 = vdwg.mxu0
  %1748 = vmatprep.subr.bf16.mxu0 %v1693
  %1749 = vmatpush1.bf16.msra.mxu0 %v1690
  %1750 = vmatprep.subr.bf16.mxu0 0
  %1751 = vmatpush1.bf16.msra.mxu0 0
  %1752 = vmatprep.subr.bf16.mxu0 0
  %1753 = vmatpush1.bf16.msra.mxu0 0
  %1754 = vmatprep.subr.bf16.mxu0 0
  %1755 = vmatpush1.bf16.msra.mxu0 0
  %1756 = vmatprep.subr.bf16.mxu0 0
  %1757 = vmatpush1.bf16.msra.mxu0 0
  %1758 = vmatprep.subr.bf16.mxu0 0
  %1759 = vmatpush1.bf16.msra.mxu0 0
  %1760 = vmatprep.subr.bf16.mxu0 0
  %1761 = vmatpush1.bf16.msra.mxu0 0
  %1762 = vmatprep.subr.bf16.mxu0 0
  %1763 = vmatpush1.bf16.msra.mxu0 0
  %1764 = vmatprep.subr.bf16.mxu0 0
  %1765 = vmatpush1.bf16.msra.mxu0 0
  %1766 = vmatprep.subr.bf16.mxu0 0
  %1767 = vmatpush1.bf16.msra.mxu0 0
  %1768 = vmatprep.subr.bf16.mxu0 0
  %1769 = vmatpush1.bf16.msra.mxu0 0
  %1770 = vmatprep.subr.bf16.mxu0 0
  %1771 = vmatpush1.bf16.msra.mxu0 0
  %1772 = vmatprep.subr.bf16.mxu0 0
  %1773 = vmatpush1.bf16.msra.mxu0 0
  %1774 = vmatprep.subr.bf16.mxu0 0
  %1775 = vmatpush1.bf16.msra.mxu0 0
  %1776 = vmatprep.subr.bf16.mxu0 0
  %1777 = vmatpush1.bf16.msra.mxu0 0
  %1778 = vmatprep.subr.bf16.mxu0 0
  %1779 = vmatpush1.bf16.msra.mxu0 0
  %1780 = vmatprep.mubr.bf16.mxu0 0
  %1781 = vmatmul.mubr.bf16.gmra.mrb[0].mxu0 %v1414
  %v1782 = vpop.f32.mrb[0].mxu0
  %v1783 = vadd.f32 0.0, %v1782
  %v1784 = vpop.f32.mrb[0].mxu0
  %v1785 = vadd.f32 0.0, %v1784
  %v1786 = vpop.f32.mrb[0].mxu0
  %v1787 = vadd.f32 0.0, %v1786
  %v1788 = vpop.f32.mrb[0].mxu0
  %v1789 = vadd.f32 0.0, %v1788
  %1790 = vmatprep.mubr.bf16.mxu0 0
  %1791 = vmatmul.mubr.bf16.gmra.mrb[0].mxu0 %v1417
  %v1792 = vpop.f32.mrb[0].mxu0
  %v1793 = vadd.f32 0.0, %v1792
  %v1794 = vpop.f32.mrb[0].mxu0
  %v1795 = vadd.f32 0.0, %v1794
  %v1796 = vpop.f32.mrb[0].mxu0
  %v1797 = vadd.f32 0.0, %v1796
  %v1798 = vpop.f32.mrb[0].mxu0
  %v1799 = vadd.f32 0.0, %v1798
  %1800 = vdwg.mxu0
  %v1801 = vmax.f32 %v1730, 0.0
  %v1802 = vmax.f32 %v1732, 0.0
  %v1803 = vmax.f32 %v1783, 0.0
  %v1804 = vmax.f32 %v1785, 0.0
  %v1805 = vmax.f32 %v1734, 0.0
  %v1806 = vmax.f32 %v1736, 0.0
  %v1807 = vmax.f32 %v1787, 0.0
  %v1808 = vmax.f32 %v1789, 0.0
  %v1809 = vmax.f32 %v1740, 0.0
  %v1810 = vmax.f32 %v1742, 0.0
  %v1811 = vmax.f32 %v1793, 0.0
  %v1812 = vmax.f32 %v1795, 0.0
  %v1813 = vmax.f32 %v1744, 0.0
  %v1814 = vmax.f32 %v1746, 0.0
  %v1815 = vmax.f32 %v1797, 0.0
  %v1816 = vmax.f32 %v1799, 0.0
  %v1817 = vpack.c.bf16 %v1805, %v1801
  %v1818 = vpack.c.bf16 %v1806, %v1802
  %v1819 = vpack.c.bf16 %v1807, %v1803
  %v1820 = vpack.c.bf16 %v1808, %v1804
  %v1821 = vpack.c.bf16 %v1813, %v1809
  %v1822 = vpack.c.bf16 %v1814, %v1810
  %v1823 = vpack.c.bf16 %v1815, %v1811
  %v1824 = vpack.c.bf16 %v1816, %v1812
  %1825 = vmatprep.subr.bf16.mxu0 %v1818
  %1826 = vmatpush1.bf16.msra.mxu0 %v1817
  %1827 = vmatprep.subr.bf16.mxu0 %v1822
  %1828 = vmatpush1.bf16.msra.mxu0 %v1821
  %1829 = vmatprep.subr.bf16.mxu0 0
  %1830 = vmatpush1.bf16.msra.mxu0 0
  %1831 = vmatprep.subr.bf16.mxu0 0
  %1832 = vmatpush1.bf16.msra.mxu0 0
  %1833 = vmatprep.subr.bf16.mxu0 0
  %1834 = vmatpush1.bf16.msra.mxu0 0
  %1835 = vmatprep.subr.bf16.mxu0 0
  %1836 = vmatpush1.bf16.msra.mxu0 0
  %1837 = vmatprep.subr.bf16.mxu0 0
  %1838 = vmatpush1.bf16.msra.mxu0 0
  %1839 = vmatprep.subr.bf16.mxu0 0
  %1840 = vmatpush1.bf16.msra.mxu0 0
  %1841 = vmatprep.subr.bf16.mxu0 0
  %1842 = vmatpush1.bf16.msra.mxu0 0
  %1843 = vmatprep.subr.bf16.mxu0 0
  %1844 = vmatpush1.bf16.msra.mxu0 0
  %1845 = vmatprep.subr.bf16.mxu0 0
  %1846 = vmatpush1.bf16.msra.mxu0 0
  %1847 = vmatprep.subr.bf16.mxu0 0
  %1848 = vmatpush1.bf16.msra.mxu0 0
  %1849 = vmatprep.subr.bf16.mxu0 0
  %1850 = vmatpush1.bf16.msra.mxu0 0
  %1851 = vmatprep.subr.bf16.mxu0 0
  %1852 = vmatpush1.bf16.msra.mxu0 0
  %1853 = vmatprep.subr.bf16.mxu0 0
  %1854 = vmatpush1.bf16.msra.mxu0 0
  %1855 = vmatprep.subr.bf16.mxu0 0
  %1856 = vmatpush1.bf16.msra.mxu0 0
  %1857 = vmatprep.mubr.bf16.mxu0 0
  %1858 = vmatmul.mubr.bf16.gmra.mrb[0].mxu0 %v1571
  %v1859 = vpop.f32.mrb[0].mxu0
  %v1860 = vadd.f32 %v1568, %v1859
  %v1861 = vpop.f32.mrb[0].mxu0
  %v1862 = vadd.f32 %v1568, %v1861
  %v1863 = vpop.f32.mrb[0].mxu0
  %v1864 = vpop.f32.mrb[0].mxu0
  %1865 = vdwg.mxu0
  %1866 = vmatprep.subr.bf16.mxu0 %v1820
  %1867 = vmatpush1.bf16.msra.mxu0 %v1819
  %1868 = vmatprep.subr.bf16.mxu0 %v1824
  %1869 = vmatpush1.bf16.msra.mxu0 %v1823
  %1870 = vmatprep.subr.bf16.mxu0 0
  %1871 = vmatpush1.bf16.msra.mxu0 0
  %1872 = vmatprep.subr.bf16.mxu0 0
  %1873 = vmatpush1.bf16.msra.mxu0 0
  %1874 = vmatprep.subr.bf16.mxu0 0
  %1875 = vmatpush1.bf16.msra.mxu0 0
  %1876 = vmatprep.subr.bf16.mxu0 0
  %1877 = vmatpush1.bf16.msra.mxu0 0
  %1878 = vmatprep.subr.bf16.mxu0 0
  %1879 = vmatpush1.bf16.msra.mxu0 0
  %1880 = vmatprep.subr.bf16.mxu0 0
  %1881 = vmatpush1.bf16.msra.mxu0 0
  %1882 = vmatprep.subr.bf16.mxu0 0
  %1883 = vmatpush1.bf16.msra.mxu0 0
  %1884 = vmatprep.subr.bf16.mxu0 0
  %1885 = vmatpush1.bf16.msra.mxu0 0
  %1886 = vmatprep.subr.bf16.mxu0 0
  %1887 = vmatpush1.bf16.msra.mxu0 0
  %1888 = vmatprep.subr.bf16.mxu0 0
  %1889 = vmatpush1.bf16.msra.mxu0 0
  %1890 = vmatprep.subr.bf16.mxu0 0
  %1891 = vmatpush1.bf16.msra.mxu0 0
  %1892 = vmatprep.subr.bf16.mxu0 0
  %1893 = vmatpush1.bf16.msra.mxu0 0
  %1894 = vmatprep.subr.bf16.mxu0 0
  %1895 = vmatpush1.bf16.msra.mxu0 0
  %1896 = vmatprep.subr.bf16.mxu0 0
  %1897 = vmatpush1.bf16.msra.mxu0 0
  %1898 = vmatprep.mubr.bf16.mxu0 0
  %1899 = vmatmul.mubr.bf16.gmra.mrb[0].mxu0 %v1571
  %v1900 = vpop.f32.mrb[0].mxu0
  %v1901 = vadd.f32 %v1568, %v1900
  %v1902 = vpop.f32.mrb[0].mxu0
  %v1903 = vadd.f32 %v1568, %v1902
  %v1904 = vpop.f32.mrb[0].mxu0
  %v1905 = vpop.f32.mrb[0].mxu0
  %1906 = vdwg.mxu0
  %v1907 = vmul.f32 %v1675, -8.508992
  %v1908 = vmul.f32 %v1676, -8.508992
  %v1909 = vmul.f32 %v1677, -8.508992
  %v1910 = vmul.f32 %v1678, -8.508992
  %v1911 = vadd.f32 %v1860, %v1907
  %v1912 = vadd.f32 %v1862, %v1908
  %v1913 = vadd.f32 %v1901, %v1909
  %v1914 = vadd.f32 %v1903, %v1910
  %v1915 = vmul.f32 %v1911, 2.0
  %v1916 = vmul.f32 %v1912, 2.0
  %v1917 = vmul.f32 %v1913, 2.0
  %v1918 = vmul.f32 %v1914, 2.0
  %v1919 = vadd.f32 %v1667, %v1915
  %v1920 = vadd.f32 %v1668, %v1916
  %v1921 = vadd.f32 %v1669, %v1917
  %v1922 = vadd.f32 %v1670, %v1918
  %v1923 = vmul.f32 %v1911, -0.0999
  %v1924 = vmul.f32 %v1912, -0.0999
  %v1925 = vmul.f32 %v1913, -0.0999
  %v1926 = vmul.f32 %v1914, -0.0999
  %v1927 = vadd.f32 %v1113, %v1923
  %v1928 = vadd.f32 %v1114, %v1924
  %v1929 = vadd.f32 %v1115, %v1925
  %v1930 = vadd.f32 %v1116, %v1926
  %s1931 = scalar_lea.vmem %s1, 80
  %v1932 = vld [vmem:[%s1931] sm:$0xf]
  %v1933 = vld [vmem:[%s1931 + $0x4] sm:$0xf]
  %v1934 = vld [vmem:[%s1931 + $0x8] sm:$0xf]
  %v1935 = vld [vmem:[%s1931 + $0xc] sm:$0xf]
  %v1936 = vpack.c.bf16 %v1927, %v1927
  %v1937 = vpack.c.bf16 %v1928, %v1928
  %v1938 = vpack.c.bf16 %v1929, %v1929
  %v1939 = vpack.c.bf16 %v1930, %v1930
  %v1944 = vunpack.c.l.b16 %v1932
  %v1945 = vunpack.c.l.b16 %v1933
  %v1946 = vunpack.c.l.b16 %v1934
  %v1947 = vunpack.c.l.b16 %v1935
  %v1948 = vpack.c.b16 %v1945, %v1944
  %v1949 = vpack.c.b16 %v1947, %v1946
  %v1951 = vsel %vm40, %v1948, 0
  %v1954 = vsel %vm40, %v1949, 0
  %v1957 = vsel %vm47, %v1936, 0
  %v1960 = vsel %vm47, %v1937, 0
  %v1963 = vsel %vm47, %v1938, 0
  %v1966 = vsel %vm47, %v1939, 0
  %1968 = vmatprep.subr.bf16.mxu0 %v1960
  %1969 = vmatpush1.bf16.msra.mxu0 %v1957
  %1970 = vmatprep.subr.bf16.mxu0 0
  %1971 = vmatpush1.bf16.msra.mxu0 0
  %1972 = vmatprep.subr.bf16.mxu0 0
  %1973 = vmatpush1.bf16.msra.mxu0 0
  %1974 = vmatprep.subr.bf16.mxu0 0
  %1975 = vmatpush1.bf16.msra.mxu0 0
  %1976 = vmatprep.subr.bf16.mxu0 0
  %1977 = vmatpush1.bf16.msra.mxu0 0
  %1978 = vmatprep.subr.bf16.mxu0 0
  %1979 = vmatpush1.bf16.msra.mxu0 0
  %1980 = vmatprep.subr.bf16.mxu0 0
  %1981 = vmatpush1.bf16.msra.mxu0 0
  %1982 = vmatprep.subr.bf16.mxu0 0
  %1983 = vmatpush1.bf16.msra.mxu0 0
  %1984 = vmatprep.subr.bf16.mxu0 0
  %1985 = vmatpush1.bf16.msra.mxu0 0
  %1986 = vmatprep.subr.bf16.mxu0 0
  %1987 = vmatpush1.bf16.msra.mxu0 0
  %1988 = vmatprep.subr.bf16.mxu0 0
  %1989 = vmatpush1.bf16.msra.mxu0 0
  %1990 = vmatprep.subr.bf16.mxu0 0
  %1991 = vmatpush1.bf16.msra.mxu0 0
  %1992 = vmatprep.subr.bf16.mxu0 0
  %1993 = vmatpush1.bf16.msra.mxu0 0
  %1994 = vmatprep.subr.bf16.mxu0 0
  %1995 = vmatpush1.bf16.msra.mxu0 0
  %1996 = vmatprep.subr.bf16.mxu0 0
  %1997 = vmatpush1.bf16.msra.mxu0 0
  %1998 = vmatprep.subr.bf16.mxu0 0
  %1999 = vmatpush1.bf16.msra.mxu0 0
  %2000 = vmatprep.mubr.bf16.mxu0 0
  %2001 = vmatmul.mubr.bf16.gmra.mrb[0].mxu0 %v1951
  %v2002 = vpop.f32.mrb[0].mxu0
  %v2003 = vadd.f32 0.0, %v2002
  %v2004 = vpop.f32.mrb[0].mxu0
  %v2005 = vadd.f32 0.0, %v2004
  %v2006 = vpop.f32.mrb[0].mxu0
  %v2007 = vadd.f32 0.0, %v2006
  %v2008 = vpop.f32.mrb[0].mxu0
  %v2009 = vadd.f32 0.0, %v2008
  %2010 = vmatprep.mubr.bf16.mxu0 0
  %2011 = vmatmul.mubr.bf16.gmra.mrb[0].mxu0 %v1954
  %v2012 = vpop.f32.mrb[0].mxu0
  %v2013 = vadd.f32 0.0, %v2012
  %v2014 = vpop.f32.mrb[0].mxu0
  %v2015 = vadd.f32 0.0, %v2014
  %v2016 = vpop.f32.mrb[0].mxu0
  %v2017 = vadd.f32 0.0, %v2016
  %v2018 = vpop.f32.mrb[0].mxu0
  %v2019 = vadd.f32 0.0, %v2018
  %2020 = vdwg.mxu0
  %2021 = vmatprep.subr.bf16.mxu0 %v1966
  %2022 = vmatpush1.bf16.msra.mxu0 %v1963
  %2023 = vmatprep.subr.bf16.mxu0 0
  %2024 = vmatpush1.bf16.msra.mxu0 0
  %2025 = vmatprep.subr.bf16.mxu0 0
  %2026 = vmatpush1.bf16.msra.mxu0 0
  %2027 = vmatprep.subr.bf16.mxu0 0
  %2028 = vmatpush1.bf16.msra.mxu0 0
  %2029 = vmatprep.subr.bf16.mxu0 0
  %2030 = vmatpush1.bf16.msra.mxu0 0
  %2031 = vmatprep.subr.bf16.mxu0 0
  %2032 = vmatpush1.bf16.msra.mxu0 0
  %2033 = vmatprep.subr.bf16.mxu0 0
  %2034 = vmatpush1.bf16.msra.mxu0 0
  %2035 = vmatprep.subr.bf16.mxu0 0
  %2036 = vmatpush1.bf16.msra.mxu0 0
  %2037 = vmatprep.subr.bf16.mxu0 0
  %2038 = vmatpush1.bf16.msra.mxu0 0
  %2039 = vmatprep.subr.bf16.mxu0 0
  %2040 = vmatpush1.bf16.msra.mxu0 0
  %2041 = vmatprep.subr.bf16.mxu0 0
  %2042 = vmatpush1.bf16.msra.mxu0 0
  %2043 = vmatprep.subr.bf16.mxu0 0
  %2044 = vmatpush1.bf16.msra.mxu0 0
  %2045 = vmatprep.subr.bf16.mxu0 0
  %2046 = vmatpush1.bf16.msra.mxu0 0
  %2047 = vmatprep.subr.bf16.mxu0 0
  %2048 = vmatpush1.bf16.msra.mxu0 0
  %2049 = vmatprep.subr.bf16.mxu0 0
  %2050 = vmatpush1.bf16.msra.mxu0 0
  %2051 = vmatprep.subr.bf16.mxu0 0
  %2052 = vmatpush1.bf16.msra.mxu0 0
  %2053 = vmatprep.mubr.bf16.mxu0 0
  %2054 = vmatmul.mubr.bf16.gmra.mrb[0].mxu0 %v1951
  %v2055 = vpop.f32.mrb[0].mxu0
  %v2056 = vadd.f32 0.0, %v2055
  %v2057 = vpop.f32.mrb[0].mxu0
  %v2058 = vadd.f32 0.0, %v2057
  %v2059 = vpop.f32.mrb[0].mxu0
  %v2060 = vadd.f32 0.0, %v2059
  %v2061 = vpop.f32.mrb[0].mxu0
  %v2062 = vadd.f32 0.0, %v2061
  %2063 = vmatprep.mubr.bf16.mxu0 0
  %2064 = vmatmul.mubr.bf16.gmra.mrb[0].mxu0 %v1954
  %v2065 = vpop.f32.mrb[0].mxu0
  %v2066 = vadd.f32 0.0, %v2065
  %v2067 = vpop.f32.mrb[0].mxu0
  %v2068 = vadd.f32 0.0, %v2067
  %v2069 = vpop.f32.mrb[0].mxu0
  %v2070 = vadd.f32 0.0, %v2069
  %v2071 = vpop.f32.mrb[0].mxu0
  %v2072 = vadd.f32 0.0, %v2071
  %2073 = vdwg.mxu0
  %v2074 = vmax.f32 %v2003, 0.0
  %v2075 = vmax.f32 %v2005, 0.0
  %v2076 = vmax.f32 %v2056, 0.0
  %v2077 = vmax.f32 %v2058, 0.0
  %v2078 = vmax.f32 %v2007, 0.0
  %v2079 = vmax.f32 %v2009, 0.0
  %v2080 = vmax.f32 %v2060, 0.0
  %v2081 = vmax.f32 %v2062, 0.0
  %v2082 = vmax.f32 %v2013, 0.0
  %v2083 = vmax.f32 %v2015, 0.0
  %v2084 = vmax.f32 %v2066, 0.0
  %v2085 = vmax.f32 %v2068, 0.0
  %v2086 = vmax.f32 %v2017, 0.0
  %v2087 = vmax.f32 %v2019, 0.0
  %v2088 = vmax.f32 %v2070, 0.0
  %v2089 = vmax.f32 %v2072, 0.0
  %s2090 = scalar_lea.vmem %s2, 20
  %v2091 = vld [vmem:[%s2090] sm:$0xf]
  %v2092 = vpack.c.bf16 %v2078, %v2074
  %v2093 = vpack.c.bf16 %v2079, %v2075
  %v2094 = vpack.c.bf16 %v2080, %v2076
  %v2095 = vpack.c.bf16 %v2081, %v2077
  %v2096 = vpack.c.bf16 %v2086, %v2082
  %v2097 = vpack.c.bf16 %v2087, %v2083
  %v2098 = vpack.c.bf16 %v2088, %v2084
  %v2099 = vpack.c.bf16 %v2089, %v2085
  %s2100 = scalar_lea.vmem %s3, 40
  %v2101 = vld [vmem:[%s2100] sm:$0xff]
  %2103 = vset.pattern.permute.xlu0 0
  %2104 = vperm.xlu0 %2103, %v2101
  %v2105 = vpop.permute.xlu0 %2104
  %v2108 = vsel %vm197, %v2091, 0
  %2110 = vmatprep.subr.bf16.mxu0 %v2093
  %2111 = vmatpush1.bf16.msra.mxu0 %v2092
  %2112 = vmatprep.subr.bf16.mxu0 %v2097
  %2113 = vmatpush1.bf16.msra.mxu0 %v2096
  %2114 = vmatprep.subr.bf16.mxu0 0
  %2115 = vmatpush1.bf16.msra.mxu0 0
  %2116 = vmatprep.subr.bf16.mxu0 0
  %2117 = vmatpush1.bf16.msra.mxu0 0
  %2118 = vmatprep.subr.bf16.mxu0 0
  %2119 = vmatpush1.bf16.msra.mxu0 0
  %2120 = vmatprep.subr.bf16.mxu0 0
  %2121 = vmatpush1.bf16.msra.mxu0 0
  %2122 = vmatprep.subr.bf16.mxu0 0
  %2123 = vmatpush1.bf16.msra.mxu0 0
  %2124 = vmatprep.subr.bf16.mxu0 0
  %2125 = vmatpush1.bf16.msra.mxu0 0
  %2126 = vmatprep.subr.bf16.mxu0 0
  %2127 = vmatpush1.bf16.msra.mxu0 0
  %2128 = vmatprep.subr.bf16.mxu0 0
  %2129 = vmatpush1.bf16.msra.mxu0 0
  %2130 = vmatprep.subr.bf16.mxu0 0
  %2131 = vmatpush1.bf16.msra.mxu0 0
  %2132 = vmatprep.subr.bf16.mxu0 0
  %2133 = vmatpush1.bf16.msra.mxu0 0
  %2134 = vmatprep.subr.bf16.mxu0 0
  %2135 = vmatpush1.bf16.msra.mxu0 0
  %2136 = vmatprep.subr.bf16.mxu0 0
  %2137 = vmatpush1.bf16.msra.mxu0 0
  %2138 = vmatprep.subr.bf16.mxu0 0
  %2139 = vmatpush1.bf16.msra.mxu0 0
  %2140 = vmatprep.subr.bf16.mxu0 0
  %2141 = vmatpush1.bf16.msra.mxu0 0
  %2142 = vmatprep.mubr.bf16.mxu0 0
  %2143 = vmatmul.mubr.bf16.gmra.mrb[0].mxu0 %v2108
  %v2144 = vpop.f32.mrb[0].mxu0
  %v2145 = vadd.f32 %v2105, %v2144
  %v2146 = vpop.f32.mrb[0].mxu0
  %v2147 = vadd.f32 %v2105, %v2146
  %v2148 = vpop.f32.mrb[0].mxu0
  %v2149 = vpop.f32.mrb[0].mxu0
  %2150 = vdwg.mxu0
  %2151 = vmatprep.subr.bf16.mxu0 %v2095
  %2152 = vmatpush1.bf16.msra.mxu0 %v2094
  %2153 = vmatprep.subr.bf16.mxu0 %v2099
  %2154 = vmatpush1.bf16.msra.mxu0 %v2098
  %2155 = vmatprep.subr.bf16.mxu0 0
  %2156 = vmatpush1.bf16.msra.mxu0 0
  %2157 = vmatprep.subr.bf16.mxu0 0
  %2158 = vmatpush1.bf16.msra.mxu0 0
  %2159 = vmatprep.subr.bf16.mxu0 0
  %2160 = vmatpush1.bf16.msra.mxu0 0
  %2161 = vmatprep.subr.bf16.mxu0 0
  %2162 = vmatpush1.bf16.msra.mxu0 0
  %2163 = vmatprep.subr.bf16.mxu0 0
  %2164 = vmatpush1.bf16.msra.mxu0 0
  %2165 = vmatprep.subr.bf16.mxu0 0
  %2166 = vmatpush1.bf16.msra.mxu0 0
  %2167 = vmatprep.subr.bf16.mxu0 0
  %2168 = vmatpush1.bf16.msra.mxu0 0
  %2169 = vmatprep.subr.bf16.mxu0 0
  %2170 = vmatpush1.bf16.msra.mxu0 0
  %2171 = vmatprep.subr.bf16.mxu0 0
  %2172 = vmatpush1.bf16.msra.mxu0 0
  %2173 = vmatprep.subr.bf16.mxu0 0
  %2174 = vmatpush1.bf16.msra.mxu0 0
  %2175 = vmatprep.subr.bf16.mxu0 0
  %2176 = vmatpush1.bf16.msra.mxu0 0
  %2177 = vmatprep.subr.bf16.mxu0 0
  %2178 = vmatpush1.bf16.msra.mxu0 0
  %2179 = vmatprep.subr.bf16.mxu0 0
  %2180 = vmatpush1.bf16.msra.mxu0 0
  %2181 = vmatprep.subr.bf16.mxu0 0
  %2182 = vmatpush1.bf16.msra.mxu0 0
  %2183 = vmatprep.mubr.bf16.mxu0 0
  %2184 = vmatmul.mubr.bf16.gmra.mrb[0].mxu0 %v2108
  %v2185 = vpop.f32.mrb[0].mxu0
  %v2186 = vadd.f32 %v2105, %v2185
  %v2187 = vpop.f32.mrb[0].mxu0
  %v2188 = vadd.f32 %v2105, %v2187
  %v2189 = vpop.f32.mrb[0].mxu0
  %v2190 = vpop.f32.mrb[0].mxu0
  %2191 = vdwg.mxu0
  %v2192 = vmul.f32 %v1927, -8.01199
  %v2193 = vmul.f32 %v1928, -8.01199
  %v2194 = vmul.f32 %v1929, -8.01199
  %v2195 = vmul.f32 %v1930, -8.01199
  %v2196 = vadd.f32 %v2145, %v2192
  %v2197 = vadd.f32 %v2147, %v2193
  %v2198 = vadd.f32 %v2186, %v2194
  %v2199 = vadd.f32 %v2188, %v2195
  %v2200 = vadd.f32 %v1919, %v2196
  %v2201 = vadd.f32 %v1920, %v2197
  %v2202 = vadd.f32 %v1921, %v2198
  %v2203 = vadd.f32 %v1922, %v2199
  %v2204 = vmul.f32 %v2200, -0.01665
  %v2205 = vmul.f32 %v2201, -0.01665
  %v2206 = vmul.f32 %v2202, -0.01665
  %v2207 = vmul.f32 %v2203, -0.01665
  %v2208 = vadd.f32 %v1113, %v2204
  %v2209 = vadd.f32 %v1114, %v2205
  %v2210 = vadd.f32 %v1115, %v2206
  %v2211 = vadd.f32 %v1116, %v2207
  %s2212 = scalar_lea.vmem %s1, 96
  %v2213 = vld [vmem:[%s2212] sm:$0xf]
  %v2214 = vld [vmem:[%s2212 + $0x4] sm:$0xf]
  %v2215 = vld [vmem:[%s2212 + $0x8] sm:$0xf]
  %v2216 = vld [vmem:[%s2212 + $0xc] sm:$0xf]
  %v2217 = vpack.c.bf16 %v2208, %v2208
  %v2218 = vpack.c.bf16 %v2209, %v2209
  %v2219 = vpack.c.bf16 %v2210, %v2210
  %v2220 = vpack.c.bf16 %v2211, %v2211
  %v2225 = vunpack.c.l.b16 %v2213
  %v2226 = vunpack.c.l.b16 %v2214
  %v2227 = vunpack.c.l.b16 %v2215
  %v2228 = vunpack.c.l.b16 %v2216
  %v2229 = vpack.c.b16 %v2226, %v2225
  %v2230 = vpack.c.b16 %v2228, %v2227
  %v2232 = vsel %vm40, %v2229, 0
  %v2235 = vsel %vm40, %v2230, 0
  %v2238 = vsel %vm47, %v2217, 0
  %v2241 = vsel %vm47, %v2218, 0
  %v2244 = vsel %vm47, %v2219, 0
  %v2247 = vsel %vm47, %v2220, 0
  %2249 = vmatprep.subr.bf16.mxu0 %v2241
  %2250 = vmatpush1.bf16.msra.mxu0 %v2238
  %2251 = vmatprep.subr.bf16.mxu0 0
  %2252 = vmatpush1.bf16.msra.mxu0 0
  %2253 = vmatprep.subr.bf16.mxu0 0
  %2254 = vmatpush1.bf16.msra.mxu0 0
  %2255 = vmatprep.subr.bf16.mxu0 0
  %2256 = vmatpush1.bf16.msra.mxu0 0
  %2257 = vmatprep.subr.bf16.mxu0 0
  %2258 = vmatpush1.bf16.msra.mxu0 0
  %2259 = vmatprep.subr.bf16.mxu0 0
  %2260 = vmatpush1.bf16.msra.mxu0 0
  %2261 = vmatprep.subr.bf16.mxu0 0
  %2262 = vmatpush1.bf16.msra.mxu0 0
  %2263 = vmatprep.subr.bf16.mxu0 0
  %2264 = vmatpush1.bf16.msra.mxu0 0
  %2265 = vmatprep.subr.bf16.mxu0 0
  %2266 = vmatpush1.bf16.msra.mxu0 0
  %2267 = vmatprep.subr.bf16.mxu0 0
  %2268 = vmatpush1.bf16.msra.mxu0 0
  %2269 = vmatprep.subr.bf16.mxu0 0
  %2270 = vmatpush1.bf16.msra.mxu0 0
  %2271 = vmatprep.subr.bf16.mxu0 0
  %2272 = vmatpush1.bf16.msra.mxu0 0
  %2273 = vmatprep.subr.bf16.mxu0 0
  %2274 = vmatpush1.bf16.msra.mxu0 0
  %2275 = vmatprep.subr.bf16.mxu0 0
  %2276 = vmatpush1.bf16.msra.mxu0 0
  %2277 = vmatprep.subr.bf16.mxu0 0
  %2278 = vmatpush1.bf16.msra.mxu0 0
  %2279 = vmatprep.subr.bf16.mxu0 0
  %2280 = vmatpush1.bf16.msra.mxu0 0
  %2281 = vmatprep.mubr.bf16.mxu0 0
  %2282 = vmatmul.mubr.bf16.gmra.mrb[0].mxu0 %v2232
  %v2283 = vpop.f32.mrb[0].mxu0
  %v2284 = vadd.f32 0.0, %v2283
  %v2285 = vpop.f32.mrb[0].mxu0
  %v2286 = vadd.f32 0.0, %v2285
  %v2287 = vpop.f32.mrb[0].mxu0
  %v2288 = vadd.f32 0.0, %v2287
  %v2289 = vpop.f32.mrb[0].mxu0
  %v2290 = vadd.f32 0.0, %v2289
  %2291 = vmatprep.mubr.bf16.mxu0 0
  %2292 = vmatmul.mubr.bf16.gmra.mrb[0].mxu0 %v2235
  %v2293 = vpop.f32.mrb[0].mxu0
  %v2294 = vadd.f32 0.0, %v2293
  %v2295 = vpop.f32.mrb[0].mxu0
  %v2296 = vadd.f32 0.0, %v2295
  %v2297 = vpop.f32.mrb[0].mxu0
  %v2298 = vadd.f32 0.0, %v2297
  %v2299 = vpop.f32.mrb[0].mxu0
  %v2300 = vadd.f32 0.0, %v2299
  %2301 = vdwg.mxu0
  %2302 = vmatprep.subr.bf16.mxu0 %v2247
  %2303 = vmatpush1.bf16.msra.mxu0 %v2244
  %2304 = vmatprep.subr.bf16.mxu0 0
  %2305 = vmatpush1.bf16.msra.mxu0 0
  %2306 = vmatprep.subr.bf16.mxu0 0
  %2307 = vmatpush1.bf16.msra.mxu0 0
  %2308 = vmatprep.subr.bf16.mxu0 0
  %2309 = vmatpush1.bf16.msra.mxu0 0
  %2310 = vmatprep.subr.bf16.mxu0 0
  %2311 = vmatpush1.bf16.msra.mxu0 0
  %2312 = vmatprep.subr.bf16.mxu0 0
  %2313 = vmatpush1.bf16.msra.mxu0 0
  %2314 = vmatprep.subr.bf16.mxu0 0
  %2315 = vmatpush1.bf16.msra.mxu0 0
  %2316 = vmatprep.subr.bf16.mxu0 0
  %2317 = vmatpush1.bf16.msra.mxu0 0
  %2318 = vmatprep.subr.bf16.mxu0 0
  %2319 = vmatpush1.bf16.msra.mxu0 0
  %2320 = vmatprep.subr.bf16.mxu0 0
  %2321 = vmatpush1.bf16.msra.mxu0 0
  %2322 = vmatprep.subr.bf16.mxu0 0
  %2323 = vmatpush1.bf16.msra.mxu0 0
  %2324 = vmatprep.subr.bf16.mxu0 0
  %2325 = vmatpush1.bf16.msra.mxu0 0
  %2326 = vmatprep.subr.bf16.mxu0 0
  %2327 = vmatpush1.bf16.msra.mxu0 0
  %2328 = vmatprep.subr.bf16.mxu0 0
  %2329 = vmatpush1.bf16.msra.mxu0 0
  %2330 = vmatprep.subr.bf16.mxu0 0
  %2331 = vmatpush1.bf16.msra.mxu0 0
  %2332 = vmatprep.subr.bf16.mxu0 0
  %2333 = vmatpush1.bf16.msra.mxu0 0
  %2334 = vmatprep.mubr.bf16.mxu0 0
  %2335 = vmatmul.mubr.bf16.gmra.mrb[0].mxu0 %v2232
  %v2336 = vpop.f32.mrb[0].mxu0
  %v2337 = vadd.f32 0.0, %v2336
  %v2338 = vpop.f32.mrb[0].mxu0
  %v2339 = vadd.f32 0.0, %v2338
  %v2340 = vpop.f32.mrb[0].mxu0
  %v2341 = vadd.f32 0.0, %v2340
  %v2342 = vpop.f32.mrb[0].mxu0
  %v2343 = vadd.f32 0.0, %v2342
  %2344 = vmatprep.mubr.bf16.mxu0 0
  %2345 = vmatmul.mubr.bf16.gmra.mrb[0].mxu0 %v2235
  %v2346 = vpop.f32.mrb[0].mxu0
  %v2347 = vadd.f32 0.0, %v2346
  %v2348 = vpop.f32.mrb[0].mxu0
  %v2349 = vadd.f32 0.0, %v2348
  %v2350 = vpop.f32.mrb[0].mxu0
  %v2351 = vadd.f32 0.0, %v2350
  %v2352 = vpop.f32.mrb[0].mxu0
  %v2353 = vadd.f32 0.0, %v2352
  %2354 = vdwg.mxu0
  %v2355 = vmax.f32 %v2284, 0.0
  %v2356 = vmax.f32 %v2286, 0.0
  %v2357 = vmax.f32 %v2337, 0.0
  %v2358 = vmax.f32 %v2339, 0.0
  %v2359 = vmax.f32 %v2288, 0.0
  %v2360 = vmax.f32 %v2290, 0.0
  %v2361 = vmax.f32 %v2341, 0.0
  %v2362 = vmax.f32 %v2343, 0.0
  %v2363 = vmax.f32 %v2294, 0.0
  %v2364 = vmax.f32 %v2296, 0.0
  %v2365 = vmax.f32 %v2347, 0.0
  %v2366 = vmax.f32 %v2349, 0.0
  %v2367 = vmax.f32 %v2298, 0.0
  %v2368 = vmax.f32 %v2300, 0.0
  %v2369 = vmax.f32 %v2351, 0.0
  %v2370 = vmax.f32 %v2353, 0.0
  %s2371 = scalar_lea.vmem %s2, 24
  %v2372 = vld [vmem:[%s2371] sm:$0xf]
  %v2373 = vpack.c.bf16 %v2359, %v2355
  %v2374 = vpack.c.bf16 %v2360, %v2356
  %v2375 = vpack.c.bf16 %v2361, %v2357
  %v2376 = vpack.c.bf16 %v2362, %v2358
  %v2377 = vpack.c.bf16 %v2367, %v2363
  %v2378 = vpack.c.bf16 %v2368, %v2364
  %v2379 = vpack.c.bf16 %v2369, %v2365
  %v2380 = vpack.c.bf16 %v2370, %v2366
  %s2381 = scalar_lea.vmem %s3, 48
  %v2382 = vld [vmem:[%s2381] sm:$0xff]
  %2384 = vset.pattern.permute.xlu0 0
  %2385 = vperm.xlu0 %2384, %v2382
  %v2386 = vpop.permute.xlu0 %2385
  %v2389 = vsel %vm197, %v2372, 0
  %2391 = vmatprep.subr.bf16.mxu0 %v2374
  %2392 = vmatpush1.bf16.msra.mxu0 %v2373
  %2393 = vmatprep.subr.bf16.mxu0 %v2378
  %2394 = vmatpush1.bf16.msra.mxu0 %v2377
  %2395 = vmatprep.subr.bf16.mxu0 0
  %2396 = vmatpush1.bf16.msra.mxu0 0
  %2397 = vmatprep.subr.bf16.mxu0 0
  %2398 = vmatpush1.bf16.msra.mxu0 0
  %2399 = vmatprep.subr.bf16.mxu0 0
  %2400 = vmatpush1.bf16.msra.mxu0 0
  %2401 = vmatprep.subr.bf16.mxu0 0
  %2402 = vmatpush1.bf16.msra.mxu0 0
  %2403 = vmatprep.subr.bf16.mxu0 0
  %2404 = vmatpush1.bf16.msra.mxu0 0
  %2405 = vmatprep.subr.bf16.mxu0 0
  %2406 = vmatpush1.bf16.msra.mxu0 0
  %2407 = vmatprep.subr.bf16.mxu0 0
  %2408 = vmatpush1.bf16.msra.mxu0 0
  %2409 = vmatprep.subr.bf16.mxu0 0
  %2410 = vmatpush1.bf16.msra.mxu0 0
  %2411 = vmatprep.subr.bf16.mxu0 0
  %2412 = vmatpush1.bf16.msra.mxu0 0
  %2413 = vmatprep.subr.bf16.mxu0 0
  %2414 = vmatpush1.bf16.msra.mxu0 0
  %2415 = vmatprep.subr.bf16.mxu0 0
  %2416 = vmatpush1.bf16.msra.mxu0 0
  %2417 = vmatprep.subr.bf16.mxu0 0
  %2418 = vmatpush1.bf16.msra.mxu0 0
  %2419 = vmatprep.subr.bf16.mxu0 0
  %2420 = vmatpush1.bf16.msra.mxu0 0
  %2421 = vmatprep.subr.bf16.mxu0 0
  %2422 = vmatpush1.bf16.msra.mxu0 0
  %2423 = vmatprep.mubr.bf16.mxu0 0
  %2424 = vmatmul.mubr.bf16.gmra.mrb[0].mxu0 %v2389
  %v2425 = vpop.f32.mrb[0].mxu0
  %v2426 = vadd.f32 %v2386, %v2425
  %v2427 = vpop.f32.mrb[0].mxu0
  %v2428 = vadd.f32 %v2386, %v2427
  %v2429 = vpop.f32.mrb[0].mxu0
  %v2430 = vpop.f32.mrb[0].mxu0
  %2431 = vdwg.mxu0
  %2432 = vmatprep.subr.bf16.mxu0 %v2376
  %2433 = vmatpush1.bf16.msra.mxu0 %v2375
  %2434 = vmatprep.subr.bf16.mxu0 %v2380
  %2435 = vmatpush1.bf16.msra.mxu0 %v2379
  %2436 = vmatprep.subr.bf16.mxu0 0
  %2437 = vmatpush1.bf16.msra.mxu0 0
  %2438 = vmatprep.subr.bf16.mxu0 0
  %2439 = vmatpush1.bf16.msra.mxu0 0
  %2440 = vmatprep.subr.bf16.mxu0 0
  %2441 = vmatpush1.bf16.msra.mxu0 0
  %2442 = vmatprep.subr.bf16.mxu0 0
  %2443 = vmatpush1.bf16.msra.mxu0 0
  %2444 = vmatprep.subr.bf16.mxu0 0
  %2445 = vmatpush1.bf16.msra.mxu0 0
  %2446 = vmatprep.subr.bf16.mxu0 0
  %2447 = vmatpush1.bf16.msra.mxu0 0
  %2448 = vmatprep.subr.bf16.mxu0 0
  %2449 = vmatpush1.bf16.msra.mxu0 0
  %2450 = vmatprep.subr.bf16.mxu0 0
  %2451 = vmatpush1.bf16.msra.mxu0 0
  %2452 = vmatprep.subr.bf16.mxu0 0
  %2453 = vmatpush1.bf16.msra.mxu0 0
  %2454 = vmatprep.subr.bf16.mxu0 0
  %2455 = vmatpush1.bf16.msra.mxu0 0
  %2456 = vmatprep.subr.bf16.mxu0 0
  %2457 = vmatpush1.bf16.msra.mxu0 0
  %2458 = vmatprep.subr.bf16.mxu0 0
  %2459 = vmatpush1.bf16.msra.mxu0 0
  %2460 = vmatprep.subr.bf16.mxu0 0
  %2461 = vmatpush1.bf16.msra.mxu0 0
  %2462 = vmatprep.subr.bf16.mxu0 0
  %2463 = vmatpush1.bf16.msra.mxu0 0
  %2464 = vmatprep.mubr.bf16.mxu0 0
  %2465 = vmatmul.mubr.bf16.gmra.mrb[0].mxu0 %v2389
  %v2466 = vpop.f32.mrb[0].mxu0
  %v2467 = vadd.f32 %v2386, %v2466
  %v2468 = vpop.f32.mrb[0].mxu0
  %v2469 = vadd.f32 %v2386, %v2468
  %v2470 = vpop.f32.mrb[0].mxu0
  %v2471 = vpop.f32.mrb[0].mxu0
  %2472 = vdwg.mxu0
  %v2473 = vmul.f32 %v2208, -8.01199
  %v2474 = vmul.f32 %v2209, -8.01199
  %v2475 = vmul.f32 %v2210, -8.01199
  %v2476 = vmul.f32 %v2211, -8.01199
  %v2477 = vadd.f32 %v2426, %v2473
  %v2478 = vadd.f32 %v2428, %v2474
  %v2479 = vadd.f32 %v2467, %v2475
  %v2480 = vadd.f32 %v2469, %v2476
  %v2481 = vmul.f32 %v2477, -0.04995
  %v2482 = vmul.f32 %v2478, -0.04995
  %v2483 = vmul.f32 %v2479, -0.04995
  %v2484 = vmul.f32 %v2480, -0.04995
  %v2485 = vadd.f32 %v2208, %v2481
  %v2486 = vadd.f32 %v2209, %v2482
  %v2487 = vadd.f32 %v2210, %v2483
  %v2488 = vadd.f32 %v2211, %v2484
  %s2489 = scalar_lea.vmem %s1, 112
  %v2490 = vld [vmem:[%s2489] sm:$0xf]
  %v2491 = vld [vmem:[%s2489 + $0x4] sm:$0xf]
  %v2492 = vld [vmem:[%s2489 + $0x8] sm:$0xf]
  %v2493 = vld [vmem:[%s2489 + $0xc] sm:$0xf]
  %v2494 = vpack.c.bf16 %v2485, %v2485
  %v2495 = vpack.c.bf16 %v2486, %v2486
  %v2496 = vpack.c.bf16 %v2487, %v2487
  %v2497 = vpack.c.bf16 %v2488, %v2488
  %v2502 = vunpack.c.l.b16 %v2490
  %v2503 = vunpack.c.l.b16 %v2491
  %v2504 = vunpack.c.l.b16 %v2492
  %v2505 = vunpack.c.l.b16 %v2493
  %v2506 = vpack.c.b16 %v2503, %v2502
  %v2507 = vpack.c.b16 %v2505, %v2504
  %v2509 = vsel %vm40, %v2506, 0
  %v2512 = vsel %vm40, %v2507, 0
  %v2515 = vsel %vm47, %v2494, 0
  %v2518 = vsel %vm47, %v2495, 0
  %v2521 = vsel %vm47, %v2496, 0
  %v2524 = vsel %vm47, %v2497, 0
  %2526 = vmatprep.subr.bf16.mxu0 %v2518
  %2527 = vmatpush1.bf16.msra.mxu0 %v2515
  %2528 = vmatprep.subr.bf16.mxu0 0
  %2529 = vmatpush1.bf16.msra.mxu0 0
  %2530 = vmatprep.subr.bf16.mxu0 0
  %2531 = vmatpush1.bf16.msra.mxu0 0
  %2532 = vmatprep.subr.bf16.mxu0 0
  %2533 = vmatpush1.bf16.msra.mxu0 0
  %2534 = vmatprep.subr.bf16.mxu0 0
  %2535 = vmatpush1.bf16.msra.mxu0 0
  %2536 = vmatprep.subr.bf16.mxu0 0
  %2537 = vmatpush1.bf16.msra.mxu0 0
  %2538 = vmatprep.subr.bf16.mxu0 0
  %2539 = vmatpush1.bf16.msra.mxu0 0
  %2540 = vmatprep.subr.bf16.mxu0 0
  %2541 = vmatpush1.bf16.msra.mxu0 0
  %2542 = vmatprep.subr.bf16.mxu0 0
  %2543 = vmatpush1.bf16.msra.mxu0 0
  %2544 = vmatprep.subr.bf16.mxu0 0
  %2545 = vmatpush1.bf16.msra.mxu0 0
  %2546 = vmatprep.subr.bf16.mxu0 0
  %2547 = vmatpush1.bf16.msra.mxu0 0
  %2548 = vmatprep.subr.bf16.mxu0 0
  %2549 = vmatpush1.bf16.msra.mxu0 0
  %2550 = vmatprep.subr.bf16.mxu0 0
  %2551 = vmatpush1.bf16.msra.mxu0 0
  %2552 = vmatprep.subr.bf16.mxu0 0
  %2553 = vmatpush1.bf16.msra.mxu0 0
  %2554 = vmatprep.subr.bf16.mxu0 0
  %2555 = vmatpush1.bf16.msra.mxu0 0
  %2556 = vmatprep.subr.bf16.mxu0 0
  %2557 = vmatpush1.bf16.msra.mxu0 0
  %2558 = vmatprep.mubr.bf16.mxu0 0
  %2559 = vmatmul.mubr.bf16.gmra.mrb[0].mxu0 %v2509
  %v2560 = vpop.f32.mrb[0].mxu0
  %v2561 = vadd.f32 0.0, %v2560
  %v2562 = vpop.f32.mrb[0].mxu0
  %v2563 = vadd.f32 0.0, %v2562
  %v2564 = vpop.f32.mrb[0].mxu0
  %v2565 = vadd.f32 0.0, %v2564
  %v2566 = vpop.f32.mrb[0].mxu0
  %v2567 = vadd.f32 0.0, %v2566
  %2568 = vmatprep.mubr.bf16.mxu0 0
  %2569 = vmatmul.mubr.bf16.gmra.mrb[0].mxu0 %v2512
  %v2570 = vpop.f32.mrb[0].mxu0
  %v2571 = vadd.f32 0.0, %v2570
  %v2572 = vpop.f32.mrb[0].mxu0
  %v2573 = vadd.f32 0.0, %v2572
  %v2574 = vpop.f32.mrb[0].mxu0
  %v2575 = vadd.f32 0.0, %v2574
  %v2576 = vpop.f32.mrb[0].mxu0
  %v2577 = vadd.f32 0.0, %v2576
  %2578 = vdwg.mxu0
  %2579 = vmatprep.subr.bf16.mxu0 %v2524
  %2580 = vmatpush1.bf16.msra.mxu0 %v2521
  %2581 = vmatprep.subr.bf16.mxu0 0
  %2582 = vmatpush1.bf16.msra.mxu0 0
  %2583 = vmatprep.subr.bf16.mxu0 0
  %2584 = vmatpush1.bf16.msra.mxu0 0
  %2585 = vmatprep.subr.bf16.mxu0 0
  %2586 = vmatpush1.bf16.msra.mxu0 0
  %2587 = vmatprep.subr.bf16.mxu0 0
  %2588 = vmatpush1.bf16.msra.mxu0 0
  %2589 = vmatprep.subr.bf16.mxu0 0
  %2590 = vmatpush1.bf16.msra.mxu0 0
  %2591 = vmatprep.subr.bf16.mxu0 0
  %2592 = vmatpush1.bf16.msra.mxu0 0
  %2593 = vmatprep.subr.bf16.mxu0 0
  %2594 = vmatpush1.bf16.msra.mxu0 0
  %2595 = vmatprep.subr.bf16.mxu0 0
  %2596 = vmatpush1.bf16.msra.mxu0 0
  %2597 = vmatprep.subr.bf16.mxu0 0
  %2598 = vmatpush1.bf16.msra.mxu0 0
  %2599 = vmatprep.subr.bf16.mxu0 0
  %2600 = vmatpush1.bf16.msra.mxu0 0
  %2601 = vmatprep.subr.bf16.mxu0 0
  %2602 = vmatpush1.bf16.msra.mxu0 0
  %2603 = vmatprep.subr.bf16.mxu0 0
  %2604 = vmatpush1.bf16.msra.mxu0 0
  %2605 = vmatprep.subr.bf16.mxu0 0
  %2606 = vmatpush1.bf16.msra.mxu0 0
  %2607 = vmatprep.subr.bf16.mxu0 0
  %2608 = vmatpush1.bf16.msra.mxu0 0
  %2609 = vmatprep.subr.bf16.mxu0 0
  %2610 = vmatpush1.bf16.msra.mxu0 0
  %2611 = vmatprep.mubr.bf16.mxu0 0
  %2612 = vmatmul.mubr.bf16.gmra.mrb[0].mxu0 %v2509
  %v2613 = vpop.f32.mrb[0].mxu0
  %v2614 = vadd.f32 0.0, %v2613
  %v2615 = vpop.f32.mrb[0].mxu0
  %v2616 = vadd.f32 0.0, %v2615
  %v2617 = vpop.f32.mrb[0].mxu0
  %v2618 = vadd.f32 0.0, %v2617
  %v2619 = vpop.f32.mrb[0].mxu0
  %v2620 = vadd.f32 0.0, %v2619
  %2621 = vmatprep.mubr.bf16.mxu0 0
  %2622 = vmatmul.mubr.bf16.gmra.mrb[0].mxu0 %v2512
  %v2623 = vpop.f32.mrb[0].mxu0
  %v2624 = vadd.f32 0.0, %v2623
  %v2625 = vpop.f32.mrb[0].mxu0
  %v2626 = vadd.f32 0.0, %v2625
  %v2627 = vpop.f32.mrb[0].mxu0
  %v2628 = vadd.f32 0.0, %v2627
  %v2629 = vpop.f32.mrb[0].mxu0
  %v2630 = vadd.f32 0.0, %v2629
  %2631 = vdwg.mxu0
  %v2632 = vmax.f32 %v2561, 0.0
  %v2633 = vmax.f32 %v2563, 0.0
  %v2634 = vmax.f32 %v2614, 0.0
  %v2635 = vmax.f32 %v2616, 0.0
  %v2636 = vmax.f32 %v2565, 0.0
  %v2637 = vmax.f32 %v2567, 0.0
  %v2638 = vmax.f32 %v2618, 0.0
  %v2639 = vmax.f32 %v2620, 0.0
  %v2640 = vmax.f32 %v2571, 0.0
  %v2641 = vmax.f32 %v2573, 0.0
  %v2642 = vmax.f32 %v2624, 0.0
  %v2643 = vmax.f32 %v2626, 0.0
  %v2644 = vmax.f32 %v2575, 0.0
  %v2645 = vmax.f32 %v2577, 0.0
  %v2646 = vmax.f32 %v2628, 0.0
  %v2647 = vmax.f32 %v2630, 0.0
  %s2648 = scalar_lea.vmem %s2, 28
  %v2649 = vld [vmem:[%s2648] sm:$0xf]
  %v2650 = vpack.c.bf16 %v2636, %v2632
  %v2651 = vpack.c.bf16 %v2637, %v2633
  %v2652 = vpack.c.bf16 %v2638, %v2634
  %v2653 = vpack.c.bf16 %v2639, %v2635
  %v2654 = vpack.c.bf16 %v2644, %v2640
  %v2655 = vpack.c.bf16 %v2645, %v2641
  %v2656 = vpack.c.bf16 %v2646, %v2642
  %v2657 = vpack.c.bf16 %v2647, %v2643
  %s2658 = scalar_lea.vmem %s3, 56
  %v2659 = vld [vmem:[%s2658] sm:$0xff]
  %2661 = vset.pattern.permute.xlu0 0
  %2662 = vperm.xlu0 %2661, %v2659
  %v2663 = vpop.permute.xlu0 %2662
  %v2666 = vsel %vm197, %v2649, 0
  %2668 = vmatprep.subr.bf16.mxu0 %v2651
  %2669 = vmatpush1.bf16.msra.mxu0 %v2650
  %2670 = vmatprep.subr.bf16.mxu0 %v2655
  %2671 = vmatpush1.bf16.msra.mxu0 %v2654
  %2672 = vmatprep.subr.bf16.mxu0 0
  %2673 = vmatpush1.bf16.msra.mxu0 0
  %2674 = vmatprep.subr.bf16.mxu0 0
  %2675 = vmatpush1.bf16.msra.mxu0 0
  %2676 = vmatprep.subr.bf16.mxu0 0
  %2677 = vmatpush1.bf16.msra.mxu0 0
  %2678 = vmatprep.subr.bf16.mxu0 0
  %2679 = vmatpush1.bf16.msra.mxu0 0
  %2680 = vmatprep.subr.bf16.mxu0 0
  %2681 = vmatpush1.bf16.msra.mxu0 0
  %2682 = vmatprep.subr.bf16.mxu0 0
  %2683 = vmatpush1.bf16.msra.mxu0 0
  %2684 = vmatprep.subr.bf16.mxu0 0
  %2685 = vmatpush1.bf16.msra.mxu0 0
  %2686 = vmatprep.subr.bf16.mxu0 0
  %2687 = vmatpush1.bf16.msra.mxu0 0
  %2688 = vmatprep.subr.bf16.mxu0 0
  %2689 = vmatpush1.bf16.msra.mxu0 0
  %2690 = vmatprep.subr.bf16.mxu0 0
  %2691 = vmatpush1.bf16.msra.mxu0 0
  %2692 = vmatprep.subr.bf16.mxu0 0
  %2693 = vmatpush1.bf16.msra.mxu0 0
  %2694 = vmatprep.subr.bf16.mxu0 0
  %2695 = vmatpush1.bf16.msra.mxu0 0
  %2696 = vmatprep.subr.bf16.mxu0 0
  %2697 = vmatpush1.bf16.msra.mxu0 0
  %2698 = vmatprep.subr.bf16.mxu0 0
  %2699 = vmatpush1.bf16.msra.mxu0 0
  %2700 = vmatprep.mubr.bf16.mxu0 0
  %2701 = vmatmul.mubr.bf16.gmra.mrb[0].mxu0 %v2666
  %v2702 = vpop.f32.mrb[0].mxu0
  %v2703 = vadd.f32 %v2663, %v2702
  %v2704 = vpop.f32.mrb[0].mxu0
  %v2705 = vadd.f32 %v2663, %v2704
  %v2706 = vpop.f32.mrb[0].mxu0
  %v2707 = vpop.f32.mrb[0].mxu0
  %2708 = vdwg.mxu0
  %2709 = vmatprep.subr.bf16.mxu0 %v2653
  %2710 = vmatpush1.bf16.msra.mxu0 %v2652
  %2711 = vmatprep.subr.bf16.mxu0 %v2657
  %2712 = vmatpush1.bf16.msra.mxu0 %v2656
  %2713 = vmatprep.subr.bf16.mxu0 0
  %2714 = vmatpush1.bf16.msra.mxu0 0
  %2715 = vmatprep.subr.bf16.mxu0 0
  %2716 = vmatpush1.bf16.msra.mxu0 0
  %2717 = vmatprep.subr.bf16.mxu0 0
  %2718 = vmatpush1.bf16.msra.mxu0 0
  %2719 = vmatprep.subr.bf16.mxu0 0
  %2720 = vmatpush1.bf16.msra.mxu0 0
  %2721 = vmatprep.subr.bf16.mxu0 0
  %2722 = vmatpush1.bf16.msra.mxu0 0
  %2723 = vmatprep.subr.bf16.mxu0 0
  %2724 = vmatpush1.bf16.msra.mxu0 0
  %2725 = vmatprep.subr.bf16.mxu0 0
  %2726 = vmatpush1.bf16.msra.mxu0 0
  %2727 = vmatprep.subr.bf16.mxu0 0
  %2728 = vmatpush1.bf16.msra.mxu0 0
  %2729 = vmatprep.subr.bf16.mxu0 0
  %2730 = vmatpush1.bf16.msra.mxu0 0
  %2731 = vmatprep.subr.bf16.mxu0 0
  %2732 = vmatpush1.bf16.msra.mxu0 0
  %2733 = vmatprep.subr.bf16.mxu0 0
  %2734 = vmatpush1.bf16.msra.mxu0 0
  %2735 = vmatprep.subr.bf16.mxu0 0
  %2736 = vmatpush1.bf16.msra.mxu0 0
  %2737 = vmatprep.subr.bf16.mxu0 0
  %2738 = vmatpush1.bf16.msra.mxu0 0
  %2739 = vmatprep.subr.bf16.mxu0 0
  %2740 = vmatpush1.bf16.msra.mxu0 0
  %2741 = vmatprep.mubr.bf16.mxu0 0
  %2742 = vmatmul.mubr.bf16.gmra.mrb[0].mxu0 %v2666
  %v2743 = vpop.f32.mrb[0].mxu0
  %v2744 = vadd.f32 %v2663, %v2743
  %v2745 = vpop.f32.mrb[0].mxu0
  %v2746 = vadd.f32 %v2663, %v2745
  %v2747 = vpop.f32.mrb[0].mxu0
  %v2748 = vpop.f32.mrb[0].mxu0
  %2749 = vdwg.mxu0
  %v2750 = vmul.f32 %v2485, -7.5149875
  %v2751 = vmul.f32 %v2486, -7.5149875
  %v2752 = vmul.f32 %v2487, -7.5149875
  %v2753 = vmul.f32 %v2488, -7.5149875
  %v2754 = vadd.f32 %v2703, %v2750
  %v2755 = vadd.f32 %v2705, %v2751
  %v2756 = vadd.f32 %v2744, %v2752
  %v2757 = vadd.f32 %v2746, %v2753
  %v2758 = vmul.f32 %v2754, 2.0
  %v2759 = vmul.f32 %v2755, 2.0
  %v2760 = vmul.f32 %v2756, 2.0
  %v2761 = vmul.f32 %v2757, 2.0
  %v2762 = vadd.f32 %v2477, %v2758
  %v2763 = vadd.f32 %v2478, %v2759
  %v2764 = vadd.f32 %v2479, %v2760
  %v2765 = vadd.f32 %v2480, %v2761
  %v2766 = vmul.f32 %v2754, -0.04995
  %v2767 = vmul.f32 %v2755, -0.04995
  %v2768 = vmul.f32 %v2756, -0.04995
  %v2769 = vmul.f32 %v2757, -0.04995
  %v2770 = vadd.f32 %v2208, %v2766
  %v2771 = vadd.f32 %v2209, %v2767
  %v2772 = vadd.f32 %v2210, %v2768
  %v2773 = vadd.f32 %v2211, %v2769
  %v2774 = vpack.c.bf16 %v2770, %v2770
  %v2775 = vpack.c.bf16 %v2771, %v2771
  %v2776 = vpack.c.bf16 %v2772, %v2772
  %v2777 = vpack.c.bf16 %v2773, %v2773
  %v2779 = vsel %vm47, %v2774, 0
  %v2782 = vsel %vm47, %v2775, 0
  %v2785 = vsel %vm47, %v2776, 0
  %v2788 = vsel %vm47, %v2777, 0
  %2790 = vmatprep.subr.bf16.mxu0 %v2782
  %2791 = vmatpush1.bf16.msra.mxu0 %v2779
  %2792 = vmatprep.subr.bf16.mxu0 0
  %2793 = vmatpush1.bf16.msra.mxu0 0
  %2794 = vmatprep.subr.bf16.mxu0 0
  %2795 = vmatpush1.bf16.msra.mxu0 0
  %2796 = vmatprep.subr.bf16.mxu0 0
  %2797 = vmatpush1.bf16.msra.mxu0 0
  %2798 = vmatprep.subr.bf16.mxu0 0
  %2799 = vmatpush1.bf16.msra.mxu0 0
  %2800 = vmatprep.subr.bf16.mxu0 0
  %2801 = vmatpush1.bf16.msra.mxu0 0
  %2802 = vmatprep.subr.bf16.mxu0 0
  %2803 = vmatpush1.bf16.msra.mxu0 0
  %2804 = vmatprep.subr.bf16.mxu0 0
  %2805 = vmatpush1.bf16.msra.mxu0 0
  %2806 = vmatprep.subr.bf16.mxu0 0
  %2807 = vmatpush1.bf16.msra.mxu0 0
  %2808 = vmatprep.subr.bf16.mxu0 0
  %2809 = vmatpush1.bf16.msra.mxu0 0
  %2810 = vmatprep.subr.bf16.mxu0 0
  %2811 = vmatpush1.bf16.msra.mxu0 0
  %2812 = vmatprep.subr.bf16.mxu0 0
  %2813 = vmatpush1.bf16.msra.mxu0 0
  %2814 = vmatprep.subr.bf16.mxu0 0
  %2815 = vmatpush1.bf16.msra.mxu0 0
  %2816 = vmatprep.subr.bf16.mxu0 0
  %2817 = vmatpush1.bf16.msra.mxu0 0
  %2818 = vmatprep.subr.bf16.mxu0 0
  %2819 = vmatpush1.bf16.msra.mxu0 0
  %2820 = vmatprep.subr.bf16.mxu0 0
  %2821 = vmatpush1.bf16.msra.mxu0 0
  %2822 = vmatprep.mubr.bf16.mxu0 0
  %2823 = vmatmul.mubr.bf16.gmra.mrb[0].mxu0 %v2509
  %v2824 = vpop.f32.mrb[0].mxu0
  %v2825 = vadd.f32 0.0, %v2824
  %v2826 = vpop.f32.mrb[0].mxu0
  %v2827 = vadd.f32 0.0, %v2826
  %v2828 = vpop.f32.mrb[0].mxu0
  %v2829 = vadd.f32 0.0, %v2828
  %v2830 = vpop.f32.mrb[0].mxu0
  %v2831 = vadd.f32 0.0, %v2830
  %2832 = vmatprep.mubr.bf16.mxu0 0
  %2833 = vmatmul.mubr.bf16.gmra.mrb[0].mxu0 %v2512
  %v2834 = vpop.f32.mrb[0].mxu0
  %v2835 = vadd.f32 0.0, %v2834
  %v2836 = vpop.f32.mrb[0].mxu0
  %v2837 = vadd.f32 0.0, %v2836
  %v2838 = vpop.f32.mrb[0].mxu0
  %v2839 = vadd.f32 0.0, %v2838
  %v2840 = vpop.f32.mrb[0].mxu0
  %v2841 = vadd.f32 0.0, %v2840
  %2842 = vdwg.mxu0
  %2843 = vmatprep.subr.bf16.mxu0 %v2788
  %2844 = vmatpush1.bf16.msra.mxu0 %v2785
  %2845 = vmatprep.subr.bf16.mxu0 0
  %2846 = vmatpush1.bf16.msra.mxu0 0
  %2847 = vmatprep.subr.bf16.mxu0 0
  %2848 = vmatpush1.bf16.msra.mxu0 0
  %2849 = vmatprep.subr.bf16.mxu0 0
  %2850 = vmatpush1.bf16.msra.mxu0 0
  %2851 = vmatprep.subr.bf16.mxu0 0
  %2852 = vmatpush1.bf16.msra.mxu0 0
  %2853 = vmatprep.subr.bf16.mxu0 0
  %2854 = vmatpush1.bf16.msra.mxu0 0
  %2855 = vmatprep.subr.bf16.mxu0 0
  %2856 = vmatpush1.bf16.msra.mxu0 0
  %2857 = vmatprep.subr.bf16.mxu0 0
  %2858 = vmatpush1.bf16.msra.mxu0 0
  %2859 = vmatprep.subr.bf16.mxu0 0
  %2860 = vmatpush1.bf16.msra.mxu0 0
  %2861 = vmatprep.subr.bf16.mxu0 0
  %2862 = vmatpush1.bf16.msra.mxu0 0
  %2863 = vmatprep.subr.bf16.mxu0 0
  %2864 = vmatpush1.bf16.msra.mxu0 0
  %2865 = vmatprep.subr.bf16.mxu0 0
  %2866 = vmatpush1.bf16.msra.mxu0 0
  %2867 = vmatprep.subr.bf16.mxu0 0
  %2868 = vmatpush1.bf16.msra.mxu0 0
  %2869 = vmatprep.subr.bf16.mxu0 0
  %2870 = vmatpush1.bf16.msra.mxu0 0
  %2871 = vmatprep.subr.bf16.mxu0 0
  %2872 = vmatpush1.bf16.msra.mxu0 0
  %2873 = vmatprep.subr.bf16.mxu0 0
  %2874 = vmatpush1.bf16.msra.mxu0 0
  %2875 = vmatprep.mubr.bf16.mxu0 0
  %2876 = vmatmul.mubr.bf16.gmra.mrb[0].mxu0 %v2509
  %v2877 = vpop.f32.mrb[0].mxu0
  %v2878 = vadd.f32 0.0, %v2877
  %v2879 = vpop.f32.mrb[0].mxu0
  %v2880 = vadd.f32 0.0, %v2879
  %v2881 = vpop.f32.mrb[0].mxu0
  %v2882 = vadd.f32 0.0, %v2881
  %v2883 = vpop.f32.mrb[0].mxu0
  %v2884 = vadd.f32 0.0, %v2883
  %2885 = vmatprep.mubr.bf16.mxu0 0
  %2886 = vmatmul.mubr.bf16.gmra.mrb[0].mxu0 %v2512
  %v2887 = vpop.f32.mrb[0].mxu0
  %v2888 = vadd.f32 0.0, %v2887
  %v2889 = vpop.f32.mrb[0].mxu0
  %v2890 = vadd.f32 0.0, %v2889
  %v2891 = vpop.f32.mrb[0].mxu0
  %v2892 = vadd.f32 0.0, %v2891
  %v2893 = vpop.f32.mrb[0].mxu0
  %v2894 = vadd.f32 0.0, %v2893
  %2895 = vdwg.mxu0
  %v2896 = vmax.f32 %v2825, 0.0
  %v2897 = vmax.f32 %v2827, 0.0
  %v2898 = vmax.f32 %v2878, 0.0
  %v2899 = vmax.f32 %v2880, 0.0
  %v2900 = vmax.f32 %v2829, 0.0
  %v2901 = vmax.f32 %v2831, 0.0
  %v2902 = vmax.f32 %v2882, 0.0
  %v2903 = vmax.f32 %v2884, 0.0
  %v2904 = vmax.f32 %v2835, 0.0
  %v2905 = vmax.f32 %v2837, 0.0
  %v2906 = vmax.f32 %v2888, 0.0
  %v2907 = vmax.f32 %v2890, 0.0
  %v2908 = vmax.f32 %v2839, 0.0
  %v2909 = vmax.f32 %v2841, 0.0
  %v2910 = vmax.f32 %v2892, 0.0
  %v2911 = vmax.f32 %v2894, 0.0
  %v2912 = vpack.c.bf16 %v2900, %v2896
  %v2913 = vpack.c.bf16 %v2901, %v2897
  %v2914 = vpack.c.bf16 %v2902, %v2898
  %v2915 = vpack.c.bf16 %v2903, %v2899
  %v2916 = vpack.c.bf16 %v2908, %v2904
  %v2917 = vpack.c.bf16 %v2909, %v2905
  %v2918 = vpack.c.bf16 %v2910, %v2906
  %v2919 = vpack.c.bf16 %v2911, %v2907
  %2920 = vmatprep.subr.bf16.mxu0 %v2913
  %2921 = vmatpush1.bf16.msra.mxu0 %v2912
  %2922 = vmatprep.subr.bf16.mxu0 %v2917
  %2923 = vmatpush1.bf16.msra.mxu0 %v2916
  %2924 = vmatprep.subr.bf16.mxu0 0
  %2925 = vmatpush1.bf16.msra.mxu0 0
  %2926 = vmatprep.subr.bf16.mxu0 0
  %2927 = vmatpush1.bf16.msra.mxu0 0
  %2928 = vmatprep.subr.bf16.mxu0 0
  %2929 = vmatpush1.bf16.msra.mxu0 0
  %2930 = vmatprep.subr.bf16.mxu0 0
  %2931 = vmatpush1.bf16.msra.mxu0 0
  %2932 = vmatprep.subr.bf16.mxu0 0
  %2933 = vmatpush1.bf16.msra.mxu0 0
  %2934 = vmatprep.subr.bf16.mxu0 0
  %2935 = vmatpush1.bf16.msra.mxu0 0
  %2936 = vmatprep.subr.bf16.mxu0 0
  %2937 = vmatpush1.bf16.msra.mxu0 0
  %2938 = vmatprep.subr.bf16.mxu0 0
  %2939 = vmatpush1.bf16.msra.mxu0 0
  %2940 = vmatprep.subr.bf16.mxu0 0
  %2941 = vmatpush1.bf16.msra.mxu0 0
  %2942 = vmatprep.subr.bf16.mxu0 0
  %2943 = vmatpush1.bf16.msra.mxu0 0
  %2944 = vmatprep.subr.bf16.mxu0 0
  %2945 = vmatpush1.bf16.msra.mxu0 0
  %2946 = vmatprep.subr.bf16.mxu0 0
  %2947 = vmatpush1.bf16.msra.mxu0 0
  %2948 = vmatprep.subr.bf16.mxu0 0
  %2949 = vmatpush1.bf16.msra.mxu0 0
  %2950 = vmatprep.subr.bf16.mxu0 0
  %2951 = vmatpush1.bf16.msra.mxu0 0
  %2952 = vmatprep.mubr.bf16.mxu0 0
  %2953 = vmatmul.mubr.bf16.gmra.mrb[0].mxu0 %v2666
  %v2954 = vpop.f32.mrb[0].mxu0
  %v2955 = vadd.f32 %v2663, %v2954
  %v2956 = vpop.f32.mrb[0].mxu0
  %v2957 = vadd.f32 %v2663, %v2956
  %v2958 = vpop.f32.mrb[0].mxu0
  %v2959 = vpop.f32.mrb[0].mxu0
  %2960 = vdwg.mxu0
  %2961 = vmatprep.subr.bf16.mxu0 %v2915
  %2962 = vmatpush1.bf16.msra.mxu0 %v2914
  %2963 = vmatprep.subr.bf16.mxu0 %v2919
  %2964 = vmatpush1.bf16.msra.mxu0 %v2918
  %2965 = vmatprep.subr.bf16.mxu0 0
  %2966 = vmatpush1.bf16.msra.mxu0 0
  %2967 = vmatprep.subr.bf16.mxu0 0
  %2968 = vmatpush1.bf16.msra.mxu0 0
  %2969 = vmatprep.subr.bf16.mxu0 0
  %2970 = vmatpush1.bf16.msra.mxu0 0
  %2971 = vmatprep.subr.bf16.mxu0 0
  %2972 = vmatpush1.bf16.msra.mxu0 0
  %2973 = vmatprep.subr.bf16.mxu0 0
  %2974 = vmatpush1.bf16.msra.mxu0 0
  %2975 = vmatprep.subr.bf16.mxu0 0
  %2976 = vmatpush1.bf16.msra.mxu0 0
  %2977 = vmatprep.subr.bf16.mxu0 0
  %2978 = vmatpush1.bf16.msra.mxu0 0
  %2979 = vmatprep.subr.bf16.mxu0 0
  %2980 = vmatpush1.bf16.msra.mxu0 0
  %2981 = vmatprep.subr.bf16.mxu0 0
  %2982 = vmatpush1.bf16.msra.mxu0 0
  %2983 = vmatprep.subr.bf16.mxu0 0
  %2984 = vmatpush1.bf16.msra.mxu0 0
  %2985 = vmatprep.subr.bf16.mxu0 0
  %2986 = vmatpush1.bf16.msra.mxu0 0
  %2987 = vmatprep.subr.bf16.mxu0 0
  %2988 = vmatpush1.bf16.msra.mxu0 0
  %2989 = vmatprep.subr.bf16.mxu0 0
  %2990 = vmatpush1.bf16.msra.mxu0 0
  %2991 = vmatprep.subr.bf16.mxu0 0
  %2992 = vmatpush1.bf16.msra.mxu0 0
  %2993 = vmatprep.mubr.bf16.mxu0 0
  %2994 = vmatmul.mubr.bf16.gmra.mrb[0].mxu0 %v2666
  %v2995 = vpop.f32.mrb[0].mxu0
  %v2996 = vadd.f32 %v2663, %v2995
  %v2997 = vpop.f32.mrb[0].mxu0
  %v2998 = vadd.f32 %v2663, %v2997
  %v2999 = vpop.f32.mrb[0].mxu0
  %v3000 = vpop.f32.mrb[0].mxu0
  %3001 = vdwg.mxu0
  %v3002 = vmul.f32 %v2770, -7.5149875
  %v3003 = vmul.f32 %v2771, -7.5149875
  %v3004 = vmul.f32 %v2772, -7.5149875
  %v3005 = vmul.f32 %v2773, -7.5149875
  %v3006 = vadd.f32 %v2955, %v3002
  %v3007 = vadd.f32 %v2957, %v3003
  %v3008 = vadd.f32 %v2996, %v3004
  %v3009 = vadd.f32 %v2998, %v3005
  %v3010 = vmul.f32 %v3006, 2.0
  %v3011 = vmul.f32 %v3007, 2.0
  %v3012 = vmul.f32 %v3008, 2.0
  %v3013 = vmul.f32 %v3009, 2.0
  %v3014 = vadd.f32 %v2762, %v3010
  %v3015 = vadd.f32 %v2763, %v3011
  %v3016 = vadd.f32 %v2764, %v3012
  %v3017 = vadd.f32 %v2765, %v3013
  %v3018 = vmul.f32 %v3006, -0.0999
  %v3019 = vmul.f32 %v3007, -0.0999
  %v3020 = vmul.f32 %v3008, -0.0999
  %v3021 = vmul.f32 %v3009, -0.0999
  %v3022 = vadd.f32 %v2208, %v3018
  %v3023 = vadd.f32 %v2209, %v3019
  %v3024 = vadd.f32 %v2210, %v3020
  %v3025 = vadd.f32 %v2211, %v3021
  %s3026 = scalar_lea.vmem %s1, 128
  %v3027 = vld [vmem:[%s3026] sm:$0xf]
  %v3028 = vld [vmem:[%s3026 + $0x4] sm:$0xf]
  %v3029 = vld [vmem:[%s3026 + $0x8] sm:$0xf]
  %v3030 = vld [vmem:[%s3026 + $0xc] sm:$0xf]
  %v3031 = vpack.c.bf16 %v3022, %v3022
  %v3032 = vpack.c.bf16 %v3023, %v3023
  %v3033 = vpack.c.bf16 %v3024, %v3024
  %v3034 = vpack.c.bf16 %v3025, %v3025
  %v3039 = vunpack.c.l.b16 %v3027
  %v3040 = vunpack.c.l.b16 %v3028
  %v3041 = vunpack.c.l.b16 %v3029
  %v3042 = vunpack.c.l.b16 %v3030
  %v3043 = vpack.c.b16 %v3040, %v3039
  %v3044 = vpack.c.b16 %v3042, %v3041
  %v3046 = vsel %vm40, %v3043, 0
  %v3049 = vsel %vm40, %v3044, 0
  %v3052 = vsel %vm47, %v3031, 0
  %v3055 = vsel %vm47, %v3032, 0
  %v3058 = vsel %vm47, %v3033, 0
  %v3061 = vsel %vm47, %v3034, 0
  %3063 = vmatprep.subr.bf16.mxu0 %v3055
  %3064 = vmatpush1.bf16.msra.mxu0 %v3052
  %3065 = vmatprep.subr.bf16.mxu0 0
  %3066 = vmatpush1.bf16.msra.mxu0 0
  %3067 = vmatprep.subr.bf16.mxu0 0
  %3068 = vmatpush1.bf16.msra.mxu0 0
  %3069 = vmatprep.subr.bf16.mxu0 0
  %3070 = vmatpush1.bf16.msra.mxu0 0
  %3071 = vmatprep.subr.bf16.mxu0 0
  %3072 = vmatpush1.bf16.msra.mxu0 0
  %3073 = vmatprep.subr.bf16.mxu0 0
  %3074 = vmatpush1.bf16.msra.mxu0 0
  %3075 = vmatprep.subr.bf16.mxu0 0
  %3076 = vmatpush1.bf16.msra.mxu0 0
  %3077 = vmatprep.subr.bf16.mxu0 0
  %3078 = vmatpush1.bf16.msra.mxu0 0
  %3079 = vmatprep.subr.bf16.mxu0 0
  %3080 = vmatpush1.bf16.msra.mxu0 0
  %3081 = vmatprep.subr.bf16.mxu0 0
  %3082 = vmatpush1.bf16.msra.mxu0 0
  %3083 = vmatprep.subr.bf16.mxu0 0
  %3084 = vmatpush1.bf16.msra.mxu0 0
  %3085 = vmatprep.subr.bf16.mxu0 0
  %3086 = vmatpush1.bf16.msra.mxu0 0
  %3087 = vmatprep.subr.bf16.mxu0 0
  %3088 = vmatpush1.bf16.msra.mxu0 0
  %3089 = vmatprep.subr.bf16.mxu0 0
  %3090 = vmatpush1.bf16.msra.mxu0 0
  %3091 = vmatprep.subr.bf16.mxu0 0
  %3092 = vmatpush1.bf16.msra.mxu0 0
  %3093 = vmatprep.subr.bf16.mxu0 0
  %3094 = vmatpush1.bf16.msra.mxu0 0
  %3095 = vmatprep.mubr.bf16.mxu0 0
  %3096 = vmatmul.mubr.bf16.gmra.mrb[0].mxu0 %v3046
  %v3097 = vpop.f32.mrb[0].mxu0
  %v3098 = vadd.f32 0.0, %v3097
  %v3099 = vpop.f32.mrb[0].mxu0
  %v3100 = vadd.f32 0.0, %v3099
  %v3101 = vpop.f32.mrb[0].mxu0
  %v3102 = vadd.f32 0.0, %v3101
  %v3103 = vpop.f32.mrb[0].mxu0
  %v3104 = vadd.f32 0.0, %v3103
  %3105 = vmatprep.mubr.bf16.mxu0 0
  %3106 = vmatmul.mubr.bf16.gmra.mrb[0].mxu0 %v3049
  %v3107 = vpop.f32.mrb[0].mxu0
  %v3108 = vadd.f32 0.0, %v3107
  %v3109 = vpop.f32.mrb[0].mxu0
  %v3110 = vadd.f32 0.0, %v3109
  %v3111 = vpop.f32.mrb[0].mxu0
  %v3112 = vadd.f32 0.0, %v3111
  %v3113 = vpop.f32.mrb[0].mxu0
  %v3114 = vadd.f32 0.0, %v3113
  %3115 = vdwg.mxu0
  %3116 = vmatprep.subr.bf16.mxu0 %v3061
  %3117 = vmatpush1.bf16.msra.mxu0 %v3058
  %3118 = vmatprep.subr.bf16.mxu0 0
  %3119 = vmatpush1.bf16.msra.mxu0 0
  %3120 = vmatprep.subr.bf16.mxu0 0
  %3121 = vmatpush1.bf16.msra.mxu0 0
  %3122 = vmatprep.subr.bf16.mxu0 0
  %3123 = vmatpush1.bf16.msra.mxu0 0
  %3124 = vmatprep.subr.bf16.mxu0 0
  %3125 = vmatpush1.bf16.msra.mxu0 0
  %3126 = vmatprep.subr.bf16.mxu0 0
  %3127 = vmatpush1.bf16.msra.mxu0 0
  %3128 = vmatprep.subr.bf16.mxu0 0
  %3129 = vmatpush1.bf16.msra.mxu0 0
  %3130 = vmatprep.subr.bf16.mxu0 0
  %3131 = vmatpush1.bf16.msra.mxu0 0
  %3132 = vmatprep.subr.bf16.mxu0 0
  %3133 = vmatpush1.bf16.msra.mxu0 0
  %3134 = vmatprep.subr.bf16.mxu0 0
  %3135 = vmatpush1.bf16.msra.mxu0 0
  %3136 = vmatprep.subr.bf16.mxu0 0
  %3137 = vmatpush1.bf16.msra.mxu0 0
  %3138 = vmatprep.subr.bf16.mxu0 0
  %3139 = vmatpush1.bf16.msra.mxu0 0
  %3140 = vmatprep.subr.bf16.mxu0 0
  %3141 = vmatpush1.bf16.msra.mxu0 0
  %3142 = vmatprep.subr.bf16.mxu0 0
  %3143 = vmatpush1.bf16.msra.mxu0 0
  %3144 = vmatprep.subr.bf16.mxu0 0
  %3145 = vmatpush1.bf16.msra.mxu0 0
  %3146 = vmatprep.subr.bf16.mxu0 0
  %3147 = vmatpush1.bf16.msra.mxu0 0
  %3148 = vmatprep.mubr.bf16.mxu0 0
  %3149 = vmatmul.mubr.bf16.gmra.mrb[0].mxu0 %v3046
  %v3150 = vpop.f32.mrb[0].mxu0
  %v3151 = vadd.f32 0.0, %v3150
  %v3152 = vpop.f32.mrb[0].mxu0
  %v3153 = vadd.f32 0.0, %v3152
  %v3154 = vpop.f32.mrb[0].mxu0
  %v3155 = vadd.f32 0.0, %v3154
  %v3156 = vpop.f32.mrb[0].mxu0
  %v3157 = vadd.f32 0.0, %v3156
  %3158 = vmatprep.mubr.bf16.mxu0 0
  %3159 = vmatmul.mubr.bf16.gmra.mrb[0].mxu0 %v3049
  %v3160 = vpop.f32.mrb[0].mxu0
  %v3161 = vadd.f32 0.0, %v3160
  %v3162 = vpop.f32.mrb[0].mxu0
  %v3163 = vadd.f32 0.0, %v3162
  %v3164 = vpop.f32.mrb[0].mxu0
  %v3165 = vadd.f32 0.0, %v3164
  %v3166 = vpop.f32.mrb[0].mxu0
  %v3167 = vadd.f32 0.0, %v3166
  %3168 = vdwg.mxu0
  %v3169 = vmax.f32 %v3098, 0.0
  %v3170 = vmax.f32 %v3100, 0.0
  %v3171 = vmax.f32 %v3151, 0.0
  %v3172 = vmax.f32 %v3153, 0.0
  %v3173 = vmax.f32 %v3102, 0.0
  %v3174 = vmax.f32 %v3104, 0.0
  %v3175 = vmax.f32 %v3155, 0.0
  %v3176 = vmax.f32 %v3157, 0.0
  %v3177 = vmax.f32 %v3108, 0.0
  %v3178 = vmax.f32 %v3110, 0.0
  %v3179 = vmax.f32 %v3161, 0.0
  %v3180 = vmax.f32 %v3163, 0.0
  %v3181 = vmax.f32 %v3112, 0.0
  %v3182 = vmax.f32 %v3114, 0.0
  %v3183 = vmax.f32 %v3165, 0.0
  %v3184 = vmax.f32 %v3167, 0.0
  %s3185 = scalar_lea.vmem %s2, 32
  %v3186 = vld [vmem:[%s3185] sm:$0xf]
  %v3187 = vpack.c.bf16 %v3173, %v3169
  %v3188 = vpack.c.bf16 %v3174, %v3170
  %v3189 = vpack.c.bf16 %v3175, %v3171
  %v3190 = vpack.c.bf16 %v3176, %v3172
  %v3191 = vpack.c.bf16 %v3181, %v3177
  %v3192 = vpack.c.bf16 %v3182, %v3178
  %v3193 = vpack.c.bf16 %v3183, %v3179
  %v3194 = vpack.c.bf16 %v3184, %v3180
  %s3195 = scalar_lea.vmem %s3, 64
  %v3196 = vld [vmem:[%s3195] sm:$0xff]
  %3198 = vset.pattern.permute.xlu0 0
  %3199 = vperm.xlu0 %3198, %v3196
  %v3200 = vpop.permute.xlu0 %3199
  %v3203 = vsel %vm197, %v3186, 0
  %3205 = vmatprep.subr.bf16.mxu0 %v3188
  %3206 = vmatpush1.bf16.msra.mxu0 %v3187
  %3207 = vmatprep.subr.bf16.mxu0 %v3192
  %3208 = vmatpush1.bf16.msra.mxu0 %v3191
  %3209 = vmatprep.subr.bf16.mxu0 0
  %3210 = vmatpush1.bf16.msra.mxu0 0
  %3211 = vmatprep.subr.bf16.mxu0 0
  %3212 = vmatpush1.bf16.msra.mxu0 0
  %3213 = vmatprep.subr.bf16.mxu0 0
  %3214 = vmatpush1.bf16.msra.mxu0 0
  %3215 = vmatprep.subr.bf16.mxu0 0
  %3216 = vmatpush1.bf16.msra.mxu0 0
  %3217 = vmatprep.subr.bf16.mxu0 0
  %3218 = vmatpush1.bf16.msra.mxu0 0
  %3219 = vmatprep.subr.bf16.mxu0 0
  %3220 = vmatpush1.bf16.msra.mxu0 0
  %3221 = vmatprep.subr.bf16.mxu0 0
  %3222 = vmatpush1.bf16.msra.mxu0 0
  %3223 = vmatprep.subr.bf16.mxu0 0
  %3224 = vmatpush1.bf16.msra.mxu0 0
  %3225 = vmatprep.subr.bf16.mxu0 0
  %3226 = vmatpush1.bf16.msra.mxu0 0
  %3227 = vmatprep.subr.bf16.mxu0 0
  %3228 = vmatpush1.bf16.msra.mxu0 0
  %3229 = vmatprep.subr.bf16.mxu0 0
  %3230 = vmatpush1.bf16.msra.mxu0 0
  %3231 = vmatprep.subr.bf16.mxu0 0
  %3232 = vmatpush1.bf16.msra.mxu0 0
  %3233 = vmatprep.subr.bf16.mxu0 0
  %3234 = vmatpush1.bf16.msra.mxu0 0
  %3235 = vmatprep.subr.bf16.mxu0 0
  %3236 = vmatpush1.bf16.msra.mxu0 0
  %3237 = vmatprep.mubr.bf16.mxu0 0
  %3238 = vmatmul.mubr.bf16.gmra.mrb[0].mxu0 %v3203
  %v3239 = vpop.f32.mrb[0].mxu0
  %v3240 = vadd.f32 %v3200, %v3239
  %v3241 = vpop.f32.mrb[0].mxu0
  %v3242 = vadd.f32 %v3200, %v3241
  %v3243 = vpop.f32.mrb[0].mxu0
  %v3244 = vpop.f32.mrb[0].mxu0
  %3245 = vdwg.mxu0
  %3246 = vmatprep.subr.bf16.mxu0 %v3190
  %3247 = vmatpush1.bf16.msra.mxu0 %v3189
  %3248 = vmatprep.subr.bf16.mxu0 %v3194
  %3249 = vmatpush1.bf16.msra.mxu0 %v3193
  %3250 = vmatprep.subr.bf16.mxu0 0
  %3251 = vmatpush1.bf16.msra.mxu0 0
  %3252 = vmatprep.subr.bf16.mxu0 0
  %3253 = vmatpush1.bf16.msra.mxu0 0
  %3254 = vmatprep.subr.bf16.mxu0 0
  %3255 = vmatpush1.bf16.msra.mxu0 0
  %3256 = vmatprep.subr.bf16.mxu0 0
  %3257 = vmatpush1.bf16.msra.mxu0 0
  %3258 = vmatprep.subr.bf16.mxu0 0
  %3259 = vmatpush1.bf16.msra.mxu0 0
  %3260 = vmatprep.subr.bf16.mxu0 0
  %3261 = vmatpush1.bf16.msra.mxu0 0
  %3262 = vmatprep.subr.bf16.mxu0 0
  %3263 = vmatpush1.bf16.msra.mxu0 0
  %3264 = vmatprep.subr.bf16.mxu0 0
  %3265 = vmatpush1.bf16.msra.mxu0 0
  %3266 = vmatprep.subr.bf16.mxu0 0
  %3267 = vmatpush1.bf16.msra.mxu0 0
  %3268 = vmatprep.subr.bf16.mxu0 0
  %3269 = vmatpush1.bf16.msra.mxu0 0
  %3270 = vmatprep.subr.bf16.mxu0 0
  %3271 = vmatpush1.bf16.msra.mxu0 0
  %3272 = vmatprep.subr.bf16.mxu0 0
  %3273 = vmatpush1.bf16.msra.mxu0 0
  %3274 = vmatprep.subr.bf16.mxu0 0
  %3275 = vmatpush1.bf16.msra.mxu0 0
  %3276 = vmatprep.subr.bf16.mxu0 0
  %3277 = vmatpush1.bf16.msra.mxu0 0
  %3278 = vmatprep.mubr.bf16.mxu0 0
  %3279 = vmatmul.mubr.bf16.gmra.mrb[0].mxu0 %v3203
  %v3280 = vpop.f32.mrb[0].mxu0
  %v3281 = vadd.f32 %v3200, %v3280
  %v3282 = vpop.f32.mrb[0].mxu0
  %v3283 = vadd.f32 %v3200, %v3282
  %v3284 = vpop.f32.mrb[0].mxu0
  %v3285 = vpop.f32.mrb[0].mxu0
  %3286 = vdwg.mxu0
  %v3287 = vmul.f32 %v3022, -7.017985
  %v3288 = vmul.f32 %v3023, -7.017985
  %v3289 = vmul.f32 %v3024, -7.017985
  %v3290 = vmul.f32 %v3025, -7.017985
  %v3291 = vadd.f32 %v3240, %v3287
  %v3292 = vadd.f32 %v3242, %v3288
  %v3293 = vadd.f32 %v3281, %v3289
  %v3294 = vadd.f32 %v3283, %v3290
  %v3295 = vadd.f32 %v3014, %v3291
  %v3296 = vadd.f32 %v3015, %v3292
  %v3297 = vadd.f32 %v3016, %v3293
  %v3298 = vadd.f32 %v3017, %v3294
  %v3299 = vmul.f32 %v3295, -0.01665
  %v3300 = vmul.f32 %v3296, -0.01665
  %v3301 = vmul.f32 %v3297, -0.01665
  %v3302 = vmul.f32 %v3298, -0.01665
  %v3303 = vadd.f32 %v2208, %v3299
  %v3304 = vadd.f32 %v2209, %v3300
  %v3305 = vadd.f32 %v2210, %v3301
  %v3306 = vadd.f32 %v2211, %v3302
  %s3307 = scalar_lea.vmem %s1, 144
  %v3308 = vld [vmem:[%s3307] sm:$0xf]
  %v3309 = vld [vmem:[%s3307 + $0x4] sm:$0xf]
  %v3310 = vld [vmem:[%s3307 + $0x8] sm:$0xf]
  %v3311 = vld [vmem:[%s3307 + $0xc] sm:$0xf]
  %v3312 = vpack.c.bf16 %v3303, %v3303
  %v3313 = vpack.c.bf16 %v3304, %v3304
  %v3314 = vpack.c.bf16 %v3305, %v3305
  %v3315 = vpack.c.bf16 %v3306, %v3306
  %v3320 = vunpack.c.l.b16 %v3308
  %v3321 = vunpack.c.l.b16 %v3309
  %v3322 = vunpack.c.l.b16 %v3310
  %v3323 = vunpack.c.l.b16 %v3311
  %v3324 = vpack.c.b16 %v3321, %v3320
  %v3325 = vpack.c.b16 %v3323, %v3322
  %v3327 = vsel %vm40, %v3324, 0
  %v3330 = vsel %vm40, %v3325, 0
  %v3333 = vsel %vm47, %v3312, 0
  %v3336 = vsel %vm47, %v3313, 0
  %v3339 = vsel %vm47, %v3314, 0
  %v3342 = vsel %vm47, %v3315, 0
  %3344 = vmatprep.subr.bf16.mxu0 %v3336
  %3345 = vmatpush1.bf16.msra.mxu0 %v3333
  %3346 = vmatprep.subr.bf16.mxu0 0
  %3347 = vmatpush1.bf16.msra.mxu0 0
  %3348 = vmatprep.subr.bf16.mxu0 0
  %3349 = vmatpush1.bf16.msra.mxu0 0
  %3350 = vmatprep.subr.bf16.mxu0 0
  %3351 = vmatpush1.bf16.msra.mxu0 0
  %3352 = vmatprep.subr.bf16.mxu0 0
  %3353 = vmatpush1.bf16.msra.mxu0 0
  %3354 = vmatprep.subr.bf16.mxu0 0
  %3355 = vmatpush1.bf16.msra.mxu0 0
  %3356 = vmatprep.subr.bf16.mxu0 0
  %3357 = vmatpush1.bf16.msra.mxu0 0
  %3358 = vmatprep.subr.bf16.mxu0 0
  %3359 = vmatpush1.bf16.msra.mxu0 0
  %3360 = vmatprep.subr.bf16.mxu0 0
  %3361 = vmatpush1.bf16.msra.mxu0 0
  %3362 = vmatprep.subr.bf16.mxu0 0
  %3363 = vmatpush1.bf16.msra.mxu0 0
  %3364 = vmatprep.subr.bf16.mxu0 0
  %3365 = vmatpush1.bf16.msra.mxu0 0
  %3366 = vmatprep.subr.bf16.mxu0 0
  %3367 = vmatpush1.bf16.msra.mxu0 0
  %3368 = vmatprep.subr.bf16.mxu0 0
  %3369 = vmatpush1.bf16.msra.mxu0 0
  %3370 = vmatprep.subr.bf16.mxu0 0
  %3371 = vmatpush1.bf16.msra.mxu0 0
  %3372 = vmatprep.subr.bf16.mxu0 0
  %3373 = vmatpush1.bf16.msra.mxu0 0
  %3374 = vmatprep.subr.bf16.mxu0 0
  %3375 = vmatpush1.bf16.msra.mxu0 0
  %3376 = vmatprep.mubr.bf16.mxu0 0
  %3377 = vmatmul.mubr.bf16.gmra.mrb[0].mxu0 %v3327
  %v3378 = vpop.f32.mrb[0].mxu0
  %v3379 = vadd.f32 0.0, %v3378
  %v3380 = vpop.f32.mrb[0].mxu0
  %v3381 = vadd.f32 0.0, %v3380
  %v3382 = vpop.f32.mrb[0].mxu0
  %v3383 = vadd.f32 0.0, %v3382
  %v3384 = vpop.f32.mrb[0].mxu0
  %v3385 = vadd.f32 0.0, %v3384
  %3386 = vmatprep.mubr.bf16.mxu0 0
  %3387 = vmatmul.mubr.bf16.gmra.mrb[0].mxu0 %v3330
  %v3388 = vpop.f32.mrb[0].mxu0
  %v3389 = vadd.f32 0.0, %v3388
  %v3390 = vpop.f32.mrb[0].mxu0
  %v3391 = vadd.f32 0.0, %v3390
  %v3392 = vpop.f32.mrb[0].mxu0
  %v3393 = vadd.f32 0.0, %v3392
  %v3394 = vpop.f32.mrb[0].mxu0
  %v3395 = vadd.f32 0.0, %v3394
  %3396 = vdwg.mxu0
  %3397 = vmatprep.subr.bf16.mxu0 %v3342
  %3398 = vmatpush1.bf16.msra.mxu0 %v3339
  %3399 = vmatprep.subr.bf16.mxu0 0
  %3400 = vmatpush1.bf16.msra.mxu0 0
  %3401 = vmatprep.subr.bf16.mxu0 0
  %3402 = vmatpush1.bf16.msra.mxu0 0
  %3403 = vmatprep.subr.bf16.mxu0 0
  %3404 = vmatpush1.bf16.msra.mxu0 0
  %3405 = vmatprep.subr.bf16.mxu0 0
  %3406 = vmatpush1.bf16.msra.mxu0 0
  %3407 = vmatprep.subr.bf16.mxu0 0
  %3408 = vmatpush1.bf16.msra.mxu0 0
  %3409 = vmatprep.subr.bf16.mxu0 0
  %3410 = vmatpush1.bf16.msra.mxu0 0
  %3411 = vmatprep.subr.bf16.mxu0 0
  %3412 = vmatpush1.bf16.msra.mxu0 0
  %3413 = vmatprep.subr.bf16.mxu0 0
  %3414 = vmatpush1.bf16.msra.mxu0 0
  %3415 = vmatprep.subr.bf16.mxu0 0
  %3416 = vmatpush1.bf16.msra.mxu0 0
  %3417 = vmatprep.subr.bf16.mxu0 0
  %3418 = vmatpush1.bf16.msra.mxu0 0
  %3419 = vmatprep.subr.bf16.mxu0 0
  %3420 = vmatpush1.bf16.msra.mxu0 0
  %3421 = vmatprep.subr.bf16.mxu0 0
  %3422 = vmatpush1.bf16.msra.mxu0 0
  %3423 = vmatprep.subr.bf16.mxu0 0
  %3424 = vmatpush1.bf16.msra.mxu0 0
  %3425 = vmatprep.subr.bf16.mxu0 0
  %3426 = vmatpush1.bf16.msra.mxu0 0
  %3427 = vmatprep.subr.bf16.mxu0 0
  %3428 = vmatpush1.bf16.msra.mxu0 0
  %3429 = vmatprep.mubr.bf16.mxu0 0
  %3430 = vmatmul.mubr.bf16.gmra.mrb[0].mxu0 %v3327
  %v3431 = vpop.f32.mrb[0].mxu0
  %v3432 = vadd.f32 0.0, %v3431
  %v3433 = vpop.f32.mrb[0].mxu0
  %v3434 = vadd.f32 0.0, %v3433
  %v3435 = vpop.f32.mrb[0].mxu0
  %v3436 = vadd.f32 0.0, %v3435
  %v3437 = vpop.f32.mrb[0].mxu0
  %v3438 = vadd.f32 0.0, %v3437
  %3439 = vmatprep.mubr.bf16.mxu0 0
  %3440 = vmatmul.mubr.bf16.gmra.mrb[0].mxu0 %v3330
  %v3441 = vpop.f32.mrb[0].mxu0
  %v3442 = vadd.f32 0.0, %v3441
  %v3443 = vpop.f32.mrb[0].mxu0
  %v3444 = vadd.f32 0.0, %v3443
  %v3445 = vpop.f32.mrb[0].mxu0
  %v3446 = vadd.f32 0.0, %v3445
  %v3447 = vpop.f32.mrb[0].mxu0
  %v3448 = vadd.f32 0.0, %v3447
  %3449 = vdwg.mxu0
  %v3450 = vmax.f32 %v3379, 0.0
  %v3451 = vmax.f32 %v3381, 0.0
  %v3452 = vmax.f32 %v3432, 0.0
  %v3453 = vmax.f32 %v3434, 0.0
  %v3454 = vmax.f32 %v3383, 0.0
  %v3455 = vmax.f32 %v3385, 0.0
  %v3456 = vmax.f32 %v3436, 0.0
  %v3457 = vmax.f32 %v3438, 0.0
  %v3458 = vmax.f32 %v3389, 0.0
  %v3459 = vmax.f32 %v3391, 0.0
  %v3460 = vmax.f32 %v3442, 0.0
  %v3461 = vmax.f32 %v3444, 0.0
  %v3462 = vmax.f32 %v3393, 0.0
  %v3463 = vmax.f32 %v3395, 0.0
  %v3464 = vmax.f32 %v3446, 0.0
  %v3465 = vmax.f32 %v3448, 0.0
  %s3466 = scalar_lea.vmem %s2, 36
  %v3467 = vld [vmem:[%s3466] sm:$0xf]
  %v3468 = vpack.c.bf16 %v3454, %v3450
  %v3469 = vpack.c.bf16 %v3455, %v3451
  %v3470 = vpack.c.bf16 %v3456, %v3452
  %v3471 = vpack.c.bf16 %v3457, %v3453
  %v3472 = vpack.c.bf16 %v3462, %v3458
  %v3473 = vpack.c.bf16 %v3463, %v3459
  %v3474 = vpack.c.bf16 %v3464, %v3460
  %v3475 = vpack.c.bf16 %v3465, %v3461
  %s3476 = scalar_lea.vmem %s3, 72
  %v3477 = vld [vmem:[%s3476] sm:$0xff]
  %3479 = vset.pattern.permute.xlu0 0
  %3480 = vperm.xlu0 %3479, %v3477
  %v3481 = vpop.permute.xlu0 %3480
  %v3484 = vsel %vm197, %v3467, 0
  %3486 = vmatprep.subr.bf16.mxu0 %v3469
  %3487 = vmatpush1.bf16.msra.mxu0 %v3468
  %3488 = vmatprep.subr.bf16.mxu0 %v3473
  %3489 = vmatpush1.bf16.msra.mxu0 %v3472
  %3490 = vmatprep.subr.bf16.mxu0 0
  %3491 = vmatpush1.bf16.msra.mxu0 0
  %3492 = vmatprep.subr.bf16.mxu0 0
  %3493 = vmatpush1.bf16.msra.mxu0 0
  %3494 = vmatprep.subr.bf16.mxu0 0
  %3495 = vmatpush1.bf16.msra.mxu0 0
  %3496 = vmatprep.subr.bf16.mxu0 0
  %3497 = vmatpush1.bf16.msra.mxu0 0
  %3498 = vmatprep.subr.bf16.mxu0 0
  %3499 = vmatpush1.bf16.msra.mxu0 0
  %3500 = vmatprep.subr.bf16.mxu0 0
  %3501 = vmatpush1.bf16.msra.mxu0 0
  %3502 = vmatprep.subr.bf16.mxu0 0
  %3503 = vmatpush1.bf16.msra.mxu0 0
  %3504 = vmatprep.subr.bf16.mxu0 0
  %3505 = vmatpush1.bf16.msra.mxu0 0
  %3506 = vmatprep.subr.bf16.mxu0 0
  %3507 = vmatpush1.bf16.msra.mxu0 0
  %3508 = vmatprep.subr.bf16.mxu0 0
  %3509 = vmatpush1.bf16.msra.mxu0 0
  %3510 = vmatprep.subr.bf16.mxu0 0
  %3511 = vmatpush1.bf16.msra.mxu0 0
  %3512 = vmatprep.subr.bf16.mxu0 0
  %3513 = vmatpush1.bf16.msra.mxu0 0
  %3514 = vmatprep.subr.bf16.mxu0 0
  %3515 = vmatpush1.bf16.msra.mxu0 0
  %3516 = vmatprep.subr.bf16.mxu0 0
  %3517 = vmatpush1.bf16.msra.mxu0 0
  %3518 = vmatprep.mubr.bf16.mxu0 0
  %3519 = vmatmul.mubr.bf16.gmra.mrb[0].mxu0 %v3484
  %v3520 = vpop.f32.mrb[0].mxu0
  %v3521 = vadd.f32 %v3481, %v3520
  %v3522 = vpop.f32.mrb[0].mxu0
  %v3523 = vadd.f32 %v3481, %v3522
  %v3524 = vpop.f32.mrb[0].mxu0
  %v3525 = vpop.f32.mrb[0].mxu0
  %3526 = vdwg.mxu0
  %3527 = vmatprep.subr.bf16.mxu0 %v3471
  %3528 = vmatpush1.bf16.msra.mxu0 %v3470
  %3529 = vmatprep.subr.bf16.mxu0 %v3475
  %3530 = vmatpush1.bf16.msra.mxu0 %v3474
  %3531 = vmatprep.subr.bf16.mxu0 0
  %3532 = vmatpush1.bf16.msra.mxu0 0
  %3533 = vmatprep.subr.bf16.mxu0 0
  %3534 = vmatpush1.bf16.msra.mxu0 0
  %3535 = vmatprep.subr.bf16.mxu0 0
  %3536 = vmatpush1.bf16.msra.mxu0 0
  %3537 = vmatprep.subr.bf16.mxu0 0
  %3538 = vmatpush1.bf16.msra.mxu0 0
  %3539 = vmatprep.subr.bf16.mxu0 0
  %3540 = vmatpush1.bf16.msra.mxu0 0
  %3541 = vmatprep.subr.bf16.mxu0 0
  %3542 = vmatpush1.bf16.msra.mxu0 0
  %3543 = vmatprep.subr.bf16.mxu0 0
  %3544 = vmatpush1.bf16.msra.mxu0 0
  %3545 = vmatprep.subr.bf16.mxu0 0
  %3546 = vmatpush1.bf16.msra.mxu0 0
  %3547 = vmatprep.subr.bf16.mxu0 0
  %3548 = vmatpush1.bf16.msra.mxu0 0
  %3549 = vmatprep.subr.bf16.mxu0 0
  %3550 = vmatpush1.bf16.msra.mxu0 0
  %3551 = vmatprep.subr.bf16.mxu0 0
  %3552 = vmatpush1.bf16.msra.mxu0 0
  %3553 = vmatprep.subr.bf16.mxu0 0
  %3554 = vmatpush1.bf16.msra.mxu0 0
  %3555 = vmatprep.subr.bf16.mxu0 0
  %3556 = vmatpush1.bf16.msra.mxu0 0
  %3557 = vmatprep.subr.bf16.mxu0 0
  %3558 = vmatpush1.bf16.msra.mxu0 0
  %3559 = vmatprep.mubr.bf16.mxu0 0
  %3560 = vmatmul.mubr.bf16.gmra.mrb[0].mxu0 %v3484
  %v3561 = vpop.f32.mrb[0].mxu0
  %v3562 = vadd.f32 %v3481, %v3561
  %v3563 = vpop.f32.mrb[0].mxu0
  %v3564 = vadd.f32 %v3481, %v3563
  %v3565 = vpop.f32.mrb[0].mxu0
  %v3566 = vpop.f32.mrb[0].mxu0
  %3567 = vdwg.mxu0
  %v3568 = vmul.f32 %v3303, -7.017985
  %v3569 = vmul.f32 %v3304, -7.017985
  %v3570 = vmul.f32 %v3305, -7.017985
  %v3571 = vmul.f32 %v3306, -7.017985
  %v3572 = vadd.f32 %v3521, %v3568
  %v3573 = vadd.f32 %v3523, %v3569
  %v3574 = vadd.f32 %v3562, %v3570
  %v3575 = vadd.f32 %v3564, %v3571
  %v3576 = vmul.f32 %v3572, -0.04995
  %v3577 = vmul.f32 %v3573, -0.04995
  %v3578 = vmul.f32 %v3574, -0.04995
  %v3579 = vmul.f32 %v3575, -0.04995
  %v3580 = vadd.f32 %v3303, %v3576
  %v3581 = vadd.f32 %v3304, %v3577
  %v3582 = vadd.f32 %v3305, %v3578
  %v3583 = vadd.f32 %v3306, %v3579
  %s3584 = scalar_lea.vmem %s1, 160
  %v3585 = vld [vmem:[%s3584] sm:$0xf]
  %v3586 = vld [vmem:[%s3584 + $0x4] sm:$0xf]
  %v3587 = vld [vmem:[%s3584 + $0x8] sm:$0xf]
  %v3588 = vld [vmem:[%s3584 + $0xc] sm:$0xf]
  %v3589 = vpack.c.bf16 %v3580, %v3580
  %v3590 = vpack.c.bf16 %v3581, %v3581
  %v3591 = vpack.c.bf16 %v3582, %v3582
  %v3592 = vpack.c.bf16 %v3583, %v3583
  %v3597 = vunpack.c.l.b16 %v3585
  %v3598 = vunpack.c.l.b16 %v3586
  %v3599 = vunpack.c.l.b16 %v3587
  %v3600 = vunpack.c.l.b16 %v3588
  %v3601 = vpack.c.b16 %v3598, %v3597
  %v3602 = vpack.c.b16 %v3600, %v3599
  %v3604 = vsel %vm40, %v3601, 0
  %v3607 = vsel %vm40, %v3602, 0
  %v3610 = vsel %vm47, %v3589, 0
  %v3613 = vsel %vm47, %v3590, 0
  %v3616 = vsel %vm47, %v3591, 0
  %v3619 = vsel %vm47, %v3592, 0
  %3621 = vmatprep.subr.bf16.mxu0 %v3613
  %3622 = vmatpush1.bf16.msra.mxu0 %v3610
  %3623 = vmatprep.subr.bf16.mxu0 0
  %3624 = vmatpush1.bf16.msra.mxu0 0
  %3625 = vmatprep.subr.bf16.mxu0 0
  %3626 = vmatpush1.bf16.msra.mxu0 0
  %3627 = vmatprep.subr.bf16.mxu0 0
  %3628 = vmatpush1.bf16.msra.mxu0 0
  %3629 = vmatprep.subr.bf16.mxu0 0
  %3630 = vmatpush1.bf16.msra.mxu0 0
  %3631 = vmatprep.subr.bf16.mxu0 0
  %3632 = vmatpush1.bf16.msra.mxu0 0
  %3633 = vmatprep.subr.bf16.mxu0 0
  %3634 = vmatpush1.bf16.msra.mxu0 0
  %3635 = vmatprep.subr.bf16.mxu0 0
  %3636 = vmatpush1.bf16.msra.mxu0 0
  %3637 = vmatprep.subr.bf16.mxu0 0
  %3638 = vmatpush1.bf16.msra.mxu0 0
  %3639 = vmatprep.subr.bf16.mxu0 0
  %3640 = vmatpush1.bf16.msra.mxu0 0
  %3641 = vmatprep.subr.bf16.mxu0 0
  %3642 = vmatpush1.bf16.msra.mxu0 0
  %3643 = vmatprep.subr.bf16.mxu0 0
  %3644 = vmatpush1.bf16.msra.mxu0 0
  %3645 = vmatprep.subr.bf16.mxu0 0
  %3646 = vmatpush1.bf16.msra.mxu0 0
  %3647 = vmatprep.subr.bf16.mxu0 0
  %3648 = vmatpush1.bf16.msra.mxu0 0
  %3649 = vmatprep.subr.bf16.mxu0 0
  %3650 = vmatpush1.bf16.msra.mxu0 0
  %3651 = vmatprep.subr.bf16.mxu0 0
  %3652 = vmatpush1.bf16.msra.mxu0 0
  %3653 = vmatprep.mubr.bf16.mxu0 0
  %3654 = vmatmul.mubr.bf16.gmra.mrb[0].mxu0 %v3604
  %v3655 = vpop.f32.mrb[0].mxu0
  %v3656 = vadd.f32 0.0, %v3655
  %v3657 = vpop.f32.mrb[0].mxu0
  %v3658 = vadd.f32 0.0, %v3657
  %v3659 = vpop.f32.mrb[0].mxu0
  %v3660 = vadd.f32 0.0, %v3659
  %v3661 = vpop.f32.mrb[0].mxu0
  %v3662 = vadd.f32 0.0, %v3661
  %3663 = vmatprep.mubr.bf16.mxu0 0
  %3664 = vmatmul.mubr.bf16.gmra.mrb[0].mxu0 %v3607
  %v3665 = vpop.f32.mrb[0].mxu0
  %v3666 = vadd.f32 0.0, %v3665
  %v3667 = vpop.f32.mrb[0].mxu0
  %v3668 = vadd.f32 0.0, %v3667
  %v3669 = vpop.f32.mrb[0].mxu0
  %v3670 = vadd.f32 0.0, %v3669
  %v3671 = vpop.f32.mrb[0].mxu0
  %v3672 = vadd.f32 0.0, %v3671
  %3673 = vdwg.mxu0
  %3674 = vmatprep.subr.bf16.mxu0 %v3619
  %3675 = vmatpush1.bf16.msra.mxu0 %v3616
  %3676 = vmatprep.subr.bf16.mxu0 0
  %3677 = vmatpush1.bf16.msra.mxu0 0
  %3678 = vmatprep.subr.bf16.mxu0 0
  %3679 = vmatpush1.bf16.msra.mxu0 0
  %3680 = vmatprep.subr.bf16.mxu0 0
  %3681 = vmatpush1.bf16.msra.mxu0 0
  %3682 = vmatprep.subr.bf16.mxu0 0
  %3683 = vmatpush1.bf16.msra.mxu0 0
  %3684 = vmatprep.subr.bf16.mxu0 0
  %3685 = vmatpush1.bf16.msra.mxu0 0
  %3686 = vmatprep.subr.bf16.mxu0 0
  %3687 = vmatpush1.bf16.msra.mxu0 0
  %3688 = vmatprep.subr.bf16.mxu0 0
  %3689 = vmatpush1.bf16.msra.mxu0 0
  %3690 = vmatprep.subr.bf16.mxu0 0
  %3691 = vmatpush1.bf16.msra.mxu0 0
  %3692 = vmatprep.subr.bf16.mxu0 0
  %3693 = vmatpush1.bf16.msra.mxu0 0
  %3694 = vmatprep.subr.bf16.mxu0 0
  %3695 = vmatpush1.bf16.msra.mxu0 0
  %3696 = vmatprep.subr.bf16.mxu0 0
  %3697 = vmatpush1.bf16.msra.mxu0 0
  %3698 = vmatprep.subr.bf16.mxu0 0
  %3699 = vmatpush1.bf16.msra.mxu0 0
  %3700 = vmatprep.subr.bf16.mxu0 0
  %3701 = vmatpush1.bf16.msra.mxu0 0
  %3702 = vmatprep.subr.bf16.mxu0 0
  %3703 = vmatpush1.bf16.msra.mxu0 0
  %3704 = vmatprep.subr.bf16.mxu0 0
  %3705 = vmatpush1.bf16.msra.mxu0 0
  %3706 = vmatprep.mubr.bf16.mxu0 0
  %3707 = vmatmul.mubr.bf16.gmra.mrb[0].mxu0 %v3604
  %v3708 = vpop.f32.mrb[0].mxu0
  %v3709 = vadd.f32 0.0, %v3708
  %v3710 = vpop.f32.mrb[0].mxu0
  %v3711 = vadd.f32 0.0, %v3710
  %v3712 = vpop.f32.mrb[0].mxu0
  %v3713 = vadd.f32 0.0, %v3712
  %v3714 = vpop.f32.mrb[0].mxu0
  %v3715 = vadd.f32 0.0, %v3714
  %3716 = vmatprep.mubr.bf16.mxu0 0
  %3717 = vmatmul.mubr.bf16.gmra.mrb[0].mxu0 %v3607
  %v3718 = vpop.f32.mrb[0].mxu0
  %v3719 = vadd.f32 0.0, %v3718
  %v3720 = vpop.f32.mrb[0].mxu0
  %v3721 = vadd.f32 0.0, %v3720
  %v3722 = vpop.f32.mrb[0].mxu0
  %v3723 = vadd.f32 0.0, %v3722
  %v3724 = vpop.f32.mrb[0].mxu0
  %v3725 = vadd.f32 0.0, %v3724
  %3726 = vdwg.mxu0
  %v3727 = vmax.f32 %v3656, 0.0
  %v3728 = vmax.f32 %v3658, 0.0
  %v3729 = vmax.f32 %v3709, 0.0
  %v3730 = vmax.f32 %v3711, 0.0
  %v3731 = vmax.f32 %v3660, 0.0
  %v3732 = vmax.f32 %v3662, 0.0
  %v3733 = vmax.f32 %v3713, 0.0
  %v3734 = vmax.f32 %v3715, 0.0
  %v3735 = vmax.f32 %v3666, 0.0
  %v3736 = vmax.f32 %v3668, 0.0
  %v3737 = vmax.f32 %v3719, 0.0
  %v3738 = vmax.f32 %v3721, 0.0
  %v3739 = vmax.f32 %v3670, 0.0
  %v3740 = vmax.f32 %v3672, 0.0
  %v3741 = vmax.f32 %v3723, 0.0
  %v3742 = vmax.f32 %v3725, 0.0
  %s3743 = scalar_lea.vmem %s2, 40
  %v3744 = vld [vmem:[%s3743] sm:$0xf]
  %v3745 = vpack.c.bf16 %v3731, %v3727
  %v3746 = vpack.c.bf16 %v3732, %v3728
  %v3747 = vpack.c.bf16 %v3733, %v3729
  %v3748 = vpack.c.bf16 %v3734, %v3730
  %v3749 = vpack.c.bf16 %v3739, %v3735
  %v3750 = vpack.c.bf16 %v3740, %v3736
  %v3751 = vpack.c.bf16 %v3741, %v3737
  %v3752 = vpack.c.bf16 %v3742, %v3738
  %s3753 = scalar_lea.vmem %s3, 80
  %v3754 = vld [vmem:[%s3753] sm:$0xff]
  %3756 = vset.pattern.permute.xlu0 0
  %3757 = vperm.xlu0 %3756, %v3754
  %v3758 = vpop.permute.xlu0 %3757
  %v3761 = vsel %vm197, %v3744, 0
  %3763 = vmatprep.subr.bf16.mxu0 %v3746
  %3764 = vmatpush1.bf16.msra.mxu0 %v3745
  %3765 = vmatprep.subr.bf16.mxu0 %v3750
  %3766 = vmatpush1.bf16.msra.mxu0 %v3749
  %3767 = vmatprep.subr.bf16.mxu0 0
  %3768 = vmatpush1.bf16.msra.mxu0 0
  %3769 = vmatprep.subr.bf16.mxu0 0
  %3770 = vmatpush1.bf16.msra.mxu0 0
  %3771 = vmatprep.subr.bf16.mxu0 0
  %3772 = vmatpush1.bf16.msra.mxu0 0
  %3773 = vmatprep.subr.bf16.mxu0 0
  %3774 = vmatpush1.bf16.msra.mxu0 0
  %3775 = vmatprep.subr.bf16.mxu0 0
  %3776 = vmatpush1.bf16.msra.mxu0 0
  %3777 = vmatprep.subr.bf16.mxu0 0
  %3778 = vmatpush1.bf16.msra.mxu0 0
  %3779 = vmatprep.subr.bf16.mxu0 0
  %3780 = vmatpush1.bf16.msra.mxu0 0
  %3781 = vmatprep.subr.bf16.mxu0 0
  %3782 = vmatpush1.bf16.msra.mxu0 0
  %3783 = vmatprep.subr.bf16.mxu0 0
  %3784 = vmatpush1.bf16.msra.mxu0 0
  %3785 = vmatprep.subr.bf16.mxu0 0
  %3786 = vmatpush1.bf16.msra.mxu0 0
  %3787 = vmatprep.subr.bf16.mxu0 0
  %3788 = vmatpush1.bf16.msra.mxu0 0
  %3789 = vmatprep.subr.bf16.mxu0 0
  %3790 = vmatpush1.bf16.msra.mxu0 0
  %3791 = vmatprep.subr.bf16.mxu0 0
  %3792 = vmatpush1.bf16.msra.mxu0 0
  %3793 = vmatprep.subr.bf16.mxu0 0
  %3794 = vmatpush1.bf16.msra.mxu0 0
  %3795 = vmatprep.mubr.bf16.mxu0 0
  %3796 = vmatmul.mubr.bf16.gmra.mrb[0].mxu0 %v3761
  %v3797 = vpop.f32.mrb[0].mxu0
  %v3798 = vadd.f32 %v3758, %v3797
  %v3799 = vpop.f32.mrb[0].mxu0
  %v3800 = vadd.f32 %v3758, %v3799
  %v3801 = vpop.f32.mrb[0].mxu0
  %v3802 = vpop.f32.mrb[0].mxu0
  %3803 = vdwg.mxu0
  %3804 = vmatprep.subr.bf16.mxu0 %v3748
  %3805 = vmatpush1.bf16.msra.mxu0 %v3747
  %3806 = vmatprep.subr.bf16.mxu0 %v3752
  %3807 = vmatpush1.bf16.msra.mxu0 %v3751
  %3808 = vmatprep.subr.bf16.mxu0 0
  %3809 = vmatpush1.bf16.msra.mxu0 0
  %3810 = vmatprep.subr.bf16.mxu0 0
  %3811 = vmatpush1.bf16.msra.mxu0 0
  %3812 = vmatprep.subr.bf16.mxu0 0
  %3813 = vmatpush1.bf16.msra.mxu0 0
  %3814 = vmatprep.subr.bf16.mxu0 0
  %3815 = vmatpush1.bf16.msra.mxu0 0
  %3816 = vmatprep.subr.bf16.mxu0 0
  %3817 = vmatpush1.bf16.msra.mxu0 0
  %3818 = vmatprep.subr.bf16.mxu0 0
  %3819 = vmatpush1.bf16.msra.mxu0 0
  %3820 = vmatprep.subr.bf16.mxu0 0
  %3821 = vmatpush1.bf16.msra.mxu0 0
  %3822 = vmatprep.subr.bf16.mxu0 0
  %3823 = vmatpush1.bf16.msra.mxu0 0
  %3824 = vmatprep.subr.bf16.mxu0 0
  %3825 = vmatpush1.bf16.msra.mxu0 0
  %3826 = vmatprep.subr.bf16.mxu0 0
  %3827 = vmatpush1.bf16.msra.mxu0 0
  %3828 = vmatprep.subr.bf16.mxu0 0
  %3829 = vmatpush1.bf16.msra.mxu0 0
  %3830 = vmatprep.subr.bf16.mxu0 0
  %3831 = vmatpush1.bf16.msra.mxu0 0
  %3832 = vmatprep.subr.bf16.mxu0 0
  %3833 = vmatpush1.bf16.msra.mxu0 0
  %3834 = vmatprep.subr.bf16.mxu0 0
  %3835 = vmatpush1.bf16.msra.mxu0 0
  %3836 = vmatprep.mubr.bf16.mxu0 0
  %3837 = vmatmul.mubr.bf16.gmra.mrb[0].mxu0 %v3761
  %v3838 = vpop.f32.mrb[0].mxu0
  %v3839 = vadd.f32 %v3758, %v3838
  %v3840 = vpop.f32.mrb[0].mxu0
  %v3841 = vadd.f32 %v3758, %v3840
  %v3842 = vpop.f32.mrb[0].mxu0
  %v3843 = vpop.f32.mrb[0].mxu0
  %3844 = vdwg.mxu0
  %v3845 = vmul.f32 %v3580, -6.5209823
  %v3846 = vmul.f32 %v3581, -6.5209823
  %v3847 = vmul.f32 %v3582, -6.5209823
  %v3848 = vmul.f32 %v3583, -6.5209823
  %v3849 = vadd.f32 %v3798, %v3845
  %v3850 = vadd.f32 %v3800, %v3846
  %v3851 = vadd.f32 %v3839, %v3847
  %v3852 = vadd.f32 %v3841, %v3848
  %v3853 = vmul.f32 %v3849, 2.0
  %v3854 = vmul.f32 %v3850, 2.0
  %v3855 = vmul.f32 %v3851, 2.0
  %v3856 = vmul.f32 %v3852, 2.0
  %v3857 = vadd.f32 %v3572, %v3853
  %v3858 = vadd.f32 %v3573, %v3854
  %v3859 = vadd.f32 %v3574, %v3855
  %v3860 = vadd.f32 %v3575, %v3856
  %v3861 = vmul.f32 %v3849, -0.04995
  %v3862 = vmul.f32 %v3850, -0.04995
  %v3863 = vmul.f32 %v3851, -0.04995
  %v3864 = vmul.f32 %v3852, -0.04995
  %v3865 = vadd.f32 %v3303, %v3861
  %v3866 = vadd.f32 %v3304, %v3862
  %v3867 = vadd.f32 %v3305, %v3863
  %v3868 = vadd.f32 %v3306, %v3864
  %v3869 = vpack.c.bf16 %v3865, %v3865
  %v3870 = vpack.c.bf16 %v3866, %v3866
  %v3871 = vpack.c.bf16 %v3867, %v3867
  %v3872 = vpack.c.bf16 %v3868, %v3868
  %v3874 = vsel %vm47, %v3869, 0
  %v3877 = vsel %vm47, %v3870, 0
  %v3880 = vsel %vm47, %v3871, 0
  %v3883 = vsel %vm47, %v3872, 0
  %3885 = vmatprep.subr.bf16.mxu0 %v3877
  %3886 = vmatpush1.bf16.msra.mxu0 %v3874
  %3887 = vmatprep.subr.bf16.mxu0 0
  %3888 = vmatpush1.bf16.msra.mxu0 0
  %3889 = vmatprep.subr.bf16.mxu0 0
  %3890 = vmatpush1.bf16.msra.mxu0 0
  %3891 = vmatprep.subr.bf16.mxu0 0
  %3892 = vmatpush1.bf16.msra.mxu0 0
  %3893 = vmatprep.subr.bf16.mxu0 0
  %3894 = vmatpush1.bf16.msra.mxu0 0
  %3895 = vmatprep.subr.bf16.mxu0 0
  %3896 = vmatpush1.bf16.msra.mxu0 0
  %3897 = vmatprep.subr.bf16.mxu0 0
  %3898 = vmatpush1.bf16.msra.mxu0 0
  %3899 = vmatprep.subr.bf16.mxu0 0
  %3900 = vmatpush1.bf16.msra.mxu0 0
  %3901 = vmatprep.subr.bf16.mxu0 0
  %3902 = vmatpush1.bf16.msra.mxu0 0
  %3903 = vmatprep.subr.bf16.mxu0 0
  %3904 = vmatpush1.bf16.msra.mxu0 0
  %3905 = vmatprep.subr.bf16.mxu0 0
  %3906 = vmatpush1.bf16.msra.mxu0 0
  %3907 = vmatprep.subr.bf16.mxu0 0
  %3908 = vmatpush1.bf16.msra.mxu0 0
  %3909 = vmatprep.subr.bf16.mxu0 0
  %3910 = vmatpush1.bf16.msra.mxu0 0
  %3911 = vmatprep.subr.bf16.mxu0 0
  %3912 = vmatpush1.bf16.msra.mxu0 0
  %3913 = vmatprep.subr.bf16.mxu0 0
  %3914 = vmatpush1.bf16.msra.mxu0 0
  %3915 = vmatprep.subr.bf16.mxu0 0
  %3916 = vmatpush1.bf16.msra.mxu0 0
  %3917 = vmatprep.mubr.bf16.mxu0 0
  %3918 = vmatmul.mubr.bf16.gmra.mrb[0].mxu0 %v3604
  %v3919 = vpop.f32.mrb[0].mxu0
  %v3920 = vadd.f32 0.0, %v3919
  %v3921 = vpop.f32.mrb[0].mxu0
  %v3922 = vadd.f32 0.0, %v3921
  %v3923 = vpop.f32.mrb[0].mxu0
  %v3924 = vadd.f32 0.0, %v3923
  %v3925 = vpop.f32.mrb[0].mxu0
  %v3926 = vadd.f32 0.0, %v3925
  %3927 = vmatprep.mubr.bf16.mxu0 0
  %3928 = vmatmul.mubr.bf16.gmra.mrb[0].mxu0 %v3607
  %v3929 = vpop.f32.mrb[0].mxu0
  %v3930 = vadd.f32 0.0, %v3929
  %v3931 = vpop.f32.mrb[0].mxu0
  %v3932 = vadd.f32 0.0, %v3931
  %v3933 = vpop.f32.mrb[0].mxu0
  %v3934 = vadd.f32 0.0, %v3933
  %v3935 = vpop.f32.mrb[0].mxu0
  %v3936 = vadd.f32 0.0, %v3935
  %3937 = vdwg.mxu0
  %3938 = vmatprep.subr.bf16.mxu0 %v3883
  %3939 = vmatpush1.bf16.msra.mxu0 %v3880
  %3940 = vmatprep.subr.bf16.mxu0 0
  %3941 = vmatpush1.bf16.msra.mxu0 0
  %3942 = vmatprep.subr.bf16.mxu0 0
  %3943 = vmatpush1.bf16.msra.mxu0 0
  %3944 = vmatprep.subr.bf16.mxu0 0
  %3945 = vmatpush1.bf16.msra.mxu0 0
  %3946 = vmatprep.subr.bf16.mxu0 0
  %3947 = vmatpush1.bf16.msra.mxu0 0
  %3948 = vmatprep.subr.bf16.mxu0 0
  %3949 = vmatpush1.bf16.msra.mxu0 0
  %3950 = vmatprep.subr.bf16.mxu0 0
  %3951 = vmatpush1.bf16.msra.mxu0 0
  %3952 = vmatprep.subr.bf16.mxu0 0
  %3953 = vmatpush1.bf16.msra.mxu0 0
  %3954 = vmatprep.subr.bf16.mxu0 0
  %3955 = vmatpush1.bf16.msra.mxu0 0
  %3956 = vmatprep.subr.bf16.mxu0 0
  %3957 = vmatpush1.bf16.msra.mxu0 0
  %3958 = vmatprep.subr.bf16.mxu0 0
  %3959 = vmatpush1.bf16.msra.mxu0 0
  %3960 = vmatprep.subr.bf16.mxu0 0
  %3961 = vmatpush1.bf16.msra.mxu0 0
  %3962 = vmatprep.subr.bf16.mxu0 0
  %3963 = vmatpush1.bf16.msra.mxu0 0
  %3964 = vmatprep.subr.bf16.mxu0 0
  %3965 = vmatpush1.bf16.msra.mxu0 0
  %3966 = vmatprep.subr.bf16.mxu0 0
  %3967 = vmatpush1.bf16.msra.mxu0 0
  %3968 = vmatprep.subr.bf16.mxu0 0
  %3969 = vmatpush1.bf16.msra.mxu0 0
  %3970 = vmatprep.mubr.bf16.mxu0 0
  %3971 = vmatmul.mubr.bf16.gmra.mrb[0].mxu0 %v3604
  %v3972 = vpop.f32.mrb[0].mxu0
  %v3973 = vadd.f32 0.0, %v3972
  %v3974 = vpop.f32.mrb[0].mxu0
  %v3975 = vadd.f32 0.0, %v3974
  %v3976 = vpop.f32.mrb[0].mxu0
  %v3977 = vadd.f32 0.0, %v3976
  %v3978 = vpop.f32.mrb[0].mxu0
  %v3979 = vadd.f32 0.0, %v3978
  %3980 = vmatprep.mubr.bf16.mxu0 0
  %3981 = vmatmul.mubr.bf16.gmra.mrb[0].mxu0 %v3607
  %v3982 = vpop.f32.mrb[0].mxu0
  %v3983 = vadd.f32 0.0, %v3982
  %v3984 = vpop.f32.mrb[0].mxu0
  %v3985 = vadd.f32 0.0, %v3984
  %v3986 = vpop.f32.mrb[0].mxu0
  %v3987 = vadd.f32 0.0, %v3986
  %v3988 = vpop.f32.mrb[0].mxu0
  %v3989 = vadd.f32 0.0, %v3988
  %3990 = vdwg.mxu0
  %v3991 = vmax.f32 %v3920, 0.0
  %v3992 = vmax.f32 %v3922, 0.0
  %v3993 = vmax.f32 %v3973, 0.0
  %v3994 = vmax.f32 %v3975, 0.0
  %v3995 = vmax.f32 %v3924, 0.0
  %v3996 = vmax.f32 %v3926, 0.0
  %v3997 = vmax.f32 %v3977, 0.0
  %v3998 = vmax.f32 %v3979, 0.0
  %v3999 = vmax.f32 %v3930, 0.0
  %v4000 = vmax.f32 %v3932, 0.0
  %v4001 = vmax.f32 %v3983, 0.0
  %v4002 = vmax.f32 %v3985, 0.0
  %v4003 = vmax.f32 %v3934, 0.0
  %v4004 = vmax.f32 %v3936, 0.0
  %v4005 = vmax.f32 %v3987, 0.0
  %v4006 = vmax.f32 %v3989, 0.0
  %v4007 = vpack.c.bf16 %v3995, %v3991
  %v4008 = vpack.c.bf16 %v3996, %v3992
  %v4009 = vpack.c.bf16 %v3997, %v3993
  %v4010 = vpack.c.bf16 %v3998, %v3994
  %v4011 = vpack.c.bf16 %v4003, %v3999
  %v4012 = vpack.c.bf16 %v4004, %v4000
  %v4013 = vpack.c.bf16 %v4005, %v4001
  %v4014 = vpack.c.bf16 %v4006, %v4002
  %4015 = vmatprep.subr.bf16.mxu0 %v4008
  %4016 = vmatpush1.bf16.msra.mxu0 %v4007
  %4017 = vmatprep.subr.bf16.mxu0 %v4012
  %4018 = vmatpush1.bf16.msra.mxu0 %v4011
  %4019 = vmatprep.subr.bf16.mxu0 0
  %4020 = vmatpush1.bf16.msra.mxu0 0
  %4021 = vmatprep.subr.bf16.mxu0 0
  %4022 = vmatpush1.bf16.msra.mxu0 0
  %4023 = vmatprep.subr.bf16.mxu0 0
  %4024 = vmatpush1.bf16.msra.mxu0 0
  %4025 = vmatprep.subr.bf16.mxu0 0
  %4026 = vmatpush1.bf16.msra.mxu0 0
  %4027 = vmatprep.subr.bf16.mxu0 0
  %4028 = vmatpush1.bf16.msra.mxu0 0
  %4029 = vmatprep.subr.bf16.mxu0 0
  %4030 = vmatpush1.bf16.msra.mxu0 0
  %4031 = vmatprep.subr.bf16.mxu0 0
  %4032 = vmatpush1.bf16.msra.mxu0 0
  %4033 = vmatprep.subr.bf16.mxu0 0
  %4034 = vmatpush1.bf16.msra.mxu0 0
  %4035 = vmatprep.subr.bf16.mxu0 0
  %4036 = vmatpush1.bf16.msra.mxu0 0
  %4037 = vmatprep.subr.bf16.mxu0 0
  %4038 = vmatpush1.bf16.msra.mxu0 0
  %4039 = vmatprep.subr.bf16.mxu0 0
  %4040 = vmatpush1.bf16.msra.mxu0 0
  %4041 = vmatprep.subr.bf16.mxu0 0
  %4042 = vmatpush1.bf16.msra.mxu0 0
  %4043 = vmatprep.subr.bf16.mxu0 0
  %4044 = vmatpush1.bf16.msra.mxu0 0
  %4045 = vmatprep.subr.bf16.mxu0 0
  %4046 = vmatpush1.bf16.msra.mxu0 0
  %4047 = vmatprep.mubr.bf16.mxu0 0
  %4048 = vmatmul.mubr.bf16.gmra.mrb[0].mxu0 %v3761
  %v4049 = vpop.f32.mrb[0].mxu0
  %v4050 = vadd.f32 %v3758, %v4049
  %v4051 = vpop.f32.mrb[0].mxu0
  %v4052 = vadd.f32 %v3758, %v4051
  %v4053 = vpop.f32.mrb[0].mxu0
  %v4054 = vpop.f32.mrb[0].mxu0
  %4055 = vdwg.mxu0
  %4056 = vmatprep.subr.bf16.mxu0 %v4010
  %4057 = vmatpush1.bf16.msra.mxu0 %v4009
  %4058 = vmatprep.subr.bf16.mxu0 %v4014
  %4059 = vmatpush1.bf16.msra.mxu0 %v4013
  %4060 = vmatprep.subr.bf16.mxu0 0
  %4061 = vmatpush1.bf16.msra.mxu0 0
  %4062 = vmatprep.subr.bf16.mxu0 0
  %4063 = vmatpush1.bf16.msra.mxu0 0
  %4064 = vmatprep.subr.bf16.mxu0 0
  %4065 = vmatpush1.bf16.msra.mxu0 0
  %4066 = vmatprep.subr.bf16.mxu0 0
  %4067 = vmatpush1.bf16.msra.mxu0 0
  %4068 = vmatprep.subr.bf16.mxu0 0
  %4069 = vmatpush1.bf16.msra.mxu0 0
  %4070 = vmatprep.subr.bf16.mxu0 0
  %4071 = vmatpush1.bf16.msra.mxu0 0
  %4072 = vmatprep.subr.bf16.mxu0 0
  %4073 = vmatpush1.bf16.msra.mxu0 0
  %4074 = vmatprep.subr.bf16.mxu0 0
  %4075 = vmatpush1.bf16.msra.mxu0 0
  %4076 = vmatprep.subr.bf16.mxu0 0
  %4077 = vmatpush1.bf16.msra.mxu0 0
  %4078 = vmatprep.subr.bf16.mxu0 0
  %4079 = vmatpush1.bf16.msra.mxu0 0
  %4080 = vmatprep.subr.bf16.mxu0 0
  %4081 = vmatpush1.bf16.msra.mxu0 0
  %4082 = vmatprep.subr.bf16.mxu0 0
  %4083 = vmatpush1.bf16.msra.mxu0 0
  %4084 = vmatprep.subr.bf16.mxu0 0
  %4085 = vmatpush1.bf16.msra.mxu0 0
  %4086 = vmatprep.subr.bf16.mxu0 0
  %4087 = vmatpush1.bf16.msra.mxu0 0
  %4088 = vmatprep.mubr.bf16.mxu0 0
  %4089 = vmatmul.mubr.bf16.gmra.mrb[0].mxu0 %v3761
  %v4090 = vpop.f32.mrb[0].mxu0
  %v4091 = vadd.f32 %v3758, %v4090
  %v4092 = vpop.f32.mrb[0].mxu0
  %v4093 = vadd.f32 %v3758, %v4092
  %v4094 = vpop.f32.mrb[0].mxu0
  %v4095 = vpop.f32.mrb[0].mxu0
  %4096 = vdwg.mxu0
  %v4097 = vmul.f32 %v3865, -6.5209823
  %v4098 = vmul.f32 %v3866, -6.5209823
  %v4099 = vmul.f32 %v3867, -6.5209823
  %v4100 = vmul.f32 %v3868, -6.5209823
  %v4101 = vadd.f32 %v4050, %v4097
  %v4102 = vadd.f32 %v4052, %v4098
  %v4103 = vadd.f32 %v4091, %v4099
  %v4104 = vadd.f32 %v4093, %v4100
  %v4105 = vmul.f32 %v4101, 2.0
  %v4106 = vmul.f32 %v4102, 2.0
  %v4107 = vmul.f32 %v4103, 2.0
  %v4108 = vmul.f32 %v4104, 2.0
  %v4109 = vadd.f32 %v3857, %v4105
  %v4110 = vadd.f32 %v3858, %v4106
  %v4111 = vadd.f32 %v3859, %v4107
  %v4112 = vadd.f32 %v3860, %v4108
  %v4113 = vmul.f32 %v4101, -0.0999
  %v4114 = vmul.f32 %v4102, -0.0999
  %v4115 = vmul.f32 %v4103, -0.0999
  %v4116 = vmul.f32 %v4104, -0.0999
  %v4117 = vadd.f32 %v3303, %v4113
  %v4118 = vadd.f32 %v3304, %v4114
  %v4119 = vadd.f32 %v3305, %v4115
  %v4120 = vadd.f32 %v3306, %v4116
  %s4121 = scalar_lea.vmem %s1, 176
  %v4122 = vld [vmem:[%s4121] sm:$0xf]
  %v4123 = vld [vmem:[%s4121 + $0x4] sm:$0xf]
  %v4124 = vld [vmem:[%s4121 + $0x8] sm:$0xf]
  %v4125 = vld [vmem:[%s4121 + $0xc] sm:$0xf]
  %v4126 = vpack.c.bf16 %v4117, %v4117
  %v4127 = vpack.c.bf16 %v4118, %v4118
  %v4128 = vpack.c.bf16 %v4119, %v4119
  %v4129 = vpack.c.bf16 %v4120, %v4120
  %v4134 = vunpack.c.l.b16 %v4122
  %v4135 = vunpack.c.l.b16 %v4123
  %v4136 = vunpack.c.l.b16 %v4124
  %v4137 = vunpack.c.l.b16 %v4125
  %v4138 = vpack.c.b16 %v4135, %v4134
  %v4139 = vpack.c.b16 %v4137, %v4136
  %v4141 = vsel %vm40, %v4138, 0
  %v4144 = vsel %vm40, %v4139, 0
  %v4147 = vsel %vm47, %v4126, 0
  %v4150 = vsel %vm47, %v4127, 0
  %v4153 = vsel %vm47, %v4128, 0
  %v4156 = vsel %vm47, %v4129, 0
  %4158 = vmatprep.subr.bf16.mxu0 %v4150
  %4159 = vmatpush1.bf16.msra.mxu0 %v4147
  %4160 = vmatprep.subr.bf16.mxu0 0
  %4161 = vmatpush1.bf16.msra.mxu0 0
  %4162 = vmatprep.subr.bf16.mxu0 0
  %4163 = vmatpush1.bf16.msra.mxu0 0
  %4164 = vmatprep.subr.bf16.mxu0 0
  %4165 = vmatpush1.bf16.msra.mxu0 0
  %4166 = vmatprep.subr.bf16.mxu0 0
  %4167 = vmatpush1.bf16.msra.mxu0 0
  %4168 = vmatprep.subr.bf16.mxu0 0
  %4169 = vmatpush1.bf16.msra.mxu0 0
  %4170 = vmatprep.subr.bf16.mxu0 0
  %4171 = vmatpush1.bf16.msra.mxu0 0
  %4172 = vmatprep.subr.bf16.mxu0 0
  %4173 = vmatpush1.bf16.msra.mxu0 0
  %4174 = vmatprep.subr.bf16.mxu0 0
  %4175 = vmatpush1.bf16.msra.mxu0 0
  %4176 = vmatprep.subr.bf16.mxu0 0
  %4177 = vmatpush1.bf16.msra.mxu0 0
  %4178 = vmatprep.subr.bf16.mxu0 0
  %4179 = vmatpush1.bf16.msra.mxu0 0
  %4180 = vmatprep.subr.bf16.mxu0 0
  %4181 = vmatpush1.bf16.msra.mxu0 0
  %4182 = vmatprep.subr.bf16.mxu0 0
  %4183 = vmatpush1.bf16.msra.mxu0 0
  %4184 = vmatprep.subr.bf16.mxu0 0
  %4185 = vmatpush1.bf16.msra.mxu0 0
  %4186 = vmatprep.subr.bf16.mxu0 0
  %4187 = vmatpush1.bf16.msra.mxu0 0
  %4188 = vmatprep.subr.bf16.mxu0 0
  %4189 = vmatpush1.bf16.msra.mxu0 0
  %4190 = vmatprep.mubr.bf16.mxu0 0
  %4191 = vmatmul.mubr.bf16.gmra.mrb[0].mxu0 %v4141
  %v4192 = vpop.f32.mrb[0].mxu0
  %v4193 = vadd.f32 0.0, %v4192
  %v4194 = vpop.f32.mrb[0].mxu0
  %v4195 = vadd.f32 0.0, %v4194
  %v4196 = vpop.f32.mrb[0].mxu0
  %v4197 = vadd.f32 0.0, %v4196
  %v4198 = vpop.f32.mrb[0].mxu0
  %v4199 = vadd.f32 0.0, %v4198
  %4200 = vmatprep.mubr.bf16.mxu0 0
  %4201 = vmatmul.mubr.bf16.gmra.mrb[0].mxu0 %v4144
  %v4202 = vpop.f32.mrb[0].mxu0
  %v4203 = vadd.f32 0.0, %v4202
  %v4204 = vpop.f32.mrb[0].mxu0
  %v4205 = vadd.f32 0.0, %v4204
  %v4206 = vpop.f32.mrb[0].mxu0
  %v4207 = vadd.f32 0.0, %v4206
  %v4208 = vpop.f32.mrb[0].mxu0
  %v4209 = vadd.f32 0.0, %v4208
  %4210 = vdwg.mxu0
  %4211 = vmatprep.subr.bf16.mxu0 %v4156
  %4212 = vmatpush1.bf16.msra.mxu0 %v4153
  %4213 = vmatprep.subr.bf16.mxu0 0
  %4214 = vmatpush1.bf16.msra.mxu0 0
  %4215 = vmatprep.subr.bf16.mxu0 0
  %4216 = vmatpush1.bf16.msra.mxu0 0
  %4217 = vmatprep.subr.bf16.mxu0 0
  %4218 = vmatpush1.bf16.msra.mxu0 0
  %4219 = vmatprep.subr.bf16.mxu0 0
  %4220 = vmatpush1.bf16.msra.mxu0 0
  %4221 = vmatprep.subr.bf16.mxu0 0
  %4222 = vmatpush1.bf16.msra.mxu0 0
  %4223 = vmatprep.subr.bf16.mxu0 0
  %4224 = vmatpush1.bf16.msra.mxu0 0
  %4225 = vmatprep.subr.bf16.mxu0 0
  %4226 = vmatpush1.bf16.msra.mxu0 0
  %4227 = vmatprep.subr.bf16.mxu0 0
  %4228 = vmatpush1.bf16.msra.mxu0 0
  %4229 = vmatprep.subr.bf16.mxu0 0
  %4230 = vmatpush1.bf16.msra.mxu0 0
  %4231 = vmatprep.subr.bf16.mxu0 0
  %4232 = vmatpush1.bf16.msra.mxu0 0
  %4233 = vmatprep.subr.bf16.mxu0 0
  %4234 = vmatpush1.bf16.msra.mxu0 0
  %4235 = vmatprep.subr.bf16.mxu0 0
  %4236 = vmatpush1.bf16.msra.mxu0 0
  %4237 = vmatprep.subr.bf16.mxu0 0
  %4238 = vmatpush1.bf16.msra.mxu0 0
  %4239 = vmatprep.subr.bf16.mxu0 0
  %4240 = vmatpush1.bf16.msra.mxu0 0
  %4241 = vmatprep.subr.bf16.mxu0 0
  %4242 = vmatpush1.bf16.msra.mxu0 0
  %4243 = vmatprep.mubr.bf16.mxu0 0
  %4244 = vmatmul.mubr.bf16.gmra.mrb[0].mxu0 %v4141
  %v4245 = vpop.f32.mrb[0].mxu0
  %v4246 = vadd.f32 0.0, %v4245
  %v4247 = vpop.f32.mrb[0].mxu0
  %v4248 = vadd.f32 0.0, %v4247
  %v4249 = vpop.f32.mrb[0].mxu0
  %v4250 = vadd.f32 0.0, %v4249
  %v4251 = vpop.f32.mrb[0].mxu0
  %v4252 = vadd.f32 0.0, %v4251
  %4253 = vmatprep.mubr.bf16.mxu0 0
  %4254 = vmatmul.mubr.bf16.gmra.mrb[0].mxu0 %v4144
  %v4255 = vpop.f32.mrb[0].mxu0
  %v4256 = vadd.f32 0.0, %v4255
  %v4257 = vpop.f32.mrb[0].mxu0
  %v4258 = vadd.f32 0.0, %v4257
  %v4259 = vpop.f32.mrb[0].mxu0
  %v4260 = vadd.f32 0.0, %v4259
  %v4261 = vpop.f32.mrb[0].mxu0
  %v4262 = vadd.f32 0.0, %v4261
  %4263 = vdwg.mxu0
  %v4264 = vmax.f32 %v4193, 0.0
  %v4265 = vmax.f32 %v4195, 0.0
  %v4266 = vmax.f32 %v4246, 0.0
  %v4267 = vmax.f32 %v4248, 0.0
  %v4268 = vmax.f32 %v4197, 0.0
  %v4269 = vmax.f32 %v4199, 0.0
  %v4270 = vmax.f32 %v4250, 0.0
  %v4271 = vmax.f32 %v4252, 0.0
  %v4272 = vmax.f32 %v4203, 0.0
  %v4273 = vmax.f32 %v4205, 0.0
  %v4274 = vmax.f32 %v4256, 0.0
  %v4275 = vmax.f32 %v4258, 0.0
  %v4276 = vmax.f32 %v4207, 0.0
  %v4277 = vmax.f32 %v4209, 0.0
  %v4278 = vmax.f32 %v4260, 0.0
  %v4279 = vmax.f32 %v4262, 0.0
  %s4280 = scalar_lea.vmem %s2, 44
  %v4281 = vld [vmem:[%s4280] sm:$0xf]
  %v4282 = vpack.c.bf16 %v4268, %v4264
  %v4283 = vpack.c.bf16 %v4269, %v4265
  %v4284 = vpack.c.bf16 %v4270, %v4266
  %v4285 = vpack.c.bf16 %v4271, %v4267
  %v4286 = vpack.c.bf16 %v4276, %v4272
  %v4287 = vpack.c.bf16 %v4277, %v4273
  %v4288 = vpack.c.bf16 %v4278, %v4274
  %v4289 = vpack.c.bf16 %v4279, %v4275
  %s4290 = scalar_lea.vmem %s3, 88
  %v4291 = vld [vmem:[%s4290] sm:$0xff]
  %4293 = vset.pattern.permute.xlu0 0
  %4294 = vperm.xlu0 %4293, %v4291
  %v4295 = vpop.permute.xlu0 %4294
  %v4298 = vsel %vm197, %v4281, 0
  %4300 = vmatprep.subr.bf16.mxu0 %v4283
  %4301 = vmatpush1.bf16.msra.mxu0 %v4282
  %4302 = vmatprep.subr.bf16.mxu0 %v4287
  %4303 = vmatpush1.bf16.msra.mxu0 %v4286
  %4304 = vmatprep.subr.bf16.mxu0 0
  %4305 = vmatpush1.bf16.msra.mxu0 0
  %4306 = vmatprep.subr.bf16.mxu0 0
  %4307 = vmatpush1.bf16.msra.mxu0 0
  %4308 = vmatprep.subr.bf16.mxu0 0
  %4309 = vmatpush1.bf16.msra.mxu0 0
  %4310 = vmatprep.subr.bf16.mxu0 0
  %4311 = vmatpush1.bf16.msra.mxu0 0
  %4312 = vmatprep.subr.bf16.mxu0 0
  %4313 = vmatpush1.bf16.msra.mxu0 0
  %4314 = vmatprep.subr.bf16.mxu0 0
  %4315 = vmatpush1.bf16.msra.mxu0 0
  %4316 = vmatprep.subr.bf16.mxu0 0
  %4317 = vmatpush1.bf16.msra.mxu0 0
  %4318 = vmatprep.subr.bf16.mxu0 0
  %4319 = vmatpush1.bf16.msra.mxu0 0
  %4320 = vmatprep.subr.bf16.mxu0 0
  %4321 = vmatpush1.bf16.msra.mxu0 0
  %4322 = vmatprep.subr.bf16.mxu0 0
  %4323 = vmatpush1.bf16.msra.mxu0 0
  %4324 = vmatprep.subr.bf16.mxu0 0
  %4325 = vmatpush1.bf16.msra.mxu0 0
  %4326 = vmatprep.subr.bf16.mxu0 0
  %4327 = vmatpush1.bf16.msra.mxu0 0
  %4328 = vmatprep.subr.bf16.mxu0 0
  %4329 = vmatpush1.bf16.msra.mxu0 0
  %4330 = vmatprep.subr.bf16.mxu0 0
  %4331 = vmatpush1.bf16.msra.mxu0 0
  %4332 = vmatprep.mubr.bf16.mxu0 0
  %4333 = vmatmul.mubr.bf16.gmra.mrb[0].mxu0 %v4298
  %v4334 = vpop.f32.mrb[0].mxu0
  %v4335 = vadd.f32 %v4295, %v4334
  %v4336 = vpop.f32.mrb[0].mxu0
  %v4337 = vadd.f32 %v4295, %v4336
  %v4338 = vpop.f32.mrb[0].mxu0
  %v4339 = vpop.f32.mrb[0].mxu0
  %4340 = vdwg.mxu0
  %4341 = vmatprep.subr.bf16.mxu0 %v4285
  %4342 = vmatpush1.bf16.msra.mxu0 %v4284
  %4343 = vmatprep.subr.bf16.mxu0 %v4289
  %4344 = vmatpush1.bf16.msra.mxu0 %v4288
  %4345 = vmatprep.subr.bf16.mxu0 0
  %4346 = vmatpush1.bf16.msra.mxu0 0
  %4347 = vmatprep.subr.bf16.mxu0 0
  %4348 = vmatpush1.bf16.msra.mxu0 0
  %4349 = vmatprep.subr.bf16.mxu0 0
  %4350 = vmatpush1.bf16.msra.mxu0 0
  %4351 = vmatprep.subr.bf16.mxu0 0
  %4352 = vmatpush1.bf16.msra.mxu0 0
  %4353 = vmatprep.subr.bf16.mxu0 0
  %4354 = vmatpush1.bf16.msra.mxu0 0
  %4355 = vmatprep.subr.bf16.mxu0 0
  %4356 = vmatpush1.bf16.msra.mxu0 0
  %4357 = vmatprep.subr.bf16.mxu0 0
  %4358 = vmatpush1.bf16.msra.mxu0 0
  %4359 = vmatprep.subr.bf16.mxu0 0
  %4360 = vmatpush1.bf16.msra.mxu0 0
  %4361 = vmatprep.subr.bf16.mxu0 0
  %4362 = vmatpush1.bf16.msra.mxu0 0
  %4363 = vmatprep.subr.bf16.mxu0 0
  %4364 = vmatpush1.bf16.msra.mxu0 0
  %4365 = vmatprep.subr.bf16.mxu0 0
  %4366 = vmatpush1.bf16.msra.mxu0 0
  %4367 = vmatprep.subr.bf16.mxu0 0
  %4368 = vmatpush1.bf16.msra.mxu0 0
  %4369 = vmatprep.subr.bf16.mxu0 0
  %4370 = vmatpush1.bf16.msra.mxu0 0
  %4371 = vmatprep.subr.bf16.mxu0 0
  %4372 = vmatpush1.bf16.msra.mxu0 0
  %4373 = vmatprep.mubr.bf16.mxu0 0
  %4374 = vmatmul.mubr.bf16.gmra.mrb[0].mxu0 %v4298
  %v4375 = vpop.f32.mrb[0].mxu0
  %v4376 = vadd.f32 %v4295, %v4375
  %v4377 = vpop.f32.mrb[0].mxu0
  %v4378 = vadd.f32 %v4295, %v4377
  %v4379 = vpop.f32.mrb[0].mxu0
  %v4380 = vpop.f32.mrb[0].mxu0
  %4381 = vdwg.mxu0
  %v4382 = vmul.f32 %v4117, -6.02398
  %v4383 = vmul.f32 %v4118, -6.02398
  %v4384 = vmul.f32 %v4119, -6.02398
  %v4385 = vmul.f32 %v4120, -6.02398
  %v4386 = vadd.f32 %v4335, %v4382
  %v4387 = vadd.f32 %v4337, %v4383
  %v4388 = vadd.f32 %v4376, %v4384
  %v4389 = vadd.f32 %v4378, %v4385
  %v4390 = vadd.f32 %v4109, %v4386
  %v4391 = vadd.f32 %v4110, %v4387
  %v4392 = vadd.f32 %v4111, %v4388
  %v4393 = vadd.f32 %v4112, %v4389
  %v4394 = vmul.f32 %v4390, -0.01665
  %v4395 = vmul.f32 %v4391, -0.01665
  %v4396 = vmul.f32 %v4392, -0.01665
  %v4397 = vmul.f32 %v4393, -0.01665
  %v4398 = vadd.f32 %v3303, %v4394
  %v4399 = vadd.f32 %v3304, %v4395
  %v4400 = vadd.f32 %v3305, %v4396
  %v4401 = vadd.f32 %v3306, %v4397
  %s4402 = scalar_lea.vmem %s1, 192
  %v4403 = vld [vmem:[%s4402] sm:$0xf]
  %v4404 = vld [vmem:[%s4402 + $0x4] sm:$0xf]
  %v4405 = vld [vmem:[%s4402 + $0x8] sm:$0xf]
  %v4406 = vld [vmem:[%s4402 + $0xc] sm:$0xf]
  %v4407 = vpack.c.bf16 %v4398, %v4398
  %v4408 = vpack.c.bf16 %v4399, %v4399
  %v4409 = vpack.c.bf16 %v4400, %v4400
  %v4410 = vpack.c.bf16 %v4401, %v4401
  %v4415 = vunpack.c.l.b16 %v4403
  %v4416 = vunpack.c.l.b16 %v4404
  %v4417 = vunpack.c.l.b16 %v4405
  %v4418 = vunpack.c.l.b16 %v4406
  %v4419 = vpack.c.b16 %v4416, %v4415
  %v4420 = vpack.c.b16 %v4418, %v4417
  %v4422 = vsel %vm40, %v4419, 0
  %v4425 = vsel %vm40, %v4420, 0
  %v4428 = vsel %vm47, %v4407, 0
  %v4431 = vsel %vm47, %v4408, 0
  %v4434 = vsel %vm47, %v4409, 0
  %v4437 = vsel %vm47, %v4410, 0
  %4439 = vmatprep.subr.bf16.mxu0 %v4431
  %4440 = vmatpush1.bf16.msra.mxu0 %v4428
  %4441 = vmatprep.subr.bf16.mxu0 0
  %4442 = vmatpush1.bf16.msra.mxu0 0
  %4443 = vmatprep.subr.bf16.mxu0 0
  %4444 = vmatpush1.bf16.msra.mxu0 0
  %4445 = vmatprep.subr.bf16.mxu0 0
  %4446 = vmatpush1.bf16.msra.mxu0 0
  %4447 = vmatprep.subr.bf16.mxu0 0
  %4448 = vmatpush1.bf16.msra.mxu0 0
  %4449 = vmatprep.subr.bf16.mxu0 0
  %4450 = vmatpush1.bf16.msra.mxu0 0
  %4451 = vmatprep.subr.bf16.mxu0 0
  %4452 = vmatpush1.bf16.msra.mxu0 0
  %4453 = vmatprep.subr.bf16.mxu0 0
  %4454 = vmatpush1.bf16.msra.mxu0 0
  %4455 = vmatprep.subr.bf16.mxu0 0
  %4456 = vmatpush1.bf16.msra.mxu0 0
  %4457 = vmatprep.subr.bf16.mxu0 0
  %4458 = vmatpush1.bf16.msra.mxu0 0
  %4459 = vmatprep.subr.bf16.mxu0 0
  %4460 = vmatpush1.bf16.msra.mxu0 0
  %4461 = vmatprep.subr.bf16.mxu0 0
  %4462 = vmatpush1.bf16.msra.mxu0 0
  %4463 = vmatprep.subr.bf16.mxu0 0
  %4464 = vmatpush1.bf16.msra.mxu0 0
  %4465 = vmatprep.subr.bf16.mxu0 0
  %4466 = vmatpush1.bf16.msra.mxu0 0
  %4467 = vmatprep.subr.bf16.mxu0 0
  %4468 = vmatpush1.bf16.msra.mxu0 0
  %4469 = vmatprep.subr.bf16.mxu0 0
  %4470 = vmatpush1.bf16.msra.mxu0 0
  %4471 = vmatprep.mubr.bf16.mxu0 0
  %4472 = vmatmul.mubr.bf16.gmra.mrb[0].mxu0 %v4422
  %v4473 = vpop.f32.mrb[0].mxu0
  %v4474 = vadd.f32 0.0, %v4473
  %v4475 = vpop.f32.mrb[0].mxu0
  %v4476 = vadd.f32 0.0, %v4475
  %v4477 = vpop.f32.mrb[0].mxu0
  %v4478 = vadd.f32 0.0, %v4477
  %v4479 = vpop.f32.mrb[0].mxu0
  %v4480 = vadd.f32 0.0, %v4479
  %4481 = vmatprep.mubr.bf16.mxu0 0
  %4482 = vmatmul.mubr.bf16.gmra.mrb[0].mxu0 %v4425
  %v4483 = vpop.f32.mrb[0].mxu0
  %v4484 = vadd.f32 0.0, %v4483
  %v4485 = vpop.f32.mrb[0].mxu0
  %v4486 = vadd.f32 0.0, %v4485
  %v4487 = vpop.f32.mrb[0].mxu0
  %v4488 = vadd.f32 0.0, %v4487
  %v4489 = vpop.f32.mrb[0].mxu0
  %v4490 = vadd.f32 0.0, %v4489
  %4491 = vdwg.mxu0
  %4492 = vmatprep.subr.bf16.mxu0 %v4437
  %4493 = vmatpush1.bf16.msra.mxu0 %v4434
  %4494 = vmatprep.subr.bf16.mxu0 0
  %4495 = vmatpush1.bf16.msra.mxu0 0
  %4496 = vmatprep.subr.bf16.mxu0 0
  %4497 = vmatpush1.bf16.msra.mxu0 0
  %4498 = vmatprep.subr.bf16.mxu0 0
  %4499 = vmatpush1.bf16.msra.mxu0 0
  %4500 = vmatprep.subr.bf16.mxu0 0
  %4501 = vmatpush1.bf16.msra.mxu0 0
  %4502 = vmatprep.subr.bf16.mxu0 0
  %4503 = vmatpush1.bf16.msra.mxu0 0
  %4504 = vmatprep.subr.bf16.mxu0 0
  %4505 = vmatpush1.bf16.msra.mxu0 0
  %4506 = vmatprep.subr.bf16.mxu0 0
  %4507 = vmatpush1.bf16.msra.mxu0 0
  %4508 = vmatprep.subr.bf16.mxu0 0
  %4509 = vmatpush1.bf16.msra.mxu0 0
  %4510 = vmatprep.subr.bf16.mxu0 0
  %4511 = vmatpush1.bf16.msra.mxu0 0
  %4512 = vmatprep.subr.bf16.mxu0 0
  %4513 = vmatpush1.bf16.msra.mxu0 0
  %4514 = vmatprep.subr.bf16.mxu0 0
  %4515 = vmatpush1.bf16.msra.mxu0 0
  %4516 = vmatprep.subr.bf16.mxu0 0
  %4517 = vmatpush1.bf16.msra.mxu0 0
  %4518 = vmatprep.subr.bf16.mxu0 0
  %4519 = vmatpush1.bf16.msra.mxu0 0
  %4520 = vmatprep.subr.bf16.mxu0 0
  %4521 = vmatpush1.bf16.msra.mxu0 0
  %4522 = vmatprep.subr.bf16.mxu0 0
  %4523 = vmatpush1.bf16.msra.mxu0 0
  %4524 = vmatprep.mubr.bf16.mxu0 0
  %4525 = vmatmul.mubr.bf16.gmra.mrb[0].mxu0 %v4422
  %v4526 = vpop.f32.mrb[0].mxu0
  %v4527 = vadd.f32 0.0, %v4526
  %v4528 = vpop.f32.mrb[0].mxu0
  %v4529 = vadd.f32 0.0, %v4528
  %v4530 = vpop.f32.mrb[0].mxu0
  %v4531 = vadd.f32 0.0, %v4530
  %v4532 = vpop.f32.mrb[0].mxu0
  %v4533 = vadd.f32 0.0, %v4532
  %4534 = vmatprep.mubr.bf16.mxu0 0
  %4535 = vmatmul.mubr.bf16.gmra.mrb[0].mxu0 %v4425
  %v4536 = vpop.f32.mrb[0].mxu0
  %v4537 = vadd.f32 0.0, %v4536
  %v4538 = vpop.f32.mrb[0].mxu0
  %v4539 = vadd.f32 0.0, %v4538
  %v4540 = vpop.f32.mrb[0].mxu0
  %v4541 = vadd.f32 0.0, %v4540
  %v4542 = vpop.f32.mrb[0].mxu0
  %v4543 = vadd.f32 0.0, %v4542
  %4544 = vdwg.mxu0
  %v4545 = vmax.f32 %v4474, 0.0
  %v4546 = vmax.f32 %v4476, 0.0
  %v4547 = vmax.f32 %v4527, 0.0
  %v4548 = vmax.f32 %v4529, 0.0
  %v4549 = vmax.f32 %v4478, 0.0
  %v4550 = vmax.f32 %v4480, 0.0
  %v4551 = vmax.f32 %v4531, 0.0
  %v4552 = vmax.f32 %v4533, 0.0
  %v4553 = vmax.f32 %v4484, 0.0
  %v4554 = vmax.f32 %v4486, 0.0
  %v4555 = vmax.f32 %v4537, 0.0
  %v4556 = vmax.f32 %v4539, 0.0
  %v4557 = vmax.f32 %v4488, 0.0
  %v4558 = vmax.f32 %v4490, 0.0
  %v4559 = vmax.f32 %v4541, 0.0
  %v4560 = vmax.f32 %v4543, 0.0
  %s4561 = scalar_lea.vmem %s2, 48
  %v4562 = vld [vmem:[%s4561] sm:$0xf]
  %v4563 = vpack.c.bf16 %v4549, %v4545
  %v4564 = vpack.c.bf16 %v4550, %v4546
  %v4565 = vpack.c.bf16 %v4551, %v4547
  %v4566 = vpack.c.bf16 %v4552, %v4548
  %v4567 = vpack.c.bf16 %v4557, %v4553
  %v4568 = vpack.c.bf16 %v4558, %v4554
  %v4569 = vpack.c.bf16 %v4559, %v4555
  %v4570 = vpack.c.bf16 %v4560, %v4556
  %s4571 = scalar_lea.vmem %s3, 96
  %v4572 = vld [vmem:[%s4571] sm:$0xff]
  %4574 = vset.pattern.permute.xlu0 0
  %4575 = vperm.xlu0 %4574, %v4572
  %v4576 = vpop.permute.xlu0 %4575
  %v4579 = vsel %vm197, %v4562, 0
  %4581 = vmatprep.subr.bf16.mxu0 %v4564
  %4582 = vmatpush1.bf16.msra.mxu0 %v4563
  %4583 = vmatprep.subr.bf16.mxu0 %v4568
  %4584 = vmatpush1.bf16.msra.mxu0 %v4567
  %4585 = vmatprep.subr.bf16.mxu0 0
  %4586 = vmatpush1.bf16.msra.mxu0 0
  %4587 = vmatprep.subr.bf16.mxu0 0
  %4588 = vmatpush1.bf16.msra.mxu0 0
  %4589 = vmatprep.subr.bf16.mxu0 0
  %4590 = vmatpush1.bf16.msra.mxu0 0
  %4591 = vmatprep.subr.bf16.mxu0 0
  %4592 = vmatpush1.bf16.msra.mxu0 0
  %4593 = vmatprep.subr.bf16.mxu0 0
  %4594 = vmatpush1.bf16.msra.mxu0 0
  %4595 = vmatprep.subr.bf16.mxu0 0
  %4596 = vmatpush1.bf16.msra.mxu0 0
  %4597 = vmatprep.subr.bf16.mxu0 0
  %4598 = vmatpush1.bf16.msra.mxu0 0
  %4599 = vmatprep.subr.bf16.mxu0 0
  %4600 = vmatpush1.bf16.msra.mxu0 0
  %4601 = vmatprep.subr.bf16.mxu0 0
  %4602 = vmatpush1.bf16.msra.mxu0 0
  %4603 = vmatprep.subr.bf16.mxu0 0
  %4604 = vmatpush1.bf16.msra.mxu0 0
  %4605 = vmatprep.subr.bf16.mxu0 0
  %4606 = vmatpush1.bf16.msra.mxu0 0
  %4607 = vmatprep.subr.bf16.mxu0 0
  %4608 = vmatpush1.bf16.msra.mxu0 0
  %4609 = vmatprep.subr.bf16.mxu0 0
  %4610 = vmatpush1.bf16.msra.mxu0 0
  %4611 = vmatprep.subr.bf16.mxu0 0
  %4612 = vmatpush1.bf16.msra.mxu0 0
  %4613 = vmatprep.mubr.bf16.mxu0 0
  %4614 = vmatmul.mubr.bf16.gmra.mrb[0].mxu0 %v4579
  %v4615 = vpop.f32.mrb[0].mxu0
  %v4616 = vadd.f32 %v4576, %v4615
  %v4617 = vpop.f32.mrb[0].mxu0
  %v4618 = vadd.f32 %v4576, %v4617
  %v4619 = vpop.f32.mrb[0].mxu0
  %v4620 = vpop.f32.mrb[0].mxu0
  %4621 = vdwg.mxu0
  %4622 = vmatprep.subr.bf16.mxu0 %v4566
  %4623 = vmatpush1.bf16.msra.mxu0 %v4565
  %4624 = vmatprep.subr.bf16.mxu0 %v4570
  %4625 = vmatpush1.bf16.msra.mxu0 %v4569
  %4626 = vmatprep.subr.bf16.mxu0 0
  %4627 = vmatpush1.bf16.msra.mxu0 0
  %4628 = vmatprep.subr.bf16.mxu0 0
  %4629 = vmatpush1.bf16.msra.mxu0 0
  %4630 = vmatprep.subr.bf16.mxu0 0
  %4631 = vmatpush1.bf16.msra.mxu0 0
  %4632 = vmatprep.subr.bf16.mxu0 0
  %4633 = vmatpush1.bf16.msra.mxu0 0
  %4634 = vmatprep.subr.bf16.mxu0 0
  %4635 = vmatpush1.bf16.msra.mxu0 0
  %4636 = vmatprep.subr.bf16.mxu0 0
  %4637 = vmatpush1.bf16.msra.mxu0 0
  %4638 = vmatprep.subr.bf16.mxu0 0
  %4639 = vmatpush1.bf16.msra.mxu0 0
  %4640 = vmatprep.subr.bf16.mxu0 0
  %4641 = vmatpush1.bf16.msra.mxu0 0
  %4642 = vmatprep.subr.bf16.mxu0 0
  %4643 = vmatpush1.bf16.msra.mxu0 0
  %4644 = vmatprep.subr.bf16.mxu0 0
  %4645 = vmatpush1.bf16.msra.mxu0 0
  %4646 = vmatprep.subr.bf16.mxu0 0
  %4647 = vmatpush1.bf16.msra.mxu0 0
  %4648 = vmatprep.subr.bf16.mxu0 0
  %4649 = vmatpush1.bf16.msra.mxu0 0
  %4650 = vmatprep.subr.bf16.mxu0 0
  %4651 = vmatpush1.bf16.msra.mxu0 0
  %4652 = vmatprep.subr.bf16.mxu0 0
  %4653 = vmatpush1.bf16.msra.mxu0 0
  %4654 = vmatprep.mubr.bf16.mxu0 0
  %4655 = vmatmul.mubr.bf16.gmra.mrb[0].mxu0 %v4579
  %v4656 = vpop.f32.mrb[0].mxu0
  %v4657 = vadd.f32 %v4576, %v4656
  %v4658 = vpop.f32.mrb[0].mxu0
  %v4659 = vadd.f32 %v4576, %v4658
  %v4660 = vpop.f32.mrb[0].mxu0
  %v4661 = vpop.f32.mrb[0].mxu0
  %4662 = vdwg.mxu0
  %v4663 = vmul.f32 %v4398, -6.02398
  %v4664 = vmul.f32 %v4399, -6.02398
  %v4665 = vmul.f32 %v4400, -6.02398
  %v4666 = vmul.f32 %v4401, -6.02398
  %v4667 = vadd.f32 %v4616, %v4663
  %v4668 = vadd.f32 %v4618, %v4664
  %v4669 = vadd.f32 %v4657, %v4665
  %v4670 = vadd.f32 %v4659, %v4666
  %v4671 = vmul.f32 %v4667, -0.04995
  %v4672 = vmul.f32 %v4668, -0.04995
  %v4673 = vmul.f32 %v4669, -0.04995
  %v4674 = vmul.f32 %v4670, -0.04995
  %v4675 = vadd.f32 %v4398, %v4671
  %v4676 = vadd.f32 %v4399, %v4672
  %v4677 = vadd.f32 %v4400, %v4673
  %v4678 = vadd.f32 %v4401, %v4674
  %s4679 = scalar_lea.vmem %s1, 208
  %v4680 = vld [vmem:[%s4679] sm:$0xf]
  %v4681 = vld [vmem:[%s4679 + $0x4] sm:$0xf]
  %v4682 = vld [vmem:[%s4679 + $0x8] sm:$0xf]
  %v4683 = vld [vmem:[%s4679 + $0xc] sm:$0xf]
  %v4684 = vpack.c.bf16 %v4675, %v4675
  %v4685 = vpack.c.bf16 %v4676, %v4676
  %v4686 = vpack.c.bf16 %v4677, %v4677
  %v4687 = vpack.c.bf16 %v4678, %v4678
  %v4692 = vunpack.c.l.b16 %v4680
  %v4693 = vunpack.c.l.b16 %v4681
  %v4694 = vunpack.c.l.b16 %v4682
  %v4695 = vunpack.c.l.b16 %v4683
  %v4696 = vpack.c.b16 %v4693, %v4692
  %v4697 = vpack.c.b16 %v4695, %v4694
  %v4699 = vsel %vm40, %v4696, 0
  %v4702 = vsel %vm40, %v4697, 0
  %v4705 = vsel %vm47, %v4684, 0
  %v4708 = vsel %vm47, %v4685, 0
  %v4711 = vsel %vm47, %v4686, 0
  %v4714 = vsel %vm47, %v4687, 0
  %4716 = vmatprep.subr.bf16.mxu0 %v4708
  %4717 = vmatpush1.bf16.msra.mxu0 %v4705
  %4718 = vmatprep.subr.bf16.mxu0 0
  %4719 = vmatpush1.bf16.msra.mxu0 0
  %4720 = vmatprep.subr.bf16.mxu0 0
  %4721 = vmatpush1.bf16.msra.mxu0 0
  %4722 = vmatprep.subr.bf16.mxu0 0
  %4723 = vmatpush1.bf16.msra.mxu0 0
  %4724 = vmatprep.subr.bf16.mxu0 0
  %4725 = vmatpush1.bf16.msra.mxu0 0
  %4726 = vmatprep.subr.bf16.mxu0 0
  %4727 = vmatpush1.bf16.msra.mxu0 0
  %4728 = vmatprep.subr.bf16.mxu0 0
  %4729 = vmatpush1.bf16.msra.mxu0 0
  %4730 = vmatprep.subr.bf16.mxu0 0
  %4731 = vmatpush1.bf16.msra.mxu0 0
  %4732 = vmatprep.subr.bf16.mxu0 0
  %4733 = vmatpush1.bf16.msra.mxu0 0
  %4734 = vmatprep.subr.bf16.mxu0 0
  %4735 = vmatpush1.bf16.msra.mxu0 0
  %4736 = vmatprep.subr.bf16.mxu0 0
  %4737 = vmatpush1.bf16.msra.mxu0 0
  %4738 = vmatprep.subr.bf16.mxu0 0
  %4739 = vmatpush1.bf16.msra.mxu0 0
  %4740 = vmatprep.subr.bf16.mxu0 0
  %4741 = vmatpush1.bf16.msra.mxu0 0
  %4742 = vmatprep.subr.bf16.mxu0 0
  %4743 = vmatpush1.bf16.msra.mxu0 0
  %4744 = vmatprep.subr.bf16.mxu0 0
  %4745 = vmatpush1.bf16.msra.mxu0 0
  %4746 = vmatprep.subr.bf16.mxu0 0
  %4747 = vmatpush1.bf16.msra.mxu0 0
  %4748 = vmatprep.mubr.bf16.mxu0 0
  %4749 = vmatmul.mubr.bf16.gmra.mrb[0].mxu0 %v4699
  %v4750 = vpop.f32.mrb[0].mxu0
  %v4751 = vadd.f32 0.0, %v4750
  %v4752 = vpop.f32.mrb[0].mxu0
  %v4753 = vadd.f32 0.0, %v4752
  %v4754 = vpop.f32.mrb[0].mxu0
  %v4755 = vadd.f32 0.0, %v4754
  %v4756 = vpop.f32.mrb[0].mxu0
  %v4757 = vadd.f32 0.0, %v4756
  %4758 = vmatprep.mubr.bf16.mxu0 0
  %4759 = vmatmul.mubr.bf16.gmra.mrb[0].mxu0 %v4702
  %v4760 = vpop.f32.mrb[0].mxu0
  %v4761 = vadd.f32 0.0, %v4760
  %v4762 = vpop.f32.mrb[0].mxu0
  %v4763 = vadd.f32 0.0, %v4762
  %v4764 = vpop.f32.mrb[0].mxu0
  %v4765 = vadd.f32 0.0, %v4764
  %v4766 = vpop.f32.mrb[0].mxu0
  %v4767 = vadd.f32 0.0, %v4766
  %4768 = vdwg.mxu0
  %4769 = vmatprep.subr.bf16.mxu0 %v4714
  %4770 = vmatpush1.bf16.msra.mxu0 %v4711
  %4771 = vmatprep.subr.bf16.mxu0 0
  %4772 = vmatpush1.bf16.msra.mxu0 0
  %4773 = vmatprep.subr.bf16.mxu0 0
  %4774 = vmatpush1.bf16.msra.mxu0 0
  %4775 = vmatprep.subr.bf16.mxu0 0
  %4776 = vmatpush1.bf16.msra.mxu0 0
  %4777 = vmatprep.subr.bf16.mxu0 0
  %4778 = vmatpush1.bf16.msra.mxu0 0
  %4779 = vmatprep.subr.bf16.mxu0 0
  %4780 = vmatpush1.bf16.msra.mxu0 0
  %4781 = vmatprep.subr.bf16.mxu0 0
  %4782 = vmatpush1.bf16.msra.mxu0 0
  %4783 = vmatprep.subr.bf16.mxu0 0
  %4784 = vmatpush1.bf16.msra.mxu0 0
  %4785 = vmatprep.subr.bf16.mxu0 0
  %4786 = vmatpush1.bf16.msra.mxu0 0
  %4787 = vmatprep.subr.bf16.mxu0 0
  %4788 = vmatpush1.bf16.msra.mxu0 0
  %4789 = vmatprep.subr.bf16.mxu0 0
  %4790 = vmatpush1.bf16.msra.mxu0 0
  %4791 = vmatprep.subr.bf16.mxu0 0
  %4792 = vmatpush1.bf16.msra.mxu0 0
  %4793 = vmatprep.subr.bf16.mxu0 0
  %4794 = vmatpush1.bf16.msra.mxu0 0
  %4795 = vmatprep.subr.bf16.mxu0 0
  %4796 = vmatpush1.bf16.msra.mxu0 0
  %4797 = vmatprep.subr.bf16.mxu0 0
  %4798 = vmatpush1.bf16.msra.mxu0 0
  %4799 = vmatprep.subr.bf16.mxu0 0
  %4800 = vmatpush1.bf16.msra.mxu0 0
  %4801 = vmatprep.mubr.bf16.mxu0 0
  %4802 = vmatmul.mubr.bf16.gmra.mrb[0].mxu0 %v4699
  %v4803 = vpop.f32.mrb[0].mxu0
  %v4804 = vadd.f32 0.0, %v4803
  %v4805 = vpop.f32.mrb[0].mxu0
  %v4806 = vadd.f32 0.0, %v4805
  %v4807 = vpop.f32.mrb[0].mxu0
  %v4808 = vadd.f32 0.0, %v4807
  %v4809 = vpop.f32.mrb[0].mxu0
  %v4810 = vadd.f32 0.0, %v4809
  %4811 = vmatprep.mubr.bf16.mxu0 0
  %4812 = vmatmul.mubr.bf16.gmra.mrb[0].mxu0 %v4702
  %v4813 = vpop.f32.mrb[0].mxu0
  %v4814 = vadd.f32 0.0, %v4813
  %v4815 = vpop.f32.mrb[0].mxu0
  %v4816 = vadd.f32 0.0, %v4815
  %v4817 = vpop.f32.mrb[0].mxu0
  %v4818 = vadd.f32 0.0, %v4817
  %v4819 = vpop.f32.mrb[0].mxu0
  %v4820 = vadd.f32 0.0, %v4819
  %4821 = vdwg.mxu0
  %v4822 = vmax.f32 %v4751, 0.0
  %v4823 = vmax.f32 %v4753, 0.0
  %v4824 = vmax.f32 %v4804, 0.0
  %v4825 = vmax.f32 %v4806, 0.0
  %v4826 = vmax.f32 %v4755, 0.0
  %v4827 = vmax.f32 %v4757, 0.0
  %v4828 = vmax.f32 %v4808, 0.0
  %v4829 = vmax.f32 %v4810, 0.0
  %v4830 = vmax.f32 %v4761, 0.0
  %v4831 = vmax.f32 %v4763, 0.0
  %v4832 = vmax.f32 %v4814, 0.0
  %v4833 = vmax.f32 %v4816, 0.0
  %v4834 = vmax.f32 %v4765, 0.0
  %v4835 = vmax.f32 %v4767, 0.0
  %v4836 = vmax.f32 %v4818, 0.0
  %v4837 = vmax.f32 %v4820, 0.0
  %s4838 = scalar_lea.vmem %s2, 52
  %v4839 = vld [vmem:[%s4838] sm:$0xf]
  %v4840 = vpack.c.bf16 %v4826, %v4822
  %v4841 = vpack.c.bf16 %v4827, %v4823
  %v4842 = vpack.c.bf16 %v4828, %v4824
  %v4843 = vpack.c.bf16 %v4829, %v4825
  %v4844 = vpack.c.bf16 %v4834, %v4830
  %v4845 = vpack.c.bf16 %v4835, %v4831
  %v4846 = vpack.c.bf16 %v4836, %v4832
  %v4847 = vpack.c.bf16 %v4837, %v4833
  %s4848 = scalar_lea.vmem %s3, 104
  %v4849 = vld [vmem:[%s4848] sm:$0xff]
  %4851 = vset.pattern.permute.xlu0 0
  %4852 = vperm.xlu0 %4851, %v4849
  %v4853 = vpop.permute.xlu0 %4852
  %v4856 = vsel %vm197, %v4839, 0
  %4858 = vmatprep.subr.bf16.mxu0 %v4841
  %4859 = vmatpush1.bf16.msra.mxu0 %v4840
  %4860 = vmatprep.subr.bf16.mxu0 %v4845
  %4861 = vmatpush1.bf16.msra.mxu0 %v4844
  %4862 = vmatprep.subr.bf16.mxu0 0
  %4863 = vmatpush1.bf16.msra.mxu0 0
  %4864 = vmatprep.subr.bf16.mxu0 0
  %4865 = vmatpush1.bf16.msra.mxu0 0
  %4866 = vmatprep.subr.bf16.mxu0 0
  %4867 = vmatpush1.bf16.msra.mxu0 0
  %4868 = vmatprep.subr.bf16.mxu0 0
  %4869 = vmatpush1.bf16.msra.mxu0 0
  %4870 = vmatprep.subr.bf16.mxu0 0
  %4871 = vmatpush1.bf16.msra.mxu0 0
  %4872 = vmatprep.subr.bf16.mxu0 0
  %4873 = vmatpush1.bf16.msra.mxu0 0
  %4874 = vmatprep.subr.bf16.mxu0 0
  %4875 = vmatpush1.bf16.msra.mxu0 0
  %4876 = vmatprep.subr.bf16.mxu0 0
  %4877 = vmatpush1.bf16.msra.mxu0 0
  %4878 = vmatprep.subr.bf16.mxu0 0
  %4879 = vmatpush1.bf16.msra.mxu0 0
  %4880 = vmatprep.subr.bf16.mxu0 0
  %4881 = vmatpush1.bf16.msra.mxu0 0
  %4882 = vmatprep.subr.bf16.mxu0 0
  %4883 = vmatpush1.bf16.msra.mxu0 0
  %4884 = vmatprep.subr.bf16.mxu0 0
  %4885 = vmatpush1.bf16.msra.mxu0 0
  %4886 = vmatprep.subr.bf16.mxu0 0
  %4887 = vmatpush1.bf16.msra.mxu0 0
  %4888 = vmatprep.subr.bf16.mxu0 0
  %4889 = vmatpush1.bf16.msra.mxu0 0
  %4890 = vmatprep.mubr.bf16.mxu0 0
  %4891 = vmatmul.mubr.bf16.gmra.mrb[0].mxu0 %v4856
  %v4892 = vpop.f32.mrb[0].mxu0
  %v4893 = vadd.f32 %v4853, %v4892
  %v4894 = vpop.f32.mrb[0].mxu0
  %v4895 = vadd.f32 %v4853, %v4894
  %v4896 = vpop.f32.mrb[0].mxu0
  %v4897 = vpop.f32.mrb[0].mxu0
  %4898 = vdwg.mxu0
  %4899 = vmatprep.subr.bf16.mxu0 %v4843
  %4900 = vmatpush1.bf16.msra.mxu0 %v4842
  %4901 = vmatprep.subr.bf16.mxu0 %v4847
  %4902 = vmatpush1.bf16.msra.mxu0 %v4846
  %4903 = vmatprep.subr.bf16.mxu0 0
  %4904 = vmatpush1.bf16.msra.mxu0 0
  %4905 = vmatprep.subr.bf16.mxu0 0
  %4906 = vmatpush1.bf16.msra.mxu0 0
  %4907 = vmatprep.subr.bf16.mxu0 0
  %4908 = vmatpush1.bf16.msra.mxu0 0
  %4909 = vmatprep.subr.bf16.mxu0 0
  %4910 = vmatpush1.bf16.msra.mxu0 0
  %4911 = vmatprep.subr.bf16.mxu0 0
  %4912 = vmatpush1.bf16.msra.mxu0 0
  %4913 = vmatprep.subr.bf16.mxu0 0
  %4914 = vmatpush1.bf16.msra.mxu0 0
  %4915 = vmatprep.subr.bf16.mxu0 0
  %4916 = vmatpush1.bf16.msra.mxu0 0
  %4917 = vmatprep.subr.bf16.mxu0 0
  %4918 = vmatpush1.bf16.msra.mxu0 0
  %4919 = vmatprep.subr.bf16.mxu0 0
  %4920 = vmatpush1.bf16.msra.mxu0 0
  %4921 = vmatprep.subr.bf16.mxu0 0
  %4922 = vmatpush1.bf16.msra.mxu0 0
  %4923 = vmatprep.subr.bf16.mxu0 0
  %4924 = vmatpush1.bf16.msra.mxu0 0
  %4925 = vmatprep.subr.bf16.mxu0 0
  %4926 = vmatpush1.bf16.msra.mxu0 0
  %4927 = vmatprep.subr.bf16.mxu0 0
  %4928 = vmatpush1.bf16.msra.mxu0 0
  %4929 = vmatprep.subr.bf16.mxu0 0
  %4930 = vmatpush1.bf16.msra.mxu0 0
  %4931 = vmatprep.mubr.bf16.mxu0 0
  %4932 = vmatmul.mubr.bf16.gmra.mrb[0].mxu0 %v4856
  %v4933 = vpop.f32.mrb[0].mxu0
  %v4934 = vadd.f32 %v4853, %v4933
  %v4935 = vpop.f32.mrb[0].mxu0
  %v4936 = vadd.f32 %v4853, %v4935
  %v4937 = vpop.f32.mrb[0].mxu0
  %v4938 = vpop.f32.mrb[0].mxu0
  %4939 = vdwg.mxu0
  %v4940 = vmul.f32 %v4675, -5.5269775
  %v4941 = vmul.f32 %v4676, -5.5269775
  %v4942 = vmul.f32 %v4677, -5.5269775
  %v4943 = vmul.f32 %v4678, -5.5269775
  %v4944 = vadd.f32 %v4893, %v4940
  %v4945 = vadd.f32 %v4895, %v4941
  %v4946 = vadd.f32 %v4934, %v4942
  %v4947 = vadd.f32 %v4936, %v4943
  %v4948 = vmul.f32 %v4944, 2.0
  %v4949 = vmul.f32 %v4945, 2.0
  %v4950 = vmul.f32 %v4946, 2.0
  %v4951 = vmul.f32 %v4947, 2.0
  %v4952 = vadd.f32 %v4667, %v4948
  %v4953 = vadd.f32 %v4668, %v4949
  %v4954 = vadd.f32 %v4669, %v4950
  %v4955 = vadd.f32 %v4670, %v4951
  %v4956 = vmul.f32 %v4944, -0.04995
  %v4957 = vmul.f32 %v4945, -0.04995
  %v4958 = vmul.f32 %v4946, -0.04995
  %v4959 = vmul.f32 %v4947, -0.04995
  %v4960 = vadd.f32 %v4398, %v4956
  %v4961 = vadd.f32 %v4399, %v4957
  %v4962 = vadd.f32 %v4400, %v4958
  %v4963 = vadd.f32 %v4401, %v4959
  %v4964 = vpack.c.bf16 %v4960, %v4960
  %v4965 = vpack.c.bf16 %v4961, %v4961
  %v4966 = vpack.c.bf16 %v4962, %v4962
  %v4967 = vpack.c.bf16 %v4963, %v4963
  %v4969 = vsel %vm47, %v4964, 0
  %v4972 = vsel %vm47, %v4965, 0
  %v4975 = vsel %vm47, %v4966, 0
  %v4978 = vsel %vm47, %v4967, 0
  %4980 = vmatprep.subr.bf16.mxu0 %v4972
  %4981 = vmatpush1.bf16.msra.mxu0 %v4969
  %4982 = vmatprep.subr.bf16.mxu0 0
  %4983 = vmatpush1.bf16.msra.mxu0 0
  %4984 = vmatprep.subr.bf16.mxu0 0
  %4985 = vmatpush1.bf16.msra.mxu0 0
  %4986 = vmatprep.subr.bf16.mxu0 0
  %4987 = vmatpush1.bf16.msra.mxu0 0
  %4988 = vmatprep.subr.bf16.mxu0 0
  %4989 = vmatpush1.bf16.msra.mxu0 0
  %4990 = vmatprep.subr.bf16.mxu0 0
  %4991 = vmatpush1.bf16.msra.mxu0 0
  %4992 = vmatprep.subr.bf16.mxu0 0
  %4993 = vmatpush1.bf16.msra.mxu0 0
  %4994 = vmatprep.subr.bf16.mxu0 0
  %4995 = vmatpush1.bf16.msra.mxu0 0
  %4996 = vmatprep.subr.bf16.mxu0 0
  %4997 = vmatpush1.bf16.msra.mxu0 0
  %4998 = vmatprep.subr.bf16.mxu0 0
  %4999 = vmatpush1.bf16.msra.mxu0 0
  %5000 = vmatprep.subr.bf16.mxu0 0
  %5001 = vmatpush1.bf16.msra.mxu0 0
  %5002 = vmatprep.subr.bf16.mxu0 0
  %5003 = vmatpush1.bf16.msra.mxu0 0
  %5004 = vmatprep.subr.bf16.mxu0 0
  %5005 = vmatpush1.bf16.msra.mxu0 0
  %5006 = vmatprep.subr.bf16.mxu0 0
  %5007 = vmatpush1.bf16.msra.mxu0 0
  %5008 = vmatprep.subr.bf16.mxu0 0
  %5009 = vmatpush1.bf16.msra.mxu0 0
  %5010 = vmatprep.subr.bf16.mxu0 0
  %5011 = vmatpush1.bf16.msra.mxu0 0
  %5012 = vmatprep.mubr.bf16.mxu0 0
  %5013 = vmatmul.mubr.bf16.gmra.mrb[0].mxu0 %v4699
  %v5014 = vpop.f32.mrb[0].mxu0
  %v5015 = vadd.f32 0.0, %v5014
  %v5016 = vpop.f32.mrb[0].mxu0
  %v5017 = vadd.f32 0.0, %v5016
  %v5018 = vpop.f32.mrb[0].mxu0
  %v5019 = vadd.f32 0.0, %v5018
  %v5020 = vpop.f32.mrb[0].mxu0
  %v5021 = vadd.f32 0.0, %v5020
  %5022 = vmatprep.mubr.bf16.mxu0 0
  %5023 = vmatmul.mubr.bf16.gmra.mrb[0].mxu0 %v4702
  %v5024 = vpop.f32.mrb[0].mxu0
  %v5025 = vadd.f32 0.0, %v5024
  %v5026 = vpop.f32.mrb[0].mxu0
  %v5027 = vadd.f32 0.0, %v5026
  %v5028 = vpop.f32.mrb[0].mxu0
  %v5029 = vadd.f32 0.0, %v5028
  %v5030 = vpop.f32.mrb[0].mxu0
  %v5031 = vadd.f32 0.0, %v5030
  %5032 = vdwg.mxu0
  %5033 = vmatprep.subr.bf16.mxu0 %v4978
  %5034 = vmatpush1.bf16.msra.mxu0 %v4975
  %5035 = vmatprep.subr.bf16.mxu0 0
  %5036 = vmatpush1.bf16.msra.mxu0 0
  %5037 = vmatprep.subr.bf16.mxu0 0
  %5038 = vmatpush1.bf16.msra.mxu0 0
  %5039 = vmatprep.subr.bf16.mxu0 0
  %5040 = vmatpush1.bf16.msra.mxu0 0
  %5041 = vmatprep.subr.bf16.mxu0 0
  %5042 = vmatpush1.bf16.msra.mxu0 0
  %5043 = vmatprep.subr.bf16.mxu0 0
  %5044 = vmatpush1.bf16.msra.mxu0 0
  %5045 = vmatprep.subr.bf16.mxu0 0
  %5046 = vmatpush1.bf16.msra.mxu0 0
  %5047 = vmatprep.subr.bf16.mxu0 0
  %5048 = vmatpush1.bf16.msra.mxu0 0
  %5049 = vmatprep.subr.bf16.mxu0 0
  %5050 = vmatpush1.bf16.msra.mxu0 0
  %5051 = vmatprep.subr.bf16.mxu0 0
  %5052 = vmatpush1.bf16.msra.mxu0 0
  %5053 = vmatprep.subr.bf16.mxu0 0
  %5054 = vmatpush1.bf16.msra.mxu0 0
  %5055 = vmatprep.subr.bf16.mxu0 0
  %5056 = vmatpush1.bf16.msra.mxu0 0
  %5057 = vmatprep.subr.bf16.mxu0 0
  %5058 = vmatpush1.bf16.msra.mxu0 0
  %5059 = vmatprep.subr.bf16.mxu0 0
  %5060 = vmatpush1.bf16.msra.mxu0 0
  %5061 = vmatprep.subr.bf16.mxu0 0
  %5062 = vmatpush1.bf16.msra.mxu0 0
  %5063 = vmatprep.subr.bf16.mxu0 0
  %5064 = vmatpush1.bf16.msra.mxu0 0
  %5065 = vmatprep.mubr.bf16.mxu0 0
  %5066 = vmatmul.mubr.bf16.gmra.mrb[0].mxu0 %v4699
  %v5067 = vpop.f32.mrb[0].mxu0
  %v5068 = vadd.f32 0.0, %v5067
  %v5069 = vpop.f32.mrb[0].mxu0
  %v5070 = vadd.f32 0.0, %v5069
  %v5071 = vpop.f32.mrb[0].mxu0
  %v5072 = vadd.f32 0.0, %v5071
  %v5073 = vpop.f32.mrb[0].mxu0
  %v5074 = vadd.f32 0.0, %v5073
  %5075 = vmatprep.mubr.bf16.mxu0 0
  %5076 = vmatmul.mubr.bf16.gmra.mrb[0].mxu0 %v4702
  %v5077 = vpop.f32.mrb[0].mxu0
  %v5078 = vadd.f32 0.0, %v5077
  %v5079 = vpop.f32.mrb[0].mxu0
  %v5080 = vadd.f32 0.0, %v5079
  %v5081 = vpop.f32.mrb[0].mxu0
  %v5082 = vadd.f32 0.0, %v5081
  %v5083 = vpop.f32.mrb[0].mxu0
  %v5084 = vadd.f32 0.0, %v5083
  %5085 = vdwg.mxu0
  %v5086 = vmax.f32 %v5015, 0.0
  %v5087 = vmax.f32 %v5017, 0.0
  %v5088 = vmax.f32 %v5068, 0.0
  %v5089 = vmax.f32 %v5070, 0.0
  %v5090 = vmax.f32 %v5019, 0.0
  %v5091 = vmax.f32 %v5021, 0.0
  %v5092 = vmax.f32 %v5072, 0.0
  %v5093 = vmax.f32 %v5074, 0.0
  %v5094 = vmax.f32 %v5025, 0.0
  %v5095 = vmax.f32 %v5027, 0.0
  %v5096 = vmax.f32 %v5078, 0.0
  %v5097 = vmax.f32 %v5080, 0.0
  %v5098 = vmax.f32 %v5029, 0.0
  %v5099 = vmax.f32 %v5031, 0.0
  %v5100 = vmax.f32 %v5082, 0.0
  %v5101 = vmax.f32 %v5084, 0.0
  %v5102 = vpack.c.bf16 %v5090, %v5086
  %v5103 = vpack.c.bf16 %v5091, %v5087
  %v5104 = vpack.c.bf16 %v5092, %v5088
  %v5105 = vpack.c.bf16 %v5093, %v5089
  %v5106 = vpack.c.bf16 %v5098, %v5094
  %v5107 = vpack.c.bf16 %v5099, %v5095
  %v5108 = vpack.c.bf16 %v5100, %v5096
  %v5109 = vpack.c.bf16 %v5101, %v5097
  %5110 = vmatprep.subr.bf16.mxu0 %v5103
  %5111 = vmatpush1.bf16.msra.mxu0 %v5102
  %5112 = vmatprep.subr.bf16.mxu0 %v5107
  %5113 = vmatpush1.bf16.msra.mxu0 %v5106
  %5114 = vmatprep.subr.bf16.mxu0 0
  %5115 = vmatpush1.bf16.msra.mxu0 0
  %5116 = vmatprep.subr.bf16.mxu0 0
  %5117 = vmatpush1.bf16.msra.mxu0 0
  %5118 = vmatprep.subr.bf16.mxu0 0
  %5119 = vmatpush1.bf16.msra.mxu0 0
  %5120 = vmatprep.subr.bf16.mxu0 0
  %5121 = vmatpush1.bf16.msra.mxu0 0
  %5122 = vmatprep.subr.bf16.mxu0 0
  %5123 = vmatpush1.bf16.msra.mxu0 0
  %5124 = vmatprep.subr.bf16.mxu0 0
  %5125 = vmatpush1.bf16.msra.mxu0 0
  %5126 = vmatprep.subr.bf16.mxu0 0
  %5127 = vmatpush1.bf16.msra.mxu0 0
  %5128 = vmatprep.subr.bf16.mxu0 0
  %5129 = vmatpush1.bf16.msra.mxu0 0
  %5130 = vmatprep.subr.bf16.mxu0 0
  %5131 = vmatpush1.bf16.msra.mxu0 0
  %5132 = vmatprep.subr.bf16.mxu0 0
  %5133 = vmatpush1.bf16.msra.mxu0 0
  %5134 = vmatprep.subr.bf16.mxu0 0
  %5135 = vmatpush1.bf16.msra.mxu0 0
  %5136 = vmatprep.subr.bf16.mxu0 0
  %5137 = vmatpush1.bf16.msra.mxu0 0
  %5138 = vmatprep.subr.bf16.mxu0 0
  %5139 = vmatpush1.bf16.msra.mxu0 0
  %5140 = vmatprep.subr.bf16.mxu0 0
  %5141 = vmatpush1.bf16.msra.mxu0 0
  %5142 = vmatprep.mubr.bf16.mxu0 0
  %5143 = vmatmul.mubr.bf16.gmra.mrb[0].mxu0 %v4856
  %v5144 = vpop.f32.mrb[0].mxu0
  %v5145 = vadd.f32 %v4853, %v5144
  %v5146 = vpop.f32.mrb[0].mxu0
  %v5147 = vadd.f32 %v4853, %v5146
  %v5148 = vpop.f32.mrb[0].mxu0
  %v5149 = vpop.f32.mrb[0].mxu0
  %5150 = vdwg.mxu0
  %5151 = vmatprep.subr.bf16.mxu0 %v5105
  %5152 = vmatpush1.bf16.msra.mxu0 %v5104
  %5153 = vmatprep.subr.bf16.mxu0 %v5109
  %5154 = vmatpush1.bf16.msra.mxu0 %v5108
  %5155 = vmatprep.subr.bf16.mxu0 0
  %5156 = vmatpush1.bf16.msra.mxu0 0
  %5157 = vmatprep.subr.bf16.mxu0 0
  %5158 = vmatpush1.bf16.msra.mxu0 0
  %5159 = vmatprep.subr.bf16.mxu0 0
  %5160 = vmatpush1.bf16.msra.mxu0 0
  %5161 = vmatprep.subr.bf16.mxu0 0
  %5162 = vmatpush1.bf16.msra.mxu0 0
  %5163 = vmatprep.subr.bf16.mxu0 0
  %5164 = vmatpush1.bf16.msra.mxu0 0
  %5165 = vmatprep.subr.bf16.mxu0 0
  %5166 = vmatpush1.bf16.msra.mxu0 0
  %5167 = vmatprep.subr.bf16.mxu0 0
  %5168 = vmatpush1.bf16.msra.mxu0 0
  %5169 = vmatprep.subr.bf16.mxu0 0
  %5170 = vmatpush1.bf16.msra.mxu0 0
  %5171 = vmatprep.subr.bf16.mxu0 0
  %5172 = vmatpush1.bf16.msra.mxu0 0
  %5173 = vmatprep.subr.bf16.mxu0 0
  %5174 = vmatpush1.bf16.msra.mxu0 0
  %5175 = vmatprep.subr.bf16.mxu0 0
  %5176 = vmatpush1.bf16.msra.mxu0 0
  %5177 = vmatprep.subr.bf16.mxu0 0
  %5178 = vmatpush1.bf16.msra.mxu0 0
  %5179 = vmatprep.subr.bf16.mxu0 0
  %5180 = vmatpush1.bf16.msra.mxu0 0
  %5181 = vmatprep.subr.bf16.mxu0 0
  %5182 = vmatpush1.bf16.msra.mxu0 0
  %5183 = vmatprep.mubr.bf16.mxu0 0
  %5184 = vmatmul.mubr.bf16.gmra.mrb[0].mxu0 %v4856
  %v5185 = vpop.f32.mrb[0].mxu0
  %v5186 = vadd.f32 %v4853, %v5185
  %v5187 = vpop.f32.mrb[0].mxu0
  %v5188 = vadd.f32 %v4853, %v5187
  %v5189 = vpop.f32.mrb[0].mxu0
  %v5190 = vpop.f32.mrb[0].mxu0
  %5191 = vdwg.mxu0
  %v5192 = vmul.f32 %v4960, -5.5269775
  %v5193 = vmul.f32 %v4961, -5.5269775
  %v5194 = vmul.f32 %v4962, -5.5269775
  %v5195 = vmul.f32 %v4963, -5.5269775
  %v5196 = vadd.f32 %v5145, %v5192
  %v5197 = vadd.f32 %v5147, %v5193
  %v5198 = vadd.f32 %v5186, %v5194
  %v5199 = vadd.f32 %v5188, %v5195
  %v5200 = vmul.f32 %v5196, 2.0
  %v5201 = vmul.f32 %v5197, 2.0
  %v5202 = vmul.f32 %v5198, 2.0
  %v5203 = vmul.f32 %v5199, 2.0
  %v5204 = vadd.f32 %v4952, %v5200
  %v5205 = vadd.f32 %v4953, %v5201
  %v5206 = vadd.f32 %v4954, %v5202
  %v5207 = vadd.f32 %v4955, %v5203
  %v5208 = vmul.f32 %v5196, -0.0999
  %v5209 = vmul.f32 %v5197, -0.0999
  %v5210 = vmul.f32 %v5198, -0.0999
  %v5211 = vmul.f32 %v5199, -0.0999
  %v5212 = vadd.f32 %v4398, %v5208
  %v5213 = vadd.f32 %v4399, %v5209
  %v5214 = vadd.f32 %v4400, %v5210
  %v5215 = vadd.f32 %v4401, %v5211
  %s5216 = scalar_lea.vmem %s1, 224
  %v5217 = vld [vmem:[%s5216] sm:$0xf]
  %v5218 = vld [vmem:[%s5216 + $0x4] sm:$0xf]
  %v5219 = vld [vmem:[%s5216 + $0x8] sm:$0xf]
  %v5220 = vld [vmem:[%s5216 + $0xc] sm:$0xf]
  %v5221 = vpack.c.bf16 %v5212, %v5212
  %v5222 = vpack.c.bf16 %v5213, %v5213
  %v5223 = vpack.c.bf16 %v5214, %v5214
  %v5224 = vpack.c.bf16 %v5215, %v5215
  %v5229 = vunpack.c.l.b16 %v5217
  %v5230 = vunpack.c.l.b16 %v5218
  %v5231 = vunpack.c.l.b16 %v5219
  %v5232 = vunpack.c.l.b16 %v5220
  %v5233 = vpack.c.b16 %v5230, %v5229
  %v5234 = vpack.c.b16 %v5232, %v5231
  %v5236 = vsel %vm40, %v5233, 0
  %v5239 = vsel %vm40, %v5234, 0
  %v5242 = vsel %vm47, %v5221, 0
  %v5245 = vsel %vm47, %v5222, 0
  %v5248 = vsel %vm47, %v5223, 0
  %v5251 = vsel %vm47, %v5224, 0
  %5253 = vmatprep.subr.bf16.mxu0 %v5245
  %5254 = vmatpush1.bf16.msra.mxu0 %v5242
  %5255 = vmatprep.subr.bf16.mxu0 0
  %5256 = vmatpush1.bf16.msra.mxu0 0
  %5257 = vmatprep.subr.bf16.mxu0 0
  %5258 = vmatpush1.bf16.msra.mxu0 0
  %5259 = vmatprep.subr.bf16.mxu0 0
  %5260 = vmatpush1.bf16.msra.mxu0 0
  %5261 = vmatprep.subr.bf16.mxu0 0
  %5262 = vmatpush1.bf16.msra.mxu0 0
  %5263 = vmatprep.subr.bf16.mxu0 0
  %5264 = vmatpush1.bf16.msra.mxu0 0
  %5265 = vmatprep.subr.bf16.mxu0 0
  %5266 = vmatpush1.bf16.msra.mxu0 0
  %5267 = vmatprep.subr.bf16.mxu0 0
  %5268 = vmatpush1.bf16.msra.mxu0 0
  %5269 = vmatprep.subr.bf16.mxu0 0
  %5270 = vmatpush1.bf16.msra.mxu0 0
  %5271 = vmatprep.subr.bf16.mxu0 0
  %5272 = vmatpush1.bf16.msra.mxu0 0
  %5273 = vmatprep.subr.bf16.mxu0 0
  %5274 = vmatpush1.bf16.msra.mxu0 0
  %5275 = vmatprep.subr.bf16.mxu0 0
  %5276 = vmatpush1.bf16.msra.mxu0 0
  %5277 = vmatprep.subr.bf16.mxu0 0
  %5278 = vmatpush1.bf16.msra.mxu0 0
  %5279 = vmatprep.subr.bf16.mxu0 0
  %5280 = vmatpush1.bf16.msra.mxu0 0
  %5281 = vmatprep.subr.bf16.mxu0 0
  %5282 = vmatpush1.bf16.msra.mxu0 0
  %5283 = vmatprep.subr.bf16.mxu0 0
  %5284 = vmatpush1.bf16.msra.mxu0 0
  %5285 = vmatprep.mubr.bf16.mxu0 0
  %5286 = vmatmul.mubr.bf16.gmra.mrb[0].mxu0 %v5236
  %v5287 = vpop.f32.mrb[0].mxu0
  %v5288 = vadd.f32 0.0, %v5287
  %v5289 = vpop.f32.mrb[0].mxu0
  %v5290 = vadd.f32 0.0, %v5289
  %v5291 = vpop.f32.mrb[0].mxu0
  %v5292 = vadd.f32 0.0, %v5291
  %v5293 = vpop.f32.mrb[0].mxu0
  %v5294 = vadd.f32 0.0, %v5293
  %5295 = vmatprep.mubr.bf16.mxu0 0
  %5296 = vmatmul.mubr.bf16.gmra.mrb[0].mxu0 %v5239
  %v5297 = vpop.f32.mrb[0].mxu0
  %v5298 = vadd.f32 0.0, %v5297
  %v5299 = vpop.f32.mrb[0].mxu0
  %v5300 = vadd.f32 0.0, %v5299
  %v5301 = vpop.f32.mrb[0].mxu0
  %v5302 = vadd.f32 0.0, %v5301
  %v5303 = vpop.f32.mrb[0].mxu0
  %v5304 = vadd.f32 0.0, %v5303
  %5305 = vdwg.mxu0
  %5306 = vmatprep.subr.bf16.mxu0 %v5251
  %5307 = vmatpush1.bf16.msra.mxu0 %v5248
  %5308 = vmatprep.subr.bf16.mxu0 0
  %5309 = vmatpush1.bf16.msra.mxu0 0
  %5310 = vmatprep.subr.bf16.mxu0 0
  %5311 = vmatpush1.bf16.msra.mxu0 0
  %5312 = vmatprep.subr.bf16.mxu0 0
  %5313 = vmatpush1.bf16.msra.mxu0 0
  %5314 = vmatprep.subr.bf16.mxu0 0
  %5315 = vmatpush1.bf16.msra.mxu0 0
  %5316 = vmatprep.subr.bf16.mxu0 0
  %5317 = vmatpush1.bf16.msra.mxu0 0
  %5318 = vmatprep.subr.bf16.mxu0 0
  %5319 = vmatpush1.bf16.msra.mxu0 0
  %5320 = vmatprep.subr.bf16.mxu0 0
  %5321 = vmatpush1.bf16.msra.mxu0 0
  %5322 = vmatprep.subr.bf16.mxu0 0
  %5323 = vmatpush1.bf16.msra.mxu0 0
  %5324 = vmatprep.subr.bf16.mxu0 0
  %5325 = vmatpush1.bf16.msra.mxu0 0
  %5326 = vmatprep.subr.bf16.mxu0 0
  %5327 = vmatpush1.bf16.msra.mxu0 0
  %5328 = vmatprep.subr.bf16.mxu0 0
  %5329 = vmatpush1.bf16.msra.mxu0 0
  %5330 = vmatprep.subr.bf16.mxu0 0
  %5331 = vmatpush1.bf16.msra.mxu0 0
  %5332 = vmatprep.subr.bf16.mxu0 0
  %5333 = vmatpush1.bf16.msra.mxu0 0
  %5334 = vmatprep.subr.bf16.mxu0 0
  %5335 = vmatpush1.bf16.msra.mxu0 0
  %5336 = vmatprep.subr.bf16.mxu0 0
  %5337 = vmatpush1.bf16.msra.mxu0 0
  %5338 = vmatprep.mubr.bf16.mxu0 0
  %5339 = vmatmul.mubr.bf16.gmra.mrb[0].mxu0 %v5236
  %v5340 = vpop.f32.mrb[0].mxu0
  %v5341 = vadd.f32 0.0, %v5340
  %v5342 = vpop.f32.mrb[0].mxu0
  %v5343 = vadd.f32 0.0, %v5342
  %v5344 = vpop.f32.mrb[0].mxu0
  %v5345 = vadd.f32 0.0, %v5344
  %v5346 = vpop.f32.mrb[0].mxu0
  %v5347 = vadd.f32 0.0, %v5346
  %5348 = vmatprep.mubr.bf16.mxu0 0
  %5349 = vmatmul.mubr.bf16.gmra.mrb[0].mxu0 %v5239
  %v5350 = vpop.f32.mrb[0].mxu0
  %v5351 = vadd.f32 0.0, %v5350
  %v5352 = vpop.f32.mrb[0].mxu0
  %v5353 = vadd.f32 0.0, %v5352
  %v5354 = vpop.f32.mrb[0].mxu0
  %v5355 = vadd.f32 0.0, %v5354
  %v5356 = vpop.f32.mrb[0].mxu0
  %v5357 = vadd.f32 0.0, %v5356
  %5358 = vdwg.mxu0
  %v5359 = vmax.f32 %v5288, 0.0
  %v5360 = vmax.f32 %v5290, 0.0
  %v5361 = vmax.f32 %v5341, 0.0
  %v5362 = vmax.f32 %v5343, 0.0
  %v5363 = vmax.f32 %v5292, 0.0
  %v5364 = vmax.f32 %v5294, 0.0
  %v5365 = vmax.f32 %v5345, 0.0
  %v5366 = vmax.f32 %v5347, 0.0
  %v5367 = vmax.f32 %v5298, 0.0
  %v5368 = vmax.f32 %v5300, 0.0
  %v5369 = vmax.f32 %v5351, 0.0
  %v5370 = vmax.f32 %v5353, 0.0
  %v5371 = vmax.f32 %v5302, 0.0
  %v5372 = vmax.f32 %v5304, 0.0
  %v5373 = vmax.f32 %v5355, 0.0
  %v5374 = vmax.f32 %v5357, 0.0
  %s5375 = scalar_lea.vmem %s2, 56
  %v5376 = vld [vmem:[%s5375] sm:$0xf]
  %v5377 = vpack.c.bf16 %v5363, %v5359
  %v5378 = vpack.c.bf16 %v5364, %v5360
  %v5379 = vpack.c.bf16 %v5365, %v5361
  %v5380 = vpack.c.bf16 %v5366, %v5362
  %v5381 = vpack.c.bf16 %v5371, %v5367
  %v5382 = vpack.c.bf16 %v5372, %v5368
  %v5383 = vpack.c.bf16 %v5373, %v5369
  %v5384 = vpack.c.bf16 %v5374, %v5370
  %s5385 = scalar_lea.vmem %s3, 112
  %v5386 = vld [vmem:[%s5385] sm:$0xff]
  %5388 = vset.pattern.permute.xlu0 0
  %5389 = vperm.xlu0 %5388, %v5386
  %v5390 = vpop.permute.xlu0 %5389
  %v5393 = vsel %vm197, %v5376, 0
  %5395 = vmatprep.subr.bf16.mxu0 %v5378
  %5396 = vmatpush1.bf16.msra.mxu0 %v5377
  %5397 = vmatprep.subr.bf16.mxu0 %v5382
  %5398 = vmatpush1.bf16.msra.mxu0 %v5381
  %5399 = vmatprep.subr.bf16.mxu0 0
  %5400 = vmatpush1.bf16.msra.mxu0 0
  %5401 = vmatprep.subr.bf16.mxu0 0
  %5402 = vmatpush1.bf16.msra.mxu0 0
  %5403 = vmatprep.subr.bf16.mxu0 0
  %5404 = vmatpush1.bf16.msra.mxu0 0
  %5405 = vmatprep.subr.bf16.mxu0 0
  %5406 = vmatpush1.bf16.msra.mxu0 0
  %5407 = vmatprep.subr.bf16.mxu0 0
  %5408 = vmatpush1.bf16.msra.mxu0 0
  %5409 = vmatprep.subr.bf16.mxu0 0
  %5410 = vmatpush1.bf16.msra.mxu0 0
  %5411 = vmatprep.subr.bf16.mxu0 0
  %5412 = vmatpush1.bf16.msra.mxu0 0
  %5413 = vmatprep.subr.bf16.mxu0 0
  %5414 = vmatpush1.bf16.msra.mxu0 0
  %5415 = vmatprep.subr.bf16.mxu0 0
  %5416 = vmatpush1.bf16.msra.mxu0 0
  %5417 = vmatprep.subr.bf16.mxu0 0
  %5418 = vmatpush1.bf16.msra.mxu0 0
  %5419 = vmatprep.subr.bf16.mxu0 0
  %5420 = vmatpush1.bf16.msra.mxu0 0
  %5421 = vmatprep.subr.bf16.mxu0 0
  %5422 = vmatpush1.bf16.msra.mxu0 0
  %5423 = vmatprep.subr.bf16.mxu0 0
  %5424 = vmatpush1.bf16.msra.mxu0 0
  %5425 = vmatprep.subr.bf16.mxu0 0
  %5426 = vmatpush1.bf16.msra.mxu0 0
  %5427 = vmatprep.mubr.bf16.mxu0 0
  %5428 = vmatmul.mubr.bf16.gmra.mrb[0].mxu0 %v5393
  %v5429 = vpop.f32.mrb[0].mxu0
  %v5430 = vadd.f32 %v5390, %v5429
  %v5431 = vpop.f32.mrb[0].mxu0
  %v5432 = vadd.f32 %v5390, %v5431
  %v5433 = vpop.f32.mrb[0].mxu0
  %v5434 = vpop.f32.mrb[0].mxu0
  %5435 = vdwg.mxu0
  %5436 = vmatprep.subr.bf16.mxu0 %v5380
  %5437 = vmatpush1.bf16.msra.mxu0 %v5379
  %5438 = vmatprep.subr.bf16.mxu0 %v5384
  %5439 = vmatpush1.bf16.msra.mxu0 %v5383
  %5440 = vmatprep.subr.bf16.mxu0 0
  %5441 = vmatpush1.bf16.msra.mxu0 0
  %5442 = vmatprep.subr.bf16.mxu0 0
  %5443 = vmatpush1.bf16.msra.mxu0 0
  %5444 = vmatprep.subr.bf16.mxu0 0
  %5445 = vmatpush1.bf16.msra.mxu0 0
  %5446 = vmatprep.subr.bf16.mxu0 0
  %5447 = vmatpush1.bf16.msra.mxu0 0
  %5448 = vmatprep.subr.bf16.mxu0 0
  %5449 = vmatpush1.bf16.msra.mxu0 0
  %5450 = vmatprep.subr.bf16.mxu0 0
  %5451 = vmatpush1.bf16.msra.mxu0 0
  %5452 = vmatprep.subr.bf16.mxu0 0
  %5453 = vmatpush1.bf16.msra.mxu0 0
  %5454 = vmatprep.subr.bf16.mxu0 0
  %5455 = vmatpush1.bf16.msra.mxu0 0
  %5456 = vmatprep.subr.bf16.mxu0 0
  %5457 = vmatpush1.bf16.msra.mxu0 0
  %5458 = vmatprep.subr.bf16.mxu0 0
  %5459 = vmatpush1.bf16.msra.mxu0 0
  %5460 = vmatprep.subr.bf16.mxu0 0
  %5461 = vmatpush1.bf16.msra.mxu0 0
  %5462 = vmatprep.subr.bf16.mxu0 0
  %5463 = vmatpush1.bf16.msra.mxu0 0
  %5464 = vmatprep.subr.bf16.mxu0 0
  %5465 = vmatpush1.bf16.msra.mxu0 0
  %5466 = vmatprep.subr.bf16.mxu0 0
  %5467 = vmatpush1.bf16.msra.mxu0 0
  %5468 = vmatprep.mubr.bf16.mxu0 0
  %5469 = vmatmul.mubr.bf16.gmra.mrb[0].mxu0 %v5393
  %v5470 = vpop.f32.mrb[0].mxu0
  %v5471 = vadd.f32 %v5390, %v5470
  %v5472 = vpop.f32.mrb[0].mxu0
  %v5473 = vadd.f32 %v5390, %v5472
  %v5474 = vpop.f32.mrb[0].mxu0
  %v5475 = vpop.f32.mrb[0].mxu0
  %5476 = vdwg.mxu0
  %v5477 = vmul.f32 %v5212, -5.029975
  %v5478 = vmul.f32 %v5213, -5.029975
  %v5479 = vmul.f32 %v5214, -5.029975
  %v5480 = vmul.f32 %v5215, -5.029975
  %v5481 = vadd.f32 %v5430, %v5477
  %v5482 = vadd.f32 %v5432, %v5478
  %v5483 = vadd.f32 %v5471, %v5479
  %v5484 = vadd.f32 %v5473, %v5480
  %v5485 = vadd.f32 %v5204, %v5481
  %v5486 = vadd.f32 %v5205, %v5482
  %v5487 = vadd.f32 %v5206, %v5483
  %v5488 = vadd.f32 %v5207, %v5484
  %v5489 = vmul.f32 %v5485, -0.01665
  %v5490 = vmul.f32 %v5486, -0.01665
  %v5491 = vmul.f32 %v5487, -0.01665
  %v5492 = vmul.f32 %v5488, -0.01665
  %v5493 = vadd.f32 %v4398, %v5489
  %v5494 = vadd.f32 %v4399, %v5490
  %v5495 = vadd.f32 %v4400, %v5491
  %v5496 = vadd.f32 %v4401, %v5492
  %s5497 = scalar_lea.vmem %s1, 240
  %v5498 = vld [vmem:[%s5497] sm:$0xf]
  %v5499 = vld [vmem:[%s5497 + $0x4] sm:$0xf]
  %v5500 = vld [vmem:[%s5497 + $0x8] sm:$0xf]
  %v5501 = vld [vmem:[%s5497 + $0xc] sm:$0xf]
  %v5502 = vpack.c.bf16 %v5493, %v5493
  %v5503 = vpack.c.bf16 %v5494, %v5494
  %v5504 = vpack.c.bf16 %v5495, %v5495
  %v5505 = vpack.c.bf16 %v5496, %v5496
  %v5510 = vunpack.c.l.b16 %v5498
  %v5511 = vunpack.c.l.b16 %v5499
  %v5512 = vunpack.c.l.b16 %v5500
  %v5513 = vunpack.c.l.b16 %v5501
  %v5514 = vpack.c.b16 %v5511, %v5510
  %v5515 = vpack.c.b16 %v5513, %v5512
  %v5517 = vsel %vm40, %v5514, 0
  %v5520 = vsel %vm40, %v5515, 0
  %v5523 = vsel %vm47, %v5502, 0
  %v5526 = vsel %vm47, %v5503, 0
  %v5529 = vsel %vm47, %v5504, 0
  %v5532 = vsel %vm47, %v5505, 0
  %5534 = vmatprep.subr.bf16.mxu0 %v5526
  %5535 = vmatpush1.bf16.msra.mxu0 %v5523
  %5536 = vmatprep.subr.bf16.mxu0 0
  %5537 = vmatpush1.bf16.msra.mxu0 0
  %5538 = vmatprep.subr.bf16.mxu0 0
  %5539 = vmatpush1.bf16.msra.mxu0 0
  %5540 = vmatprep.subr.bf16.mxu0 0
  %5541 = vmatpush1.bf16.msra.mxu0 0
  %5542 = vmatprep.subr.bf16.mxu0 0
  %5543 = vmatpush1.bf16.msra.mxu0 0
  %5544 = vmatprep.subr.bf16.mxu0 0
  %5545 = vmatpush1.bf16.msra.mxu0 0
  %5546 = vmatprep.subr.bf16.mxu0 0
  %5547 = vmatpush1.bf16.msra.mxu0 0
  %5548 = vmatprep.subr.bf16.mxu0 0
  %5549 = vmatpush1.bf16.msra.mxu0 0
  %5550 = vmatprep.subr.bf16.mxu0 0
  %5551 = vmatpush1.bf16.msra.mxu0 0
  %5552 = vmatprep.subr.bf16.mxu0 0
  %5553 = vmatpush1.bf16.msra.mxu0 0
  %5554 = vmatprep.subr.bf16.mxu0 0
  %5555 = vmatpush1.bf16.msra.mxu0 0
  %5556 = vmatprep.subr.bf16.mxu0 0
  %5557 = vmatpush1.bf16.msra.mxu0 0
  %5558 = vmatprep.subr.bf16.mxu0 0
  %5559 = vmatpush1.bf16.msra.mxu0 0
  %5560 = vmatprep.subr.bf16.mxu0 0
  %5561 = vmatpush1.bf16.msra.mxu0 0
  %5562 = vmatprep.subr.bf16.mxu0 0
  %5563 = vmatpush1.bf16.msra.mxu0 0
  %5564 = vmatprep.subr.bf16.mxu0 0
  %5565 = vmatpush1.bf16.msra.mxu0 0
  %5566 = vmatprep.mubr.bf16.mxu0 0
  %5567 = vmatmul.mubr.bf16.gmra.mrb[0].mxu0 %v5517
  %v5568 = vpop.f32.mrb[0].mxu0
  %v5569 = vadd.f32 0.0, %v5568
  %v5570 = vpop.f32.mrb[0].mxu0
  %v5571 = vadd.f32 0.0, %v5570
  %v5572 = vpop.f32.mrb[0].mxu0
  %v5573 = vadd.f32 0.0, %v5572
  %v5574 = vpop.f32.mrb[0].mxu0
  %v5575 = vadd.f32 0.0, %v5574
  %5576 = vmatprep.mubr.bf16.mxu0 0
  %5577 = vmatmul.mubr.bf16.gmra.mrb[0].mxu0 %v5520
  %v5578 = vpop.f32.mrb[0].mxu0
  %v5579 = vadd.f32 0.0, %v5578
  %v5580 = vpop.f32.mrb[0].mxu0
  %v5581 = vadd.f32 0.0, %v5580
  %v5582 = vpop.f32.mrb[0].mxu0
  %v5583 = vadd.f32 0.0, %v5582
  %v5584 = vpop.f32.mrb[0].mxu0
  %v5585 = vadd.f32 0.0, %v5584
  %5586 = vdwg.mxu0
  %5587 = vmatprep.subr.bf16.mxu0 %v5532
  %5588 = vmatpush1.bf16.msra.mxu0 %v5529
  %5589 = vmatprep.subr.bf16.mxu0 0
  %5590 = vmatpush1.bf16.msra.mxu0 0
  %5591 = vmatprep.subr.bf16.mxu0 0
  %5592 = vmatpush1.bf16.msra.mxu0 0
  %5593 = vmatprep.subr.bf16.mxu0 0
  %5594 = vmatpush1.bf16.msra.mxu0 0
  %5595 = vmatprep.subr.bf16.mxu0 0
  %5596 = vmatpush1.bf16.msra.mxu0 0
  %5597 = vmatprep.subr.bf16.mxu0 0
  %5598 = vmatpush1.bf16.msra.mxu0 0
  %5599 = vmatprep.subr.bf16.mxu0 0
  %5600 = vmatpush1.bf16.msra.mxu0 0
  %5601 = vmatprep.subr.bf16.mxu0 0
  %5602 = vmatpush1.bf16.msra.mxu0 0
  %5603 = vmatprep.subr.bf16.mxu0 0
  %5604 = vmatpush1.bf16.msra.mxu0 0
  %5605 = vmatprep.subr.bf16.mxu0 0
  %5606 = vmatpush1.bf16.msra.mxu0 0
  %5607 = vmatprep.subr.bf16.mxu0 0
  %5608 = vmatpush1.bf16.msra.mxu0 0
  %5609 = vmatprep.subr.bf16.mxu0 0
  %5610 = vmatpush1.bf16.msra.mxu0 0
  %5611 = vmatprep.subr.bf16.mxu0 0
  %5612 = vmatpush1.bf16.msra.mxu0 0
  %5613 = vmatprep.subr.bf16.mxu0 0
  %5614 = vmatpush1.bf16.msra.mxu0 0
  %5615 = vmatprep.subr.bf16.mxu0 0
  %5616 = vmatpush1.bf16.msra.mxu0 0
  %5617 = vmatprep.subr.bf16.mxu0 0
  %5618 = vmatpush1.bf16.msra.mxu0 0
  %5619 = vmatprep.mubr.bf16.mxu0 0
  %5620 = vmatmul.mubr.bf16.gmra.mrb[0].mxu0 %v5517
  %v5621 = vpop.f32.mrb[0].mxu0
  %v5622 = vadd.f32 0.0, %v5621
  %v5623 = vpop.f32.mrb[0].mxu0
  %v5624 = vadd.f32 0.0, %v5623
  %v5625 = vpop.f32.mrb[0].mxu0
  %v5626 = vadd.f32 0.0, %v5625
  %v5627 = vpop.f32.mrb[0].mxu0
  %v5628 = vadd.f32 0.0, %v5627
  %5629 = vmatprep.mubr.bf16.mxu0 0
  %5630 = vmatmul.mubr.bf16.gmra.mrb[0].mxu0 %v5520
  %v5631 = vpop.f32.mrb[0].mxu0
  %v5632 = vadd.f32 0.0, %v5631
  %v5633 = vpop.f32.mrb[0].mxu0
  %v5634 = vadd.f32 0.0, %v5633
  %v5635 = vpop.f32.mrb[0].mxu0
  %v5636 = vadd.f32 0.0, %v5635
  %v5637 = vpop.f32.mrb[0].mxu0
  %v5638 = vadd.f32 0.0, %v5637
  %5639 = vdwg.mxu0
  %v5640 = vmax.f32 %v5569, 0.0
  %v5641 = vmax.f32 %v5571, 0.0
  %v5642 = vmax.f32 %v5622, 0.0
  %v5643 = vmax.f32 %v5624, 0.0
  %v5644 = vmax.f32 %v5573, 0.0
  %v5645 = vmax.f32 %v5575, 0.0
  %v5646 = vmax.f32 %v5626, 0.0
  %v5647 = vmax.f32 %v5628, 0.0
  %v5648 = vmax.f32 %v5579, 0.0
  %v5649 = vmax.f32 %v5581, 0.0
  %v5650 = vmax.f32 %v5632, 0.0
  %v5651 = vmax.f32 %v5634, 0.0
  %v5652 = vmax.f32 %v5583, 0.0
  %v5653 = vmax.f32 %v5585, 0.0
  %v5654 = vmax.f32 %v5636, 0.0
  %v5655 = vmax.f32 %v5638, 0.0
  %s5656 = scalar_lea.vmem %s2, 60
  %v5657 = vld [vmem:[%s5656] sm:$0xf]
  %v5658 = vpack.c.bf16 %v5644, %v5640
  %v5659 = vpack.c.bf16 %v5645, %v5641
  %v5660 = vpack.c.bf16 %v5646, %v5642
  %v5661 = vpack.c.bf16 %v5647, %v5643
  %v5662 = vpack.c.bf16 %v5652, %v5648
  %v5663 = vpack.c.bf16 %v5653, %v5649
  %v5664 = vpack.c.bf16 %v5654, %v5650
  %v5665 = vpack.c.bf16 %v5655, %v5651
  %s5666 = scalar_lea.vmem %s3, 120
  %v5667 = vld [vmem:[%s5666] sm:$0xff]
  %5669 = vset.pattern.permute.xlu0 0
  %5670 = vperm.xlu0 %5669, %v5667
  %v5671 = vpop.permute.xlu0 %5670
  %v5674 = vsel %vm197, %v5657, 0
  %5676 = vmatprep.subr.bf16.mxu0 %v5659
  %5677 = vmatpush1.bf16.msra.mxu0 %v5658
  %5678 = vmatprep.subr.bf16.mxu0 %v5663
  %5679 = vmatpush1.bf16.msra.mxu0 %v5662
  %5680 = vmatprep.subr.bf16.mxu0 0
  %5681 = vmatpush1.bf16.msra.mxu0 0
  %5682 = vmatprep.subr.bf16.mxu0 0
  %5683 = vmatpush1.bf16.msra.mxu0 0
  %5684 = vmatprep.subr.bf16.mxu0 0
  %5685 = vmatpush1.bf16.msra.mxu0 0
  %5686 = vmatprep.subr.bf16.mxu0 0
  %5687 = vmatpush1.bf16.msra.mxu0 0
  %5688 = vmatprep.subr.bf16.mxu0 0
  %5689 = vmatpush1.bf16.msra.mxu0 0
  %5690 = vmatprep.subr.bf16.mxu0 0
  %5691 = vmatpush1.bf16.msra.mxu0 0
  %5692 = vmatprep.subr.bf16.mxu0 0
  %5693 = vmatpush1.bf16.msra.mxu0 0
  %5694 = vmatprep.subr.bf16.mxu0 0
  %5695 = vmatpush1.bf16.msra.mxu0 0
  %5696 = vmatprep.subr.bf16.mxu0 0
  %5697 = vmatpush1.bf16.msra.mxu0 0
  %5698 = vmatprep.subr.bf16.mxu0 0
  %5699 = vmatpush1.bf16.msra.mxu0 0
  %5700 = vmatprep.subr.bf16.mxu0 0
  %5701 = vmatpush1.bf16.msra.mxu0 0
  %5702 = vmatprep.subr.bf16.mxu0 0
  %5703 = vmatpush1.bf16.msra.mxu0 0
  %5704 = vmatprep.subr.bf16.mxu0 0
  %5705 = vmatpush1.bf16.msra.mxu0 0
  %5706 = vmatprep.subr.bf16.mxu0 0
  %5707 = vmatpush1.bf16.msra.mxu0 0
  %5708 = vmatprep.mubr.bf16.mxu0 0
  %5709 = vmatmul.mubr.bf16.gmra.mrb[0].mxu0 %v5674
  %v5710 = vpop.f32.mrb[0].mxu0
  %v5711 = vadd.f32 %v5671, %v5710
  %v5712 = vpop.f32.mrb[0].mxu0
  %v5713 = vadd.f32 %v5671, %v5712
  %v5714 = vpop.f32.mrb[0].mxu0
  %v5715 = vpop.f32.mrb[0].mxu0
  %5716 = vdwg.mxu0
  %5717 = vmatprep.subr.bf16.mxu0 %v5661
  %5718 = vmatpush1.bf16.msra.mxu0 %v5660
  %5719 = vmatprep.subr.bf16.mxu0 %v5665
  %5720 = vmatpush1.bf16.msra.mxu0 %v5664
  %5721 = vmatprep.subr.bf16.mxu0 0
  %5722 = vmatpush1.bf16.msra.mxu0 0
  %5723 = vmatprep.subr.bf16.mxu0 0
  %5724 = vmatpush1.bf16.msra.mxu0 0
  %5725 = vmatprep.subr.bf16.mxu0 0
  %5726 = vmatpush1.bf16.msra.mxu0 0
  %5727 = vmatprep.subr.bf16.mxu0 0
  %5728 = vmatpush1.bf16.msra.mxu0 0
  %5729 = vmatprep.subr.bf16.mxu0 0
  %5730 = vmatpush1.bf16.msra.mxu0 0
  %5731 = vmatprep.subr.bf16.mxu0 0
  %5732 = vmatpush1.bf16.msra.mxu0 0
  %5733 = vmatprep.subr.bf16.mxu0 0
  %5734 = vmatpush1.bf16.msra.mxu0 0
  %5735 = vmatprep.subr.bf16.mxu0 0
  %5736 = vmatpush1.bf16.msra.mxu0 0
  %5737 = vmatprep.subr.bf16.mxu0 0
  %5738 = vmatpush1.bf16.msra.mxu0 0
  %5739 = vmatprep.subr.bf16.mxu0 0
  %5740 = vmatpush1.bf16.msra.mxu0 0
  %5741 = vmatprep.subr.bf16.mxu0 0
  %5742 = vmatpush1.bf16.msra.mxu0 0
  %5743 = vmatprep.subr.bf16.mxu0 0
  %5744 = vmatpush1.bf16.msra.mxu0 0
  %5745 = vmatprep.subr.bf16.mxu0 0
  %5746 = vmatpush1.bf16.msra.mxu0 0
  %5747 = vmatprep.subr.bf16.mxu0 0
  %5748 = vmatpush1.bf16.msra.mxu0 0
  %5749 = vmatprep.mubr.bf16.mxu0 0
  %5750 = vmatmul.mubr.bf16.gmra.mrb[0].mxu0 %v5674
  %v5751 = vpop.f32.mrb[0].mxu0
  %v5752 = vadd.f32 %v5671, %v5751
  %v5753 = vpop.f32.mrb[0].mxu0
  %v5754 = vadd.f32 %v5671, %v5753
  %v5755 = vpop.f32.mrb[0].mxu0
  %v5756 = vpop.f32.mrb[0].mxu0
  %5757 = vdwg.mxu0
  %v5758 = vmul.f32 %v5493, -5.029975
  %v5759 = vmul.f32 %v5494, -5.029975
  %v5760 = vmul.f32 %v5495, -5.029975
  %v5761 = vmul.f32 %v5496, -5.029975
  %v5762 = vadd.f32 %v5711, %v5758
  %v5763 = vadd.f32 %v5713, %v5759
  %v5764 = vadd.f32 %v5752, %v5760
  %v5765 = vadd.f32 %v5754, %v5761
  %v5766 = vmul.f32 %v5762, -0.04995
  %v5767 = vmul.f32 %v5763, -0.04995
  %v5768 = vmul.f32 %v5764, -0.04995
  %v5769 = vmul.f32 %v5765, -0.04995
  %v5770 = vadd.f32 %v5493, %v5766
  %v5771 = vadd.f32 %v5494, %v5767
  %v5772 = vadd.f32 %v5495, %v5768
  %v5773 = vadd.f32 %v5496, %v5769
  %s5774 = scalar_lea.vmem %s1, 256
  %v5775 = vld [vmem:[%s5774] sm:$0xf]
  %v5776 = vld [vmem:[%s5774 + $0x4] sm:$0xf]
  %v5777 = vld [vmem:[%s5774 + $0x8] sm:$0xf]
  %v5778 = vld [vmem:[%s5774 + $0xc] sm:$0xf]
  %v5779 = vpack.c.bf16 %v5770, %v5770
  %v5780 = vpack.c.bf16 %v5771, %v5771
  %v5781 = vpack.c.bf16 %v5772, %v5772
  %v5782 = vpack.c.bf16 %v5773, %v5773
  %v5787 = vunpack.c.l.b16 %v5775
  %v5788 = vunpack.c.l.b16 %v5776
  %v5789 = vunpack.c.l.b16 %v5777
  %v5790 = vunpack.c.l.b16 %v5778
  %v5791 = vpack.c.b16 %v5788, %v5787
  %v5792 = vpack.c.b16 %v5790, %v5789
  %v5794 = vsel %vm40, %v5791, 0
  %v5797 = vsel %vm40, %v5792, 0
  %v5800 = vsel %vm47, %v5779, 0
  %v5803 = vsel %vm47, %v5780, 0
  %v5806 = vsel %vm47, %v5781, 0
  %v5809 = vsel %vm47, %v5782, 0
  %5811 = vmatprep.subr.bf16.mxu0 %v5803
  %5812 = vmatpush1.bf16.msra.mxu0 %v5800
  %5813 = vmatprep.subr.bf16.mxu0 0
  %5814 = vmatpush1.bf16.msra.mxu0 0
  %5815 = vmatprep.subr.bf16.mxu0 0
  %5816 = vmatpush1.bf16.msra.mxu0 0
  %5817 = vmatprep.subr.bf16.mxu0 0
  %5818 = vmatpush1.bf16.msra.mxu0 0
  %5819 = vmatprep.subr.bf16.mxu0 0
  %5820 = vmatpush1.bf16.msra.mxu0 0
  %5821 = vmatprep.subr.bf16.mxu0 0
  %5822 = vmatpush1.bf16.msra.mxu0 0
  %5823 = vmatprep.subr.bf16.mxu0 0
  %5824 = vmatpush1.bf16.msra.mxu0 0
  %5825 = vmatprep.subr.bf16.mxu0 0
  %5826 = vmatpush1.bf16.msra.mxu0 0
  %5827 = vmatprep.subr.bf16.mxu0 0
  %5828 = vmatpush1.bf16.msra.mxu0 0
  %5829 = vmatprep.subr.bf16.mxu0 0
  %5830 = vmatpush1.bf16.msra.mxu0 0
  %5831 = vmatprep.subr.bf16.mxu0 0
  %5832 = vmatpush1.bf16.msra.mxu0 0
  %5833 = vmatprep.subr.bf16.mxu0 0
  %5834 = vmatpush1.bf16.msra.mxu0 0
  %5835 = vmatprep.subr.bf16.mxu0 0
  %5836 = vmatpush1.bf16.msra.mxu0 0
  %5837 = vmatprep.subr.bf16.mxu0 0
  %5838 = vmatpush1.bf16.msra.mxu0 0
  %5839 = vmatprep.subr.bf16.mxu0 0
  %5840 = vmatpush1.bf16.msra.mxu0 0
  %5841 = vmatprep.subr.bf16.mxu0 0
  %5842 = vmatpush1.bf16.msra.mxu0 0
  %5843 = vmatprep.mubr.bf16.mxu0 0
  %5844 = vmatmul.mubr.bf16.gmra.mrb[0].mxu0 %v5794
  %v5845 = vpop.f32.mrb[0].mxu0
  %v5846 = vadd.f32 0.0, %v5845
  %v5847 = vpop.f32.mrb[0].mxu0
  %v5848 = vadd.f32 0.0, %v5847
  %v5849 = vpop.f32.mrb[0].mxu0
  %v5850 = vadd.f32 0.0, %v5849
  %v5851 = vpop.f32.mrb[0].mxu0
  %v5852 = vadd.f32 0.0, %v5851
  %5853 = vmatprep.mubr.bf16.mxu0 0
  %5854 = vmatmul.mubr.bf16.gmra.mrb[0].mxu0 %v5797
  %v5855 = vpop.f32.mrb[0].mxu0
  %v5856 = vadd.f32 0.0, %v5855
  %v5857 = vpop.f32.mrb[0].mxu0
  %v5858 = vadd.f32 0.0, %v5857
  %v5859 = vpop.f32.mrb[0].mxu0
  %v5860 = vadd.f32 0.0, %v5859
  %v5861 = vpop.f32.mrb[0].mxu0
  %v5862 = vadd.f32 0.0, %v5861
  %5863 = vdwg.mxu0
  %5864 = vmatprep.subr.bf16.mxu0 %v5809
  %5865 = vmatpush1.bf16.msra.mxu0 %v5806
  %5866 = vmatprep.subr.bf16.mxu0 0
  %5867 = vmatpush1.bf16.msra.mxu0 0
  %5868 = vmatprep.subr.bf16.mxu0 0
  %5869 = vmatpush1.bf16.msra.mxu0 0
  %5870 = vmatprep.subr.bf16.mxu0 0
  %5871 = vmatpush1.bf16.msra.mxu0 0
  %5872 = vmatprep.subr.bf16.mxu0 0
  %5873 = vmatpush1.bf16.msra.mxu0 0
  %5874 = vmatprep.subr.bf16.mxu0 0
  %5875 = vmatpush1.bf16.msra.mxu0 0
  %5876 = vmatprep.subr.bf16.mxu0 0
  %5877 = vmatpush1.bf16.msra.mxu0 0
  %5878 = vmatprep.subr.bf16.mxu0 0
  %5879 = vmatpush1.bf16.msra.mxu0 0
  %5880 = vmatprep.subr.bf16.mxu0 0
  %5881 = vmatpush1.bf16.msra.mxu0 0
  %5882 = vmatprep.subr.bf16.mxu0 0
  %5883 = vmatpush1.bf16.msra.mxu0 0
  %5884 = vmatprep.subr.bf16.mxu0 0
  %5885 = vmatpush1.bf16.msra.mxu0 0
  %5886 = vmatprep.subr.bf16.mxu0 0
  %5887 = vmatpush1.bf16.msra.mxu0 0
  %5888 = vmatprep.subr.bf16.mxu0 0
  %5889 = vmatpush1.bf16.msra.mxu0 0
  %5890 = vmatprep.subr.bf16.mxu0 0
  %5891 = vmatpush1.bf16.msra.mxu0 0
  %5892 = vmatprep.subr.bf16.mxu0 0
  %5893 = vmatpush1.bf16.msra.mxu0 0
  %5894 = vmatprep.subr.bf16.mxu0 0
  %5895 = vmatpush1.bf16.msra.mxu0 0
  %5896 = vmatprep.mubr.bf16.mxu0 0
  %5897 = vmatmul.mubr.bf16.gmra.mrb[0].mxu0 %v5794
  %v5898 = vpop.f32.mrb[0].mxu0
  %v5899 = vadd.f32 0.0, %v5898
  %v5900 = vpop.f32.mrb[0].mxu0
  %v5901 = vadd.f32 0.0, %v5900
  %v5902 = vpop.f32.mrb[0].mxu0
  %v5903 = vadd.f32 0.0, %v5902
  %v5904 = vpop.f32.mrb[0].mxu0
  %v5905 = vadd.f32 0.0, %v5904
  %5906 = vmatprep.mubr.bf16.mxu0 0
  %5907 = vmatmul.mubr.bf16.gmra.mrb[0].mxu0 %v5797
  %v5908 = vpop.f32.mrb[0].mxu0
  %v5909 = vadd.f32 0.0, %v5908
  %v5910 = vpop.f32.mrb[0].mxu0
  %v5911 = vadd.f32 0.0, %v5910
  %v5912 = vpop.f32.mrb[0].mxu0
  %v5913 = vadd.f32 0.0, %v5912
  %v5914 = vpop.f32.mrb[0].mxu0
  %v5915 = vadd.f32 0.0, %v5914
  %5916 = vdwg.mxu0
  %v5917 = vmax.f32 %v5846, 0.0
  %v5918 = vmax.f32 %v5848, 0.0
  %v5919 = vmax.f32 %v5899, 0.0
  %v5920 = vmax.f32 %v5901, 0.0
  %v5921 = vmax.f32 %v5850, 0.0
  %v5922 = vmax.f32 %v5852, 0.0
  %v5923 = vmax.f32 %v5903, 0.0
  %v5924 = vmax.f32 %v5905, 0.0
  %v5925 = vmax.f32 %v5856, 0.0
  %v5926 = vmax.f32 %v5858, 0.0
  %v5927 = vmax.f32 %v5909, 0.0
  %v5928 = vmax.f32 %v5911, 0.0
  %v5929 = vmax.f32 %v5860, 0.0
  %v5930 = vmax.f32 %v5862, 0.0
  %v5931 = vmax.f32 %v5913, 0.0
  %v5932 = vmax.f32 %v5915, 0.0
  %s5933 = scalar_lea.vmem %s2, 64
  %v5934 = vld [vmem:[%s5933] sm:$0xf]
  %v5935 = vpack.c.bf16 %v5921, %v5917
  %v5936 = vpack.c.bf16 %v5922, %v5918
  %v5937 = vpack.c.bf16 %v5923, %v5919
  %v5938 = vpack.c.bf16 %v5924, %v5920
  %v5939 = vpack.c.bf16 %v5929, %v5925
  %v5940 = vpack.c.bf16 %v5930, %v5926
  %v5941 = vpack.c.bf16 %v5931, %v5927
  %v5942 = vpack.c.bf16 %v5932, %v5928
  %s5943 = scalar_lea.vmem %s3, 128
  %v5944 = vld [vmem:[%s5943] sm:$0xff]
  %5946 = vset.pattern.permute.xlu0 0
  %5947 = vperm.xlu0 %5946, %v5944
  %v5948 = vpop.permute.xlu0 %5947
  %v5951 = vsel %vm197, %v5934, 0
  %5953 = vmatprep.subr.bf16.mxu0 %v5936
  %5954 = vmatpush1.bf16.msra.mxu0 %v5935
  %5955 = vmatprep.subr.bf16.mxu0 %v5940
  %5956 = vmatpush1.bf16.msra.mxu0 %v5939
  %5957 = vmatprep.subr.bf16.mxu0 0
  %5958 = vmatpush1.bf16.msra.mxu0 0
  %5959 = vmatprep.subr.bf16.mxu0 0
  %5960 = vmatpush1.bf16.msra.mxu0 0
  %5961 = vmatprep.subr.bf16.mxu0 0
  %5962 = vmatpush1.bf16.msra.mxu0 0
  %5963 = vmatprep.subr.bf16.mxu0 0
  %5964 = vmatpush1.bf16.msra.mxu0 0
  %5965 = vmatprep.subr.bf16.mxu0 0
  %5966 = vmatpush1.bf16.msra.mxu0 0
  %5967 = vmatprep.subr.bf16.mxu0 0
  %5968 = vmatpush1.bf16.msra.mxu0 0
  %5969 = vmatprep.subr.bf16.mxu0 0
  %5970 = vmatpush1.bf16.msra.mxu0 0
  %5971 = vmatprep.subr.bf16.mxu0 0
  %5972 = vmatpush1.bf16.msra.mxu0 0
  %5973 = vmatprep.subr.bf16.mxu0 0
  %5974 = vmatpush1.bf16.msra.mxu0 0
  %5975 = vmatprep.subr.bf16.mxu0 0
  %5976 = vmatpush1.bf16.msra.mxu0 0
  %5977 = vmatprep.subr.bf16.mxu0 0
  %5978 = vmatpush1.bf16.msra.mxu0 0
  %5979 = vmatprep.subr.bf16.mxu0 0
  %5980 = vmatpush1.bf16.msra.mxu0 0
  %5981 = vmatprep.subr.bf16.mxu0 0
  %5982 = vmatpush1.bf16.msra.mxu0 0
  %5983 = vmatprep.subr.bf16.mxu0 0
  %5984 = vmatpush1.bf16.msra.mxu0 0
  %5985 = vmatprep.mubr.bf16.mxu0 0
  %5986 = vmatmul.mubr.bf16.gmra.mrb[0].mxu0 %v5951
  %v5987 = vpop.f32.mrb[0].mxu0
  %v5988 = vadd.f32 %v5948, %v5987
  %v5989 = vpop.f32.mrb[0].mxu0
  %v5990 = vadd.f32 %v5948, %v5989
  %v5991 = vpop.f32.mrb[0].mxu0
  %v5992 = vpop.f32.mrb[0].mxu0
  %5993 = vdwg.mxu0
  %5994 = vmatprep.subr.bf16.mxu0 %v5938
  %5995 = vmatpush1.bf16.msra.mxu0 %v5937
  %5996 = vmatprep.subr.bf16.mxu0 %v5942
  %5997 = vmatpush1.bf16.msra.mxu0 %v5941
  %5998 = vmatprep.subr.bf16.mxu0 0
  %5999 = vmatpush1.bf16.msra.mxu0 0
  %6000 = vmatprep.subr.bf16.mxu0 0
  %6001 = vmatpush1.bf16.msra.mxu0 0
  %6002 = vmatprep.subr.bf16.mxu0 0
  %6003 = vmatpush1.bf16.msra.mxu0 0
  %6004 = vmatprep.subr.bf16.mxu0 0
  %6005 = vmatpush1.bf16.msra.mxu0 0
  %6006 = vmatprep.subr.bf16.mxu0 0
  %6007 = vmatpush1.bf16.msra.mxu0 0
  %6008 = vmatprep.subr.bf16.mxu0 0
  %6009 = vmatpush1.bf16.msra.mxu0 0
  %6010 = vmatprep.subr.bf16.mxu0 0
  %6011 = vmatpush1.bf16.msra.mxu0 0
  %6012 = vmatprep.subr.bf16.mxu0 0
  %6013 = vmatpush1.bf16.msra.mxu0 0
  %6014 = vmatprep.subr.bf16.mxu0 0
  %6015 = vmatpush1.bf16.msra.mxu0 0
  %6016 = vmatprep.subr.bf16.mxu0 0
  %6017 = vmatpush1.bf16.msra.mxu0 0
  %6018 = vmatprep.subr.bf16.mxu0 0
  %6019 = vmatpush1.bf16.msra.mxu0 0
  %6020 = vmatprep.subr.bf16.mxu0 0
  %6021 = vmatpush1.bf16.msra.mxu0 0
  %6022 = vmatprep.subr.bf16.mxu0 0
  %6023 = vmatpush1.bf16.msra.mxu0 0
  %6024 = vmatprep.subr.bf16.mxu0 0
  %6025 = vmatpush1.bf16.msra.mxu0 0
  %6026 = vmatprep.mubr.bf16.mxu0 0
  %6027 = vmatmul.mubr.bf16.gmra.mrb[0].mxu0 %v5951
  %v6028 = vpop.f32.mrb[0].mxu0
  %v6029 = vadd.f32 %v5948, %v6028
  %v6030 = vpop.f32.mrb[0].mxu0
  %v6031 = vadd.f32 %v5948, %v6030
  %v6032 = vpop.f32.mrb[0].mxu0
  %v6033 = vpop.f32.mrb[0].mxu0
  %6034 = vdwg.mxu0
  %v6035 = vmul.f32 %v5770, -4.5329723
  %v6036 = vmul.f32 %v5771, -4.5329723
  %v6037 = vmul.f32 %v5772, -4.5329723
  %v6038 = vmul.f32 %v5773, -4.5329723
  %v6039 = vadd.f32 %v5988, %v6035
  %v6040 = vadd.f32 %v5990, %v6036
  %v6041 = vadd.f32 %v6029, %v6037
  %v6042 = vadd.f32 %v6031, %v6038
  %v6043 = vmul.f32 %v6039, 2.0
  %v6044 = vmul.f32 %v6040, 2.0
  %v6045 = vmul.f32 %v6041, 2.0
  %v6046 = vmul.f32 %v6042, 2.0
  %v6047 = vadd.f32 %v5762, %v6043
  %v6048 = vadd.f32 %v5763, %v6044
  %v6049 = vadd.f32 %v5764, %v6045
  %v6050 = vadd.f32 %v5765, %v6046
  %v6051 = vmul.f32 %v6039, -0.04995
  %v6052 = vmul.f32 %v6040, -0.04995
  %v6053 = vmul.f32 %v6041, -0.04995
  %v6054 = vmul.f32 %v6042, -0.04995
  %v6055 = vadd.f32 %v5493, %v6051
  %v6056 = vadd.f32 %v5494, %v6052
  %v6057 = vadd.f32 %v5495, %v6053
  %v6058 = vadd.f32 %v5496, %v6054
  %v6059 = vpack.c.bf16 %v6055, %v6055
  %v6060 = vpack.c.bf16 %v6056, %v6056
  %v6061 = vpack.c.bf16 %v6057, %v6057
  %v6062 = vpack.c.bf16 %v6058, %v6058
  %v6064 = vsel %vm47, %v6059, 0
  %v6067 = vsel %vm47, %v6060, 0
  %v6070 = vsel %vm47, %v6061, 0
  %v6073 = vsel %vm47, %v6062, 0
  %6075 = vmatprep.subr.bf16.mxu0 %v6067
  %6076 = vmatpush1.bf16.msra.mxu0 %v6064
  %6077 = vmatprep.subr.bf16.mxu0 0
  %6078 = vmatpush1.bf16.msra.mxu0 0
  %6079 = vmatprep.subr.bf16.mxu0 0
  %6080 = vmatpush1.bf16.msra.mxu0 0
  %6081 = vmatprep.subr.bf16.mxu0 0
  %6082 = vmatpush1.bf16.msra.mxu0 0
  %6083 = vmatprep.subr.bf16.mxu0 0
  %6084 = vmatpush1.bf16.msra.mxu0 0
  %6085 = vmatprep.subr.bf16.mxu0 0
  %6086 = vmatpush1.bf16.msra.mxu0 0
  %6087 = vmatprep.subr.bf16.mxu0 0
  %6088 = vmatpush1.bf16.msra.mxu0 0
  %6089 = vmatprep.subr.bf16.mxu0 0
  %6090 = vmatpush1.bf16.msra.mxu0 0
  %6091 = vmatprep.subr.bf16.mxu0 0
  %6092 = vmatpush1.bf16.msra.mxu0 0
  %6093 = vmatprep.subr.bf16.mxu0 0
  %6094 = vmatpush1.bf16.msra.mxu0 0
  %6095 = vmatprep.subr.bf16.mxu0 0
  %6096 = vmatpush1.bf16.msra.mxu0 0
  %6097 = vmatprep.subr.bf16.mxu0 0
  %6098 = vmatpush1.bf16.msra.mxu0 0
  %6099 = vmatprep.subr.bf16.mxu0 0
  %6100 = vmatpush1.bf16.msra.mxu0 0
  %6101 = vmatprep.subr.bf16.mxu0 0
  %6102 = vmatpush1.bf16.msra.mxu0 0
  %6103 = vmatprep.subr.bf16.mxu0 0
  %6104 = vmatpush1.bf16.msra.mxu0 0
  %6105 = vmatprep.subr.bf16.mxu0 0
  %6106 = vmatpush1.bf16.msra.mxu0 0
  %6107 = vmatprep.mubr.bf16.mxu0 0
  %6108 = vmatmul.mubr.bf16.gmra.mrb[0].mxu0 %v5794
  %v6109 = vpop.f32.mrb[0].mxu0
  %v6110 = vadd.f32 0.0, %v6109
  %v6111 = vpop.f32.mrb[0].mxu0
  %v6112 = vadd.f32 0.0, %v6111
  %v6113 = vpop.f32.mrb[0].mxu0
  %v6114 = vadd.f32 0.0, %v6113
  %v6115 = vpop.f32.mrb[0].mxu0
  %v6116 = vadd.f32 0.0, %v6115
  %6117 = vmatprep.mubr.bf16.mxu0 0
  %6118 = vmatmul.mubr.bf16.gmra.mrb[0].mxu0 %v5797
  %v6119 = vpop.f32.mrb[0].mxu0
  %v6120 = vadd.f32 0.0, %v6119
  %v6121 = vpop.f32.mrb[0].mxu0
  %v6122 = vadd.f32 0.0, %v6121
  %v6123 = vpop.f32.mrb[0].mxu0
  %v6124 = vadd.f32 0.0, %v6123
  %v6125 = vpop.f32.mrb[0].mxu0
  %v6126 = vadd.f32 0.0, %v6125
  %6127 = vdwg.mxu0
  %6128 = vmatprep.subr.bf16.mxu0 %v6073
  %6129 = vmatpush1.bf16.msra.mxu0 %v6070
  %6130 = vmatprep.subr.bf16.mxu0 0
  %6131 = vmatpush1.bf16.msra.mxu0 0
  %6132 = vmatprep.subr.bf16.mxu0 0
  %6133 = vmatpush1.bf16.msra.mxu0 0
  %6134 = vmatprep.subr.bf16.mxu0 0
  %6135 = vmatpush1.bf16.msra.mxu0 0
  %6136 = vmatprep.subr.bf16.mxu0 0
  %6137 = vmatpush1.bf16.msra.mxu0 0
  %6138 = vmatprep.subr.bf16.mxu0 0
  %6139 = vmatpush1.bf16.msra.mxu0 0
  %6140 = vmatprep.subr.bf16.mxu0 0
  %6141 = vmatpush1.bf16.msra.mxu0 0
  %6142 = vmatprep.subr.bf16.mxu0 0
  %6143 = vmatpush1.bf16.msra.mxu0 0
  %6144 = vmatprep.subr.bf16.mxu0 0
  %6145 = vmatpush1.bf16.msra.mxu0 0
  %6146 = vmatprep.subr.bf16.mxu0 0
  %6147 = vmatpush1.bf16.msra.mxu0 0
  %6148 = vmatprep.subr.bf16.mxu0 0
  %6149 = vmatpush1.bf16.msra.mxu0 0
  %6150 = vmatprep.subr.bf16.mxu0 0
  %6151 = vmatpush1.bf16.msra.mxu0 0
  %6152 = vmatprep.subr.bf16.mxu0 0
  %6153 = vmatpush1.bf16.msra.mxu0 0
  %6154 = vmatprep.subr.bf16.mxu0 0
  %6155 = vmatpush1.bf16.msra.mxu0 0
  %6156 = vmatprep.subr.bf16.mxu0 0
  %6157 = vmatpush1.bf16.msra.mxu0 0
  %6158 = vmatprep.subr.bf16.mxu0 0
  %6159 = vmatpush1.bf16.msra.mxu0 0
  %6160 = vmatprep.mubr.bf16.mxu0 0
  %6161 = vmatmul.mubr.bf16.gmra.mrb[0].mxu0 %v5794
  %v6162 = vpop.f32.mrb[0].mxu0
  %v6163 = vadd.f32 0.0, %v6162
  %v6164 = vpop.f32.mrb[0].mxu0
  %v6165 = vadd.f32 0.0, %v6164
  %v6166 = vpop.f32.mrb[0].mxu0
  %v6167 = vadd.f32 0.0, %v6166
  %v6168 = vpop.f32.mrb[0].mxu0
  %v6169 = vadd.f32 0.0, %v6168
  %6170 = vmatprep.mubr.bf16.mxu0 0
  %6171 = vmatmul.mubr.bf16.gmra.mrb[0].mxu0 %v5797
  %v6172 = vpop.f32.mrb[0].mxu0
  %v6173 = vadd.f32 0.0, %v6172
  %v6174 = vpop.f32.mrb[0].mxu0
  %v6175 = vadd.f32 0.0, %v6174
  %v6176 = vpop.f32.mrb[0].mxu0
  %v6177 = vadd.f32 0.0, %v6176
  %v6178 = vpop.f32.mrb[0].mxu0
  %v6179 = vadd.f32 0.0, %v6178
  %6180 = vdwg.mxu0
  %v6181 = vmax.f32 %v6110, 0.0
  %v6182 = vmax.f32 %v6112, 0.0
  %v6183 = vmax.f32 %v6163, 0.0
  %v6184 = vmax.f32 %v6165, 0.0
  %v6185 = vmax.f32 %v6114, 0.0
  %v6186 = vmax.f32 %v6116, 0.0
  %v6187 = vmax.f32 %v6167, 0.0
  %v6188 = vmax.f32 %v6169, 0.0
  %v6189 = vmax.f32 %v6120, 0.0
  %v6190 = vmax.f32 %v6122, 0.0
  %v6191 = vmax.f32 %v6173, 0.0
  %v6192 = vmax.f32 %v6175, 0.0
  %v6193 = vmax.f32 %v6124, 0.0
  %v6194 = vmax.f32 %v6126, 0.0
  %v6195 = vmax.f32 %v6177, 0.0
  %v6196 = vmax.f32 %v6179, 0.0
  %v6197 = vpack.c.bf16 %v6185, %v6181
  %v6198 = vpack.c.bf16 %v6186, %v6182
  %v6199 = vpack.c.bf16 %v6187, %v6183
  %v6200 = vpack.c.bf16 %v6188, %v6184
  %v6201 = vpack.c.bf16 %v6193, %v6189
  %v6202 = vpack.c.bf16 %v6194, %v6190
  %v6203 = vpack.c.bf16 %v6195, %v6191
  %v6204 = vpack.c.bf16 %v6196, %v6192
  %6205 = vmatprep.subr.bf16.mxu0 %v6198
  %6206 = vmatpush1.bf16.msra.mxu0 %v6197
  %6207 = vmatprep.subr.bf16.mxu0 %v6202
  %6208 = vmatpush1.bf16.msra.mxu0 %v6201
  %6209 = vmatprep.subr.bf16.mxu0 0
  %6210 = vmatpush1.bf16.msra.mxu0 0
  %6211 = vmatprep.subr.bf16.mxu0 0
  %6212 = vmatpush1.bf16.msra.mxu0 0
  %6213 = vmatprep.subr.bf16.mxu0 0
  %6214 = vmatpush1.bf16.msra.mxu0 0
  %6215 = vmatprep.subr.bf16.mxu0 0
  %6216 = vmatpush1.bf16.msra.mxu0 0
  %6217 = vmatprep.subr.bf16.mxu0 0
  %6218 = vmatpush1.bf16.msra.mxu0 0
  %6219 = vmatprep.subr.bf16.mxu0 0
  %6220 = vmatpush1.bf16.msra.mxu0 0
  %6221 = vmatprep.subr.bf16.mxu0 0
  %6222 = vmatpush1.bf16.msra.mxu0 0
  %6223 = vmatprep.subr.bf16.mxu0 0
  %6224 = vmatpush1.bf16.msra.mxu0 0
  %6225 = vmatprep.subr.bf16.mxu0 0
  %6226 = vmatpush1.bf16.msra.mxu0 0
  %6227 = vmatprep.subr.bf16.mxu0 0
  %6228 = vmatpush1.bf16.msra.mxu0 0
  %6229 = vmatprep.subr.bf16.mxu0 0
  %6230 = vmatpush1.bf16.msra.mxu0 0
  %6231 = vmatprep.subr.bf16.mxu0 0
  %6232 = vmatpush1.bf16.msra.mxu0 0
  %6233 = vmatprep.subr.bf16.mxu0 0
  %6234 = vmatpush1.bf16.msra.mxu0 0
  %6235 = vmatprep.subr.bf16.mxu0 0
  %6236 = vmatpush1.bf16.msra.mxu0 0
  %6237 = vmatprep.mubr.bf16.mxu0 0
  %6238 = vmatmul.mubr.bf16.gmra.mrb[0].mxu0 %v5951
  %v6239 = vpop.f32.mrb[0].mxu0
  %v6240 = vadd.f32 %v5948, %v6239
  %v6241 = vpop.f32.mrb[0].mxu0
  %v6242 = vadd.f32 %v5948, %v6241
  %v6243 = vpop.f32.mrb[0].mxu0
  %v6244 = vpop.f32.mrb[0].mxu0
  %6245 = vdwg.mxu0
  %6246 = vmatprep.subr.bf16.mxu0 %v6200
  %6247 = vmatpush1.bf16.msra.mxu0 %v6199
  %6248 = vmatprep.subr.bf16.mxu0 %v6204
  %6249 = vmatpush1.bf16.msra.mxu0 %v6203
  %6250 = vmatprep.subr.bf16.mxu0 0
  %6251 = vmatpush1.bf16.msra.mxu0 0
  %6252 = vmatprep.subr.bf16.mxu0 0
  %6253 = vmatpush1.bf16.msra.mxu0 0
  %6254 = vmatprep.subr.bf16.mxu0 0
  %6255 = vmatpush1.bf16.msra.mxu0 0
  %6256 = vmatprep.subr.bf16.mxu0 0
  %6257 = vmatpush1.bf16.msra.mxu0 0
  %6258 = vmatprep.subr.bf16.mxu0 0
  %6259 = vmatpush1.bf16.msra.mxu0 0
  %6260 = vmatprep.subr.bf16.mxu0 0
  %6261 = vmatpush1.bf16.msra.mxu0 0
  %6262 = vmatprep.subr.bf16.mxu0 0
  %6263 = vmatpush1.bf16.msra.mxu0 0
  %6264 = vmatprep.subr.bf16.mxu0 0
  %6265 = vmatpush1.bf16.msra.mxu0 0
  %6266 = vmatprep.subr.bf16.mxu0 0
  %6267 = vmatpush1.bf16.msra.mxu0 0
  %6268 = vmatprep.subr.bf16.mxu0 0
  %6269 = vmatpush1.bf16.msra.mxu0 0
  %6270 = vmatprep.subr.bf16.mxu0 0
  %6271 = vmatpush1.bf16.msra.mxu0 0
  %6272 = vmatprep.subr.bf16.mxu0 0
  %6273 = vmatpush1.bf16.msra.mxu0 0
  %6274 = vmatprep.subr.bf16.mxu0 0
  %6275 = vmatpush1.bf16.msra.mxu0 0
  %6276 = vmatprep.subr.bf16.mxu0 0
  %6277 = vmatpush1.bf16.msra.mxu0 0
  %6278 = vmatprep.mubr.bf16.mxu0 0
  %6279 = vmatmul.mubr.bf16.gmra.mrb[0].mxu0 %v5951
  %v6280 = vpop.f32.mrb[0].mxu0
  %v6281 = vadd.f32 %v5948, %v6280
  %v6282 = vpop.f32.mrb[0].mxu0
  %v6283 = vadd.f32 %v5948, %v6282
  %v6284 = vpop.f32.mrb[0].mxu0
  %v6285 = vpop.f32.mrb[0].mxu0
  %6286 = vdwg.mxu0
  %v6287 = vmul.f32 %v6055, -4.5329723
  %v6288 = vmul.f32 %v6056, -4.5329723
  %v6289 = vmul.f32 %v6057, -4.5329723
  %v6290 = vmul.f32 %v6058, -4.5329723
  %v6291 = vadd.f32 %v6240, %v6287
  %v6292 = vadd.f32 %v6242, %v6288
  %v6293 = vadd.f32 %v6281, %v6289
  %v6294 = vadd.f32 %v6283, %v6290
  %v6295 = vmul.f32 %v6291, 2.0
  %v6296 = vmul.f32 %v6292, 2.0
  %v6297 = vmul.f32 %v6293, 2.0
  %v6298 = vmul.f32 %v6294, 2.0
  %v6299 = vadd.f32 %v6047, %v6295
  %v6300 = vadd.f32 %v6048, %v6296
  %v6301 = vadd.f32 %v6049, %v6297
  %v6302 = vadd.f32 %v6050, %v6298
  %v6303 = vmul.f32 %v6291, -0.0999
  %v6304 = vmul.f32 %v6292, -0.0999
  %v6305 = vmul.f32 %v6293, -0.0999
  %v6306 = vmul.f32 %v6294, -0.0999
  %v6307 = vadd.f32 %v5493, %v6303
  %v6308 = vadd.f32 %v5494, %v6304
  %v6309 = vadd.f32 %v5495, %v6305
  %v6310 = vadd.f32 %v5496, %v6306
  %s6311 = scalar_lea.vmem %s1, 272
  %v6312 = vld [vmem:[%s6311] sm:$0xf]
  %v6313 = vld [vmem:[%s6311 + $0x4] sm:$0xf]
  %v6314 = vld [vmem:[%s6311 + $0x8] sm:$0xf]
  %v6315 = vld [vmem:[%s6311 + $0xc] sm:$0xf]
  %v6316 = vpack.c.bf16 %v6307, %v6307
  %v6317 = vpack.c.bf16 %v6308, %v6308
  %v6318 = vpack.c.bf16 %v6309, %v6309
  %v6319 = vpack.c.bf16 %v6310, %v6310
  %v6324 = vunpack.c.l.b16 %v6312
  %v6325 = vunpack.c.l.b16 %v6313
  %v6326 = vunpack.c.l.b16 %v6314
  %v6327 = vunpack.c.l.b16 %v6315
  %v6328 = vpack.c.b16 %v6325, %v6324
  %v6329 = vpack.c.b16 %v6327, %v6326
  %v6331 = vsel %vm40, %v6328, 0
  %v6334 = vsel %vm40, %v6329, 0
  %v6337 = vsel %vm47, %v6316, 0
  %v6340 = vsel %vm47, %v6317, 0
  %v6343 = vsel %vm47, %v6318, 0
  %v6346 = vsel %vm47, %v6319, 0
  %6348 = vmatprep.subr.bf16.mxu0 %v6340
  %6349 = vmatpush1.bf16.msra.mxu0 %v6337
  %6350 = vmatprep.subr.bf16.mxu0 0
  %6351 = vmatpush1.bf16.msra.mxu0 0
  %6352 = vmatprep.subr.bf16.mxu0 0
  %6353 = vmatpush1.bf16.msra.mxu0 0
  %6354 = vmatprep.subr.bf16.mxu0 0
  %6355 = vmatpush1.bf16.msra.mxu0 0
  %6356 = vmatprep.subr.bf16.mxu0 0
  %6357 = vmatpush1.bf16.msra.mxu0 0
  %6358 = vmatprep.subr.bf16.mxu0 0
  %6359 = vmatpush1.bf16.msra.mxu0 0
  %6360 = vmatprep.subr.bf16.mxu0 0
  %6361 = vmatpush1.bf16.msra.mxu0 0
  %6362 = vmatprep.subr.bf16.mxu0 0
  %6363 = vmatpush1.bf16.msra.mxu0 0
  %6364 = vmatprep.subr.bf16.mxu0 0
  %6365 = vmatpush1.bf16.msra.mxu0 0
  %6366 = vmatprep.subr.bf16.mxu0 0
  %6367 = vmatpush1.bf16.msra.mxu0 0
  %6368 = vmatprep.subr.bf16.mxu0 0
  %6369 = vmatpush1.bf16.msra.mxu0 0
  %6370 = vmatprep.subr.bf16.mxu0 0
  %6371 = vmatpush1.bf16.msra.mxu0 0
  %6372 = vmatprep.subr.bf16.mxu0 0
  %6373 = vmatpush1.bf16.msra.mxu0 0
  %6374 = vmatprep.subr.bf16.mxu0 0
  %6375 = vmatpush1.bf16.msra.mxu0 0
  %6376 = vmatprep.subr.bf16.mxu0 0
  %6377 = vmatpush1.bf16.msra.mxu0 0
  %6378 = vmatprep.subr.bf16.mxu0 0
  %6379 = vmatpush1.bf16.msra.mxu0 0
  %6380 = vmatprep.mubr.bf16.mxu0 0
  %6381 = vmatmul.mubr.bf16.gmra.mrb[0].mxu0 %v6331
  %v6382 = vpop.f32.mrb[0].mxu0
  %v6383 = vadd.f32 0.0, %v6382
  %v6384 = vpop.f32.mrb[0].mxu0
  %v6385 = vadd.f32 0.0, %v6384
  %v6386 = vpop.f32.mrb[0].mxu0
  %v6387 = vadd.f32 0.0, %v6386
  %v6388 = vpop.f32.mrb[0].mxu0
  %v6389 = vadd.f32 0.0, %v6388
  %6390 = vmatprep.mubr.bf16.mxu0 0
  %6391 = vmatmul.mubr.bf16.gmra.mrb[0].mxu0 %v6334
  %v6392 = vpop.f32.mrb[0].mxu0
  %v6393 = vadd.f32 0.0, %v6392
  %v6394 = vpop.f32.mrb[0].mxu0
  %v6395 = vadd.f32 0.0, %v6394
  %v6396 = vpop.f32.mrb[0].mxu0
  %v6397 = vadd.f32 0.0, %v6396
  %v6398 = vpop.f32.mrb[0].mxu0
  %v6399 = vadd.f32 0.0, %v6398
  %6400 = vdwg.mxu0
  %6401 = vmatprep.subr.bf16.mxu0 %v6346
  %6402 = vmatpush1.bf16.msra.mxu0 %v6343
  %6403 = vmatprep.subr.bf16.mxu0 0
  %6404 = vmatpush1.bf16.msra.mxu0 0
  %6405 = vmatprep.subr.bf16.mxu0 0
  %6406 = vmatpush1.bf16.msra.mxu0 0
  %6407 = vmatprep.subr.bf16.mxu0 0
  %6408 = vmatpush1.bf16.msra.mxu0 0
  %6409 = vmatprep.subr.bf16.mxu0 0
  %6410 = vmatpush1.bf16.msra.mxu0 0
  %6411 = vmatprep.subr.bf16.mxu0 0
  %6412 = vmatpush1.bf16.msra.mxu0 0
  %6413 = vmatprep.subr.bf16.mxu0 0
  %6414 = vmatpush1.bf16.msra.mxu0 0
  %6415 = vmatprep.subr.bf16.mxu0 0
  %6416 = vmatpush1.bf16.msra.mxu0 0
  %6417 = vmatprep.subr.bf16.mxu0 0
  %6418 = vmatpush1.bf16.msra.mxu0 0
  %6419 = vmatprep.subr.bf16.mxu0 0
  %6420 = vmatpush1.bf16.msra.mxu0 0
  %6421 = vmatprep.subr.bf16.mxu0 0
  %6422 = vmatpush1.bf16.msra.mxu0 0
  %6423 = vmatprep.subr.bf16.mxu0 0
  %6424 = vmatpush1.bf16.msra.mxu0 0
  %6425 = vmatprep.subr.bf16.mxu0 0
  %6426 = vmatpush1.bf16.msra.mxu0 0
  %6427 = vmatprep.subr.bf16.mxu0 0
  %6428 = vmatpush1.bf16.msra.mxu0 0
  %6429 = vmatprep.subr.bf16.mxu0 0
  %6430 = vmatpush1.bf16.msra.mxu0 0
  %6431 = vmatprep.subr.bf16.mxu0 0
  %6432 = vmatpush1.bf16.msra.mxu0 0
  %6433 = vmatprep.mubr.bf16.mxu0 0
  %6434 = vmatmul.mubr.bf16.gmra.mrb[0].mxu0 %v6331
  %v6435 = vpop.f32.mrb[0].mxu0
  %v6436 = vadd.f32 0.0, %v6435
  %v6437 = vpop.f32.mrb[0].mxu0
  %v6438 = vadd.f32 0.0, %v6437
  %v6439 = vpop.f32.mrb[0].mxu0
  %v6440 = vadd.f32 0.0, %v6439
  %v6441 = vpop.f32.mrb[0].mxu0
  %v6442 = vadd.f32 0.0, %v6441
  %6443 = vmatprep.mubr.bf16.mxu0 0
  %6444 = vmatmul.mubr.bf16.gmra.mrb[0].mxu0 %v6334
  %v6445 = vpop.f32.mrb[0].mxu0
  %v6446 = vadd.f32 0.0, %v6445
  %v6447 = vpop.f32.mrb[0].mxu0
  %v6448 = vadd.f32 0.0, %v6447
  %v6449 = vpop.f32.mrb[0].mxu0
  %v6450 = vadd.f32 0.0, %v6449
  %v6451 = vpop.f32.mrb[0].mxu0
  %v6452 = vadd.f32 0.0, %v6451
  %6453 = vdwg.mxu0
  %v6454 = vmax.f32 %v6383, 0.0
  %v6455 = vmax.f32 %v6385, 0.0
  %v6456 = vmax.f32 %v6436, 0.0
  %v6457 = vmax.f32 %v6438, 0.0
  %v6458 = vmax.f32 %v6387, 0.0
  %v6459 = vmax.f32 %v6389, 0.0
  %v6460 = vmax.f32 %v6440, 0.0
  %v6461 = vmax.f32 %v6442, 0.0
  %v6462 = vmax.f32 %v6393, 0.0
  %v6463 = vmax.f32 %v6395, 0.0
  %v6464 = vmax.f32 %v6446, 0.0
  %v6465 = vmax.f32 %v6448, 0.0
  %v6466 = vmax.f32 %v6397, 0.0
  %v6467 = vmax.f32 %v6399, 0.0
  %v6468 = vmax.f32 %v6450, 0.0
  %v6469 = vmax.f32 %v6452, 0.0
  %s6470 = scalar_lea.vmem %s2, 68
  %v6471 = vld [vmem:[%s6470] sm:$0xf]
  %v6472 = vpack.c.bf16 %v6458, %v6454
  %v6473 = vpack.c.bf16 %v6459, %v6455
  %v6474 = vpack.c.bf16 %v6460, %v6456
  %v6475 = vpack.c.bf16 %v6461, %v6457
  %v6476 = vpack.c.bf16 %v6466, %v6462
  %v6477 = vpack.c.bf16 %v6467, %v6463
  %v6478 = vpack.c.bf16 %v6468, %v6464
  %v6479 = vpack.c.bf16 %v6469, %v6465
  %s6480 = scalar_lea.vmem %s3, 136
  %v6481 = vld [vmem:[%s6480] sm:$0xff]
  %6483 = vset.pattern.permute.xlu0 0
  %6484 = vperm.xlu0 %6483, %v6481
  %v6485 = vpop.permute.xlu0 %6484
  %v6488 = vsel %vm197, %v6471, 0
  %6490 = vmatprep.subr.bf16.mxu0 %v6473
  %6491 = vmatpush1.bf16.msra.mxu0 %v6472
  %6492 = vmatprep.subr.bf16.mxu0 %v6477
  %6493 = vmatpush1.bf16.msra.mxu0 %v6476
  %6494 = vmatprep.subr.bf16.mxu0 0
  %6495 = vmatpush1.bf16.msra.mxu0 0
  %6496 = vmatprep.subr.bf16.mxu0 0
  %6497 = vmatpush1.bf16.msra.mxu0 0
  %6498 = vmatprep.subr.bf16.mxu0 0
  %6499 = vmatpush1.bf16.msra.mxu0 0
  %6500 = vmatprep.subr.bf16.mxu0 0
  %6501 = vmatpush1.bf16.msra.mxu0 0
  %6502 = vmatprep.subr.bf16.mxu0 0
  %6503 = vmatpush1.bf16.msra.mxu0 0
  %6504 = vmatprep.subr.bf16.mxu0 0
  %6505 = vmatpush1.bf16.msra.mxu0 0
  %6506 = vmatprep.subr.bf16.mxu0 0
  %6507 = vmatpush1.bf16.msra.mxu0 0
  %6508 = vmatprep.subr.bf16.mxu0 0
  %6509 = vmatpush1.bf16.msra.mxu0 0
  %6510 = vmatprep.subr.bf16.mxu0 0
  %6511 = vmatpush1.bf16.msra.mxu0 0
  %6512 = vmatprep.subr.bf16.mxu0 0
  %6513 = vmatpush1.bf16.msra.mxu0 0
  %6514 = vmatprep.subr.bf16.mxu0 0
  %6515 = vmatpush1.bf16.msra.mxu0 0
  %6516 = vmatprep.subr.bf16.mxu0 0
  %6517 = vmatpush1.bf16.msra.mxu0 0
  %6518 = vmatprep.subr.bf16.mxu0 0
  %6519 = vmatpush1.bf16.msra.mxu0 0
  %6520 = vmatprep.subr.bf16.mxu0 0
  %6521 = vmatpush1.bf16.msra.mxu0 0
  %6522 = vmatprep.mubr.bf16.mxu0 0
  %6523 = vmatmul.mubr.bf16.gmra.mrb[0].mxu0 %v6488
  %v6524 = vpop.f32.mrb[0].mxu0
  %v6525 = vadd.f32 %v6485, %v6524
  %v6526 = vpop.f32.mrb[0].mxu0
  %v6527 = vadd.f32 %v6485, %v6526
  %v6528 = vpop.f32.mrb[0].mxu0
  %v6529 = vpop.f32.mrb[0].mxu0
  %6530 = vdwg.mxu0
  %6531 = vmatprep.subr.bf16.mxu0 %v6475
  %6532 = vmatpush1.bf16.msra.mxu0 %v6474
  %6533 = vmatprep.subr.bf16.mxu0 %v6479
  %6534 = vmatpush1.bf16.msra.mxu0 %v6478
  %6535 = vmatprep.subr.bf16.mxu0 0
  %6536 = vmatpush1.bf16.msra.mxu0 0
  %6537 = vmatprep.subr.bf16.mxu0 0
  %6538 = vmatpush1.bf16.msra.mxu0 0
  %6539 = vmatprep.subr.bf16.mxu0 0
  %6540 = vmatpush1.bf16.msra.mxu0 0
  %6541 = vmatprep.subr.bf16.mxu0 0
  %6542 = vmatpush1.bf16.msra.mxu0 0
  %6543 = vmatprep.subr.bf16.mxu0 0
  %6544 = vmatpush1.bf16.msra.mxu0 0
  %6545 = vmatprep.subr.bf16.mxu0 0
  %6546 = vmatpush1.bf16.msra.mxu0 0
  %6547 = vmatprep.subr.bf16.mxu0 0
  %6548 = vmatpush1.bf16.msra.mxu0 0
  %6549 = vmatprep.subr.bf16.mxu0 0
  %6550 = vmatpush1.bf16.msra.mxu0 0
  %6551 = vmatprep.subr.bf16.mxu0 0
  %6552 = vmatpush1.bf16.msra.mxu0 0
  %6553 = vmatprep.subr.bf16.mxu0 0
  %6554 = vmatpush1.bf16.msra.mxu0 0
  %6555 = vmatprep.subr.bf16.mxu0 0
  %6556 = vmatpush1.bf16.msra.mxu0 0
  %6557 = vmatprep.subr.bf16.mxu0 0
  %6558 = vmatpush1.bf16.msra.mxu0 0
  %6559 = vmatprep.subr.bf16.mxu0 0
  %6560 = vmatpush1.bf16.msra.mxu0 0
  %6561 = vmatprep.subr.bf16.mxu0 0
  %6562 = vmatpush1.bf16.msra.mxu0 0
  %6563 = vmatprep.mubr.bf16.mxu0 0
  %6564 = vmatmul.mubr.bf16.gmra.mrb[0].mxu0 %v6488
  %v6565 = vpop.f32.mrb[0].mxu0
  %v6566 = vadd.f32 %v6485, %v6565
  %v6567 = vpop.f32.mrb[0].mxu0
  %v6568 = vadd.f32 %v6485, %v6567
  %v6569 = vpop.f32.mrb[0].mxu0
  %v6570 = vpop.f32.mrb[0].mxu0
  %6571 = vdwg.mxu0
  %v6572 = vmul.f32 %v6307, -4.03597
  %v6573 = vmul.f32 %v6308, -4.03597
  %v6574 = vmul.f32 %v6309, -4.03597
  %v6575 = vmul.f32 %v6310, -4.03597
  %v6576 = vadd.f32 %v6525, %v6572
  %v6577 = vadd.f32 %v6527, %v6573
  %v6578 = vadd.f32 %v6566, %v6574
  %v6579 = vadd.f32 %v6568, %v6575
  %v6580 = vadd.f32 %v6299, %v6576
  %v6581 = vadd.f32 %v6300, %v6577
  %v6582 = vadd.f32 %v6301, %v6578
  %v6583 = vadd.f32 %v6302, %v6579
  %v6584 = vmul.f32 %v6580, -0.01665
  %v6585 = vmul.f32 %v6581, -0.01665
  %v6586 = vmul.f32 %v6582, -0.01665
  %v6587 = vmul.f32 %v6583, -0.01665
  %v6588 = vadd.f32 %v5493, %v6584
  %v6589 = vadd.f32 %v5494, %v6585
  %v6590 = vadd.f32 %v5495, %v6586
  %v6591 = vadd.f32 %v5496, %v6587
  %s6592 = scalar_lea.vmem %s1, 288
  %v6593 = vld [vmem:[%s6592] sm:$0xf]
  %v6594 = vld [vmem:[%s6592 + $0x4] sm:$0xf]
  %v6595 = vld [vmem:[%s6592 + $0x8] sm:$0xf]
  %v6596 = vld [vmem:[%s6592 + $0xc] sm:$0xf]
  %v6597 = vpack.c.bf16 %v6588, %v6588
  %v6598 = vpack.c.bf16 %v6589, %v6589
  %v6599 = vpack.c.bf16 %v6590, %v6590
  %v6600 = vpack.c.bf16 %v6591, %v6591
  %v6605 = vunpack.c.l.b16 %v6593
  %v6606 = vunpack.c.l.b16 %v6594
  %v6607 = vunpack.c.l.b16 %v6595
  %v6608 = vunpack.c.l.b16 %v6596
  %v6609 = vpack.c.b16 %v6606, %v6605
  %v6610 = vpack.c.b16 %v6608, %v6607
  %v6612 = vsel %vm40, %v6609, 0
  %v6615 = vsel %vm40, %v6610, 0
  %v6618 = vsel %vm47, %v6597, 0
  %v6621 = vsel %vm47, %v6598, 0
  %v6624 = vsel %vm47, %v6599, 0
  %v6627 = vsel %vm47, %v6600, 0
  %6629 = vmatprep.subr.bf16.mxu0 %v6621
  %6630 = vmatpush1.bf16.msra.mxu0 %v6618
  %6631 = vmatprep.subr.bf16.mxu0 0
  %6632 = vmatpush1.bf16.msra.mxu0 0
  %6633 = vmatprep.subr.bf16.mxu0 0
  %6634 = vmatpush1.bf16.msra.mxu0 0
  %6635 = vmatprep.subr.bf16.mxu0 0
  %6636 = vmatpush1.bf16.msra.mxu0 0
  %6637 = vmatprep.subr.bf16.mxu0 0
  %6638 = vmatpush1.bf16.msra.mxu0 0
  %6639 = vmatprep.subr.bf16.mxu0 0
  %6640 = vmatpush1.bf16.msra.mxu0 0
  %6641 = vmatprep.subr.bf16.mxu0 0
  %6642 = vmatpush1.bf16.msra.mxu0 0
  %6643 = vmatprep.subr.bf16.mxu0 0
  %6644 = vmatpush1.bf16.msra.mxu0 0
  %6645 = vmatprep.subr.bf16.mxu0 0
  %6646 = vmatpush1.bf16.msra.mxu0 0
  %6647 = vmatprep.subr.bf16.mxu0 0
  %6648 = vmatpush1.bf16.msra.mxu0 0
  %6649 = vmatprep.subr.bf16.mxu0 0
  %6650 = vmatpush1.bf16.msra.mxu0 0
  %6651 = vmatprep.subr.bf16.mxu0 0
  %6652 = vmatpush1.bf16.msra.mxu0 0
  %6653 = vmatprep.subr.bf16.mxu0 0
  %6654 = vmatpush1.bf16.msra.mxu0 0
  %6655 = vmatprep.subr.bf16.mxu0 0
  %6656 = vmatpush1.bf16.msra.mxu0 0
  %6657 = vmatprep.subr.bf16.mxu0 0
  %6658 = vmatpush1.bf16.msra.mxu0 0
  %6659 = vmatprep.subr.bf16.mxu0 0
  %6660 = vmatpush1.bf16.msra.mxu0 0
  %6661 = vmatprep.mubr.bf16.mxu0 0
  %6662 = vmatmul.mubr.bf16.gmra.mrb[0].mxu0 %v6612
  %v6663 = vpop.f32.mrb[0].mxu0
  %v6664 = vadd.f32 0.0, %v6663
  %v6665 = vpop.f32.mrb[0].mxu0
  %v6666 = vadd.f32 0.0, %v6665
  %v6667 = vpop.f32.mrb[0].mxu0
  %v6668 = vadd.f32 0.0, %v6667
  %v6669 = vpop.f32.mrb[0].mxu0
  %v6670 = vadd.f32 0.0, %v6669
  %6671 = vmatprep.mubr.bf16.mxu0 0
  %6672 = vmatmul.mubr.bf16.gmra.mrb[0].mxu0 %v6615
  %v6673 = vpop.f32.mrb[0].mxu0
  %v6674 = vadd.f32 0.0, %v6673
  %v6675 = vpop.f32.mrb[0].mxu0
  %v6676 = vadd.f32 0.0, %v6675
  %v6677 = vpop.f32.mrb[0].mxu0
  %v6678 = vadd.f32 0.0, %v6677
  %v6679 = vpop.f32.mrb[0].mxu0
  %v6680 = vadd.f32 0.0, %v6679
  %6681 = vdwg.mxu0
  %6682 = vmatprep.subr.bf16.mxu0 %v6627
  %6683 = vmatpush1.bf16.msra.mxu0 %v6624
  %6684 = vmatprep.subr.bf16.mxu0 0
  %6685 = vmatpush1.bf16.msra.mxu0 0
  %6686 = vmatprep.subr.bf16.mxu0 0
  %6687 = vmatpush1.bf16.msra.mxu0 0
  %6688 = vmatprep.subr.bf16.mxu0 0
  %6689 = vmatpush1.bf16.msra.mxu0 0
  %6690 = vmatprep.subr.bf16.mxu0 0
  %6691 = vmatpush1.bf16.msra.mxu0 0
  %6692 = vmatprep.subr.bf16.mxu0 0
  %6693 = vmatpush1.bf16.msra.mxu0 0
  %6694 = vmatprep.subr.bf16.mxu0 0
  %6695 = vmatpush1.bf16.msra.mxu0 0
  %6696 = vmatprep.subr.bf16.mxu0 0
  %6697 = vmatpush1.bf16.msra.mxu0 0
  %6698 = vmatprep.subr.bf16.mxu0 0
  %6699 = vmatpush1.bf16.msra.mxu0 0
  %6700 = vmatprep.subr.bf16.mxu0 0
  %6701 = vmatpush1.bf16.msra.mxu0 0
  %6702 = vmatprep.subr.bf16.mxu0 0
  %6703 = vmatpush1.bf16.msra.mxu0 0
  %6704 = vmatprep.subr.bf16.mxu0 0
  %6705 = vmatpush1.bf16.msra.mxu0 0
  %6706 = vmatprep.subr.bf16.mxu0 0
  %6707 = vmatpush1.bf16.msra.mxu0 0
  %6708 = vmatprep.subr.bf16.mxu0 0
  %6709 = vmatpush1.bf16.msra.mxu0 0
  %6710 = vmatprep.subr.bf16.mxu0 0
  %6711 = vmatpush1.bf16.msra.mxu0 0
  %6712 = vmatprep.subr.bf16.mxu0 0
  %6713 = vmatpush1.bf16.msra.mxu0 0
  %6714 = vmatprep.mubr.bf16.mxu0 0
  %6715 = vmatmul.mubr.bf16.gmra.mrb[0].mxu0 %v6612
  %v6716 = vpop.f32.mrb[0].mxu0
  %v6717 = vadd.f32 0.0, %v6716
  %v6718 = vpop.f32.mrb[0].mxu0
  %v6719 = vadd.f32 0.0, %v6718
  %v6720 = vpop.f32.mrb[0].mxu0
  %v6721 = vadd.f32 0.0, %v6720
  %v6722 = vpop.f32.mrb[0].mxu0
  %v6723 = vadd.f32 0.0, %v6722
  %6724 = vmatprep.mubr.bf16.mxu0 0
  %6725 = vmatmul.mubr.bf16.gmra.mrb[0].mxu0 %v6615
  %v6726 = vpop.f32.mrb[0].mxu0
  %v6727 = vadd.f32 0.0, %v6726
  %v6728 = vpop.f32.mrb[0].mxu0
  %v6729 = vadd.f32 0.0, %v6728
  %v6730 = vpop.f32.mrb[0].mxu0
  %v6731 = vadd.f32 0.0, %v6730
  %v6732 = vpop.f32.mrb[0].mxu0
  %v6733 = vadd.f32 0.0, %v6732
  %6734 = vdwg.mxu0
  %v6735 = vmax.f32 %v6664, 0.0
  %v6736 = vmax.f32 %v6666, 0.0
  %v6737 = vmax.f32 %v6717, 0.0
  %v6738 = vmax.f32 %v6719, 0.0
  %v6739 = vmax.f32 %v6668, 0.0
  %v6740 = vmax.f32 %v6670, 0.0
  %v6741 = vmax.f32 %v6721, 0.0
  %v6742 = vmax.f32 %v6723, 0.0
  %v6743 = vmax.f32 %v6674, 0.0
  %v6744 = vmax.f32 %v6676, 0.0
  %v6745 = vmax.f32 %v6727, 0.0
  %v6746 = vmax.f32 %v6729, 0.0
  %v6747 = vmax.f32 %v6678, 0.0
  %v6748 = vmax.f32 %v6680, 0.0
  %v6749 = vmax.f32 %v6731, 0.0
  %v6750 = vmax.f32 %v6733, 0.0
  %s6751 = scalar_lea.vmem %s2, 72
  %v6752 = vld [vmem:[%s6751] sm:$0xf]
  %v6753 = vpack.c.bf16 %v6739, %v6735
  %v6754 = vpack.c.bf16 %v6740, %v6736
  %v6755 = vpack.c.bf16 %v6741, %v6737
  %v6756 = vpack.c.bf16 %v6742, %v6738
  %v6757 = vpack.c.bf16 %v6747, %v6743
  %v6758 = vpack.c.bf16 %v6748, %v6744
  %v6759 = vpack.c.bf16 %v6749, %v6745
  %v6760 = vpack.c.bf16 %v6750, %v6746
  %s6761 = scalar_lea.vmem %s3, 144
  %v6762 = vld [vmem:[%s6761] sm:$0xff]
  %6764 = vset.pattern.permute.xlu0 0
  %6765 = vperm.xlu0 %6764, %v6762
  %v6766 = vpop.permute.xlu0 %6765
  %v6769 = vsel %vm197, %v6752, 0
  %6771 = vmatprep.subr.bf16.mxu0 %v6754
  %6772 = vmatpush1.bf16.msra.mxu0 %v6753
  %6773 = vmatprep.subr.bf16.mxu0 %v6758
  %6774 = vmatpush1.bf16.msra.mxu0 %v6757
  %6775 = vmatprep.subr.bf16.mxu0 0
  %6776 = vmatpush1.bf16.msra.mxu0 0
  %6777 = vmatprep.subr.bf16.mxu0 0
  %6778 = vmatpush1.bf16.msra.mxu0 0
  %6779 = vmatprep.subr.bf16.mxu0 0
  %6780 = vmatpush1.bf16.msra.mxu0 0
  %6781 = vmatprep.subr.bf16.mxu0 0
  %6782 = vmatpush1.bf16.msra.mxu0 0
  %6783 = vmatprep.subr.bf16.mxu0 0
  %6784 = vmatpush1.bf16.msra.mxu0 0
  %6785 = vmatprep.subr.bf16.mxu0 0
  %6786 = vmatpush1.bf16.msra.mxu0 0
  %6787 = vmatprep.subr.bf16.mxu0 0
  %6788 = vmatpush1.bf16.msra.mxu0 0
  %6789 = vmatprep.subr.bf16.mxu0 0
  %6790 = vmatpush1.bf16.msra.mxu0 0
  %6791 = vmatprep.subr.bf16.mxu0 0
  %6792 = vmatpush1.bf16.msra.mxu0 0
  %6793 = vmatprep.subr.bf16.mxu0 0
  %6794 = vmatpush1.bf16.msra.mxu0 0
  %6795 = vmatprep.subr.bf16.mxu0 0
  %6796 = vmatpush1.bf16.msra.mxu0 0
  %6797 = vmatprep.subr.bf16.mxu0 0
  %6798 = vmatpush1.bf16.msra.mxu0 0
  %6799 = vmatprep.subr.bf16.mxu0 0
  %6800 = vmatpush1.bf16.msra.mxu0 0
  %6801 = vmatprep.subr.bf16.mxu0 0
  %6802 = vmatpush1.bf16.msra.mxu0 0
  %6803 = vmatprep.mubr.bf16.mxu0 0
  %6804 = vmatmul.mubr.bf16.gmra.mrb[0].mxu0 %v6769
  %v6805 = vpop.f32.mrb[0].mxu0
  %v6806 = vadd.f32 %v6766, %v6805
  %v6807 = vpop.f32.mrb[0].mxu0
  %v6808 = vadd.f32 %v6766, %v6807
  %v6809 = vpop.f32.mrb[0].mxu0
  %v6810 = vpop.f32.mrb[0].mxu0
  %6811 = vdwg.mxu0
  %6812 = vmatprep.subr.bf16.mxu0 %v6756
  %6813 = vmatpush1.bf16.msra.mxu0 %v6755
  %6814 = vmatprep.subr.bf16.mxu0 %v6760
  %6815 = vmatpush1.bf16.msra.mxu0 %v6759
  %6816 = vmatprep.subr.bf16.mxu0 0
  %6817 = vmatpush1.bf16.msra.mxu0 0
  %6818 = vmatprep.subr.bf16.mxu0 0
  %6819 = vmatpush1.bf16.msra.mxu0 0
  %6820 = vmatprep.subr.bf16.mxu0 0
  %6821 = vmatpush1.bf16.msra.mxu0 0
  %6822 = vmatprep.subr.bf16.mxu0 0
  %6823 = vmatpush1.bf16.msra.mxu0 0
  %6824 = vmatprep.subr.bf16.mxu0 0
  %6825 = vmatpush1.bf16.msra.mxu0 0
  %6826 = vmatprep.subr.bf16.mxu0 0
  %6827 = vmatpush1.bf16.msra.mxu0 0
  %6828 = vmatprep.subr.bf16.mxu0 0
  %6829 = vmatpush1.bf16.msra.mxu0 0
  %6830 = vmatprep.subr.bf16.mxu0 0
  %6831 = vmatpush1.bf16.msra.mxu0 0
  %6832 = vmatprep.subr.bf16.mxu0 0
  %6833 = vmatpush1.bf16.msra.mxu0 0
  %6834 = vmatprep.subr.bf16.mxu0 0
  %6835 = vmatpush1.bf16.msra.mxu0 0
  %6836 = vmatprep.subr.bf16.mxu0 0
  %6837 = vmatpush1.bf16.msra.mxu0 0
  %6838 = vmatprep.subr.bf16.mxu0 0
  %6839 = vmatpush1.bf16.msra.mxu0 0
  %6840 = vmatprep.subr.bf16.mxu0 0
  %6841 = vmatpush1.bf16.msra.mxu0 0
  %6842 = vmatprep.subr.bf16.mxu0 0
  %6843 = vmatpush1.bf16.msra.mxu0 0
  %6844 = vmatprep.mubr.bf16.mxu0 0
  %6845 = vmatmul.mubr.bf16.gmra.mrb[0].mxu0 %v6769
  %v6846 = vpop.f32.mrb[0].mxu0
  %v6847 = vadd.f32 %v6766, %v6846
  %v6848 = vpop.f32.mrb[0].mxu0
  %v6849 = vadd.f32 %v6766, %v6848
  %v6850 = vpop.f32.mrb[0].mxu0
  %v6851 = vpop.f32.mrb[0].mxu0
  %6852 = vdwg.mxu0
  %v6853 = vmul.f32 %v6588, -4.03597
  %v6854 = vmul.f32 %v6589, -4.03597
  %v6855 = vmul.f32 %v6590, -4.03597
  %v6856 = vmul.f32 %v6591, -4.03597
  %v6857 = vadd.f32 %v6806, %v6853
  %v6858 = vadd.f32 %v6808, %v6854
  %v6859 = vadd.f32 %v6847, %v6855
  %v6860 = vadd.f32 %v6849, %v6856
  %v6861 = vmul.f32 %v6857, -0.04995
  %v6862 = vmul.f32 %v6858, -0.04995
  %v6863 = vmul.f32 %v6859, -0.04995
  %v6864 = vmul.f32 %v6860, -0.04995
  %v6865 = vadd.f32 %v6588, %v6861
  %v6866 = vadd.f32 %v6589, %v6862
  %v6867 = vadd.f32 %v6590, %v6863
  %v6868 = vadd.f32 %v6591, %v6864
  %s6869 = scalar_lea.vmem %s1, 304
  %v6870 = vld [vmem:[%s6869] sm:$0xf]
  %v6871 = vld [vmem:[%s6869 + $0x4] sm:$0xf]
  %v6872 = vld [vmem:[%s6869 + $0x8] sm:$0xf]
  %v6873 = vld [vmem:[%s6869 + $0xc] sm:$0xf]
  %v6874 = vpack.c.bf16 %v6865, %v6865
  %v6875 = vpack.c.bf16 %v6866, %v6866
  %v6876 = vpack.c.bf16 %v6867, %v6867
  %v6877 = vpack.c.bf16 %v6868, %v6868
  %v6882 = vunpack.c.l.b16 %v6870
  %v6883 = vunpack.c.l.b16 %v6871
  %v6884 = vunpack.c.l.b16 %v6872
  %v6885 = vunpack.c.l.b16 %v6873
  %v6886 = vpack.c.b16 %v6883, %v6882
  %v6887 = vpack.c.b16 %v6885, %v6884
  %v6889 = vsel %vm40, %v6886, 0
  %v6892 = vsel %vm40, %v6887, 0
  %v6895 = vsel %vm47, %v6874, 0
  %v6898 = vsel %vm47, %v6875, 0
  %v6901 = vsel %vm47, %v6876, 0
  %v6904 = vsel %vm47, %v6877, 0
  %6906 = vmatprep.subr.bf16.mxu0 %v6898
  %6907 = vmatpush1.bf16.msra.mxu0 %v6895
  %6908 = vmatprep.subr.bf16.mxu0 0
  %6909 = vmatpush1.bf16.msra.mxu0 0
  %6910 = vmatprep.subr.bf16.mxu0 0
  %6911 = vmatpush1.bf16.msra.mxu0 0
  %6912 = vmatprep.subr.bf16.mxu0 0
  %6913 = vmatpush1.bf16.msra.mxu0 0
  %6914 = vmatprep.subr.bf16.mxu0 0
  %6915 = vmatpush1.bf16.msra.mxu0 0
  %6916 = vmatprep.subr.bf16.mxu0 0
  %6917 = vmatpush1.bf16.msra.mxu0 0
  %6918 = vmatprep.subr.bf16.mxu0 0
  %6919 = vmatpush1.bf16.msra.mxu0 0
  %6920 = vmatprep.subr.bf16.mxu0 0
  %6921 = vmatpush1.bf16.msra.mxu0 0
  %6922 = vmatprep.subr.bf16.mxu0 0
  %6923 = vmatpush1.bf16.msra.mxu0 0
  %6924 = vmatprep.subr.bf16.mxu0 0
  %6925 = vmatpush1.bf16.msra.mxu0 0
  %6926 = vmatprep.subr.bf16.mxu0 0
  %6927 = vmatpush1.bf16.msra.mxu0 0
  %6928 = vmatprep.subr.bf16.mxu0 0
  %6929 = vmatpush1.bf16.msra.mxu0 0
  %6930 = vmatprep.subr.bf16.mxu0 0
  %6931 = vmatpush1.bf16.msra.mxu0 0
  %6932 = vmatprep.subr.bf16.mxu0 0
  %6933 = vmatpush1.bf16.msra.mxu0 0
  %6934 = vmatprep.subr.bf16.mxu0 0
  %6935 = vmatpush1.bf16.msra.mxu0 0
  %6936 = vmatprep.subr.bf16.mxu0 0
  %6937 = vmatpush1.bf16.msra.mxu0 0
  %6938 = vmatprep.mubr.bf16.mxu0 0
  %6939 = vmatmul.mubr.bf16.gmra.mrb[0].mxu0 %v6889
  %v6940 = vpop.f32.mrb[0].mxu0
  %v6941 = vadd.f32 0.0, %v6940
  %v6942 = vpop.f32.mrb[0].mxu0
  %v6943 = vadd.f32 0.0, %v6942
  %v6944 = vpop.f32.mrb[0].mxu0
  %v6945 = vadd.f32 0.0, %v6944
  %v6946 = vpop.f32.mrb[0].mxu0
  %v6947 = vadd.f32 0.0, %v6946
  %6948 = vmatprep.mubr.bf16.mxu0 0
  %6949 = vmatmul.mubr.bf16.gmra.mrb[0].mxu0 %v6892
  %v6950 = vpop.f32.mrb[0].mxu0
  %v6951 = vadd.f32 0.0, %v6950
  %v6952 = vpop.f32.mrb[0].mxu0
  %v6953 = vadd.f32 0.0, %v6952
  %v6954 = vpop.f32.mrb[0].mxu0
  %v6955 = vadd.f32 0.0, %v6954
  %v6956 = vpop.f32.mrb[0].mxu0
  %v6957 = vadd.f32 0.0, %v6956
  %6958 = vdwg.mxu0
  %6959 = vmatprep.subr.bf16.mxu0 %v6904
  %6960 = vmatpush1.bf16.msra.mxu0 %v6901
  %6961 = vmatprep.subr.bf16.mxu0 0
  %6962 = vmatpush1.bf16.msra.mxu0 0
  %6963 = vmatprep.subr.bf16.mxu0 0
  %6964 = vmatpush1.bf16.msra.mxu0 0
  %6965 = vmatprep.subr.bf16.mxu0 0
  %6966 = vmatpush1.bf16.msra.mxu0 0
  %6967 = vmatprep.subr.bf16.mxu0 0
  %6968 = vmatpush1.bf16.msra.mxu0 0
  %6969 = vmatprep.subr.bf16.mxu0 0
  %6970 = vmatpush1.bf16.msra.mxu0 0
  %6971 = vmatprep.subr.bf16.mxu0 0
  %6972 = vmatpush1.bf16.msra.mxu0 0
  %6973 = vmatprep.subr.bf16.mxu0 0
  %6974 = vmatpush1.bf16.msra.mxu0 0
  %6975 = vmatprep.subr.bf16.mxu0 0
  %6976 = vmatpush1.bf16.msra.mxu0 0
  %6977 = vmatprep.subr.bf16.mxu0 0
  %6978 = vmatpush1.bf16.msra.mxu0 0
  %6979 = vmatprep.subr.bf16.mxu0 0
  %6980 = vmatpush1.bf16.msra.mxu0 0
  %6981 = vmatprep.subr.bf16.mxu0 0
  %6982 = vmatpush1.bf16.msra.mxu0 0
  %6983 = vmatprep.subr.bf16.mxu0 0
  %6984 = vmatpush1.bf16.msra.mxu0 0
  %6985 = vmatprep.subr.bf16.mxu0 0
  %6986 = vmatpush1.bf16.msra.mxu0 0
  %6987 = vmatprep.subr.bf16.mxu0 0
  %6988 = vmatpush1.bf16.msra.mxu0 0
  %6989 = vmatprep.subr.bf16.mxu0 0
  %6990 = vmatpush1.bf16.msra.mxu0 0
  %6991 = vmatprep.mubr.bf16.mxu0 0
  %6992 = vmatmul.mubr.bf16.gmra.mrb[0].mxu0 %v6889
  %v6993 = vpop.f32.mrb[0].mxu0
  %v6994 = vadd.f32 0.0, %v6993
  %v6995 = vpop.f32.mrb[0].mxu0
  %v6996 = vadd.f32 0.0, %v6995
  %v6997 = vpop.f32.mrb[0].mxu0
  %v6998 = vadd.f32 0.0, %v6997
  %v6999 = vpop.f32.mrb[0].mxu0
  %v7000 = vadd.f32 0.0, %v6999
  %7001 = vmatprep.mubr.bf16.mxu0 0
  %7002 = vmatmul.mubr.bf16.gmra.mrb[0].mxu0 %v6892
  %v7003 = vpop.f32.mrb[0].mxu0
  %v7004 = vadd.f32 0.0, %v7003
  %v7005 = vpop.f32.mrb[0].mxu0
  %v7006 = vadd.f32 0.0, %v7005
  %v7007 = vpop.f32.mrb[0].mxu0
  %v7008 = vadd.f32 0.0, %v7007
  %v7009 = vpop.f32.mrb[0].mxu0
  %v7010 = vadd.f32 0.0, %v7009
  %7011 = vdwg.mxu0
  %v7012 = vmax.f32 %v6941, 0.0
  %v7013 = vmax.f32 %v6943, 0.0
  %v7014 = vmax.f32 %v6994, 0.0
  %v7015 = vmax.f32 %v6996, 0.0
  %v7016 = vmax.f32 %v6945, 0.0
  %v7017 = vmax.f32 %v6947, 0.0
  %v7018 = vmax.f32 %v6998, 0.0
  %v7019 = vmax.f32 %v7000, 0.0
  %v7020 = vmax.f32 %v6951, 0.0
  %v7021 = vmax.f32 %v6953, 0.0
  %v7022 = vmax.f32 %v7004, 0.0
  %v7023 = vmax.f32 %v7006, 0.0
  %v7024 = vmax.f32 %v6955, 0.0
  %v7025 = vmax.f32 %v6957, 0.0
  %v7026 = vmax.f32 %v7008, 0.0
  %v7027 = vmax.f32 %v7010, 0.0
  %s7028 = scalar_lea.vmem %s2, 76
  %v7029 = vld [vmem:[%s7028] sm:$0xf]
  %v7030 = vpack.c.bf16 %v7016, %v7012
  %v7031 = vpack.c.bf16 %v7017, %v7013
  %v7032 = vpack.c.bf16 %v7018, %v7014
  %v7033 = vpack.c.bf16 %v7019, %v7015
  %v7034 = vpack.c.bf16 %v7024, %v7020
  %v7035 = vpack.c.bf16 %v7025, %v7021
  %v7036 = vpack.c.bf16 %v7026, %v7022
  %v7037 = vpack.c.bf16 %v7027, %v7023
  %s7038 = scalar_lea.vmem %s3, 152
  %v7039 = vld [vmem:[%s7038] sm:$0xff]
  %7041 = vset.pattern.permute.xlu0 0
  %7042 = vperm.xlu0 %7041, %v7039
  %v7043 = vpop.permute.xlu0 %7042
  %v7046 = vsel %vm197, %v7029, 0
  %7048 = vmatprep.subr.bf16.mxu0 %v7031
  %7049 = vmatpush1.bf16.msra.mxu0 %v7030
  %7050 = vmatprep.subr.bf16.mxu0 %v7035
  %7051 = vmatpush1.bf16.msra.mxu0 %v7034
  %7052 = vmatprep.subr.bf16.mxu0 0
  %7053 = vmatpush1.bf16.msra.mxu0 0
  %7054 = vmatprep.subr.bf16.mxu0 0
  %7055 = vmatpush1.bf16.msra.mxu0 0
  %7056 = vmatprep.subr.bf16.mxu0 0
  %7057 = vmatpush1.bf16.msra.mxu0 0
  %7058 = vmatprep.subr.bf16.mxu0 0
  %7059 = vmatpush1.bf16.msra.mxu0 0
  %7060 = vmatprep.subr.bf16.mxu0 0
  %7061 = vmatpush1.bf16.msra.mxu0 0
  %7062 = vmatprep.subr.bf16.mxu0 0
  %7063 = vmatpush1.bf16.msra.mxu0 0
  %7064 = vmatprep.subr.bf16.mxu0 0
  %7065 = vmatpush1.bf16.msra.mxu0 0
  %7066 = vmatprep.subr.bf16.mxu0 0
  %7067 = vmatpush1.bf16.msra.mxu0 0
  %7068 = vmatprep.subr.bf16.mxu0 0
  %7069 = vmatpush1.bf16.msra.mxu0 0
  %7070 = vmatprep.subr.bf16.mxu0 0
  %7071 = vmatpush1.bf16.msra.mxu0 0
  %7072 = vmatprep.subr.bf16.mxu0 0
  %7073 = vmatpush1.bf16.msra.mxu0 0
  %7074 = vmatprep.subr.bf16.mxu0 0
  %7075 = vmatpush1.bf16.msra.mxu0 0
  %7076 = vmatprep.subr.bf16.mxu0 0
  %7077 = vmatpush1.bf16.msra.mxu0 0
  %7078 = vmatprep.subr.bf16.mxu0 0
  %7079 = vmatpush1.bf16.msra.mxu0 0
  %7080 = vmatprep.mubr.bf16.mxu0 0
  %7081 = vmatmul.mubr.bf16.gmra.mrb[0].mxu0 %v7046
  %v7082 = vpop.f32.mrb[0].mxu0
  %v7083 = vadd.f32 %v7043, %v7082
  %v7084 = vpop.f32.mrb[0].mxu0
  %v7085 = vadd.f32 %v7043, %v7084
  %v7086 = vpop.f32.mrb[0].mxu0
  %v7087 = vpop.f32.mrb[0].mxu0
  %7088 = vdwg.mxu0
  %7089 = vmatprep.subr.bf16.mxu0 %v7033
  %7090 = vmatpush1.bf16.msra.mxu0 %v7032
  %7091 = vmatprep.subr.bf16.mxu0 %v7037
  %7092 = vmatpush1.bf16.msra.mxu0 %v7036
  %7093 = vmatprep.subr.bf16.mxu0 0
  %7094 = vmatpush1.bf16.msra.mxu0 0
  %7095 = vmatprep.subr.bf16.mxu0 0
  %7096 = vmatpush1.bf16.msra.mxu0 0
  %7097 = vmatprep.subr.bf16.mxu0 0
  %7098 = vmatpush1.bf16.msra.mxu0 0
  %7099 = vmatprep.subr.bf16.mxu0 0
  %7100 = vmatpush1.bf16.msra.mxu0 0
  %7101 = vmatprep.subr.bf16.mxu0 0
  %7102 = vmatpush1.bf16.msra.mxu0 0
  %7103 = vmatprep.subr.bf16.mxu0 0
  %7104 = vmatpush1.bf16.msra.mxu0 0
  %7105 = vmatprep.subr.bf16.mxu0 0
  %7106 = vmatpush1.bf16.msra.mxu0 0
  %7107 = vmatprep.subr.bf16.mxu0 0
  %7108 = vmatpush1.bf16.msra.mxu0 0
  %7109 = vmatprep.subr.bf16.mxu0 0
  %7110 = vmatpush1.bf16.msra.mxu0 0
  %7111 = vmatprep.subr.bf16.mxu0 0
  %7112 = vmatpush1.bf16.msra.mxu0 0
  %7113 = vmatprep.subr.bf16.mxu0 0
  %7114 = vmatpush1.bf16.msra.mxu0 0
  %7115 = vmatprep.subr.bf16.mxu0 0
  %7116 = vmatpush1.bf16.msra.mxu0 0
  %7117 = vmatprep.subr.bf16.mxu0 0
  %7118 = vmatpush1.bf16.msra.mxu0 0
  %7119 = vmatprep.subr.bf16.mxu0 0
  %7120 = vmatpush1.bf16.msra.mxu0 0
  %7121 = vmatprep.mubr.bf16.mxu0 0
  %7122 = vmatmul.mubr.bf16.gmra.mrb[0].mxu0 %v7046
  %v7123 = vpop.f32.mrb[0].mxu0
  %v7124 = vadd.f32 %v7043, %v7123
  %v7125 = vpop.f32.mrb[0].mxu0
  %v7126 = vadd.f32 %v7043, %v7125
  %v7127 = vpop.f32.mrb[0].mxu0
  %v7128 = vpop.f32.mrb[0].mxu0
  %7129 = vdwg.mxu0
  %v7130 = vmul.f32 %v6865, -3.5389676
  %v7131 = vmul.f32 %v6866, -3.5389676
  %v7132 = vmul.f32 %v6867, -3.5389676
  %v7133 = vmul.f32 %v6868, -3.5389676
  %v7134 = vadd.f32 %v7083, %v7130
  %v7135 = vadd.f32 %v7085, %v7131
  %v7136 = vadd.f32 %v7124, %v7132
  %v7137 = vadd.f32 %v7126, %v7133
  %v7138 = vmul.f32 %v7134, 2.0
  %v7139 = vmul.f32 %v7135, 2.0
  %v7140 = vmul.f32 %v7136, 2.0
  %v7141 = vmul.f32 %v7137, 2.0
  %v7142 = vadd.f32 %v6857, %v7138
  %v7143 = vadd.f32 %v6858, %v7139
  %v7144 = vadd.f32 %v6859, %v7140
  %v7145 = vadd.f32 %v6860, %v7141
  %v7146 = vmul.f32 %v7134, -0.04995
  %v7147 = vmul.f32 %v7135, -0.04995
  %v7148 = vmul.f32 %v7136, -0.04995
  %v7149 = vmul.f32 %v7137, -0.04995
  %v7150 = vadd.f32 %v6588, %v7146
  %v7151 = vadd.f32 %v6589, %v7147
  %v7152 = vadd.f32 %v6590, %v7148
  %v7153 = vadd.f32 %v6591, %v7149
  %v7154 = vpack.c.bf16 %v7150, %v7150
  %v7155 = vpack.c.bf16 %v7151, %v7151
  %v7156 = vpack.c.bf16 %v7152, %v7152
  %v7157 = vpack.c.bf16 %v7153, %v7153
  %v7159 = vsel %vm47, %v7154, 0
  %v7162 = vsel %vm47, %v7155, 0
  %v7165 = vsel %vm47, %v7156, 0
  %v7168 = vsel %vm47, %v7157, 0
  %7170 = vmatprep.subr.bf16.mxu0 %v7162
  %7171 = vmatpush1.bf16.msra.mxu0 %v7159
  %7172 = vmatprep.subr.bf16.mxu0 0
  %7173 = vmatpush1.bf16.msra.mxu0 0
  %7174 = vmatprep.subr.bf16.mxu0 0
  %7175 = vmatpush1.bf16.msra.mxu0 0
  %7176 = vmatprep.subr.bf16.mxu0 0
  %7177 = vmatpush1.bf16.msra.mxu0 0
  %7178 = vmatprep.subr.bf16.mxu0 0
  %7179 = vmatpush1.bf16.msra.mxu0 0
  %7180 = vmatprep.subr.bf16.mxu0 0
  %7181 = vmatpush1.bf16.msra.mxu0 0
  %7182 = vmatprep.subr.bf16.mxu0 0
  %7183 = vmatpush1.bf16.msra.mxu0 0
  %7184 = vmatprep.subr.bf16.mxu0 0
  %7185 = vmatpush1.bf16.msra.mxu0 0
  %7186 = vmatprep.subr.bf16.mxu0 0
  %7187 = vmatpush1.bf16.msra.mxu0 0
  %7188 = vmatprep.subr.bf16.mxu0 0
  %7189 = vmatpush1.bf16.msra.mxu0 0
  %7190 = vmatprep.subr.bf16.mxu0 0
  %7191 = vmatpush1.bf16.msra.mxu0 0
  %7192 = vmatprep.subr.bf16.mxu0 0
  %7193 = vmatpush1.bf16.msra.mxu0 0
  %7194 = vmatprep.subr.bf16.mxu0 0
  %7195 = vmatpush1.bf16.msra.mxu0 0
  %7196 = vmatprep.subr.bf16.mxu0 0
  %7197 = vmatpush1.bf16.msra.mxu0 0
  %7198 = vmatprep.subr.bf16.mxu0 0
  %7199 = vmatpush1.bf16.msra.mxu0 0
  %7200 = vmatprep.subr.bf16.mxu0 0
  %7201 = vmatpush1.bf16.msra.mxu0 0
  %7202 = vmatprep.mubr.bf16.mxu0 0
  %7203 = vmatmul.mubr.bf16.gmra.mrb[0].mxu0 %v6889
  %v7204 = vpop.f32.mrb[0].mxu0
  %v7205 = vadd.f32 0.0, %v7204
  %v7206 = vpop.f32.mrb[0].mxu0
  %v7207 = vadd.f32 0.0, %v7206
  %v7208 = vpop.f32.mrb[0].mxu0
  %v7209 = vadd.f32 0.0, %v7208
  %v7210 = vpop.f32.mrb[0].mxu0
  %v7211 = vadd.f32 0.0, %v7210
  %7212 = vmatprep.mubr.bf16.mxu0 0
  %7213 = vmatmul.mubr.bf16.gmra.mrb[0].mxu0 %v6892
  %v7214 = vpop.f32.mrb[0].mxu0
  %v7215 = vadd.f32 0.0, %v7214
  %v7216 = vpop.f32.mrb[0].mxu0
  %v7217 = vadd.f32 0.0, %v7216
  %v7218 = vpop.f32.mrb[0].mxu0
  %v7219 = vadd.f32 0.0, %v7218
  %v7220 = vpop.f32.mrb[0].mxu0
  %v7221 = vadd.f32 0.0, %v7220
  %7222 = vdwg.mxu0
  %7223 = vmatprep.subr.bf16.mxu0 %v7168
  %7224 = vmatpush1.bf16.msra.mxu0 %v7165
  %7225 = vmatprep.subr.bf16.mxu0 0
  %7226 = vmatpush1.bf16.msra.mxu0 0
  %7227 = vmatprep.subr.bf16.mxu0 0
  %7228 = vmatpush1.bf16.msra.mxu0 0
  %7229 = vmatprep.subr.bf16.mxu0 0
  %7230 = vmatpush1.bf16.msra.mxu0 0
  %7231 = vmatprep.subr.bf16.mxu0 0
  %7232 = vmatpush1.bf16.msra.mxu0 0
  %7233 = vmatprep.subr.bf16.mxu0 0
  %7234 = vmatpush1.bf16.msra.mxu0 0
  %7235 = vmatprep.subr.bf16.mxu0 0
  %7236 = vmatpush1.bf16.msra.mxu0 0
  %7237 = vmatprep.subr.bf16.mxu0 0
  %7238 = vmatpush1.bf16.msra.mxu0 0
  %7239 = vmatprep.subr.bf16.mxu0 0
  %7240 = vmatpush1.bf16.msra.mxu0 0
  %7241 = vmatprep.subr.bf16.mxu0 0
  %7242 = vmatpush1.bf16.msra.mxu0 0
  %7243 = vmatprep.subr.bf16.mxu0 0
  %7244 = vmatpush1.bf16.msra.mxu0 0
  %7245 = vmatprep.subr.bf16.mxu0 0
  %7246 = vmatpush1.bf16.msra.mxu0 0
  %7247 = vmatprep.subr.bf16.mxu0 0
  %7248 = vmatpush1.bf16.msra.mxu0 0
  %7249 = vmatprep.subr.bf16.mxu0 0
  %7250 = vmatpush1.bf16.msra.mxu0 0
  %7251 = vmatprep.subr.bf16.mxu0 0
  %7252 = vmatpush1.bf16.msra.mxu0 0
  %7253 = vmatprep.subr.bf16.mxu0 0
  %7254 = vmatpush1.bf16.msra.mxu0 0
  %7255 = vmatprep.mubr.bf16.mxu0 0
  %7256 = vmatmul.mubr.bf16.gmra.mrb[0].mxu0 %v6889
  %v7257 = vpop.f32.mrb[0].mxu0
  %v7258 = vadd.f32 0.0, %v7257
  %v7259 = vpop.f32.mrb[0].mxu0
  %v7260 = vadd.f32 0.0, %v7259
  %v7261 = vpop.f32.mrb[0].mxu0
  %v7262 = vadd.f32 0.0, %v7261
  %v7263 = vpop.f32.mrb[0].mxu0
  %v7264 = vadd.f32 0.0, %v7263
  %7265 = vmatprep.mubr.bf16.mxu0 0
  %7266 = vmatmul.mubr.bf16.gmra.mrb[0].mxu0 %v6892
  %v7267 = vpop.f32.mrb[0].mxu0
  %v7268 = vadd.f32 0.0, %v7267
  %v7269 = vpop.f32.mrb[0].mxu0
  %v7270 = vadd.f32 0.0, %v7269
  %v7271 = vpop.f32.mrb[0].mxu0
  %v7272 = vadd.f32 0.0, %v7271
  %v7273 = vpop.f32.mrb[0].mxu0
  %v7274 = vadd.f32 0.0, %v7273
  %7275 = vdwg.mxu0
  %v7276 = vmax.f32 %v7205, 0.0
  %v7277 = vmax.f32 %v7207, 0.0
  %v7278 = vmax.f32 %v7258, 0.0
  %v7279 = vmax.f32 %v7260, 0.0
  %v7280 = vmax.f32 %v7209, 0.0
  %v7281 = vmax.f32 %v7211, 0.0
  %v7282 = vmax.f32 %v7262, 0.0
  %v7283 = vmax.f32 %v7264, 0.0
  %v7284 = vmax.f32 %v7215, 0.0
  %v7285 = vmax.f32 %v7217, 0.0
  %v7286 = vmax.f32 %v7268, 0.0
  %v7287 = vmax.f32 %v7270, 0.0
  %v7288 = vmax.f32 %v7219, 0.0
  %v7289 = vmax.f32 %v7221, 0.0
  %v7290 = vmax.f32 %v7272, 0.0
  %v7291 = vmax.f32 %v7274, 0.0
  %v7292 = vpack.c.bf16 %v7280, %v7276
  %v7293 = vpack.c.bf16 %v7281, %v7277
  %v7294 = vpack.c.bf16 %v7282, %v7278
  %v7295 = vpack.c.bf16 %v7283, %v7279
  %v7296 = vpack.c.bf16 %v7288, %v7284
  %v7297 = vpack.c.bf16 %v7289, %v7285
  %v7298 = vpack.c.bf16 %v7290, %v7286
  %v7299 = vpack.c.bf16 %v7291, %v7287
  %7300 = vmatprep.subr.bf16.mxu0 %v7293
  %7301 = vmatpush1.bf16.msra.mxu0 %v7292
  %7302 = vmatprep.subr.bf16.mxu0 %v7297
  %7303 = vmatpush1.bf16.msra.mxu0 %v7296
  %7304 = vmatprep.subr.bf16.mxu0 0
  %7305 = vmatpush1.bf16.msra.mxu0 0
  %7306 = vmatprep.subr.bf16.mxu0 0
  %7307 = vmatpush1.bf16.msra.mxu0 0
  %7308 = vmatprep.subr.bf16.mxu0 0
  %7309 = vmatpush1.bf16.msra.mxu0 0
  %7310 = vmatprep.subr.bf16.mxu0 0
  %7311 = vmatpush1.bf16.msra.mxu0 0
  %7312 = vmatprep.subr.bf16.mxu0 0
  %7313 = vmatpush1.bf16.msra.mxu0 0
  %7314 = vmatprep.subr.bf16.mxu0 0
  %7315 = vmatpush1.bf16.msra.mxu0 0
  %7316 = vmatprep.subr.bf16.mxu0 0
  %7317 = vmatpush1.bf16.msra.mxu0 0
  %7318 = vmatprep.subr.bf16.mxu0 0
  %7319 = vmatpush1.bf16.msra.mxu0 0
  %7320 = vmatprep.subr.bf16.mxu0 0
  %7321 = vmatpush1.bf16.msra.mxu0 0
  %7322 = vmatprep.subr.bf16.mxu0 0
  %7323 = vmatpush1.bf16.msra.mxu0 0
  %7324 = vmatprep.subr.bf16.mxu0 0
  %7325 = vmatpush1.bf16.msra.mxu0 0
  %7326 = vmatprep.subr.bf16.mxu0 0
  %7327 = vmatpush1.bf16.msra.mxu0 0
  %7328 = vmatprep.subr.bf16.mxu0 0
  %7329 = vmatpush1.bf16.msra.mxu0 0
  %7330 = vmatprep.subr.bf16.mxu0 0
  %7331 = vmatpush1.bf16.msra.mxu0 0
  %7332 = vmatprep.mubr.bf16.mxu0 0
  %7333 = vmatmul.mubr.bf16.gmra.mrb[0].mxu0 %v7046
  %v7334 = vpop.f32.mrb[0].mxu0
  %v7335 = vadd.f32 %v7043, %v7334
  %v7336 = vpop.f32.mrb[0].mxu0
  %v7337 = vadd.f32 %v7043, %v7336
  %v7338 = vpop.f32.mrb[0].mxu0
  %v7339 = vpop.f32.mrb[0].mxu0
  %7340 = vdwg.mxu0
  %7341 = vmatprep.subr.bf16.mxu0 %v7295
  %7342 = vmatpush1.bf16.msra.mxu0 %v7294
  %7343 = vmatprep.subr.bf16.mxu0 %v7299
  %7344 = vmatpush1.bf16.msra.mxu0 %v7298
  %7345 = vmatprep.subr.bf16.mxu0 0
  %7346 = vmatpush1.bf16.msra.mxu0 0
  %7347 = vmatprep.subr.bf16.mxu0 0
  %7348 = vmatpush1.bf16.msra.mxu0 0
  %7349 = vmatprep.subr.bf16.mxu0 0
  %7350 = vmatpush1.bf16.msra.mxu0 0
  %7351 = vmatprep.subr.bf16.mxu0 0
  %7352 = vmatpush1.bf16.msra.mxu0 0
  %7353 = vmatprep.subr.bf16.mxu0 0
  %7354 = vmatpush1.bf16.msra.mxu0 0
  %7355 = vmatprep.subr.bf16.mxu0 0
  %7356 = vmatpush1.bf16.msra.mxu0 0
  %7357 = vmatprep.subr.bf16.mxu0 0
  %7358 = vmatpush1.bf16.msra.mxu0 0
  %7359 = vmatprep.subr.bf16.mxu0 0
  %7360 = vmatpush1.bf16.msra.mxu0 0
  %7361 = vmatprep.subr.bf16.mxu0 0
  %7362 = vmatpush1.bf16.msra.mxu0 0
  %7363 = vmatprep.subr.bf16.mxu0 0
  %7364 = vmatpush1.bf16.msra.mxu0 0
  %7365 = vmatprep.subr.bf16.mxu0 0
  %7366 = vmatpush1.bf16.msra.mxu0 0
  %7367 = vmatprep.subr.bf16.mxu0 0
  %7368 = vmatpush1.bf16.msra.mxu0 0
  %7369 = vmatprep.subr.bf16.mxu0 0
  %7370 = vmatpush1.bf16.msra.mxu0 0
  %7371 = vmatprep.subr.bf16.mxu0 0
  %7372 = vmatpush1.bf16.msra.mxu0 0
  %7373 = vmatprep.mubr.bf16.mxu0 0
  %7374 = vmatmul.mubr.bf16.gmra.mrb[0].mxu0 %v7046
  %v7375 = vpop.f32.mrb[0].mxu0
  %v7376 = vadd.f32 %v7043, %v7375
  %v7377 = vpop.f32.mrb[0].mxu0
  %v7378 = vadd.f32 %v7043, %v7377
  %v7379 = vpop.f32.mrb[0].mxu0
  %v7380 = vpop.f32.mrb[0].mxu0
  %7381 = vdwg.mxu0
  %v7382 = vmul.f32 %v7150, -3.5389676
  %v7383 = vmul.f32 %v7151, -3.5389676
  %v7384 = vmul.f32 %v7152, -3.5389676
  %v7385 = vmul.f32 %v7153, -3.5389676
  %v7386 = vadd.f32 %v7335, %v7382
  %v7387 = vadd.f32 %v7337, %v7383
  %v7388 = vadd.f32 %v7376, %v7384
  %v7389 = vadd.f32 %v7378, %v7385
  %v7390 = vmul.f32 %v7386, 2.0
  %v7391 = vmul.f32 %v7387, 2.0
  %v7392 = vmul.f32 %v7388, 2.0
  %v7393 = vmul.f32 %v7389, 2.0
  %v7394 = vadd.f32 %v7142, %v7390
  %v7395 = vadd.f32 %v7143, %v7391
  %v7396 = vadd.f32 %v7144, %v7392
  %v7397 = vadd.f32 %v7145, %v7393
  %v7398 = vmul.f32 %v7386, -0.0999
  %v7399 = vmul.f32 %v7387, -0.0999
  %v7400 = vmul.f32 %v7388, -0.0999
  %v7401 = vmul.f32 %v7389, -0.0999
  %v7402 = vadd.f32 %v6588, %v7398
  %v7403 = vadd.f32 %v6589, %v7399
  %v7404 = vadd.f32 %v6590, %v7400
  %v7405 = vadd.f32 %v6591, %v7401
  %s7406 = scalar_lea.vmem %s1, 320
  %v7407 = vld [vmem:[%s7406] sm:$0xf]
  %v7408 = vld [vmem:[%s7406 + $0x4] sm:$0xf]
  %v7409 = vld [vmem:[%s7406 + $0x8] sm:$0xf]
  %v7410 = vld [vmem:[%s7406 + $0xc] sm:$0xf]
  %v7411 = vpack.c.bf16 %v7402, %v7402
  %v7412 = vpack.c.bf16 %v7403, %v7403
  %v7413 = vpack.c.bf16 %v7404, %v7404
  %v7414 = vpack.c.bf16 %v7405, %v7405
  %v7419 = vunpack.c.l.b16 %v7407
  %v7420 = vunpack.c.l.b16 %v7408
  %v7421 = vunpack.c.l.b16 %v7409
  %v7422 = vunpack.c.l.b16 %v7410
  %v7423 = vpack.c.b16 %v7420, %v7419
  %v7424 = vpack.c.b16 %v7422, %v7421
  %v7426 = vsel %vm40, %v7423, 0
  %v7429 = vsel %vm40, %v7424, 0
  %v7432 = vsel %vm47, %v7411, 0
  %v7435 = vsel %vm47, %v7412, 0
  %v7438 = vsel %vm47, %v7413, 0
  %v7441 = vsel %vm47, %v7414, 0
  %7443 = vmatprep.subr.bf16.mxu0 %v7435
  %7444 = vmatpush1.bf16.msra.mxu0 %v7432
  %7445 = vmatprep.subr.bf16.mxu0 0
  %7446 = vmatpush1.bf16.msra.mxu0 0
  %7447 = vmatprep.subr.bf16.mxu0 0
  %7448 = vmatpush1.bf16.msra.mxu0 0
  %7449 = vmatprep.subr.bf16.mxu0 0
  %7450 = vmatpush1.bf16.msra.mxu0 0
  %7451 = vmatprep.subr.bf16.mxu0 0
  %7452 = vmatpush1.bf16.msra.mxu0 0
  %7453 = vmatprep.subr.bf16.mxu0 0
  %7454 = vmatpush1.bf16.msra.mxu0 0
  %7455 = vmatprep.subr.bf16.mxu0 0
  %7456 = vmatpush1.bf16.msra.mxu0 0
  %7457 = vmatprep.subr.bf16.mxu0 0
  %7458 = vmatpush1.bf16.msra.mxu0 0
  %7459 = vmatprep.subr.bf16.mxu0 0
  %7460 = vmatpush1.bf16.msra.mxu0 0
  %7461 = vmatprep.subr.bf16.mxu0 0
  %7462 = vmatpush1.bf16.msra.mxu0 0
  %7463 = vmatprep.subr.bf16.mxu0 0
  %7464 = vmatpush1.bf16.msra.mxu0 0
  %7465 = vmatprep.subr.bf16.mxu0 0
  %7466 = vmatpush1.bf16.msra.mxu0 0
  %7467 = vmatprep.subr.bf16.mxu0 0
  %7468 = vmatpush1.bf16.msra.mxu0 0
  %7469 = vmatprep.subr.bf16.mxu0 0
  %7470 = vmatpush1.bf16.msra.mxu0 0
  %7471 = vmatprep.subr.bf16.mxu0 0
  %7472 = vmatpush1.bf16.msra.mxu0 0
  %7473 = vmatprep.subr.bf16.mxu0 0
  %7474 = vmatpush1.bf16.msra.mxu0 0
  %7475 = vmatprep.mubr.bf16.mxu0 0
  %7476 = vmatmul.mubr.bf16.gmra.mrb[0].mxu0 %v7426
  %v7477 = vpop.f32.mrb[0].mxu0
  %v7478 = vadd.f32 0.0, %v7477
  %v7479 = vpop.f32.mrb[0].mxu0
  %v7480 = vadd.f32 0.0, %v7479
  %v7481 = vpop.f32.mrb[0].mxu0
  %v7482 = vadd.f32 0.0, %v7481
  %v7483 = vpop.f32.mrb[0].mxu0
  %v7484 = vadd.f32 0.0, %v7483
  %7485 = vmatprep.mubr.bf16.mxu0 0
  %7486 = vmatmul.mubr.bf16.gmra.mrb[0].mxu0 %v7429
  %v7487 = vpop.f32.mrb[0].mxu0
  %v7488 = vadd.f32 0.0, %v7487
  %v7489 = vpop.f32.mrb[0].mxu0
  %v7490 = vadd.f32 0.0, %v7489
  %v7491 = vpop.f32.mrb[0].mxu0
  %v7492 = vadd.f32 0.0, %v7491
  %v7493 = vpop.f32.mrb[0].mxu0
  %v7494 = vadd.f32 0.0, %v7493
  %7495 = vdwg.mxu0
  %7496 = vmatprep.subr.bf16.mxu0 %v7441
  %7497 = vmatpush1.bf16.msra.mxu0 %v7438
  %7498 = vmatprep.subr.bf16.mxu0 0
  %7499 = vmatpush1.bf16.msra.mxu0 0
  %7500 = vmatprep.subr.bf16.mxu0 0
  %7501 = vmatpush1.bf16.msra.mxu0 0
  %7502 = vmatprep.subr.bf16.mxu0 0
  %7503 = vmatpush1.bf16.msra.mxu0 0
  %7504 = vmatprep.subr.bf16.mxu0 0
  %7505 = vmatpush1.bf16.msra.mxu0 0
  %7506 = vmatprep.subr.bf16.mxu0 0
  %7507 = vmatpush1.bf16.msra.mxu0 0
  %7508 = vmatprep.subr.bf16.mxu0 0
  %7509 = vmatpush1.bf16.msra.mxu0 0
  %7510 = vmatprep.subr.bf16.mxu0 0
  %7511 = vmatpush1.bf16.msra.mxu0 0
  %7512 = vmatprep.subr.bf16.mxu0 0
  %7513 = vmatpush1.bf16.msra.mxu0 0
  %7514 = vmatprep.subr.bf16.mxu0 0
  %7515 = vmatpush1.bf16.msra.mxu0 0
  %7516 = vmatprep.subr.bf16.mxu0 0
  %7517 = vmatpush1.bf16.msra.mxu0 0
  %7518 = vmatprep.subr.bf16.mxu0 0
  %7519 = vmatpush1.bf16.msra.mxu0 0
  %7520 = vmatprep.subr.bf16.mxu0 0
  %7521 = vmatpush1.bf16.msra.mxu0 0
  %7522 = vmatprep.subr.bf16.mxu0 0
  %7523 = vmatpush1.bf16.msra.mxu0 0
  %7524 = vmatprep.subr.bf16.mxu0 0
  %7525 = vmatpush1.bf16.msra.mxu0 0
  %7526 = vmatprep.subr.bf16.mxu0 0
  %7527 = vmatpush1.bf16.msra.mxu0 0
  %7528 = vmatprep.mubr.bf16.mxu0 0
  %7529 = vmatmul.mubr.bf16.gmra.mrb[0].mxu0 %v7426
  %v7530 = vpop.f32.mrb[0].mxu0
  %v7531 = vadd.f32 0.0, %v7530
  %v7532 = vpop.f32.mrb[0].mxu0
  %v7533 = vadd.f32 0.0, %v7532
  %v7534 = vpop.f32.mrb[0].mxu0
  %v7535 = vadd.f32 0.0, %v7534
  %v7536 = vpop.f32.mrb[0].mxu0
  %v7537 = vadd.f32 0.0, %v7536
  %7538 = vmatprep.mubr.bf16.mxu0 0
  %7539 = vmatmul.mubr.bf16.gmra.mrb[0].mxu0 %v7429
  %v7540 = vpop.f32.mrb[0].mxu0
  %v7541 = vadd.f32 0.0, %v7540
  %v7542 = vpop.f32.mrb[0].mxu0
  %v7543 = vadd.f32 0.0, %v7542
  %v7544 = vpop.f32.mrb[0].mxu0
  %v7545 = vadd.f32 0.0, %v7544
  %v7546 = vpop.f32.mrb[0].mxu0
  %v7547 = vadd.f32 0.0, %v7546
  %7548 = vdwg.mxu0
  %v7549 = vmax.f32 %v7478, 0.0
  %v7550 = vmax.f32 %v7480, 0.0
  %v7551 = vmax.f32 %v7531, 0.0
  %v7552 = vmax.f32 %v7533, 0.0
  %v7553 = vmax.f32 %v7482, 0.0
  %v7554 = vmax.f32 %v7484, 0.0
  %v7555 = vmax.f32 %v7535, 0.0
  %v7556 = vmax.f32 %v7537, 0.0
  %v7557 = vmax.f32 %v7488, 0.0
  %v7558 = vmax.f32 %v7490, 0.0
  %v7559 = vmax.f32 %v7541, 0.0
  %v7560 = vmax.f32 %v7543, 0.0
  %v7561 = vmax.f32 %v7492, 0.0
  %v7562 = vmax.f32 %v7494, 0.0
  %v7563 = vmax.f32 %v7545, 0.0
  %v7564 = vmax.f32 %v7547, 0.0
  %s7565 = scalar_lea.vmem %s2, 80
  %v7566 = vld [vmem:[%s7565] sm:$0xf]
  %v7567 = vpack.c.bf16 %v7553, %v7549
  %v7568 = vpack.c.bf16 %v7554, %v7550
  %v7569 = vpack.c.bf16 %v7555, %v7551
  %v7570 = vpack.c.bf16 %v7556, %v7552
  %v7571 = vpack.c.bf16 %v7561, %v7557
  %v7572 = vpack.c.bf16 %v7562, %v7558
  %v7573 = vpack.c.bf16 %v7563, %v7559
  %v7574 = vpack.c.bf16 %v7564, %v7560
  %s7575 = scalar_lea.vmem %s3, 160
  %v7576 = vld [vmem:[%s7575] sm:$0xff]
  %7578 = vset.pattern.permute.xlu0 0
  %7579 = vperm.xlu0 %7578, %v7576
  %v7580 = vpop.permute.xlu0 %7579
  %v7583 = vsel %vm197, %v7566, 0
  %7585 = vmatprep.subr.bf16.mxu0 %v7568
  %7586 = vmatpush1.bf16.msra.mxu0 %v7567
  %7587 = vmatprep.subr.bf16.mxu0 %v7572
  %7588 = vmatpush1.bf16.msra.mxu0 %v7571
  %7589 = vmatprep.subr.bf16.mxu0 0
  %7590 = vmatpush1.bf16.msra.mxu0 0
  %7591 = vmatprep.subr.bf16.mxu0 0
  %7592 = vmatpush1.bf16.msra.mxu0 0
  %7593 = vmatprep.subr.bf16.mxu0 0
  %7594 = vmatpush1.bf16.msra.mxu0 0
  %7595 = vmatprep.subr.bf16.mxu0 0
  %7596 = vmatpush1.bf16.msra.mxu0 0
  %7597 = vmatprep.subr.bf16.mxu0 0
  %7598 = vmatpush1.bf16.msra.mxu0 0
  %7599 = vmatprep.subr.bf16.mxu0 0
  %7600 = vmatpush1.bf16.msra.mxu0 0
  %7601 = vmatprep.subr.bf16.mxu0 0
  %7602 = vmatpush1.bf16.msra.mxu0 0
  %7603 = vmatprep.subr.bf16.mxu0 0
  %7604 = vmatpush1.bf16.msra.mxu0 0
  %7605 = vmatprep.subr.bf16.mxu0 0
  %7606 = vmatpush1.bf16.msra.mxu0 0
  %7607 = vmatprep.subr.bf16.mxu0 0
  %7608 = vmatpush1.bf16.msra.mxu0 0
  %7609 = vmatprep.subr.bf16.mxu0 0
  %7610 = vmatpush1.bf16.msra.mxu0 0
  %7611 = vmatprep.subr.bf16.mxu0 0
  %7612 = vmatpush1.bf16.msra.mxu0 0
  %7613 = vmatprep.subr.bf16.mxu0 0
  %7614 = vmatpush1.bf16.msra.mxu0 0
  %7615 = vmatprep.subr.bf16.mxu0 0
  %7616 = vmatpush1.bf16.msra.mxu0 0
  %7617 = vmatprep.mubr.bf16.mxu0 0
  %7618 = vmatmul.mubr.bf16.gmra.mrb[0].mxu0 %v7583
  %v7619 = vpop.f32.mrb[0].mxu0
  %v7620 = vadd.f32 %v7580, %v7619
  %v7621 = vpop.f32.mrb[0].mxu0
  %v7622 = vadd.f32 %v7580, %v7621
  %v7623 = vpop.f32.mrb[0].mxu0
  %v7624 = vpop.f32.mrb[0].mxu0
  %7625 = vdwg.mxu0
  %7626 = vmatprep.subr.bf16.mxu0 %v7570
  %7627 = vmatpush1.bf16.msra.mxu0 %v7569
  %7628 = vmatprep.subr.bf16.mxu0 %v7574
  %7629 = vmatpush1.bf16.msra.mxu0 %v7573
  %7630 = vmatprep.subr.bf16.mxu0 0
  %7631 = vmatpush1.bf16.msra.mxu0 0
  %7632 = vmatprep.subr.bf16.mxu0 0
  %7633 = vmatpush1.bf16.msra.mxu0 0
  %7634 = vmatprep.subr.bf16.mxu0 0
  %7635 = vmatpush1.bf16.msra.mxu0 0
  %7636 = vmatprep.subr.bf16.mxu0 0
  %7637 = vmatpush1.bf16.msra.mxu0 0
  %7638 = vmatprep.subr.bf16.mxu0 0
  %7639 = vmatpush1.bf16.msra.mxu0 0
  %7640 = vmatprep.subr.bf16.mxu0 0
  %7641 = vmatpush1.bf16.msra.mxu0 0
  %7642 = vmatprep.subr.bf16.mxu0 0
  %7643 = vmatpush1.bf16.msra.mxu0 0
  %7644 = vmatprep.subr.bf16.mxu0 0
  %7645 = vmatpush1.bf16.msra.mxu0 0
  %7646 = vmatprep.subr.bf16.mxu0 0
  %7647 = vmatpush1.bf16.msra.mxu0 0
  %7648 = vmatprep.subr.bf16.mxu0 0
  %7649 = vmatpush1.bf16.msra.mxu0 0
  %7650 = vmatprep.subr.bf16.mxu0 0
  %7651 = vmatpush1.bf16.msra.mxu0 0
  %7652 = vmatprep.subr.bf16.mxu0 0
  %7653 = vmatpush1.bf16.msra.mxu0 0
  %7654 = vmatprep.subr.bf16.mxu0 0
  %7655 = vmatpush1.bf16.msra.mxu0 0
  %7656 = vmatprep.subr.bf16.mxu0 0
  %7657 = vmatpush1.bf16.msra.mxu0 0
  %7658 = vmatprep.mubr.bf16.mxu0 0
  %7659 = vmatmul.mubr.bf16.gmra.mrb[0].mxu0 %v7583
  %v7660 = vpop.f32.mrb[0].mxu0
  %v7661 = vadd.f32 %v7580, %v7660
  %v7662 = vpop.f32.mrb[0].mxu0
  %v7663 = vadd.f32 %v7580, %v7662
  %v7664 = vpop.f32.mrb[0].mxu0
  %v7665 = vpop.f32.mrb[0].mxu0
  %7666 = vdwg.mxu0
  %v7667 = vmul.f32 %v7402, -3.041965
  %v7668 = vmul.f32 %v7403, -3.041965
  %v7669 = vmul.f32 %v7404, -3.041965
  %v7670 = vmul.f32 %v7405, -3.041965
  %v7671 = vadd.f32 %v7620, %v7667
  %v7672 = vadd.f32 %v7622, %v7668
  %v7673 = vadd.f32 %v7661, %v7669
  %v7674 = vadd.f32 %v7663, %v7670
  %v7675 = vadd.f32 %v7394, %v7671
  %v7676 = vadd.f32 %v7395, %v7672
  %v7677 = vadd.f32 %v7396, %v7673
  %v7678 = vadd.f32 %v7397, %v7674
  %v7679 = vmul.f32 %v7675, -0.01665
  %v7680 = vmul.f32 %v7676, -0.01665
  %v7681 = vmul.f32 %v7677, -0.01665
  %v7682 = vmul.f32 %v7678, -0.01665
  %v7683 = vadd.f32 %v6588, %v7679
  %v7684 = vadd.f32 %v6589, %v7680
  %v7685 = vadd.f32 %v6590, %v7681
  %v7686 = vadd.f32 %v6591, %v7682
  %s7687 = scalar_lea.vmem %s1, 336
  %v7688 = vld [vmem:[%s7687] sm:$0xf]
  %v7689 = vld [vmem:[%s7687 + $0x4] sm:$0xf]
  %v7690 = vld [vmem:[%s7687 + $0x8] sm:$0xf]
  %v7691 = vld [vmem:[%s7687 + $0xc] sm:$0xf]
  %v7692 = vpack.c.bf16 %v7683, %v7683
  %v7693 = vpack.c.bf16 %v7684, %v7684
  %v7694 = vpack.c.bf16 %v7685, %v7685
  %v7695 = vpack.c.bf16 %v7686, %v7686
  %v7700 = vunpack.c.l.b16 %v7688
  %v7701 = vunpack.c.l.b16 %v7689
  %v7702 = vunpack.c.l.b16 %v7690
  %v7703 = vunpack.c.l.b16 %v7691
  %v7704 = vpack.c.b16 %v7701, %v7700
  %v7705 = vpack.c.b16 %v7703, %v7702
  %v7707 = vsel %vm40, %v7704, 0
  %v7710 = vsel %vm40, %v7705, 0
  %v7713 = vsel %vm47, %v7692, 0
  %v7716 = vsel %vm47, %v7693, 0
  %v7719 = vsel %vm47, %v7694, 0
  %v7722 = vsel %vm47, %v7695, 0
  %7724 = vmatprep.subr.bf16.mxu0 %v7716
  %7725 = vmatpush1.bf16.msra.mxu0 %v7713
  %7726 = vmatprep.subr.bf16.mxu0 0
  %7727 = vmatpush1.bf16.msra.mxu0 0
  %7728 = vmatprep.subr.bf16.mxu0 0
  %7729 = vmatpush1.bf16.msra.mxu0 0
  %7730 = vmatprep.subr.bf16.mxu0 0
  %7731 = vmatpush1.bf16.msra.mxu0 0
  %7732 = vmatprep.subr.bf16.mxu0 0
  %7733 = vmatpush1.bf16.msra.mxu0 0
  %7734 = vmatprep.subr.bf16.mxu0 0
  %7735 = vmatpush1.bf16.msra.mxu0 0
  %7736 = vmatprep.subr.bf16.mxu0 0
  %7737 = vmatpush1.bf16.msra.mxu0 0
  %7738 = vmatprep.subr.bf16.mxu0 0
  %7739 = vmatpush1.bf16.msra.mxu0 0
  %7740 = vmatprep.subr.bf16.mxu0 0
  %7741 = vmatpush1.bf16.msra.mxu0 0
  %7742 = vmatprep.subr.bf16.mxu0 0
  %7743 = vmatpush1.bf16.msra.mxu0 0
  %7744 = vmatprep.subr.bf16.mxu0 0
  %7745 = vmatpush1.bf16.msra.mxu0 0
  %7746 = vmatprep.subr.bf16.mxu0 0
  %7747 = vmatpush1.bf16.msra.mxu0 0
  %7748 = vmatprep.subr.bf16.mxu0 0
  %7749 = vmatpush1.bf16.msra.mxu0 0
  %7750 = vmatprep.subr.bf16.mxu0 0
  %7751 = vmatpush1.bf16.msra.mxu0 0
  %7752 = vmatprep.subr.bf16.mxu0 0
  %7753 = vmatpush1.bf16.msra.mxu0 0
  %7754 = vmatprep.subr.bf16.mxu0 0
  %7755 = vmatpush1.bf16.msra.mxu0 0
  %7756 = vmatprep.mubr.bf16.mxu0 0
  %7757 = vmatmul.mubr.bf16.gmra.mrb[0].mxu0 %v7707
  %v7758 = vpop.f32.mrb[0].mxu0
  %v7759 = vadd.f32 0.0, %v7758
  %v7760 = vpop.f32.mrb[0].mxu0
  %v7761 = vadd.f32 0.0, %v7760
  %v7762 = vpop.f32.mrb[0].mxu0
  %v7763 = vadd.f32 0.0, %v7762
  %v7764 = vpop.f32.mrb[0].mxu0
  %v7765 = vadd.f32 0.0, %v7764
  %7766 = vmatprep.mubr.bf16.mxu0 0
  %7767 = vmatmul.mubr.bf16.gmra.mrb[0].mxu0 %v7710
  %v7768 = vpop.f32.mrb[0].mxu0
  %v7769 = vadd.f32 0.0, %v7768
  %v7770 = vpop.f32.mrb[0].mxu0
  %v7771 = vadd.f32 0.0, %v7770
  %v7772 = vpop.f32.mrb[0].mxu0
  %v7773 = vadd.f32 0.0, %v7772
  %v7774 = vpop.f32.mrb[0].mxu0
  %v7775 = vadd.f32 0.0, %v7774
  %7776 = vdwg.mxu0
  %7777 = vmatprep.subr.bf16.mxu0 %v7722
  %7778 = vmatpush1.bf16.msra.mxu0 %v7719
  %7779 = vmatprep.subr.bf16.mxu0 0
  %7780 = vmatpush1.bf16.msra.mxu0 0
  %7781 = vmatprep.subr.bf16.mxu0 0
  %7782 = vmatpush1.bf16.msra.mxu0 0
  %7783 = vmatprep.subr.bf16.mxu0 0
  %7784 = vmatpush1.bf16.msra.mxu0 0
  %7785 = vmatprep.subr.bf16.mxu0 0
  %7786 = vmatpush1.bf16.msra.mxu0 0
  %7787 = vmatprep.subr.bf16.mxu0 0
  %7788 = vmatpush1.bf16.msra.mxu0 0
  %7789 = vmatprep.subr.bf16.mxu0 0
  %7790 = vmatpush1.bf16.msra.mxu0 0
  %7791 = vmatprep.subr.bf16.mxu0 0
  %7792 = vmatpush1.bf16.msra.mxu0 0
  %7793 = vmatprep.subr.bf16.mxu0 0
  %7794 = vmatpush1.bf16.msra.mxu0 0
  %7795 = vmatprep.subr.bf16.mxu0 0
  %7796 = vmatpush1.bf16.msra.mxu0 0
  %7797 = vmatprep.subr.bf16.mxu0 0
  %7798 = vmatpush1.bf16.msra.mxu0 0
  %7799 = vmatprep.subr.bf16.mxu0 0
  %7800 = vmatpush1.bf16.msra.mxu0 0
  %7801 = vmatprep.subr.bf16.mxu0 0
  %7802 = vmatpush1.bf16.msra.mxu0 0
  %7803 = vmatprep.subr.bf16.mxu0 0
  %7804 = vmatpush1.bf16.msra.mxu0 0
  %7805 = vmatprep.subr.bf16.mxu0 0
  %7806 = vmatpush1.bf16.msra.mxu0 0
  %7807 = vmatprep.subr.bf16.mxu0 0
  %7808 = vmatpush1.bf16.msra.mxu0 0
  %7809 = vmatprep.mubr.bf16.mxu0 0
  %7810 = vmatmul.mubr.bf16.gmra.mrb[0].mxu0 %v7707
  %v7811 = vpop.f32.mrb[0].mxu0
  %v7812 = vadd.f32 0.0, %v7811
  %v7813 = vpop.f32.mrb[0].mxu0
  %v7814 = vadd.f32 0.0, %v7813
  %v7815 = vpop.f32.mrb[0].mxu0
  %v7816 = vadd.f32 0.0, %v7815
  %v7817 = vpop.f32.mrb[0].mxu0
  %v7818 = vadd.f32 0.0, %v7817
  %7819 = vmatprep.mubr.bf16.mxu0 0
  %7820 = vmatmul.mubr.bf16.gmra.mrb[0].mxu0 %v7710
  %v7821 = vpop.f32.mrb[0].mxu0
  %v7822 = vadd.f32 0.0, %v7821
  %v7823 = vpop.f32.mrb[0].mxu0
  %v7824 = vadd.f32 0.0, %v7823
  %v7825 = vpop.f32.mrb[0].mxu0
  %v7826 = vadd.f32 0.0, %v7825
  %v7827 = vpop.f32.mrb[0].mxu0
  %v7828 = vadd.f32 0.0, %v7827
  %7829 = vdwg.mxu0
  %v7830 = vmax.f32 %v7759, 0.0
  %v7831 = vmax.f32 %v7761, 0.0
  %v7832 = vmax.f32 %v7812, 0.0
  %v7833 = vmax.f32 %v7814, 0.0
  %v7834 = vmax.f32 %v7763, 0.0
  %v7835 = vmax.f32 %v7765, 0.0
  %v7836 = vmax.f32 %v7816, 0.0
  %v7837 = vmax.f32 %v7818, 0.0
  %v7838 = vmax.f32 %v7769, 0.0
  %v7839 = vmax.f32 %v7771, 0.0
  %v7840 = vmax.f32 %v7822, 0.0
  %v7841 = vmax.f32 %v7824, 0.0
  %v7842 = vmax.f32 %v7773, 0.0
  %v7843 = vmax.f32 %v7775, 0.0
  %v7844 = vmax.f32 %v7826, 0.0
  %v7845 = vmax.f32 %v7828, 0.0
  %s7846 = scalar_lea.vmem %s2, 84
  %v7847 = vld [vmem:[%s7846] sm:$0xf]
  %v7848 = vpack.c.bf16 %v7834, %v7830
  %v7849 = vpack.c.bf16 %v7835, %v7831
  %v7850 = vpack.c.bf16 %v7836, %v7832
  %v7851 = vpack.c.bf16 %v7837, %v7833
  %v7852 = vpack.c.bf16 %v7842, %v7838
  %v7853 = vpack.c.bf16 %v7843, %v7839
  %v7854 = vpack.c.bf16 %v7844, %v7840
  %v7855 = vpack.c.bf16 %v7845, %v7841
  %s7856 = scalar_lea.vmem %s3, 168
  %v7857 = vld [vmem:[%s7856] sm:$0xff]
  %7859 = vset.pattern.permute.xlu0 0
  %7860 = vperm.xlu0 %7859, %v7857
  %v7861 = vpop.permute.xlu0 %7860
  %v7864 = vsel %vm197, %v7847, 0
  %7866 = vmatprep.subr.bf16.mxu0 %v7849
  %7867 = vmatpush1.bf16.msra.mxu0 %v7848
  %7868 = vmatprep.subr.bf16.mxu0 %v7853
  %7869 = vmatpush1.bf16.msra.mxu0 %v7852
  %7870 = vmatprep.subr.bf16.mxu0 0
  %7871 = vmatpush1.bf16.msra.mxu0 0
  %7872 = vmatprep.subr.bf16.mxu0 0
  %7873 = vmatpush1.bf16.msra.mxu0 0
  %7874 = vmatprep.subr.bf16.mxu0 0
  %7875 = vmatpush1.bf16.msra.mxu0 0
  %7876 = vmatprep.subr.bf16.mxu0 0
  %7877 = vmatpush1.bf16.msra.mxu0 0
  %7878 = vmatprep.subr.bf16.mxu0 0
  %7879 = vmatpush1.bf16.msra.mxu0 0
  %7880 = vmatprep.subr.bf16.mxu0 0
  %7881 = vmatpush1.bf16.msra.mxu0 0
  %7882 = vmatprep.subr.bf16.mxu0 0
  %7883 = vmatpush1.bf16.msra.mxu0 0
  %7884 = vmatprep.subr.bf16.mxu0 0
  %7885 = vmatpush1.bf16.msra.mxu0 0
  %7886 = vmatprep.subr.bf16.mxu0 0
  %7887 = vmatpush1.bf16.msra.mxu0 0
  %7888 = vmatprep.subr.bf16.mxu0 0
  %7889 = vmatpush1.bf16.msra.mxu0 0
  %7890 = vmatprep.subr.bf16.mxu0 0
  %7891 = vmatpush1.bf16.msra.mxu0 0
  %7892 = vmatprep.subr.bf16.mxu0 0
  %7893 = vmatpush1.bf16.msra.mxu0 0
  %7894 = vmatprep.subr.bf16.mxu0 0
  %7895 = vmatpush1.bf16.msra.mxu0 0
  %7896 = vmatprep.subr.bf16.mxu0 0
  %7897 = vmatpush1.bf16.msra.mxu0 0
  %7898 = vmatprep.mubr.bf16.mxu0 0
  %7899 = vmatmul.mubr.bf16.gmra.mrb[0].mxu0 %v7864
  %v7900 = vpop.f32.mrb[0].mxu0
  %v7901 = vadd.f32 %v7861, %v7900
  %v7902 = vpop.f32.mrb[0].mxu0
  %v7903 = vadd.f32 %v7861, %v7902
  %v7904 = vpop.f32.mrb[0].mxu0
  %v7905 = vpop.f32.mrb[0].mxu0
  %7906 = vdwg.mxu0
  %7907 = vmatprep.subr.bf16.mxu0 %v7851
  %7908 = vmatpush1.bf16.msra.mxu0 %v7850
  %7909 = vmatprep.subr.bf16.mxu0 %v7855
  %7910 = vmatpush1.bf16.msra.mxu0 %v7854
  %7911 = vmatprep.subr.bf16.mxu0 0
  %7912 = vmatpush1.bf16.msra.mxu0 0
  %7913 = vmatprep.subr.bf16.mxu0 0
  %7914 = vmatpush1.bf16.msra.mxu0 0
  %7915 = vmatprep.subr.bf16.mxu0 0
  %7916 = vmatpush1.bf16.msra.mxu0 0
  %7917 = vmatprep.subr.bf16.mxu0 0
  %7918 = vmatpush1.bf16.msra.mxu0 0
  %7919 = vmatprep.subr.bf16.mxu0 0
  %7920 = vmatpush1.bf16.msra.mxu0 0
  %7921 = vmatprep.subr.bf16.mxu0 0
  %7922 = vmatpush1.bf16.msra.mxu0 0
  %7923 = vmatprep.subr.bf16.mxu0 0
  %7924 = vmatpush1.bf16.msra.mxu0 0
  %7925 = vmatprep.subr.bf16.mxu0 0
  %7926 = vmatpush1.bf16.msra.mxu0 0
  %7927 = vmatprep.subr.bf16.mxu0 0
  %7928 = vmatpush1.bf16.msra.mxu0 0
  %7929 = vmatprep.subr.bf16.mxu0 0
  %7930 = vmatpush1.bf16.msra.mxu0 0
  %7931 = vmatprep.subr.bf16.mxu0 0
  %7932 = vmatpush1.bf16.msra.mxu0 0
  %7933 = vmatprep.subr.bf16.mxu0 0
  %7934 = vmatpush1.bf16.msra.mxu0 0
  %7935 = vmatprep.subr.bf16.mxu0 0
  %7936 = vmatpush1.bf16.msra.mxu0 0
  %7937 = vmatprep.subr.bf16.mxu0 0
  %7938 = vmatpush1.bf16.msra.mxu0 0
  %7939 = vmatprep.mubr.bf16.mxu0 0
  %7940 = vmatmul.mubr.bf16.gmra.mrb[0].mxu0 %v7864
  %v7941 = vpop.f32.mrb[0].mxu0
  %v7942 = vadd.f32 %v7861, %v7941
  %v7943 = vpop.f32.mrb[0].mxu0
  %v7944 = vadd.f32 %v7861, %v7943
  %v7945 = vpop.f32.mrb[0].mxu0
  %v7946 = vpop.f32.mrb[0].mxu0
  %7947 = vdwg.mxu0
  %v7948 = vmul.f32 %v7683, -3.041965
  %v7949 = vmul.f32 %v7684, -3.041965
  %v7950 = vmul.f32 %v7685, -3.041965
  %v7951 = vmul.f32 %v7686, -3.041965
  %v7952 = vadd.f32 %v7901, %v7948
  %v7953 = vadd.f32 %v7903, %v7949
  %v7954 = vadd.f32 %v7942, %v7950
  %v7955 = vadd.f32 %v7944, %v7951
  %v7956 = vmul.f32 %v7952, -0.04995
  %v7957 = vmul.f32 %v7953, -0.04995
  %v7958 = vmul.f32 %v7954, -0.04995
  %v7959 = vmul.f32 %v7955, -0.04995
  %v7960 = vadd.f32 %v7683, %v7956
  %v7961 = vadd.f32 %v7684, %v7957
  %v7962 = vadd.f32 %v7685, %v7958
  %v7963 = vadd.f32 %v7686, %v7959
  %s7964 = scalar_lea.vmem %s1, 352
  %v7965 = vld [vmem:[%s7964] sm:$0xf]
  %v7966 = vld [vmem:[%s7964 + $0x4] sm:$0xf]
  %v7967 = vld [vmem:[%s7964 + $0x8] sm:$0xf]
  %v7968 = vld [vmem:[%s7964 + $0xc] sm:$0xf]
  %v7969 = vpack.c.bf16 %v7960, %v7960
  %v7970 = vpack.c.bf16 %v7961, %v7961
  %v7971 = vpack.c.bf16 %v7962, %v7962
  %v7972 = vpack.c.bf16 %v7963, %v7963
  %v7977 = vunpack.c.l.b16 %v7965
  %v7978 = vunpack.c.l.b16 %v7966
  %v7979 = vunpack.c.l.b16 %v7967
  %v7980 = vunpack.c.l.b16 %v7968
  %v7981 = vpack.c.b16 %v7978, %v7977
  %v7982 = vpack.c.b16 %v7980, %v7979
  %v7984 = vsel %vm40, %v7981, 0
  %v7987 = vsel %vm40, %v7982, 0
  %v7990 = vsel %vm47, %v7969, 0
  %v7993 = vsel %vm47, %v7970, 0
  %v7996 = vsel %vm47, %v7971, 0
  %v7999 = vsel %vm47, %v7972, 0
  %8001 = vmatprep.subr.bf16.mxu0 %v7993
  %8002 = vmatpush1.bf16.msra.mxu0 %v7990
  %8003 = vmatprep.subr.bf16.mxu0 0
  %8004 = vmatpush1.bf16.msra.mxu0 0
  %8005 = vmatprep.subr.bf16.mxu0 0
  %8006 = vmatpush1.bf16.msra.mxu0 0
  %8007 = vmatprep.subr.bf16.mxu0 0
  %8008 = vmatpush1.bf16.msra.mxu0 0
  %8009 = vmatprep.subr.bf16.mxu0 0
  %8010 = vmatpush1.bf16.msra.mxu0 0
  %8011 = vmatprep.subr.bf16.mxu0 0
  %8012 = vmatpush1.bf16.msra.mxu0 0
  %8013 = vmatprep.subr.bf16.mxu0 0
  %8014 = vmatpush1.bf16.msra.mxu0 0
  %8015 = vmatprep.subr.bf16.mxu0 0
  %8016 = vmatpush1.bf16.msra.mxu0 0
  %8017 = vmatprep.subr.bf16.mxu0 0
  %8018 = vmatpush1.bf16.msra.mxu0 0
  %8019 = vmatprep.subr.bf16.mxu0 0
  %8020 = vmatpush1.bf16.msra.mxu0 0
  %8021 = vmatprep.subr.bf16.mxu0 0
  %8022 = vmatpush1.bf16.msra.mxu0 0
  %8023 = vmatprep.subr.bf16.mxu0 0
  %8024 = vmatpush1.bf16.msra.mxu0 0
  %8025 = vmatprep.subr.bf16.mxu0 0
  %8026 = vmatpush1.bf16.msra.mxu0 0
  %8027 = vmatprep.subr.bf16.mxu0 0
  %8028 = vmatpush1.bf16.msra.mxu0 0
  %8029 = vmatprep.subr.bf16.mxu0 0
  %8030 = vmatpush1.bf16.msra.mxu0 0
  %8031 = vmatprep.subr.bf16.mxu0 0
  %8032 = vmatpush1.bf16.msra.mxu0 0
  %8033 = vmatprep.mubr.bf16.mxu0 0
  %8034 = vmatmul.mubr.bf16.gmra.mrb[0].mxu0 %v7984
  %v8035 = vpop.f32.mrb[0].mxu0
  %v8036 = vadd.f32 0.0, %v8035
  %v8037 = vpop.f32.mrb[0].mxu0
  %v8038 = vadd.f32 0.0, %v8037
  %v8039 = vpop.f32.mrb[0].mxu0
  %v8040 = vadd.f32 0.0, %v8039
  %v8041 = vpop.f32.mrb[0].mxu0
  %v8042 = vadd.f32 0.0, %v8041
  %8043 = vmatprep.mubr.bf16.mxu0 0
  %8044 = vmatmul.mubr.bf16.gmra.mrb[0].mxu0 %v7987
  %v8045 = vpop.f32.mrb[0].mxu0
  %v8046 = vadd.f32 0.0, %v8045
  %v8047 = vpop.f32.mrb[0].mxu0
  %v8048 = vadd.f32 0.0, %v8047
  %v8049 = vpop.f32.mrb[0].mxu0
  %v8050 = vadd.f32 0.0, %v8049
  %v8051 = vpop.f32.mrb[0].mxu0
  %v8052 = vadd.f32 0.0, %v8051
  %8053 = vdwg.mxu0
  %8054 = vmatprep.subr.bf16.mxu0 %v7999
  %8055 = vmatpush1.bf16.msra.mxu0 %v7996
  %8056 = vmatprep.subr.bf16.mxu0 0
  %8057 = vmatpush1.bf16.msra.mxu0 0
  %8058 = vmatprep.subr.bf16.mxu0 0
  %8059 = vmatpush1.bf16.msra.mxu0 0
  %8060 = vmatprep.subr.bf16.mxu0 0
  %8061 = vmatpush1.bf16.msra.mxu0 0
  %8062 = vmatprep.subr.bf16.mxu0 0
  %8063 = vmatpush1.bf16.msra.mxu0 0
  %8064 = vmatprep.subr.bf16.mxu0 0
  %8065 = vmatpush1.bf16.msra.mxu0 0
  %8066 = vmatprep.subr.bf16.mxu0 0
  %8067 = vmatpush1.bf16.msra.mxu0 0
  %8068 = vmatprep.subr.bf16.mxu0 0
  %8069 = vmatpush1.bf16.msra.mxu0 0
  %8070 = vmatprep.subr.bf16.mxu0 0
  %8071 = vmatpush1.bf16.msra.mxu0 0
  %8072 = vmatprep.subr.bf16.mxu0 0
  %8073 = vmatpush1.bf16.msra.mxu0 0
  %8074 = vmatprep.subr.bf16.mxu0 0
  %8075 = vmatpush1.bf16.msra.mxu0 0
  %8076 = vmatprep.subr.bf16.mxu0 0
  %8077 = vmatpush1.bf16.msra.mxu0 0
  %8078 = vmatprep.subr.bf16.mxu0 0
  %8079 = vmatpush1.bf16.msra.mxu0 0
  %8080 = vmatprep.subr.bf16.mxu0 0
  %8081 = vmatpush1.bf16.msra.mxu0 0
  %8082 = vmatprep.subr.bf16.mxu0 0
  %8083 = vmatpush1.bf16.msra.mxu0 0
  %8084 = vmatprep.subr.bf16.mxu0 0
  %8085 = vmatpush1.bf16.msra.mxu0 0
  %8086 = vmatprep.mubr.bf16.mxu0 0
  %8087 = vmatmul.mubr.bf16.gmra.mrb[0].mxu0 %v7984
  %v8088 = vpop.f32.mrb[0].mxu0
  %v8089 = vadd.f32 0.0, %v8088
  %v8090 = vpop.f32.mrb[0].mxu0
  %v8091 = vadd.f32 0.0, %v8090
  %v8092 = vpop.f32.mrb[0].mxu0
  %v8093 = vadd.f32 0.0, %v8092
  %v8094 = vpop.f32.mrb[0].mxu0
  %v8095 = vadd.f32 0.0, %v8094
  %8096 = vmatprep.mubr.bf16.mxu0 0
  %8097 = vmatmul.mubr.bf16.gmra.mrb[0].mxu0 %v7987
  %v8098 = vpop.f32.mrb[0].mxu0
  %v8099 = vadd.f32 0.0, %v8098
  %v8100 = vpop.f32.mrb[0].mxu0
  %v8101 = vadd.f32 0.0, %v8100
  %v8102 = vpop.f32.mrb[0].mxu0
  %v8103 = vadd.f32 0.0, %v8102
  %v8104 = vpop.f32.mrb[0].mxu0
  %v8105 = vadd.f32 0.0, %v8104
  %8106 = vdwg.mxu0
  %v8107 = vmax.f32 %v8036, 0.0
  %v8108 = vmax.f32 %v8038, 0.0
  %v8109 = vmax.f32 %v8089, 0.0
  %v8110 = vmax.f32 %v8091, 0.0
  %v8111 = vmax.f32 %v8040, 0.0
  %v8112 = vmax.f32 %v8042, 0.0
  %v8113 = vmax.f32 %v8093, 0.0
  %v8114 = vmax.f32 %v8095, 0.0
  %v8115 = vmax.f32 %v8046, 0.0
  %v8116 = vmax.f32 %v8048, 0.0
  %v8117 = vmax.f32 %v8099, 0.0
  %v8118 = vmax.f32 %v8101, 0.0
  %v8119 = vmax.f32 %v8050, 0.0
  %v8120 = vmax.f32 %v8052, 0.0
  %v8121 = vmax.f32 %v8103, 0.0
  %v8122 = vmax.f32 %v8105, 0.0
  %s8123 = scalar_lea.vmem %s2, 88
  %v8124 = vld [vmem:[%s8123] sm:$0xf]
  %v8125 = vpack.c.bf16 %v8111, %v8107
  %v8126 = vpack.c.bf16 %v8112, %v8108
  %v8127 = vpack.c.bf16 %v8113, %v8109
  %v8128 = vpack.c.bf16 %v8114, %v8110
  %v8129 = vpack.c.bf16 %v8119, %v8115
  %v8130 = vpack.c.bf16 %v8120, %v8116
  %v8131 = vpack.c.bf16 %v8121, %v8117
  %v8132 = vpack.c.bf16 %v8122, %v8118
  %s8133 = scalar_lea.vmem %s3, 176
  %v8134 = vld [vmem:[%s8133] sm:$0xff]
  %8136 = vset.pattern.permute.xlu0 0
  %8137 = vperm.xlu0 %8136, %v8134
  %v8138 = vpop.permute.xlu0 %8137
  %v8141 = vsel %vm197, %v8124, 0
  %8143 = vmatprep.subr.bf16.mxu0 %v8126
  %8144 = vmatpush1.bf16.msra.mxu0 %v8125
  %8145 = vmatprep.subr.bf16.mxu0 %v8130
  %8146 = vmatpush1.bf16.msra.mxu0 %v8129
  %8147 = vmatprep.subr.bf16.mxu0 0
  %8148 = vmatpush1.bf16.msra.mxu0 0
  %8149 = vmatprep.subr.bf16.mxu0 0
  %8150 = vmatpush1.bf16.msra.mxu0 0
  %8151 = vmatprep.subr.bf16.mxu0 0
  %8152 = vmatpush1.bf16.msra.mxu0 0
  %8153 = vmatprep.subr.bf16.mxu0 0
  %8154 = vmatpush1.bf16.msra.mxu0 0
  %8155 = vmatprep.subr.bf16.mxu0 0
  %8156 = vmatpush1.bf16.msra.mxu0 0
  %8157 = vmatprep.subr.bf16.mxu0 0
  %8158 = vmatpush1.bf16.msra.mxu0 0
  %8159 = vmatprep.subr.bf16.mxu0 0
  %8160 = vmatpush1.bf16.msra.mxu0 0
  %8161 = vmatprep.subr.bf16.mxu0 0
  %8162 = vmatpush1.bf16.msra.mxu0 0
  %8163 = vmatprep.subr.bf16.mxu0 0
  %8164 = vmatpush1.bf16.msra.mxu0 0
  %8165 = vmatprep.subr.bf16.mxu0 0
  %8166 = vmatpush1.bf16.msra.mxu0 0
  %8167 = vmatprep.subr.bf16.mxu0 0
  %8168 = vmatpush1.bf16.msra.mxu0 0
  %8169 = vmatprep.subr.bf16.mxu0 0
  %8170 = vmatpush1.bf16.msra.mxu0 0
  %8171 = vmatprep.subr.bf16.mxu0 0
  %8172 = vmatpush1.bf16.msra.mxu0 0
  %8173 = vmatprep.subr.bf16.mxu0 0
  %8174 = vmatpush1.bf16.msra.mxu0 0
  %8175 = vmatprep.mubr.bf16.mxu0 0
  %8176 = vmatmul.mubr.bf16.gmra.mrb[0].mxu0 %v8141
  %v8177 = vpop.f32.mrb[0].mxu0
  %v8178 = vadd.f32 %v8138, %v8177
  %v8179 = vpop.f32.mrb[0].mxu0
  %v8180 = vadd.f32 %v8138, %v8179
  %v8181 = vpop.f32.mrb[0].mxu0
  %v8182 = vpop.f32.mrb[0].mxu0
  %8183 = vdwg.mxu0
  %8184 = vmatprep.subr.bf16.mxu0 %v8128
  %8185 = vmatpush1.bf16.msra.mxu0 %v8127
  %8186 = vmatprep.subr.bf16.mxu0 %v8132
  %8187 = vmatpush1.bf16.msra.mxu0 %v8131
  %8188 = vmatprep.subr.bf16.mxu0 0
  %8189 = vmatpush1.bf16.msra.mxu0 0
  %8190 = vmatprep.subr.bf16.mxu0 0
  %8191 = vmatpush1.bf16.msra.mxu0 0
  %8192 = vmatprep.subr.bf16.mxu0 0
  %8193 = vmatpush1.bf16.msra.mxu0 0
  %8194 = vmatprep.subr.bf16.mxu0 0
  %8195 = vmatpush1.bf16.msra.mxu0 0
  %8196 = vmatprep.subr.bf16.mxu0 0
  %8197 = vmatpush1.bf16.msra.mxu0 0
  %8198 = vmatprep.subr.bf16.mxu0 0
  %8199 = vmatpush1.bf16.msra.mxu0 0
  %8200 = vmatprep.subr.bf16.mxu0 0
  %8201 = vmatpush1.bf16.msra.mxu0 0
  %8202 = vmatprep.subr.bf16.mxu0 0
  %8203 = vmatpush1.bf16.msra.mxu0 0
  %8204 = vmatprep.subr.bf16.mxu0 0
  %8205 = vmatpush1.bf16.msra.mxu0 0
  %8206 = vmatprep.subr.bf16.mxu0 0
  %8207 = vmatpush1.bf16.msra.mxu0 0
  %8208 = vmatprep.subr.bf16.mxu0 0
  %8209 = vmatpush1.bf16.msra.mxu0 0
  %8210 = vmatprep.subr.bf16.mxu0 0
  %8211 = vmatpush1.bf16.msra.mxu0 0
  %8212 = vmatprep.subr.bf16.mxu0 0
  %8213 = vmatpush1.bf16.msra.mxu0 0
  %8214 = vmatprep.subr.bf16.mxu0 0
  %8215 = vmatpush1.bf16.msra.mxu0 0
  %8216 = vmatprep.mubr.bf16.mxu0 0
  %8217 = vmatmul.mubr.bf16.gmra.mrb[0].mxu0 %v8141
  %v8218 = vpop.f32.mrb[0].mxu0
  %v8219 = vadd.f32 %v8138, %v8218
  %v8220 = vpop.f32.mrb[0].mxu0
  %v8221 = vadd.f32 %v8138, %v8220
  %v8222 = vpop.f32.mrb[0].mxu0
  %v8223 = vpop.f32.mrb[0].mxu0
  %8224 = vdwg.mxu0
  %v8225 = vmul.f32 %v7960, -2.5449624
  %v8226 = vmul.f32 %v7961, -2.5449624
  %v8227 = vmul.f32 %v7962, -2.5449624
  %v8228 = vmul.f32 %v7963, -2.5449624
  %v8229 = vadd.f32 %v8178, %v8225
  %v8230 = vadd.f32 %v8180, %v8226
  %v8231 = vadd.f32 %v8219, %v8227
  %v8232 = vadd.f32 %v8221, %v8228
  %v8233 = vmul.f32 %v8229, 2.0
  %v8234 = vmul.f32 %v8230, 2.0
  %v8235 = vmul.f32 %v8231, 2.0
  %v8236 = vmul.f32 %v8232, 2.0
  %v8237 = vadd.f32 %v7952, %v8233
  %v8238 = vadd.f32 %v7953, %v8234
  %v8239 = vadd.f32 %v7954, %v8235
  %v8240 = vadd.f32 %v7955, %v8236
  %v8241 = vmul.f32 %v8229, -0.04995
  %v8242 = vmul.f32 %v8230, -0.04995
  %v8243 = vmul.f32 %v8231, -0.04995
  %v8244 = vmul.f32 %v8232, -0.04995
  %v8245 = vadd.f32 %v7683, %v8241
  %v8246 = vadd.f32 %v7684, %v8242
  %v8247 = vadd.f32 %v7685, %v8243
  %v8248 = vadd.f32 %v7686, %v8244
  %v8249 = vpack.c.bf16 %v8245, %v8245
  %v8250 = vpack.c.bf16 %v8246, %v8246
  %v8251 = vpack.c.bf16 %v8247, %v8247
  %v8252 = vpack.c.bf16 %v8248, %v8248
  %v8254 = vsel %vm47, %v8249, 0
  %v8257 = vsel %vm47, %v8250, 0
  %v8260 = vsel %vm47, %v8251, 0
  %v8263 = vsel %vm47, %v8252, 0
  %8265 = vmatprep.subr.bf16.mxu0 %v8257
  %8266 = vmatpush1.bf16.msra.mxu0 %v8254
  %8267 = vmatprep.subr.bf16.mxu0 0
  %8268 = vmatpush1.bf16.msra.mxu0 0
  %8269 = vmatprep.subr.bf16.mxu0 0
  %8270 = vmatpush1.bf16.msra.mxu0 0
  %8271 = vmatprep.subr.bf16.mxu0 0
  %8272 = vmatpush1.bf16.msra.mxu0 0
  %8273 = vmatprep.subr.bf16.mxu0 0
  %8274 = vmatpush1.bf16.msra.mxu0 0
  %8275 = vmatprep.subr.bf16.mxu0 0
  %8276 = vmatpush1.bf16.msra.mxu0 0
  %8277 = vmatprep.subr.bf16.mxu0 0
  %8278 = vmatpush1.bf16.msra.mxu0 0
  %8279 = vmatprep.subr.bf16.mxu0 0
  %8280 = vmatpush1.bf16.msra.mxu0 0
  %8281 = vmatprep.subr.bf16.mxu0 0
  %8282 = vmatpush1.bf16.msra.mxu0 0
  %8283 = vmatprep.subr.bf16.mxu0 0
  %8284 = vmatpush1.bf16.msra.mxu0 0
  %8285 = vmatprep.subr.bf16.mxu0 0
  %8286 = vmatpush1.bf16.msra.mxu0 0
  %8287 = vmatprep.subr.bf16.mxu0 0
  %8288 = vmatpush1.bf16.msra.mxu0 0
  %8289 = vmatprep.subr.bf16.mxu0 0
  %8290 = vmatpush1.bf16.msra.mxu0 0
  %8291 = vmatprep.subr.bf16.mxu0 0
  %8292 = vmatpush1.bf16.msra.mxu0 0
  %8293 = vmatprep.subr.bf16.mxu0 0
  %8294 = vmatpush1.bf16.msra.mxu0 0
  %8295 = vmatprep.subr.bf16.mxu0 0
  %8296 = vmatpush1.bf16.msra.mxu0 0
  %8297 = vmatprep.mubr.bf16.mxu0 0
  %8298 = vmatmul.mubr.bf16.gmra.mrb[0].mxu0 %v7984
  %v8299 = vpop.f32.mrb[0].mxu0
  %v8300 = vadd.f32 0.0, %v8299
  %v8301 = vpop.f32.mrb[0].mxu0
  %v8302 = vadd.f32 0.0, %v8301
  %v8303 = vpop.f32.mrb[0].mxu0
  %v8304 = vadd.f32 0.0, %v8303
  %v8305 = vpop.f32.mrb[0].mxu0
  %v8306 = vadd.f32 0.0, %v8305
  %8307 = vmatprep.mubr.bf16.mxu0 0
  %8308 = vmatmul.mubr.bf16.gmra.mrb[0].mxu0 %v7987
  %v8309 = vpop.f32.mrb[0].mxu0
  %v8310 = vadd.f32 0.0, %v8309
  %v8311 = vpop.f32.mrb[0].mxu0
  %v8312 = vadd.f32 0.0, %v8311
  %v8313 = vpop.f32.mrb[0].mxu0
  %v8314 = vadd.f32 0.0, %v8313
  %v8315 = vpop.f32.mrb[0].mxu0
  %v8316 = vadd.f32 0.0, %v8315
  %8317 = vdwg.mxu0
  %8318 = vmatprep.subr.bf16.mxu0 %v8263
  %8319 = vmatpush1.bf16.msra.mxu0 %v8260
  %8320 = vmatprep.subr.bf16.mxu0 0
  %8321 = vmatpush1.bf16.msra.mxu0 0
  %8322 = vmatprep.subr.bf16.mxu0 0
  %8323 = vmatpush1.bf16.msra.mxu0 0
  %8324 = vmatprep.subr.bf16.mxu0 0
  %8325 = vmatpush1.bf16.msra.mxu0 0
  %8326 = vmatprep.subr.bf16.mxu0 0
  %8327 = vmatpush1.bf16.msra.mxu0 0
  %8328 = vmatprep.subr.bf16.mxu0 0
  %8329 = vmatpush1.bf16.msra.mxu0 0
  %8330 = vmatprep.subr.bf16.mxu0 0
  %8331 = vmatpush1.bf16.msra.mxu0 0
  %8332 = vmatprep.subr.bf16.mxu0 0
  %8333 = vmatpush1.bf16.msra.mxu0 0
  %8334 = vmatprep.subr.bf16.mxu0 0
  %8335 = vmatpush1.bf16.msra.mxu0 0
  %8336 = vmatprep.subr.bf16.mxu0 0
  %8337 = vmatpush1.bf16.msra.mxu0 0
  %8338 = vmatprep.subr.bf16.mxu0 0
  %8339 = vmatpush1.bf16.msra.mxu0 0
  %8340 = vmatprep.subr.bf16.mxu0 0
  %8341 = vmatpush1.bf16.msra.mxu0 0
  %8342 = vmatprep.subr.bf16.mxu0 0
  %8343 = vmatpush1.bf16.msra.mxu0 0
  %8344 = vmatprep.subr.bf16.mxu0 0
  %8345 = vmatpush1.bf16.msra.mxu0 0
  %8346 = vmatprep.subr.bf16.mxu0 0
  %8347 = vmatpush1.bf16.msra.mxu0 0
  %8348 = vmatprep.subr.bf16.mxu0 0
  %8349 = vmatpush1.bf16.msra.mxu0 0
  %8350 = vmatprep.mubr.bf16.mxu0 0
  %8351 = vmatmul.mubr.bf16.gmra.mrb[0].mxu0 %v7984
  %v8352 = vpop.f32.mrb[0].mxu0
  %v8353 = vadd.f32 0.0, %v8352
  %v8354 = vpop.f32.mrb[0].mxu0
  %v8355 = vadd.f32 0.0, %v8354
  %v8356 = vpop.f32.mrb[0].mxu0
  %v8357 = vadd.f32 0.0, %v8356
  %v8358 = vpop.f32.mrb[0].mxu0
  %v8359 = vadd.f32 0.0, %v8358
  %8360 = vmatprep.mubr.bf16.mxu0 0
  %8361 = vmatmul.mubr.bf16.gmra.mrb[0].mxu0 %v7987
  %v8362 = vpop.f32.mrb[0].mxu0
  %v8363 = vadd.f32 0.0, %v8362
  %v8364 = vpop.f32.mrb[0].mxu0
  %v8365 = vadd.f32 0.0, %v8364
  %v8366 = vpop.f32.mrb[0].mxu0
  %v8367 = vadd.f32 0.0, %v8366
  %v8368 = vpop.f32.mrb[0].mxu0
  %v8369 = vadd.f32 0.0, %v8368
  %8370 = vdwg.mxu0
  %v8371 = vmax.f32 %v8300, 0.0
  %v8372 = vmax.f32 %v8302, 0.0
  %v8373 = vmax.f32 %v8353, 0.0
  %v8374 = vmax.f32 %v8355, 0.0
  %v8375 = vmax.f32 %v8304, 0.0
  %v8376 = vmax.f32 %v8306, 0.0
  %v8377 = vmax.f32 %v8357, 0.0
  %v8378 = vmax.f32 %v8359, 0.0
  %v8379 = vmax.f32 %v8310, 0.0
  %v8380 = vmax.f32 %v8312, 0.0
  %v8381 = vmax.f32 %v8363, 0.0
  %v8382 = vmax.f32 %v8365, 0.0
  %v8383 = vmax.f32 %v8314, 0.0
  %v8384 = vmax.f32 %v8316, 0.0
  %v8385 = vmax.f32 %v8367, 0.0
  %v8386 = vmax.f32 %v8369, 0.0
  %v8387 = vpack.c.bf16 %v8375, %v8371
  %v8388 = vpack.c.bf16 %v8376, %v8372
  %v8389 = vpack.c.bf16 %v8377, %v8373
  %v8390 = vpack.c.bf16 %v8378, %v8374
  %v8391 = vpack.c.bf16 %v8383, %v8379
  %v8392 = vpack.c.bf16 %v8384, %v8380
  %v8393 = vpack.c.bf16 %v8385, %v8381
  %v8394 = vpack.c.bf16 %v8386, %v8382
  %8395 = vmatprep.subr.bf16.mxu0 %v8388
  %8396 = vmatpush1.bf16.msra.mxu0 %v8387
  %8397 = vmatprep.subr.bf16.mxu0 %v8392
  %8398 = vmatpush1.bf16.msra.mxu0 %v8391
  %8399 = vmatprep.subr.bf16.mxu0 0
  %8400 = vmatpush1.bf16.msra.mxu0 0
  %8401 = vmatprep.subr.bf16.mxu0 0
  %8402 = vmatpush1.bf16.msra.mxu0 0
  %8403 = vmatprep.subr.bf16.mxu0 0
  %8404 = vmatpush1.bf16.msra.mxu0 0
  %8405 = vmatprep.subr.bf16.mxu0 0
  %8406 = vmatpush1.bf16.msra.mxu0 0
  %8407 = vmatprep.subr.bf16.mxu0 0
  %8408 = vmatpush1.bf16.msra.mxu0 0
  %8409 = vmatprep.subr.bf16.mxu0 0
  %8410 = vmatpush1.bf16.msra.mxu0 0
  %8411 = vmatprep.subr.bf16.mxu0 0
  %8412 = vmatpush1.bf16.msra.mxu0 0
  %8413 = vmatprep.subr.bf16.mxu0 0
  %8414 = vmatpush1.bf16.msra.mxu0 0
  %8415 = vmatprep.subr.bf16.mxu0 0
  %8416 = vmatpush1.bf16.msra.mxu0 0
  %8417 = vmatprep.subr.bf16.mxu0 0
  %8418 = vmatpush1.bf16.msra.mxu0 0
  %8419 = vmatprep.subr.bf16.mxu0 0
  %8420 = vmatpush1.bf16.msra.mxu0 0
  %8421 = vmatprep.subr.bf16.mxu0 0
  %8422 = vmatpush1.bf16.msra.mxu0 0
  %8423 = vmatprep.subr.bf16.mxu0 0
  %8424 = vmatpush1.bf16.msra.mxu0 0
  %8425 = vmatprep.subr.bf16.mxu0 0
  %8426 = vmatpush1.bf16.msra.mxu0 0
  %8427 = vmatprep.mubr.bf16.mxu0 0
  %8428 = vmatmul.mubr.bf16.gmra.mrb[0].mxu0 %v8141
  %v8429 = vpop.f32.mrb[0].mxu0
  %v8430 = vadd.f32 %v8138, %v8429
  %v8431 = vpop.f32.mrb[0].mxu0
  %v8432 = vadd.f32 %v8138, %v8431
  %v8433 = vpop.f32.mrb[0].mxu0
  %v8434 = vpop.f32.mrb[0].mxu0
  %8435 = vdwg.mxu0
  %8436 = vmatprep.subr.bf16.mxu0 %v8390
  %8437 = vmatpush1.bf16.msra.mxu0 %v8389
  %8438 = vmatprep.subr.bf16.mxu0 %v8394
  %8439 = vmatpush1.bf16.msra.mxu0 %v8393
  %8440 = vmatprep.subr.bf16.mxu0 0
  %8441 = vmatpush1.bf16.msra.mxu0 0
  %8442 = vmatprep.subr.bf16.mxu0 0
  %8443 = vmatpush1.bf16.msra.mxu0 0
  %8444 = vmatprep.subr.bf16.mxu0 0
  %8445 = vmatpush1.bf16.msra.mxu0 0
  %8446 = vmatprep.subr.bf16.mxu0 0
  %8447 = vmatpush1.bf16.msra.mxu0 0
  %8448 = vmatprep.subr.bf16.mxu0 0
  %8449 = vmatpush1.bf16.msra.mxu0 0
  %8450 = vmatprep.subr.bf16.mxu0 0
  %8451 = vmatpush1.bf16.msra.mxu0 0
  %8452 = vmatprep.subr.bf16.mxu0 0
  %8453 = vmatpush1.bf16.msra.mxu0 0
  %8454 = vmatprep.subr.bf16.mxu0 0
  %8455 = vmatpush1.bf16.msra.mxu0 0
  %8456 = vmatprep.subr.bf16.mxu0 0
  %8457 = vmatpush1.bf16.msra.mxu0 0
  %8458 = vmatprep.subr.bf16.mxu0 0
  %8459 = vmatpush1.bf16.msra.mxu0 0
  %8460 = vmatprep.subr.bf16.mxu0 0
  %8461 = vmatpush1.bf16.msra.mxu0 0
  %8462 = vmatprep.subr.bf16.mxu0 0
  %8463 = vmatpush1.bf16.msra.mxu0 0
  %8464 = vmatprep.subr.bf16.mxu0 0
  %8465 = vmatpush1.bf16.msra.mxu0 0
  %8466 = vmatprep.subr.bf16.mxu0 0
  %8467 = vmatpush1.bf16.msra.mxu0 0
  %8468 = vmatprep.mubr.bf16.mxu0 0
  %8469 = vmatmul.mubr.bf16.gmra.mrb[0].mxu0 %v8141
  %v8470 = vpop.f32.mrb[0].mxu0
  %v8471 = vadd.f32 %v8138, %v8470
  %v8472 = vpop.f32.mrb[0].mxu0
  %v8473 = vadd.f32 %v8138, %v8472
  %v8474 = vpop.f32.mrb[0].mxu0
  %v8475 = vpop.f32.mrb[0].mxu0
  %8476 = vdwg.mxu0
  %v8477 = vmul.f32 %v8245, -2.5449624
  %v8478 = vmul.f32 %v8246, -2.5449624
  %v8479 = vmul.f32 %v8247, -2.5449624
  %v8480 = vmul.f32 %v8248, -2.5449624
  %v8481 = vadd.f32 %v8430, %v8477
  %v8482 = vadd.f32 %v8432, %v8478
  %v8483 = vadd.f32 %v8471, %v8479
  %v8484 = vadd.f32 %v8473, %v8480
  %v8485 = vmul.f32 %v8481, 2.0
  %v8486 = vmul.f32 %v8482, 2.0
  %v8487 = vmul.f32 %v8483, 2.0
  %v8488 = vmul.f32 %v8484, 2.0
  %v8489 = vadd.f32 %v8237, %v8485
  %v8490 = vadd.f32 %v8238, %v8486
  %v8491 = vadd.f32 %v8239, %v8487
  %v8492 = vadd.f32 %v8240, %v8488
  %v8493 = vmul.f32 %v8481, -0.0999
  %v8494 = vmul.f32 %v8482, -0.0999
  %v8495 = vmul.f32 %v8483, -0.0999
  %v8496 = vmul.f32 %v8484, -0.0999
  %v8497 = vadd.f32 %v7683, %v8493
  %v8498 = vadd.f32 %v7684, %v8494
  %v8499 = vadd.f32 %v7685, %v8495
  %v8500 = vadd.f32 %v7686, %v8496
  %s8501 = scalar_lea.vmem %s1, 368
  %v8502 = vld [vmem:[%s8501] sm:$0xf]
  %v8503 = vld [vmem:[%s8501 + $0x4] sm:$0xf]
  %v8504 = vld [vmem:[%s8501 + $0x8] sm:$0xf]
  %v8505 = vld [vmem:[%s8501 + $0xc] sm:$0xf]
  %v8506 = vpack.c.bf16 %v8497, %v8497
  %v8507 = vpack.c.bf16 %v8498, %v8498
  %v8508 = vpack.c.bf16 %v8499, %v8499
  %v8509 = vpack.c.bf16 %v8500, %v8500
  %v8514 = vunpack.c.l.b16 %v8502
  %v8515 = vunpack.c.l.b16 %v8503
  %v8516 = vunpack.c.l.b16 %v8504
  %v8517 = vunpack.c.l.b16 %v8505
  %v8518 = vpack.c.b16 %v8515, %v8514
  %v8519 = vpack.c.b16 %v8517, %v8516
  %v8521 = vsel %vm40, %v8518, 0
  %v8524 = vsel %vm40, %v8519, 0
  %v8527 = vsel %vm47, %v8506, 0
  %v8530 = vsel %vm47, %v8507, 0
  %v8533 = vsel %vm47, %v8508, 0
  %v8536 = vsel %vm47, %v8509, 0
  %8538 = vmatprep.subr.bf16.mxu0 %v8530
  %8539 = vmatpush1.bf16.msra.mxu0 %v8527
  %8540 = vmatprep.subr.bf16.mxu0 0
  %8541 = vmatpush1.bf16.msra.mxu0 0
  %8542 = vmatprep.subr.bf16.mxu0 0
  %8543 = vmatpush1.bf16.msra.mxu0 0
  %8544 = vmatprep.subr.bf16.mxu0 0
  %8545 = vmatpush1.bf16.msra.mxu0 0
  %8546 = vmatprep.subr.bf16.mxu0 0
  %8547 = vmatpush1.bf16.msra.mxu0 0
  %8548 = vmatprep.subr.bf16.mxu0 0
  %8549 = vmatpush1.bf16.msra.mxu0 0
  %8550 = vmatprep.subr.bf16.mxu0 0
  %8551 = vmatpush1.bf16.msra.mxu0 0
  %8552 = vmatprep.subr.bf16.mxu0 0
  %8553 = vmatpush1.bf16.msra.mxu0 0
  %8554 = vmatprep.subr.bf16.mxu0 0
  %8555 = vmatpush1.bf16.msra.mxu0 0
  %8556 = vmatprep.subr.bf16.mxu0 0
  %8557 = vmatpush1.bf16.msra.mxu0 0
  %8558 = vmatprep.subr.bf16.mxu0 0
  %8559 = vmatpush1.bf16.msra.mxu0 0
  %8560 = vmatprep.subr.bf16.mxu0 0
  %8561 = vmatpush1.bf16.msra.mxu0 0
  %8562 = vmatprep.subr.bf16.mxu0 0
  %8563 = vmatpush1.bf16.msra.mxu0 0
  %8564 = vmatprep.subr.bf16.mxu0 0
  %8565 = vmatpush1.bf16.msra.mxu0 0
  %8566 = vmatprep.subr.bf16.mxu0 0
  %8567 = vmatpush1.bf16.msra.mxu0 0
  %8568 = vmatprep.subr.bf16.mxu0 0
  %8569 = vmatpush1.bf16.msra.mxu0 0
  %8570 = vmatprep.mubr.bf16.mxu0 0
  %8571 = vmatmul.mubr.bf16.gmra.mrb[0].mxu0 %v8521
  %v8572 = vpop.f32.mrb[0].mxu0
  %v8573 = vadd.f32 0.0, %v8572
  %v8574 = vpop.f32.mrb[0].mxu0
  %v8575 = vadd.f32 0.0, %v8574
  %v8576 = vpop.f32.mrb[0].mxu0
  %v8577 = vadd.f32 0.0, %v8576
  %v8578 = vpop.f32.mrb[0].mxu0
  %v8579 = vadd.f32 0.0, %v8578
  %8580 = vmatprep.mubr.bf16.mxu0 0
  %8581 = vmatmul.mubr.bf16.gmra.mrb[0].mxu0 %v8524
  %v8582 = vpop.f32.mrb[0].mxu0
  %v8583 = vadd.f32 0.0, %v8582
  %v8584 = vpop.f32.mrb[0].mxu0
  %v8585 = vadd.f32 0.0, %v8584
  %v8586 = vpop.f32.mrb[0].mxu0
  %v8587 = vadd.f32 0.0, %v8586
  %v8588 = vpop.f32.mrb[0].mxu0
  %v8589 = vadd.f32 0.0, %v8588
  %8590 = vdwg.mxu0
  %8591 = vmatprep.subr.bf16.mxu0 %v8536
  %8592 = vmatpush1.bf16.msra.mxu0 %v8533
  %8593 = vmatprep.subr.bf16.mxu0 0
  %8594 = vmatpush1.bf16.msra.mxu0 0
  %8595 = vmatprep.subr.bf16.mxu0 0
  %8596 = vmatpush1.bf16.msra.mxu0 0
  %8597 = vmatprep.subr.bf16.mxu0 0
  %8598 = vmatpush1.bf16.msra.mxu0 0
  %8599 = vmatprep.subr.bf16.mxu0 0
  %8600 = vmatpush1.bf16.msra.mxu0 0
  %8601 = vmatprep.subr.bf16.mxu0 0
  %8602 = vmatpush1.bf16.msra.mxu0 0
  %8603 = vmatprep.subr.bf16.mxu0 0
  %8604 = vmatpush1.bf16.msra.mxu0 0
  %8605 = vmatprep.subr.bf16.mxu0 0
  %8606 = vmatpush1.bf16.msra.mxu0 0
  %8607 = vmatprep.subr.bf16.mxu0 0
  %8608 = vmatpush1.bf16.msra.mxu0 0
  %8609 = vmatprep.subr.bf16.mxu0 0
  %8610 = vmatpush1.bf16.msra.mxu0 0
  %8611 = vmatprep.subr.bf16.mxu0 0
  %8612 = vmatpush1.bf16.msra.mxu0 0
  %8613 = vmatprep.subr.bf16.mxu0 0
  %8614 = vmatpush1.bf16.msra.mxu0 0
  %8615 = vmatprep.subr.bf16.mxu0 0
  %8616 = vmatpush1.bf16.msra.mxu0 0
  %8617 = vmatprep.subr.bf16.mxu0 0
  %8618 = vmatpush1.bf16.msra.mxu0 0
  %8619 = vmatprep.subr.bf16.mxu0 0
  %8620 = vmatpush1.bf16.msra.mxu0 0
  %8621 = vmatprep.subr.bf16.mxu0 0
  %8622 = vmatpush1.bf16.msra.mxu0 0
  %8623 = vmatprep.mubr.bf16.mxu0 0
  %8624 = vmatmul.mubr.bf16.gmra.mrb[0].mxu0 %v8521
  %v8625 = vpop.f32.mrb[0].mxu0
  %v8626 = vadd.f32 0.0, %v8625
  %v8627 = vpop.f32.mrb[0].mxu0
  %v8628 = vadd.f32 0.0, %v8627
  %v8629 = vpop.f32.mrb[0].mxu0
  %v8630 = vadd.f32 0.0, %v8629
  %v8631 = vpop.f32.mrb[0].mxu0
  %v8632 = vadd.f32 0.0, %v8631
  %8633 = vmatprep.mubr.bf16.mxu0 0
  %8634 = vmatmul.mubr.bf16.gmra.mrb[0].mxu0 %v8524
  %v8635 = vpop.f32.mrb[0].mxu0
  %v8636 = vadd.f32 0.0, %v8635
  %v8637 = vpop.f32.mrb[0].mxu0
  %v8638 = vadd.f32 0.0, %v8637
  %v8639 = vpop.f32.mrb[0].mxu0
  %v8640 = vadd.f32 0.0, %v8639
  %v8641 = vpop.f32.mrb[0].mxu0
  %v8642 = vadd.f32 0.0, %v8641
  %8643 = vdwg.mxu0
  %v8644 = vmax.f32 %v8573, 0.0
  %v8645 = vmax.f32 %v8575, 0.0
  %v8646 = vmax.f32 %v8626, 0.0
  %v8647 = vmax.f32 %v8628, 0.0
  %v8648 = vmax.f32 %v8577, 0.0
  %v8649 = vmax.f32 %v8579, 0.0
  %v8650 = vmax.f32 %v8630, 0.0
  %v8651 = vmax.f32 %v8632, 0.0
  %v8652 = vmax.f32 %v8583, 0.0
  %v8653 = vmax.f32 %v8585, 0.0
  %v8654 = vmax.f32 %v8636, 0.0
  %v8655 = vmax.f32 %v8638, 0.0
  %v8656 = vmax.f32 %v8587, 0.0
  %v8657 = vmax.f32 %v8589, 0.0
  %v8658 = vmax.f32 %v8640, 0.0
  %v8659 = vmax.f32 %v8642, 0.0
  %s8660 = scalar_lea.vmem %s2, 92
  %v8661 = vld [vmem:[%s8660] sm:$0xf]
  %v8662 = vpack.c.bf16 %v8648, %v8644
  %v8663 = vpack.c.bf16 %v8649, %v8645
  %v8664 = vpack.c.bf16 %v8650, %v8646
  %v8665 = vpack.c.bf16 %v8651, %v8647
  %v8666 = vpack.c.bf16 %v8656, %v8652
  %v8667 = vpack.c.bf16 %v8657, %v8653
  %v8668 = vpack.c.bf16 %v8658, %v8654
  %v8669 = vpack.c.bf16 %v8659, %v8655
  %s8670 = scalar_lea.vmem %s3, 184
  %v8671 = vld [vmem:[%s8670] sm:$0xff]
  %8673 = vset.pattern.permute.xlu0 0
  %8674 = vperm.xlu0 %8673, %v8671
  %v8675 = vpop.permute.xlu0 %8674
  %v8678 = vsel %vm197, %v8661, 0
  %8680 = vmatprep.subr.bf16.mxu0 %v8663
  %8681 = vmatpush1.bf16.msra.mxu0 %v8662
  %8682 = vmatprep.subr.bf16.mxu0 %v8667
  %8683 = vmatpush1.bf16.msra.mxu0 %v8666
  %8684 = vmatprep.subr.bf16.mxu0 0
  %8685 = vmatpush1.bf16.msra.mxu0 0
  %8686 = vmatprep.subr.bf16.mxu0 0
  %8687 = vmatpush1.bf16.msra.mxu0 0
  %8688 = vmatprep.subr.bf16.mxu0 0
  %8689 = vmatpush1.bf16.msra.mxu0 0
  %8690 = vmatprep.subr.bf16.mxu0 0
  %8691 = vmatpush1.bf16.msra.mxu0 0
  %8692 = vmatprep.subr.bf16.mxu0 0
  %8693 = vmatpush1.bf16.msra.mxu0 0
  %8694 = vmatprep.subr.bf16.mxu0 0
  %8695 = vmatpush1.bf16.msra.mxu0 0
  %8696 = vmatprep.subr.bf16.mxu0 0
  %8697 = vmatpush1.bf16.msra.mxu0 0
  %8698 = vmatprep.subr.bf16.mxu0 0
  %8699 = vmatpush1.bf16.msra.mxu0 0
  %8700 = vmatprep.subr.bf16.mxu0 0
  %8701 = vmatpush1.bf16.msra.mxu0 0
  %8702 = vmatprep.subr.bf16.mxu0 0
  %8703 = vmatpush1.bf16.msra.mxu0 0
  %8704 = vmatprep.subr.bf16.mxu0 0
  %8705 = vmatpush1.bf16.msra.mxu0 0
  %8706 = vmatprep.subr.bf16.mxu0 0
  %8707 = vmatpush1.bf16.msra.mxu0 0
  %8708 = vmatprep.subr.bf16.mxu0 0
  %8709 = vmatpush1.bf16.msra.mxu0 0
  %8710 = vmatprep.subr.bf16.mxu0 0
  %8711 = vmatpush1.bf16.msra.mxu0 0
  %8712 = vmatprep.mubr.bf16.mxu0 0
  %8713 = vmatmul.mubr.bf16.gmra.mrb[0].mxu0 %v8678
  %v8714 = vpop.f32.mrb[0].mxu0
  %v8715 = vadd.f32 %v8675, %v8714
  %v8716 = vpop.f32.mrb[0].mxu0
  %v8717 = vadd.f32 %v8675, %v8716
  %v8718 = vpop.f32.mrb[0].mxu0
  %v8719 = vpop.f32.mrb[0].mxu0
  %8720 = vdwg.mxu0
  %8721 = vmatprep.subr.bf16.mxu0 %v8665
  %8722 = vmatpush1.bf16.msra.mxu0 %v8664
  %8723 = vmatprep.subr.bf16.mxu0 %v8669
  %8724 = vmatpush1.bf16.msra.mxu0 %v8668
  %8725 = vmatprep.subr.bf16.mxu0 0
  %8726 = vmatpush1.bf16.msra.mxu0 0
  %8727 = vmatprep.subr.bf16.mxu0 0
  %8728 = vmatpush1.bf16.msra.mxu0 0
  %8729 = vmatprep.subr.bf16.mxu0 0
  %8730 = vmatpush1.bf16.msra.mxu0 0
  %8731 = vmatprep.subr.bf16.mxu0 0
  %8732 = vmatpush1.bf16.msra.mxu0 0
  %8733 = vmatprep.subr.bf16.mxu0 0
  %8734 = vmatpush1.bf16.msra.mxu0 0
  %8735 = vmatprep.subr.bf16.mxu0 0
  %8736 = vmatpush1.bf16.msra.mxu0 0
  %8737 = vmatprep.subr.bf16.mxu0 0
  %8738 = vmatpush1.bf16.msra.mxu0 0
  %8739 = vmatprep.subr.bf16.mxu0 0
  %8740 = vmatpush1.bf16.msra.mxu0 0
  %8741 = vmatprep.subr.bf16.mxu0 0
  %8742 = vmatpush1.bf16.msra.mxu0 0
  %8743 = vmatprep.subr.bf16.mxu0 0
  %8744 = vmatpush1.bf16.msra.mxu0 0
  %8745 = vmatprep.subr.bf16.mxu0 0
  %8746 = vmatpush1.bf16.msra.mxu0 0
  %8747 = vmatprep.subr.bf16.mxu0 0
  %8748 = vmatpush1.bf16.msra.mxu0 0
  %8749 = vmatprep.subr.bf16.mxu0 0
  %8750 = vmatpush1.bf16.msra.mxu0 0
  %8751 = vmatprep.subr.bf16.mxu0 0
  %8752 = vmatpush1.bf16.msra.mxu0 0
  %8753 = vmatprep.mubr.bf16.mxu0 0
  %8754 = vmatmul.mubr.bf16.gmra.mrb[0].mxu0 %v8678
  %v8755 = vpop.f32.mrb[0].mxu0
  %v8756 = vadd.f32 %v8675, %v8755
  %v8757 = vpop.f32.mrb[0].mxu0
  %v8758 = vadd.f32 %v8675, %v8757
  %v8759 = vpop.f32.mrb[0].mxu0
  %v8760 = vpop.f32.mrb[0].mxu0
  %8761 = vdwg.mxu0
  %v8762 = vmul.f32 %v8497, -2.04796
  %v8763 = vmul.f32 %v8498, -2.04796
  %v8764 = vmul.f32 %v8499, -2.04796
  %v8765 = vmul.f32 %v8500, -2.04796
  %v8766 = vadd.f32 %v8715, %v8762
  %v8767 = vadd.f32 %v8717, %v8763
  %v8768 = vadd.f32 %v8756, %v8764
  %v8769 = vadd.f32 %v8758, %v8765
  %v8770 = vadd.f32 %v8489, %v8766
  %v8771 = vadd.f32 %v8490, %v8767
  %v8772 = vadd.f32 %v8491, %v8768
  %v8773 = vadd.f32 %v8492, %v8769
  %v8774 = vmul.f32 %v8770, -0.01665
  %v8775 = vmul.f32 %v8771, -0.01665
  %v8776 = vmul.f32 %v8772, -0.01665
  %v8777 = vmul.f32 %v8773, -0.01665
  %v8778 = vadd.f32 %v7683, %v8774
  %v8779 = vadd.f32 %v7684, %v8775
  %v8780 = vadd.f32 %v7685, %v8776
  %v8781 = vadd.f32 %v7686, %v8777
  %s8782 = scalar_lea.vmem %s1, 384
  %v8783 = vld [vmem:[%s8782] sm:$0xf]
  %v8784 = vld [vmem:[%s8782 + $0x4] sm:$0xf]
  %v8785 = vld [vmem:[%s8782 + $0x8] sm:$0xf]
  %v8786 = vld [vmem:[%s8782 + $0xc] sm:$0xf]
  %v8787 = vpack.c.bf16 %v8778, %v8778
  %v8788 = vpack.c.bf16 %v8779, %v8779
  %v8789 = vpack.c.bf16 %v8780, %v8780
  %v8790 = vpack.c.bf16 %v8781, %v8781
  %v8795 = vunpack.c.l.b16 %v8783
  %v8796 = vunpack.c.l.b16 %v8784
  %v8797 = vunpack.c.l.b16 %v8785
  %v8798 = vunpack.c.l.b16 %v8786
  %v8799 = vpack.c.b16 %v8796, %v8795
  %v8800 = vpack.c.b16 %v8798, %v8797
  %v8802 = vsel %vm40, %v8799, 0
  %v8805 = vsel %vm40, %v8800, 0
  %v8808 = vsel %vm47, %v8787, 0
  %v8811 = vsel %vm47, %v8788, 0
  %v8814 = vsel %vm47, %v8789, 0
  %v8817 = vsel %vm47, %v8790, 0
  %8819 = vmatprep.subr.bf16.mxu0 %v8811
  %8820 = vmatpush1.bf16.msra.mxu0 %v8808
  %8821 = vmatprep.subr.bf16.mxu0 0
  %8822 = vmatpush1.bf16.msra.mxu0 0
  %8823 = vmatprep.subr.bf16.mxu0 0
  %8824 = vmatpush1.bf16.msra.mxu0 0
  %8825 = vmatprep.subr.bf16.mxu0 0
  %8826 = vmatpush1.bf16.msra.mxu0 0
  %8827 = vmatprep.subr.bf16.mxu0 0
  %8828 = vmatpush1.bf16.msra.mxu0 0
  %8829 = vmatprep.subr.bf16.mxu0 0
  %8830 = vmatpush1.bf16.msra.mxu0 0
  %8831 = vmatprep.subr.bf16.mxu0 0
  %8832 = vmatpush1.bf16.msra.mxu0 0
  %8833 = vmatprep.subr.bf16.mxu0 0
  %8834 = vmatpush1.bf16.msra.mxu0 0
  %8835 = vmatprep.subr.bf16.mxu0 0
  %8836 = vmatpush1.bf16.msra.mxu0 0
  %8837 = vmatprep.subr.bf16.mxu0 0
  %8838 = vmatpush1.bf16.msra.mxu0 0
  %8839 = vmatprep.subr.bf16.mxu0 0
  %8840 = vmatpush1.bf16.msra.mxu0 0
  %8841 = vmatprep.subr.bf16.mxu0 0
  %8842 = vmatpush1.bf16.msra.mxu0 0
  %8843 = vmatprep.subr.bf16.mxu0 0
  %8844 = vmatpush1.bf16.msra.mxu0 0
  %8845 = vmatprep.subr.bf16.mxu0 0
  %8846 = vmatpush1.bf16.msra.mxu0 0
  %8847 = vmatprep.subr.bf16.mxu0 0
  %8848 = vmatpush1.bf16.msra.mxu0 0
  %8849 = vmatprep.subr.bf16.mxu0 0
  %8850 = vmatpush1.bf16.msra.mxu0 0
  %8851 = vmatprep.mubr.bf16.mxu0 0
  %8852 = vmatmul.mubr.bf16.gmra.mrb[0].mxu0 %v8802
  %v8853 = vpop.f32.mrb[0].mxu0
  %v8854 = vadd.f32 0.0, %v8853
  %v8855 = vpop.f32.mrb[0].mxu0
  %v8856 = vadd.f32 0.0, %v8855
  %v8857 = vpop.f32.mrb[0].mxu0
  %v8858 = vadd.f32 0.0, %v8857
  %v8859 = vpop.f32.mrb[0].mxu0
  %v8860 = vadd.f32 0.0, %v8859
  %8861 = vmatprep.mubr.bf16.mxu0 0
  %8862 = vmatmul.mubr.bf16.gmra.mrb[0].mxu0 %v8805
  %v8863 = vpop.f32.mrb[0].mxu0
  %v8864 = vadd.f32 0.0, %v8863
  %v8865 = vpop.f32.mrb[0].mxu0
  %v8866 = vadd.f32 0.0, %v8865
  %v8867 = vpop.f32.mrb[0].mxu0
  %v8868 = vadd.f32 0.0, %v8867
  %v8869 = vpop.f32.mrb[0].mxu0
  %v8870 = vadd.f32 0.0, %v8869
  %8871 = vdwg.mxu0
  %8872 = vmatprep.subr.bf16.mxu0 %v8817
  %8873 = vmatpush1.bf16.msra.mxu0 %v8814
  %8874 = vmatprep.subr.bf16.mxu0 0
  %8875 = vmatpush1.bf16.msra.mxu0 0
  %8876 = vmatprep.subr.bf16.mxu0 0
  %8877 = vmatpush1.bf16.msra.mxu0 0
  %8878 = vmatprep.subr.bf16.mxu0 0
  %8879 = vmatpush1.bf16.msra.mxu0 0
  %8880 = vmatprep.subr.bf16.mxu0 0
  %8881 = vmatpush1.bf16.msra.mxu0 0
  %8882 = vmatprep.subr.bf16.mxu0 0
  %8883 = vmatpush1.bf16.msra.mxu0 0
  %8884 = vmatprep.subr.bf16.mxu0 0
  %8885 = vmatpush1.bf16.msra.mxu0 0
  %8886 = vmatprep.subr.bf16.mxu0 0
  %8887 = vmatpush1.bf16.msra.mxu0 0
  %8888 = vmatprep.subr.bf16.mxu0 0
  %8889 = vmatpush1.bf16.msra.mxu0 0
  %8890 = vmatprep.subr.bf16.mxu0 0
  %8891 = vmatpush1.bf16.msra.mxu0 0
  %8892 = vmatprep.subr.bf16.mxu0 0
  %8893 = vmatpush1.bf16.msra.mxu0 0
  %8894 = vmatprep.subr.bf16.mxu0 0
  %8895 = vmatpush1.bf16.msra.mxu0 0
  %8896 = vmatprep.subr.bf16.mxu0 0
  %8897 = vmatpush1.bf16.msra.mxu0 0
  %8898 = vmatprep.subr.bf16.mxu0 0
  %8899 = vmatpush1.bf16.msra.mxu0 0
  %8900 = vmatprep.subr.bf16.mxu0 0
  %8901 = vmatpush1.bf16.msra.mxu0 0
  %8902 = vmatprep.subr.bf16.mxu0 0
  %8903 = vmatpush1.bf16.msra.mxu0 0
  %8904 = vmatprep.mubr.bf16.mxu0 0
  %8905 = vmatmul.mubr.bf16.gmra.mrb[0].mxu0 %v8802
  %v8906 = vpop.f32.mrb[0].mxu0
  %v8907 = vadd.f32 0.0, %v8906
  %v8908 = vpop.f32.mrb[0].mxu0
  %v8909 = vadd.f32 0.0, %v8908
  %v8910 = vpop.f32.mrb[0].mxu0
  %v8911 = vadd.f32 0.0, %v8910
  %v8912 = vpop.f32.mrb[0].mxu0
  %v8913 = vadd.f32 0.0, %v8912
  %8914 = vmatprep.mubr.bf16.mxu0 0
  %8915 = vmatmul.mubr.bf16.gmra.mrb[0].mxu0 %v8805
  %v8916 = vpop.f32.mrb[0].mxu0
  %v8917 = vadd.f32 0.0, %v8916
  %v8918 = vpop.f32.mrb[0].mxu0
  %v8919 = vadd.f32 0.0, %v8918
  %v8920 = vpop.f32.mrb[0].mxu0
  %v8921 = vadd.f32 0.0, %v8920
  %v8922 = vpop.f32.mrb[0].mxu0
  %v8923 = vadd.f32 0.0, %v8922
  %8924 = vdwg.mxu0
  %v8925 = vmax.f32 %v8854, 0.0
  %v8926 = vmax.f32 %v8856, 0.0
  %v8927 = vmax.f32 %v8907, 0.0
  %v8928 = vmax.f32 %v8909, 0.0
  %v8929 = vmax.f32 %v8858, 0.0
  %v8930 = vmax.f32 %v8860, 0.0
  %v8931 = vmax.f32 %v8911, 0.0
  %v8932 = vmax.f32 %v8913, 0.0
  %v8933 = vmax.f32 %v8864, 0.0
  %v8934 = vmax.f32 %v8866, 0.0
  %v8935 = vmax.f32 %v8917, 0.0
  %v8936 = vmax.f32 %v8919, 0.0
  %v8937 = vmax.f32 %v8868, 0.0
  %v8938 = vmax.f32 %v8870, 0.0
  %v8939 = vmax.f32 %v8921, 0.0
  %v8940 = vmax.f32 %v8923, 0.0
  %s8941 = scalar_lea.vmem %s2, 96
  %v8942 = vld [vmem:[%s8941] sm:$0xf]
  %v8943 = vpack.c.bf16 %v8929, %v8925
  %v8944 = vpack.c.bf16 %v8930, %v8926
  %v8945 = vpack.c.bf16 %v8931, %v8927
  %v8946 = vpack.c.bf16 %v8932, %v8928
  %v8947 = vpack.c.bf16 %v8937, %v8933
  %v8948 = vpack.c.bf16 %v8938, %v8934
  %v8949 = vpack.c.bf16 %v8939, %v8935
  %v8950 = vpack.c.bf16 %v8940, %v8936
  %s8951 = scalar_lea.vmem %s3, 192
  %v8952 = vld [vmem:[%s8951] sm:$0xff]
  %8954 = vset.pattern.permute.xlu0 0
  %8955 = vperm.xlu0 %8954, %v8952
  %v8956 = vpop.permute.xlu0 %8955
  %v8959 = vsel %vm197, %v8942, 0
  %8961 = vmatprep.subr.bf16.mxu0 %v8944
  %8962 = vmatpush1.bf16.msra.mxu0 %v8943
  %8963 = vmatprep.subr.bf16.mxu0 %v8948
  %8964 = vmatpush1.bf16.msra.mxu0 %v8947
  %8965 = vmatprep.subr.bf16.mxu0 0
  %8966 = vmatpush1.bf16.msra.mxu0 0
  %8967 = vmatprep.subr.bf16.mxu0 0
  %8968 = vmatpush1.bf16.msra.mxu0 0
  %8969 = vmatprep.subr.bf16.mxu0 0
  %8970 = vmatpush1.bf16.msra.mxu0 0
  %8971 = vmatprep.subr.bf16.mxu0 0
  %8972 = vmatpush1.bf16.msra.mxu0 0
  %8973 = vmatprep.subr.bf16.mxu0 0
  %8974 = vmatpush1.bf16.msra.mxu0 0
  %8975 = vmatprep.subr.bf16.mxu0 0
  %8976 = vmatpush1.bf16.msra.mxu0 0
  %8977 = vmatprep.subr.bf16.mxu0 0
  %8978 = vmatpush1.bf16.msra.mxu0 0
  %8979 = vmatprep.subr.bf16.mxu0 0
  %8980 = vmatpush1.bf16.msra.mxu0 0
  %8981 = vmatprep.subr.bf16.mxu0 0
  %8982 = vmatpush1.bf16.msra.mxu0 0
  %8983 = vmatprep.subr.bf16.mxu0 0
  %8984 = vmatpush1.bf16.msra.mxu0 0
  %8985 = vmatprep.subr.bf16.mxu0 0
  %8986 = vmatpush1.bf16.msra.mxu0 0
  %8987 = vmatprep.subr.bf16.mxu0 0
  %8988 = vmatpush1.bf16.msra.mxu0 0
  %8989 = vmatprep.subr.bf16.mxu0 0
  %8990 = vmatpush1.bf16.msra.mxu0 0
  %8991 = vmatprep.subr.bf16.mxu0 0
  %8992 = vmatpush1.bf16.msra.mxu0 0
  %8993 = vmatprep.mubr.bf16.mxu0 0
  %8994 = vmatmul.mubr.bf16.gmra.mrb[0].mxu0 %v8959
  %v8995 = vpop.f32.mrb[0].mxu0
  %v8996 = vadd.f32 %v8956, %v8995
  %v8997 = vpop.f32.mrb[0].mxu0
  %v8998 = vadd.f32 %v8956, %v8997
  %v8999 = vpop.f32.mrb[0].mxu0
  %v9000 = vpop.f32.mrb[0].mxu0
  %9001 = vdwg.mxu0
  %9002 = vmatprep.subr.bf16.mxu0 %v8946
  %9003 = vmatpush1.bf16.msra.mxu0 %v8945
  %9004 = vmatprep.subr.bf16.mxu0 %v8950
  %9005 = vmatpush1.bf16.msra.mxu0 %v8949
  %9006 = vmatprep.subr.bf16.mxu0 0
  %9007 = vmatpush1.bf16.msra.mxu0 0
  %9008 = vmatprep.subr.bf16.mxu0 0
  %9009 = vmatpush1.bf16.msra.mxu0 0
  %9010 = vmatprep.subr.bf16.mxu0 0
  %9011 = vmatpush1.bf16.msra.mxu0 0
  %9012 = vmatprep.subr.bf16.mxu0 0
  %9013 = vmatpush1.bf16.msra.mxu0 0
  %9014 = vmatprep.subr.bf16.mxu0 0
  %9015 = vmatpush1.bf16.msra.mxu0 0
  %9016 = vmatprep.subr.bf16.mxu0 0
  %9017 = vmatpush1.bf16.msra.mxu0 0
  %9018 = vmatprep.subr.bf16.mxu0 0
  %9019 = vmatpush1.bf16.msra.mxu0 0
  %9020 = vmatprep.subr.bf16.mxu0 0
  %9021 = vmatpush1.bf16.msra.mxu0 0
  %9022 = vmatprep.subr.bf16.mxu0 0
  %9023 = vmatpush1.bf16.msra.mxu0 0
  %9024 = vmatprep.subr.bf16.mxu0 0
  %9025 = vmatpush1.bf16.msra.mxu0 0
  %9026 = vmatprep.subr.bf16.mxu0 0
  %9027 = vmatpush1.bf16.msra.mxu0 0
  %9028 = vmatprep.subr.bf16.mxu0 0
  %9029 = vmatpush1.bf16.msra.mxu0 0
  %9030 = vmatprep.subr.bf16.mxu0 0
  %9031 = vmatpush1.bf16.msra.mxu0 0
  %9032 = vmatprep.subr.bf16.mxu0 0
  %9033 = vmatpush1.bf16.msra.mxu0 0
  %9034 = vmatprep.mubr.bf16.mxu0 0
  %9035 = vmatmul.mubr.bf16.gmra.mrb[0].mxu0 %v8959
  %v9036 = vpop.f32.mrb[0].mxu0
  %v9037 = vadd.f32 %v8956, %v9036
  %v9038 = vpop.f32.mrb[0].mxu0
  %v9039 = vadd.f32 %v8956, %v9038
  %v9040 = vpop.f32.mrb[0].mxu0
  %v9041 = vpop.f32.mrb[0].mxu0
  %9042 = vdwg.mxu0
  %v9043 = vmul.f32 %v8778, -2.04796
  %v9044 = vmul.f32 %v8779, -2.04796
  %v9045 = vmul.f32 %v8780, -2.04796
  %v9046 = vmul.f32 %v8781, -2.04796
  %v9047 = vadd.f32 %v8996, %v9043
  %v9048 = vadd.f32 %v8998, %v9044
  %v9049 = vadd.f32 %v9037, %v9045
  %v9050 = vadd.f32 %v9039, %v9046
  %v9051 = vmul.f32 %v9047, -0.04995
  %v9052 = vmul.f32 %v9048, -0.04995
  %v9053 = vmul.f32 %v9049, -0.04995
  %v9054 = vmul.f32 %v9050, -0.04995
  %v9055 = vadd.f32 %v8778, %v9051
  %v9056 = vadd.f32 %v8779, %v9052
  %v9057 = vadd.f32 %v8780, %v9053
  %v9058 = vadd.f32 %v8781, %v9054
  %s9059 = scalar_lea.vmem %s1, 400
  %v9060 = vld [vmem:[%s9059] sm:$0xf]
  %v9061 = vld [vmem:[%s9059 + $0x4] sm:$0xf]
  %v9062 = vld [vmem:[%s9059 + $0x8] sm:$0xf]
  %v9063 = vld [vmem:[%s9059 + $0xc] sm:$0xf]
  %v9064 = vpack.c.bf16 %v9055, %v9055
  %v9065 = vpack.c.bf16 %v9056, %v9056
  %v9066 = vpack.c.bf16 %v9057, %v9057
  %v9067 = vpack.c.bf16 %v9058, %v9058
  %v9072 = vunpack.c.l.b16 %v9060
  %v9073 = vunpack.c.l.b16 %v9061
  %v9074 = vunpack.c.l.b16 %v9062
  %v9075 = vunpack.c.l.b16 %v9063
  %v9076 = vpack.c.b16 %v9073, %v9072
  %v9077 = vpack.c.b16 %v9075, %v9074
  %v9079 = vsel %vm40, %v9076, 0
  %v9082 = vsel %vm40, %v9077, 0
  %v9085 = vsel %vm47, %v9064, 0
  %v9088 = vsel %vm47, %v9065, 0
  %v9091 = vsel %vm47, %v9066, 0
  %v9094 = vsel %vm47, %v9067, 0
  %9096 = vmatprep.subr.bf16.mxu0 %v9088
  %9097 = vmatpush1.bf16.msra.mxu0 %v9085
  %9098 = vmatprep.subr.bf16.mxu0 0
  %9099 = vmatpush1.bf16.msra.mxu0 0
  %9100 = vmatprep.subr.bf16.mxu0 0
  %9101 = vmatpush1.bf16.msra.mxu0 0
  %9102 = vmatprep.subr.bf16.mxu0 0
  %9103 = vmatpush1.bf16.msra.mxu0 0
  %9104 = vmatprep.subr.bf16.mxu0 0
  %9105 = vmatpush1.bf16.msra.mxu0 0
  %9106 = vmatprep.subr.bf16.mxu0 0
  %9107 = vmatpush1.bf16.msra.mxu0 0
  %9108 = vmatprep.subr.bf16.mxu0 0
  %9109 = vmatpush1.bf16.msra.mxu0 0
  %9110 = vmatprep.subr.bf16.mxu0 0
  %9111 = vmatpush1.bf16.msra.mxu0 0
  %9112 = vmatprep.subr.bf16.mxu0 0
  %9113 = vmatpush1.bf16.msra.mxu0 0
  %9114 = vmatprep.subr.bf16.mxu0 0
  %9115 = vmatpush1.bf16.msra.mxu0 0
  %9116 = vmatprep.subr.bf16.mxu0 0
  %9117 = vmatpush1.bf16.msra.mxu0 0
  %9118 = vmatprep.subr.bf16.mxu0 0
  %9119 = vmatpush1.bf16.msra.mxu0 0
  %9120 = vmatprep.subr.bf16.mxu0 0
  %9121 = vmatpush1.bf16.msra.mxu0 0
  %9122 = vmatprep.subr.bf16.mxu0 0
  %9123 = vmatpush1.bf16.msra.mxu0 0
  %9124 = vmatprep.subr.bf16.mxu0 0
  %9125 = vmatpush1.bf16.msra.mxu0 0
  %9126 = vmatprep.subr.bf16.mxu0 0
  %9127 = vmatpush1.bf16.msra.mxu0 0
  %9128 = vmatprep.mubr.bf16.mxu0 0
  %9129 = vmatmul.mubr.bf16.gmra.mrb[0].mxu0 %v9079
  %v9130 = vpop.f32.mrb[0].mxu0
  %v9131 = vadd.f32 0.0, %v9130
  %v9132 = vpop.f32.mrb[0].mxu0
  %v9133 = vadd.f32 0.0, %v9132
  %v9134 = vpop.f32.mrb[0].mxu0
  %v9135 = vadd.f32 0.0, %v9134
  %v9136 = vpop.f32.mrb[0].mxu0
  %v9137 = vadd.f32 0.0, %v9136
  %9138 = vmatprep.mubr.bf16.mxu0 0
  %9139 = vmatmul.mubr.bf16.gmra.mrb[0].mxu0 %v9082
  %v9140 = vpop.f32.mrb[0].mxu0
  %v9141 = vadd.f32 0.0, %v9140
  %v9142 = vpop.f32.mrb[0].mxu0
  %v9143 = vadd.f32 0.0, %v9142
  %v9144 = vpop.f32.mrb[0].mxu0
  %v9145 = vadd.f32 0.0, %v9144
  %v9146 = vpop.f32.mrb[0].mxu0
  %v9147 = vadd.f32 0.0, %v9146
  %9148 = vdwg.mxu0
  %9149 = vmatprep.subr.bf16.mxu0 %v9094
  %9150 = vmatpush1.bf16.msra.mxu0 %v9091
  %9151 = vmatprep.subr.bf16.mxu0 0
  %9152 = vmatpush1.bf16.msra.mxu0 0
  %9153 = vmatprep.subr.bf16.mxu0 0
  %9154 = vmatpush1.bf16.msra.mxu0 0
  %9155 = vmatprep.subr.bf16.mxu0 0
  %9156 = vmatpush1.bf16.msra.mxu0 0
  %9157 = vmatprep.subr.bf16.mxu0 0
  %9158 = vmatpush1.bf16.msra.mxu0 0
  %9159 = vmatprep.subr.bf16.mxu0 0
  %9160 = vmatpush1.bf16.msra.mxu0 0
  %9161 = vmatprep.subr.bf16.mxu0 0
  %9162 = vmatpush1.bf16.msra.mxu0 0
  %9163 = vmatprep.subr.bf16.mxu0 0
  %9164 = vmatpush1.bf16.msra.mxu0 0
  %9165 = vmatprep.subr.bf16.mxu0 0
  %9166 = vmatpush1.bf16.msra.mxu0 0
  %9167 = vmatprep.subr.bf16.mxu0 0
  %9168 = vmatpush1.bf16.msra.mxu0 0
  %9169 = vmatprep.subr.bf16.mxu0 0
  %9170 = vmatpush1.bf16.msra.mxu0 0
  %9171 = vmatprep.subr.bf16.mxu0 0
  %9172 = vmatpush1.bf16.msra.mxu0 0
  %9173 = vmatprep.subr.bf16.mxu0 0
  %9174 = vmatpush1.bf16.msra.mxu0 0
  %9175 = vmatprep.subr.bf16.mxu0 0
  %9176 = vmatpush1.bf16.msra.mxu0 0
  %9177 = vmatprep.subr.bf16.mxu0 0
  %9178 = vmatpush1.bf16.msra.mxu0 0
  %9179 = vmatprep.subr.bf16.mxu0 0
  %9180 = vmatpush1.bf16.msra.mxu0 0
  %9181 = vmatprep.mubr.bf16.mxu0 0
  %9182 = vmatmul.mubr.bf16.gmra.mrb[0].mxu0 %v9079
  %v9183 = vpop.f32.mrb[0].mxu0
  %v9184 = vadd.f32 0.0, %v9183
  %v9185 = vpop.f32.mrb[0].mxu0
  %v9186 = vadd.f32 0.0, %v9185
  %v9187 = vpop.f32.mrb[0].mxu0
  %v9188 = vadd.f32 0.0, %v9187
  %v9189 = vpop.f32.mrb[0].mxu0
  %v9190 = vadd.f32 0.0, %v9189
  %9191 = vmatprep.mubr.bf16.mxu0 0
  %9192 = vmatmul.mubr.bf16.gmra.mrb[0].mxu0 %v9082
  %v9193 = vpop.f32.mrb[0].mxu0
  %v9194 = vadd.f32 0.0, %v9193
  %v9195 = vpop.f32.mrb[0].mxu0
  %v9196 = vadd.f32 0.0, %v9195
  %v9197 = vpop.f32.mrb[0].mxu0
  %v9198 = vadd.f32 0.0, %v9197
  %v9199 = vpop.f32.mrb[0].mxu0
  %v9200 = vadd.f32 0.0, %v9199
  %9201 = vdwg.mxu0
  %v9202 = vmax.f32 %v9131, 0.0
  %v9203 = vmax.f32 %v9133, 0.0
  %v9204 = vmax.f32 %v9184, 0.0
  %v9205 = vmax.f32 %v9186, 0.0
  %v9206 = vmax.f32 %v9135, 0.0
  %v9207 = vmax.f32 %v9137, 0.0
  %v9208 = vmax.f32 %v9188, 0.0
  %v9209 = vmax.f32 %v9190, 0.0
  %v9210 = vmax.f32 %v9141, 0.0
  %v9211 = vmax.f32 %v9143, 0.0
  %v9212 = vmax.f32 %v9194, 0.0
  %v9213 = vmax.f32 %v9196, 0.0
  %v9214 = vmax.f32 %v9145, 0.0
  %v9215 = vmax.f32 %v9147, 0.0
  %v9216 = vmax.f32 %v9198, 0.0
  %v9217 = vmax.f32 %v9200, 0.0
  %s9218 = scalar_lea.vmem %s2, 100
  %v9219 = vld [vmem:[%s9218] sm:$0xf]
  %v9220 = vpack.c.bf16 %v9206, %v9202
  %v9221 = vpack.c.bf16 %v9207, %v9203
  %v9222 = vpack.c.bf16 %v9208, %v9204
  %v9223 = vpack.c.bf16 %v9209, %v9205
  %v9224 = vpack.c.bf16 %v9214, %v9210
  %v9225 = vpack.c.bf16 %v9215, %v9211
  %v9226 = vpack.c.bf16 %v9216, %v9212
  %v9227 = vpack.c.bf16 %v9217, %v9213
  %s9228 = scalar_lea.vmem %s3, 200
  %v9229 = vld [vmem:[%s9228] sm:$0xff]
  %9231 = vset.pattern.permute.xlu0 0
  %9232 = vperm.xlu0 %9231, %v9229
  %v9233 = vpop.permute.xlu0 %9232
  %v9236 = vsel %vm197, %v9219, 0
  %9238 = vmatprep.subr.bf16.mxu0 %v9221
  %9239 = vmatpush1.bf16.msra.mxu0 %v9220
  %9240 = vmatprep.subr.bf16.mxu0 %v9225
  %9241 = vmatpush1.bf16.msra.mxu0 %v9224
  %9242 = vmatprep.subr.bf16.mxu0 0
  %9243 = vmatpush1.bf16.msra.mxu0 0
  %9244 = vmatprep.subr.bf16.mxu0 0
  %9245 = vmatpush1.bf16.msra.mxu0 0
  %9246 = vmatprep.subr.bf16.mxu0 0
  %9247 = vmatpush1.bf16.msra.mxu0 0
  %9248 = vmatprep.subr.bf16.mxu0 0
  %9249 = vmatpush1.bf16.msra.mxu0 0
  %9250 = vmatprep.subr.bf16.mxu0 0
  %9251 = vmatpush1.bf16.msra.mxu0 0
  %9252 = vmatprep.subr.bf16.mxu0 0
  %9253 = vmatpush1.bf16.msra.mxu0 0
  %9254 = vmatprep.subr.bf16.mxu0 0
  %9255 = vmatpush1.bf16.msra.mxu0 0
  %9256 = vmatprep.subr.bf16.mxu0 0
  %9257 = vmatpush1.bf16.msra.mxu0 0
  %9258 = vmatprep.subr.bf16.mxu0 0
  %9259 = vmatpush1.bf16.msra.mxu0 0
  %9260 = vmatprep.subr.bf16.mxu0 0
  %9261 = vmatpush1.bf16.msra.mxu0 0
  %9262 = vmatprep.subr.bf16.mxu0 0
  %9263 = vmatpush1.bf16.msra.mxu0 0
  %9264 = vmatprep.subr.bf16.mxu0 0
  %9265 = vmatpush1.bf16.msra.mxu0 0
  %9266 = vmatprep.subr.bf16.mxu0 0
  %9267 = vmatpush1.bf16.msra.mxu0 0
  %9268 = vmatprep.subr.bf16.mxu0 0
  %9269 = vmatpush1.bf16.msra.mxu0 0
  %9270 = vmatprep.mubr.bf16.mxu0 0
  %9271 = vmatmul.mubr.bf16.gmra.mrb[0].mxu0 %v9236
  %v9272 = vpop.f32.mrb[0].mxu0
  %v9273 = vadd.f32 %v9233, %v9272
  %v9274 = vpop.f32.mrb[0].mxu0
  %v9275 = vadd.f32 %v9233, %v9274
  %v9276 = vpop.f32.mrb[0].mxu0
  %v9277 = vpop.f32.mrb[0].mxu0
  %9278 = vdwg.mxu0
  %9279 = vmatprep.subr.bf16.mxu0 %v9223
  %9280 = vmatpush1.bf16.msra.mxu0 %v9222
  %9281 = vmatprep.subr.bf16.mxu0 %v9227
  %9282 = vmatpush1.bf16.msra.mxu0 %v9226
  %9283 = vmatprep.subr.bf16.mxu0 0
  %9284 = vmatpush1.bf16.msra.mxu0 0
  %9285 = vmatprep.subr.bf16.mxu0 0
  %9286 = vmatpush1.bf16.msra.mxu0 0
  %9287 = vmatprep.subr.bf16.mxu0 0
  %9288 = vmatpush1.bf16.msra.mxu0 0
  %9289 = vmatprep.subr.bf16.mxu0 0
  %9290 = vmatpush1.bf16.msra.mxu0 0
  %9291 = vmatprep.subr.bf16.mxu0 0
  %9292 = vmatpush1.bf16.msra.mxu0 0
  %9293 = vmatprep.subr.bf16.mxu0 0
  %9294 = vmatpush1.bf16.msra.mxu0 0
  %9295 = vmatprep.subr.bf16.mxu0 0
  %9296 = vmatpush1.bf16.msra.mxu0 0
  %9297 = vmatprep.subr.bf16.mxu0 0
  %9298 = vmatpush1.bf16.msra.mxu0 0
  %9299 = vmatprep.subr.bf16.mxu0 0
  %9300 = vmatpush1.bf16.msra.mxu0 0
  %9301 = vmatprep.subr.bf16.mxu0 0
  %9302 = vmatpush1.bf16.msra.mxu0 0
  %9303 = vmatprep.subr.bf16.mxu0 0
  %9304 = vmatpush1.bf16.msra.mxu0 0
  %9305 = vmatprep.subr.bf16.mxu0 0
  %9306 = vmatpush1.bf16.msra.mxu0 0
  %9307 = vmatprep.subr.bf16.mxu0 0
  %9308 = vmatpush1.bf16.msra.mxu0 0
  %9309 = vmatprep.subr.bf16.mxu0 0
  %9310 = vmatpush1.bf16.msra.mxu0 0
  %9311 = vmatprep.mubr.bf16.mxu0 0
  %9312 = vmatmul.mubr.bf16.gmra.mrb[0].mxu0 %v9236
  %v9313 = vpop.f32.mrb[0].mxu0
  %v9314 = vadd.f32 %v9233, %v9313
  %v9315 = vpop.f32.mrb[0].mxu0
  %v9316 = vadd.f32 %v9233, %v9315
  %v9317 = vpop.f32.mrb[0].mxu0
  %v9318 = vpop.f32.mrb[0].mxu0
  %9319 = vdwg.mxu0
  %v9320 = vmul.f32 %v9055, -1.5509574
  %v9321 = vmul.f32 %v9056, -1.5509574
  %v9322 = vmul.f32 %v9057, -1.5509574
  %v9323 = vmul.f32 %v9058, -1.5509574
  %v9324 = vadd.f32 %v9273, %v9320
  %v9325 = vadd.f32 %v9275, %v9321
  %v9326 = vadd.f32 %v9314, %v9322
  %v9327 = vadd.f32 %v9316, %v9323
  %v9328 = vmul.f32 %v9324, 2.0
  %v9329 = vmul.f32 %v9325, 2.0
  %v9330 = vmul.f32 %v9326, 2.0
  %v9331 = vmul.f32 %v9327, 2.0
  %v9332 = vadd.f32 %v9047, %v9328
  %v9333 = vadd.f32 %v9048, %v9329
  %v9334 = vadd.f32 %v9049, %v9330
  %v9335 = vadd.f32 %v9050, %v9331
  %v9336 = vmul.f32 %v9324, -0.04995
  %v9337 = vmul.f32 %v9325, -0.04995
  %v9338 = vmul.f32 %v9326, -0.04995
  %v9339 = vmul.f32 %v9327, -0.04995
  %v9340 = vadd.f32 %v8778, %v9336
  %v9341 = vadd.f32 %v8779, %v9337
  %v9342 = vadd.f32 %v8780, %v9338
  %v9343 = vadd.f32 %v8781, %v9339
  %v9344 = vpack.c.bf16 %v9340, %v9340
  %v9345 = vpack.c.bf16 %v9341, %v9341
  %v9346 = vpack.c.bf16 %v9342, %v9342
  %v9347 = vpack.c.bf16 %v9343, %v9343
  %v9349 = vsel %vm47, %v9344, 0
  %v9352 = vsel %vm47, %v9345, 0
  %v9355 = vsel %vm47, %v9346, 0
  %v9358 = vsel %vm47, %v9347, 0
  %9360 = vmatprep.subr.bf16.mxu0 %v9352
  %9361 = vmatpush1.bf16.msra.mxu0 %v9349
  %9362 = vmatprep.subr.bf16.mxu0 0
  %9363 = vmatpush1.bf16.msra.mxu0 0
  %9364 = vmatprep.subr.bf16.mxu0 0
  %9365 = vmatpush1.bf16.msra.mxu0 0
  %9366 = vmatprep.subr.bf16.mxu0 0
  %9367 = vmatpush1.bf16.msra.mxu0 0
  %9368 = vmatprep.subr.bf16.mxu0 0
  %9369 = vmatpush1.bf16.msra.mxu0 0
  %9370 = vmatprep.subr.bf16.mxu0 0
  %9371 = vmatpush1.bf16.msra.mxu0 0
  %9372 = vmatprep.subr.bf16.mxu0 0
  %9373 = vmatpush1.bf16.msra.mxu0 0
  %9374 = vmatprep.subr.bf16.mxu0 0
  %9375 = vmatpush1.bf16.msra.mxu0 0
  %9376 = vmatprep.subr.bf16.mxu0 0
  %9377 = vmatpush1.bf16.msra.mxu0 0
  %9378 = vmatprep.subr.bf16.mxu0 0
  %9379 = vmatpush1.bf16.msra.mxu0 0
  %9380 = vmatprep.subr.bf16.mxu0 0
  %9381 = vmatpush1.bf16.msra.mxu0 0
  %9382 = vmatprep.subr.bf16.mxu0 0
  %9383 = vmatpush1.bf16.msra.mxu0 0
  %9384 = vmatprep.subr.bf16.mxu0 0
  %9385 = vmatpush1.bf16.msra.mxu0 0
  %9386 = vmatprep.subr.bf16.mxu0 0
  %9387 = vmatpush1.bf16.msra.mxu0 0
  %9388 = vmatprep.subr.bf16.mxu0 0
  %9389 = vmatpush1.bf16.msra.mxu0 0
  %9390 = vmatprep.subr.bf16.mxu0 0
  %9391 = vmatpush1.bf16.msra.mxu0 0
  %9392 = vmatprep.mubr.bf16.mxu0 0
  %9393 = vmatmul.mubr.bf16.gmra.mrb[0].mxu0 %v9079
  %v9394 = vpop.f32.mrb[0].mxu0
  %v9395 = vadd.f32 0.0, %v9394
  %v9396 = vpop.f32.mrb[0].mxu0
  %v9397 = vadd.f32 0.0, %v9396
  %v9398 = vpop.f32.mrb[0].mxu0
  %v9399 = vadd.f32 0.0, %v9398
  %v9400 = vpop.f32.mrb[0].mxu0
  %v9401 = vadd.f32 0.0, %v9400
  %9402 = vmatprep.mubr.bf16.mxu0 0
  %9403 = vmatmul.mubr.bf16.gmra.mrb[0].mxu0 %v9082
  %v9404 = vpop.f32.mrb[0].mxu0
  %v9405 = vadd.f32 0.0, %v9404
  %v9406 = vpop.f32.mrb[0].mxu0
  %v9407 = vadd.f32 0.0, %v9406
  %v9408 = vpop.f32.mrb[0].mxu0
  %v9409 = vadd.f32 0.0, %v9408
  %v9410 = vpop.f32.mrb[0].mxu0
  %v9411 = vadd.f32 0.0, %v9410
  %9412 = vdwg.mxu0
  %9413 = vmatprep.subr.bf16.mxu0 %v9358
  %9414 = vmatpush1.bf16.msra.mxu0 %v9355
  %9415 = vmatprep.subr.bf16.mxu0 0
  %9416 = vmatpush1.bf16.msra.mxu0 0
  %9417 = vmatprep.subr.bf16.mxu0 0
  %9418 = vmatpush1.bf16.msra.mxu0 0
  %9419 = vmatprep.subr.bf16.mxu0 0
  %9420 = vmatpush1.bf16.msra.mxu0 0
  %9421 = vmatprep.subr.bf16.mxu0 0
  %9422 = vmatpush1.bf16.msra.mxu0 0
  %9423 = vmatprep.subr.bf16.mxu0 0
  %9424 = vmatpush1.bf16.msra.mxu0 0
  %9425 = vmatprep.subr.bf16.mxu0 0
  %9426 = vmatpush1.bf16.msra.mxu0 0
  %9427 = vmatprep.subr.bf16.mxu0 0
  %9428 = vmatpush1.bf16.msra.mxu0 0
  %9429 = vmatprep.subr.bf16.mxu0 0
  %9430 = vmatpush1.bf16.msra.mxu0 0
  %9431 = vmatprep.subr.bf16.mxu0 0
  %9432 = vmatpush1.bf16.msra.mxu0 0
  %9433 = vmatprep.subr.bf16.mxu0 0
  %9434 = vmatpush1.bf16.msra.mxu0 0
  %9435 = vmatprep.subr.bf16.mxu0 0
  %9436 = vmatpush1.bf16.msra.mxu0 0
  %9437 = vmatprep.subr.bf16.mxu0 0
  %9438 = vmatpush1.bf16.msra.mxu0 0
  %9439 = vmatprep.subr.bf16.mxu0 0
  %9440 = vmatpush1.bf16.msra.mxu0 0
  %9441 = vmatprep.subr.bf16.mxu0 0
  %9442 = vmatpush1.bf16.msra.mxu0 0
  %9443 = vmatprep.subr.bf16.mxu0 0
  %9444 = vmatpush1.bf16.msra.mxu0 0
  %9445 = vmatprep.mubr.bf16.mxu0 0
  %9446 = vmatmul.mubr.bf16.gmra.mrb[0].mxu0 %v9079
  %v9447 = vpop.f32.mrb[0].mxu0
  %v9448 = vadd.f32 0.0, %v9447
  %v9449 = vpop.f32.mrb[0].mxu0
  %v9450 = vadd.f32 0.0, %v9449
  %v9451 = vpop.f32.mrb[0].mxu0
  %v9452 = vadd.f32 0.0, %v9451
  %v9453 = vpop.f32.mrb[0].mxu0
  %v9454 = vadd.f32 0.0, %v9453
  %9455 = vmatprep.mubr.bf16.mxu0 0
  %9456 = vmatmul.mubr.bf16.gmra.mrb[0].mxu0 %v9082
  %v9457 = vpop.f32.mrb[0].mxu0
  %v9458 = vadd.f32 0.0, %v9457
  %v9459 = vpop.f32.mrb[0].mxu0
  %v9460 = vadd.f32 0.0, %v9459
  %v9461 = vpop.f32.mrb[0].mxu0
  %v9462 = vadd.f32 0.0, %v9461
  %v9463 = vpop.f32.mrb[0].mxu0
  %v9464 = vadd.f32 0.0, %v9463
  %9465 = vdwg.mxu0
  %v9466 = vmax.f32 %v9395, 0.0
  %v9467 = vmax.f32 %v9397, 0.0
  %v9468 = vmax.f32 %v9448, 0.0
  %v9469 = vmax.f32 %v9450, 0.0
  %v9470 = vmax.f32 %v9399, 0.0
  %v9471 = vmax.f32 %v9401, 0.0
  %v9472 = vmax.f32 %v9452, 0.0
  %v9473 = vmax.f32 %v9454, 0.0
  %v9474 = vmax.f32 %v9405, 0.0
  %v9475 = vmax.f32 %v9407, 0.0
  %v9476 = vmax.f32 %v9458, 0.0
  %v9477 = vmax.f32 %v9460, 0.0
  %v9478 = vmax.f32 %v9409, 0.0
  %v9479 = vmax.f32 %v9411, 0.0
  %v9480 = vmax.f32 %v9462, 0.0
  %v9481 = vmax.f32 %v9464, 0.0
  %v9482 = vpack.c.bf16 %v9470, %v9466
  %v9483 = vpack.c.bf16 %v9471, %v9467
  %v9484 = vpack.c.bf16 %v9472, %v9468
  %v9485 = vpack.c.bf16 %v9473, %v9469
  %v9486 = vpack.c.bf16 %v9478, %v9474
  %v9487 = vpack.c.bf16 %v9479, %v9475
  %v9488 = vpack.c.bf16 %v9480, %v9476
  %v9489 = vpack.c.bf16 %v9481, %v9477
  %9490 = vmatprep.subr.bf16.mxu0 %v9483
  %9491 = vmatpush1.bf16.msra.mxu0 %v9482
  %9492 = vmatprep.subr.bf16.mxu0 %v9487
  %9493 = vmatpush1.bf16.msra.mxu0 %v9486
  %9494 = vmatprep.subr.bf16.mxu0 0
  %9495 = vmatpush1.bf16.msra.mxu0 0
  %9496 = vmatprep.subr.bf16.mxu0 0
  %9497 = vmatpush1.bf16.msra.mxu0 0
  %9498 = vmatprep.subr.bf16.mxu0 0
  %9499 = vmatpush1.bf16.msra.mxu0 0
  %9500 = vmatprep.subr.bf16.mxu0 0
  %9501 = vmatpush1.bf16.msra.mxu0 0
  %9502 = vmatprep.subr.bf16.mxu0 0
  %9503 = vmatpush1.bf16.msra.mxu0 0
  %9504 = vmatprep.subr.bf16.mxu0 0
  %9505 = vmatpush1.bf16.msra.mxu0 0
  %9506 = vmatprep.subr.bf16.mxu0 0
  %9507 = vmatpush1.bf16.msra.mxu0 0
  %9508 = vmatprep.subr.bf16.mxu0 0
  %9509 = vmatpush1.bf16.msra.mxu0 0
  %9510 = vmatprep.subr.bf16.mxu0 0
  %9511 = vmatpush1.bf16.msra.mxu0 0
  %9512 = vmatprep.subr.bf16.mxu0 0
  %9513 = vmatpush1.bf16.msra.mxu0 0
  %9514 = vmatprep.subr.bf16.mxu0 0
  %9515 = vmatpush1.bf16.msra.mxu0 0
  %9516 = vmatprep.subr.bf16.mxu0 0
  %9517 = vmatpush1.bf16.msra.mxu0 0
  %9518 = vmatprep.subr.bf16.mxu0 0
  %9519 = vmatpush1.bf16.msra.mxu0 0
  %9520 = vmatprep.subr.bf16.mxu0 0
  %9521 = vmatpush1.bf16.msra.mxu0 0
  %9522 = vmatprep.mubr.bf16.mxu0 0
  %9523 = vmatmul.mubr.bf16.gmra.mrb[0].mxu0 %v9236
  %v9524 = vpop.f32.mrb[0].mxu0
  %v9525 = vadd.f32 %v9233, %v9524
  %v9526 = vpop.f32.mrb[0].mxu0
  %v9527 = vadd.f32 %v9233, %v9526
  %v9528 = vpop.f32.mrb[0].mxu0
  %v9529 = vpop.f32.mrb[0].mxu0
  %9530 = vdwg.mxu0
  %9531 = vmatprep.subr.bf16.mxu0 %v9485
  %9532 = vmatpush1.bf16.msra.mxu0 %v9484
  %9533 = vmatprep.subr.bf16.mxu0 %v9489
  %9534 = vmatpush1.bf16.msra.mxu0 %v9488
  %9535 = vmatprep.subr.bf16.mxu0 0
  %9536 = vmatpush1.bf16.msra.mxu0 0
  %9537 = vmatprep.subr.bf16.mxu0 0
  %9538 = vmatpush1.bf16.msra.mxu0 0
  %9539 = vmatprep.subr.bf16.mxu0 0
  %9540 = vmatpush1.bf16.msra.mxu0 0
  %9541 = vmatprep.subr.bf16.mxu0 0
  %9542 = vmatpush1.bf16.msra.mxu0 0
  %9543 = vmatprep.subr.bf16.mxu0 0
  %9544 = vmatpush1.bf16.msra.mxu0 0
  %9545 = vmatprep.subr.bf16.mxu0 0
  %9546 = vmatpush1.bf16.msra.mxu0 0
  %9547 = vmatprep.subr.bf16.mxu0 0
  %9548 = vmatpush1.bf16.msra.mxu0 0
  %9549 = vmatprep.subr.bf16.mxu0 0
  %9550 = vmatpush1.bf16.msra.mxu0 0
  %9551 = vmatprep.subr.bf16.mxu0 0
  %9552 = vmatpush1.bf16.msra.mxu0 0
  %9553 = vmatprep.subr.bf16.mxu0 0
  %9554 = vmatpush1.bf16.msra.mxu0 0
  %9555 = vmatprep.subr.bf16.mxu0 0
  %9556 = vmatpush1.bf16.msra.mxu0 0
  %9557 = vmatprep.subr.bf16.mxu0 0
  %9558 = vmatpush1.bf16.msra.mxu0 0
  %9559 = vmatprep.subr.bf16.mxu0 0
  %9560 = vmatpush1.bf16.msra.mxu0 0
  %9561 = vmatprep.subr.bf16.mxu0 0
  %9562 = vmatpush1.bf16.msra.mxu0 0
  %9563 = vmatprep.mubr.bf16.mxu0 0
  %9564 = vmatmul.mubr.bf16.gmra.mrb[0].mxu0 %v9236
  %v9565 = vpop.f32.mrb[0].mxu0
  %v9566 = vadd.f32 %v9233, %v9565
  %v9567 = vpop.f32.mrb[0].mxu0
  %v9568 = vadd.f32 %v9233, %v9567
  %v9569 = vpop.f32.mrb[0].mxu0
  %v9570 = vpop.f32.mrb[0].mxu0
  %9571 = vdwg.mxu0
  %v9572 = vmul.f32 %v9340, -1.5509574
  %v9573 = vmul.f32 %v9341, -1.5509574
  %v9574 = vmul.f32 %v9342, -1.5509574
  %v9575 = vmul.f32 %v9343, -1.5509574
  %v9576 = vadd.f32 %v9525, %v9572
  %v9577 = vadd.f32 %v9527, %v9573
  %v9578 = vadd.f32 %v9566, %v9574
  %v9579 = vadd.f32 %v9568, %v9575
  %v9580 = vmul.f32 %v9576, 2.0
  %v9581 = vmul.f32 %v9577, 2.0
  %v9582 = vmul.f32 %v9578, 2.0
  %v9583 = vmul.f32 %v9579, 2.0
  %v9584 = vadd.f32 %v9332, %v9580
  %v9585 = vadd.f32 %v9333, %v9581
  %v9586 = vadd.f32 %v9334, %v9582
  %v9587 = vadd.f32 %v9335, %v9583
  %v9588 = vmul.f32 %v9576, -0.0999
  %v9589 = vmul.f32 %v9577, -0.0999
  %v9590 = vmul.f32 %v9578, -0.0999
  %v9591 = vmul.f32 %v9579, -0.0999
  %v9592 = vadd.f32 %v8778, %v9588
  %v9593 = vadd.f32 %v8779, %v9589
  %v9594 = vadd.f32 %v8780, %v9590
  %v9595 = vadd.f32 %v8781, %v9591
  %s9596 = scalar_lea.vmem %s1, 416
  %v9597 = vld [vmem:[%s9596] sm:$0xf]
  %v9598 = vld [vmem:[%s9596 + $0x4] sm:$0xf]
  %v9599 = vld [vmem:[%s9596 + $0x8] sm:$0xf]
  %v9600 = vld [vmem:[%s9596 + $0xc] sm:$0xf]
  %v9601 = vpack.c.bf16 %v9592, %v9592
  %v9602 = vpack.c.bf16 %v9593, %v9593
  %v9603 = vpack.c.bf16 %v9594, %v9594
  %v9604 = vpack.c.bf16 %v9595, %v9595
  %v9609 = vunpack.c.l.b16 %v9597
  %v9610 = vunpack.c.l.b16 %v9598
  %v9611 = vunpack.c.l.b16 %v9599
  %v9612 = vunpack.c.l.b16 %v9600
  %v9613 = vpack.c.b16 %v9610, %v9609
  %v9614 = vpack.c.b16 %v9612, %v9611
  %v9616 = vsel %vm40, %v9613, 0
  %v9619 = vsel %vm40, %v9614, 0
  %v9622 = vsel %vm47, %v9601, 0
  %v9625 = vsel %vm47, %v9602, 0
  %v9628 = vsel %vm47, %v9603, 0
  %v9631 = vsel %vm47, %v9604, 0
  %9633 = vmatprep.subr.bf16.mxu0 %v9625
  %9634 = vmatpush1.bf16.msra.mxu0 %v9622
  %9635 = vmatprep.subr.bf16.mxu0 0
  %9636 = vmatpush1.bf16.msra.mxu0 0
  %9637 = vmatprep.subr.bf16.mxu0 0
  %9638 = vmatpush1.bf16.msra.mxu0 0
  %9639 = vmatprep.subr.bf16.mxu0 0
  %9640 = vmatpush1.bf16.msra.mxu0 0
  %9641 = vmatprep.subr.bf16.mxu0 0
  %9642 = vmatpush1.bf16.msra.mxu0 0
  %9643 = vmatprep.subr.bf16.mxu0 0
  %9644 = vmatpush1.bf16.msra.mxu0 0
  %9645 = vmatprep.subr.bf16.mxu0 0
  %9646 = vmatpush1.bf16.msra.mxu0 0
  %9647 = vmatprep.subr.bf16.mxu0 0
  %9648 = vmatpush1.bf16.msra.mxu0 0
  %9649 = vmatprep.subr.bf16.mxu0 0
  %9650 = vmatpush1.bf16.msra.mxu0 0
  %9651 = vmatprep.subr.bf16.mxu0 0
  %9652 = vmatpush1.bf16.msra.mxu0 0
  %9653 = vmatprep.subr.bf16.mxu0 0
  %9654 = vmatpush1.bf16.msra.mxu0 0
  %9655 = vmatprep.subr.bf16.mxu0 0
  %9656 = vmatpush1.bf16.msra.mxu0 0
  %9657 = vmatprep.subr.bf16.mxu0 0
  %9658 = vmatpush1.bf16.msra.mxu0 0
  %9659 = vmatprep.subr.bf16.mxu0 0
  %9660 = vmatpush1.bf16.msra.mxu0 0
  %9661 = vmatprep.subr.bf16.mxu0 0
  %9662 = vmatpush1.bf16.msra.mxu0 0
  %9663 = vmatprep.subr.bf16.mxu0 0
  %9664 = vmatpush1.bf16.msra.mxu0 0
  %9665 = vmatprep.mubr.bf16.mxu0 0
  %9666 = vmatmul.mubr.bf16.gmra.mrb[0].mxu0 %v9616
  %v9667 = vpop.f32.mrb[0].mxu0
  %v9668 = vadd.f32 0.0, %v9667
  %v9669 = vpop.f32.mrb[0].mxu0
  %v9670 = vadd.f32 0.0, %v9669
  %v9671 = vpop.f32.mrb[0].mxu0
  %v9672 = vadd.f32 0.0, %v9671
  %v9673 = vpop.f32.mrb[0].mxu0
  %v9674 = vadd.f32 0.0, %v9673
  %9675 = vmatprep.mubr.bf16.mxu0 0
  %9676 = vmatmul.mubr.bf16.gmra.mrb[0].mxu0 %v9619
  %v9677 = vpop.f32.mrb[0].mxu0
  %v9678 = vadd.f32 0.0, %v9677
  %v9679 = vpop.f32.mrb[0].mxu0
  %v9680 = vadd.f32 0.0, %v9679
  %v9681 = vpop.f32.mrb[0].mxu0
  %v9682 = vadd.f32 0.0, %v9681
  %v9683 = vpop.f32.mrb[0].mxu0
  %v9684 = vadd.f32 0.0, %v9683
  %9685 = vdwg.mxu0
  %9686 = vmatprep.subr.bf16.mxu0 %v9631
  %9687 = vmatpush1.bf16.msra.mxu0 %v9628
  %9688 = vmatprep.subr.bf16.mxu0 0
  %9689 = vmatpush1.bf16.msra.mxu0 0
  %9690 = vmatprep.subr.bf16.mxu0 0
  %9691 = vmatpush1.bf16.msra.mxu0 0
  %9692 = vmatprep.subr.bf16.mxu0 0
  %9693 = vmatpush1.bf16.msra.mxu0 0
  %9694 = vmatprep.subr.bf16.mxu0 0
  %9695 = vmatpush1.bf16.msra.mxu0 0
  %9696 = vmatprep.subr.bf16.mxu0 0
  %9697 = vmatpush1.bf16.msra.mxu0 0
  %9698 = vmatprep.subr.bf16.mxu0 0
  %9699 = vmatpush1.bf16.msra.mxu0 0
  %9700 = vmatprep.subr.bf16.mxu0 0
  %9701 = vmatpush1.bf16.msra.mxu0 0
  %9702 = vmatprep.subr.bf16.mxu0 0
  %9703 = vmatpush1.bf16.msra.mxu0 0
  %9704 = vmatprep.subr.bf16.mxu0 0
  %9705 = vmatpush1.bf16.msra.mxu0 0
  %9706 = vmatprep.subr.bf16.mxu0 0
  %9707 = vmatpush1.bf16.msra.mxu0 0
  %9708 = vmatprep.subr.bf16.mxu0 0
  %9709 = vmatpush1.bf16.msra.mxu0 0
  %9710 = vmatprep.subr.bf16.mxu0 0
  %9711 = vmatpush1.bf16.msra.mxu0 0
  %9712 = vmatprep.subr.bf16.mxu0 0
  %9713 = vmatpush1.bf16.msra.mxu0 0
  %9714 = vmatprep.subr.bf16.mxu0 0
  %9715 = vmatpush1.bf16.msra.mxu0 0
  %9716 = vmatprep.subr.bf16.mxu0 0
  %9717 = vmatpush1.bf16.msra.mxu0 0
  %9718 = vmatprep.mubr.bf16.mxu0 0
  %9719 = vmatmul.mubr.bf16.gmra.mrb[0].mxu0 %v9616
  %v9720 = vpop.f32.mrb[0].mxu0
  %v9721 = vadd.f32 0.0, %v9720
  %v9722 = vpop.f32.mrb[0].mxu0
  %v9723 = vadd.f32 0.0, %v9722
  %v9724 = vpop.f32.mrb[0].mxu0
  %v9725 = vadd.f32 0.0, %v9724
  %v9726 = vpop.f32.mrb[0].mxu0
  %v9727 = vadd.f32 0.0, %v9726
  %9728 = vmatprep.mubr.bf16.mxu0 0
  %9729 = vmatmul.mubr.bf16.gmra.mrb[0].mxu0 %v9619
  %v9730 = vpop.f32.mrb[0].mxu0
  %v9731 = vadd.f32 0.0, %v9730
  %v9732 = vpop.f32.mrb[0].mxu0
  %v9733 = vadd.f32 0.0, %v9732
  %v9734 = vpop.f32.mrb[0].mxu0
  %v9735 = vadd.f32 0.0, %v9734
  %v9736 = vpop.f32.mrb[0].mxu0
  %v9737 = vadd.f32 0.0, %v9736
  %9738 = vdwg.mxu0
  %v9739 = vmax.f32 %v9668, 0.0
  %v9740 = vmax.f32 %v9670, 0.0
  %v9741 = vmax.f32 %v9721, 0.0
  %v9742 = vmax.f32 %v9723, 0.0
  %v9743 = vmax.f32 %v9672, 0.0
  %v9744 = vmax.f32 %v9674, 0.0
  %v9745 = vmax.f32 %v9725, 0.0
  %v9746 = vmax.f32 %v9727, 0.0
  %v9747 = vmax.f32 %v9678, 0.0
  %v9748 = vmax.f32 %v9680, 0.0
  %v9749 = vmax.f32 %v9731, 0.0
  %v9750 = vmax.f32 %v9733, 0.0
  %v9751 = vmax.f32 %v9682, 0.0
  %v9752 = vmax.f32 %v9684, 0.0
  %v9753 = vmax.f32 %v9735, 0.0
  %v9754 = vmax.f32 %v9737, 0.0
  %s9755 = scalar_lea.vmem %s2, 104
  %v9756 = vld [vmem:[%s9755] sm:$0xf]
  %v9757 = vpack.c.bf16 %v9743, %v9739
  %v9758 = vpack.c.bf16 %v9744, %v9740
  %v9759 = vpack.c.bf16 %v9745, %v9741
  %v9760 = vpack.c.bf16 %v9746, %v9742
  %v9761 = vpack.c.bf16 %v9751, %v9747
  %v9762 = vpack.c.bf16 %v9752, %v9748
  %v9763 = vpack.c.bf16 %v9753, %v9749
  %v9764 = vpack.c.bf16 %v9754, %v9750
  %s9765 = scalar_lea.vmem %s3, 208
  %v9766 = vld [vmem:[%s9765] sm:$0xff]
  %9768 = vset.pattern.permute.xlu0 0
  %9769 = vperm.xlu0 %9768, %v9766
  %v9770 = vpop.permute.xlu0 %9769
  %v9773 = vsel %vm197, %v9756, 0
  %9775 = vmatprep.subr.bf16.mxu0 %v9758
  %9776 = vmatpush1.bf16.msra.mxu0 %v9757
  %9777 = vmatprep.subr.bf16.mxu0 %v9762
  %9778 = vmatpush1.bf16.msra.mxu0 %v9761
  %9779 = vmatprep.subr.bf16.mxu0 0
  %9780 = vmatpush1.bf16.msra.mxu0 0
  %9781 = vmatprep.subr.bf16.mxu0 0
  %9782 = vmatpush1.bf16.msra.mxu0 0
  %9783 = vmatprep.subr.bf16.mxu0 0
  %9784 = vmatpush1.bf16.msra.mxu0 0
  %9785 = vmatprep.subr.bf16.mxu0 0
  %9786 = vmatpush1.bf16.msra.mxu0 0
  %9787 = vmatprep.subr.bf16.mxu0 0
  %9788 = vmatpush1.bf16.msra.mxu0 0
  %9789 = vmatprep.subr.bf16.mxu0 0
  %9790 = vmatpush1.bf16.msra.mxu0 0
  %9791 = vmatprep.subr.bf16.mxu0 0
  %9792 = vmatpush1.bf16.msra.mxu0 0
  %9793 = vmatprep.subr.bf16.mxu0 0
  %9794 = vmatpush1.bf16.msra.mxu0 0
  %9795 = vmatprep.subr.bf16.mxu0 0
  %9796 = vmatpush1.bf16.msra.mxu0 0
  %9797 = vmatprep.subr.bf16.mxu0 0
  %9798 = vmatpush1.bf16.msra.mxu0 0
  %9799 = vmatprep.subr.bf16.mxu0 0
  %9800 = vmatpush1.bf16.msra.mxu0 0
  %9801 = vmatprep.subr.bf16.mxu0 0
  %9802 = vmatpush1.bf16.msra.mxu0 0
  %9803 = vmatprep.subr.bf16.mxu0 0
  %9804 = vmatpush1.bf16.msra.mxu0 0
  %9805 = vmatprep.subr.bf16.mxu0 0
  %9806 = vmatpush1.bf16.msra.mxu0 0
  %9807 = vmatprep.mubr.bf16.mxu0 0
  %9808 = vmatmul.mubr.bf16.gmra.mrb[0].mxu0 %v9773
  %v9809 = vpop.f32.mrb[0].mxu0
  %v9810 = vadd.f32 %v9770, %v9809
  %v9811 = vpop.f32.mrb[0].mxu0
  %v9812 = vadd.f32 %v9770, %v9811
  %v9813 = vpop.f32.mrb[0].mxu0
  %v9814 = vpop.f32.mrb[0].mxu0
  %9815 = vdwg.mxu0
  %9816 = vmatprep.subr.bf16.mxu0 %v9760
  %9817 = vmatpush1.bf16.msra.mxu0 %v9759
  %9818 = vmatprep.subr.bf16.mxu0 %v9764
  %9819 = vmatpush1.bf16.msra.mxu0 %v9763
  %9820 = vmatprep.subr.bf16.mxu0 0
  %9821 = vmatpush1.bf16.msra.mxu0 0
  %9822 = vmatprep.subr.bf16.mxu0 0
  %9823 = vmatpush1.bf16.msra.mxu0 0
  %9824 = vmatprep.subr.bf16.mxu0 0
  %9825 = vmatpush1.bf16.msra.mxu0 0
  %9826 = vmatprep.subr.bf16.mxu0 0
  %9827 = vmatpush1.bf16.msra.mxu0 0
  %9828 = vmatprep.subr.bf16.mxu0 0
  %9829 = vmatpush1.bf16.msra.mxu0 0
  %9830 = vmatprep.subr.bf16.mxu0 0
  %9831 = vmatpush1.bf16.msra.mxu0 0
  %9832 = vmatprep.subr.bf16.mxu0 0
  %9833 = vmatpush1.bf16.msra.mxu0 0
  %9834 = vmatprep.subr.bf16.mxu0 0
  %9835 = vmatpush1.bf16.msra.mxu0 0
  %9836 = vmatprep.subr.bf16.mxu0 0
  %9837 = vmatpush1.bf16.msra.mxu0 0
  %9838 = vmatprep.subr.bf16.mxu0 0
  %9839 = vmatpush1.bf16.msra.mxu0 0
  %9840 = vmatprep.subr.bf16.mxu0 0
  %9841 = vmatpush1.bf16.msra.mxu0 0
  %9842 = vmatprep.subr.bf16.mxu0 0
  %9843 = vmatpush1.bf16.msra.mxu0 0
  %9844 = vmatprep.subr.bf16.mxu0 0
  %9845 = vmatpush1.bf16.msra.mxu0 0
  %9846 = vmatprep.subr.bf16.mxu0 0
  %9847 = vmatpush1.bf16.msra.mxu0 0
  %9848 = vmatprep.mubr.bf16.mxu0 0
  %9849 = vmatmul.mubr.bf16.gmra.mrb[0].mxu0 %v9773
  %v9850 = vpop.f32.mrb[0].mxu0
  %v9851 = vadd.f32 %v9770, %v9850
  %v9852 = vpop.f32.mrb[0].mxu0
  %v9853 = vadd.f32 %v9770, %v9852
  %v9854 = vpop.f32.mrb[0].mxu0
  %v9855 = vpop.f32.mrb[0].mxu0
  %9856 = vdwg.mxu0
  %v9857 = vmul.f32 %v9592, -1.053955
  %v9858 = vmul.f32 %v9593, -1.053955
  %v9859 = vmul.f32 %v9594, -1.053955
  %v9860 = vmul.f32 %v9595, -1.053955
  %v9861 = vadd.f32 %v9810, %v9857
  %v9862 = vadd.f32 %v9812, %v9858
  %v9863 = vadd.f32 %v9851, %v9859
  %v9864 = vadd.f32 %v9853, %v9860
  %v9865 = vadd.f32 %v9584, %v9861
  %v9866 = vadd.f32 %v9585, %v9862
  %v9867 = vadd.f32 %v9586, %v9863
  %v9868 = vadd.f32 %v9587, %v9864
  %v9869 = vmul.f32 %v9865, -0.01665
  %v9870 = vmul.f32 %v9866, -0.01665
  %v9871 = vmul.f32 %v9867, -0.01665
  %v9872 = vmul.f32 %v9868, -0.01665
  %v9873 = vadd.f32 %v8778, %v9869
  %v9874 = vadd.f32 %v8779, %v9870
  %v9875 = vadd.f32 %v8780, %v9871
  %v9876 = vadd.f32 %v8781, %v9872
  %s9877 = scalar_lea.vmem %s1, 432
  %v9878 = vld [vmem:[%s9877] sm:$0xf]
  %v9879 = vld [vmem:[%s9877 + $0x4] sm:$0xf]
  %v9880 = vld [vmem:[%s9877 + $0x8] sm:$0xf]
  %v9881 = vld [vmem:[%s9877 + $0xc] sm:$0xf]
  %v9882 = vpack.c.bf16 %v9873, %v9873
  %v9883 = vpack.c.bf16 %v9874, %v9874
  %v9884 = vpack.c.bf16 %v9875, %v9875
  %v9885 = vpack.c.bf16 %v9876, %v9876
  %v9890 = vunpack.c.l.b16 %v9878
  %v9891 = vunpack.c.l.b16 %v9879
  %v9892 = vunpack.c.l.b16 %v9880
  %v9893 = vunpack.c.l.b16 %v9881
  %v9894 = vpack.c.b16 %v9891, %v9890
  %v9895 = vpack.c.b16 %v9893, %v9892
  %v9897 = vsel %vm40, %v9894, 0
  %v9900 = vsel %vm40, %v9895, 0
  %v9903 = vsel %vm47, %v9882, 0
  %v9906 = vsel %vm47, %v9883, 0
  %v9909 = vsel %vm47, %v9884, 0
  %v9912 = vsel %vm47, %v9885, 0
  %9914 = vmatprep.subr.bf16.mxu0 %v9906
  %9915 = vmatpush1.bf16.msra.mxu0 %v9903
  %9916 = vmatprep.subr.bf16.mxu0 0
  %9917 = vmatpush1.bf16.msra.mxu0 0
  %9918 = vmatprep.subr.bf16.mxu0 0
  %9919 = vmatpush1.bf16.msra.mxu0 0
  %9920 = vmatprep.subr.bf16.mxu0 0
  %9921 = vmatpush1.bf16.msra.mxu0 0
  %9922 = vmatprep.subr.bf16.mxu0 0
  %9923 = vmatpush1.bf16.msra.mxu0 0
  %9924 = vmatprep.subr.bf16.mxu0 0
  %9925 = vmatpush1.bf16.msra.mxu0 0
  %9926 = vmatprep.subr.bf16.mxu0 0
  %9927 = vmatpush1.bf16.msra.mxu0 0
  %9928 = vmatprep.subr.bf16.mxu0 0
  %9929 = vmatpush1.bf16.msra.mxu0 0
  %9930 = vmatprep.subr.bf16.mxu0 0
  %9931 = vmatpush1.bf16.msra.mxu0 0
  %9932 = vmatprep.subr.bf16.mxu0 0
  %9933 = vmatpush1.bf16.msra.mxu0 0
  %9934 = vmatprep.subr.bf16.mxu0 0
  %9935 = vmatpush1.bf16.msra.mxu0 0
  %9936 = vmatprep.subr.bf16.mxu0 0
  %9937 = vmatpush1.bf16.msra.mxu0 0
  %9938 = vmatprep.subr.bf16.mxu0 0
  %9939 = vmatpush1.bf16.msra.mxu0 0
  %9940 = vmatprep.subr.bf16.mxu0 0
  %9941 = vmatpush1.bf16.msra.mxu0 0
  %9942 = vmatprep.subr.bf16.mxu0 0
  %9943 = vmatpush1.bf16.msra.mxu0 0
  %9944 = vmatprep.subr.bf16.mxu0 0
  %9945 = vmatpush1.bf16.msra.mxu0 0
  %9946 = vmatprep.mubr.bf16.mxu0 0
  %9947 = vmatmul.mubr.bf16.gmra.mrb[0].mxu0 %v9897
  %v9948 = vpop.f32.mrb[0].mxu0
  %v9949 = vadd.f32 0.0, %v9948
  %v9950 = vpop.f32.mrb[0].mxu0
  %v9951 = vadd.f32 0.0, %v9950
  %v9952 = vpop.f32.mrb[0].mxu0
  %v9953 = vadd.f32 0.0, %v9952
  %v9954 = vpop.f32.mrb[0].mxu0
  %v9955 = vadd.f32 0.0, %v9954
  %9956 = vmatprep.mubr.bf16.mxu0 0
  %9957 = vmatmul.mubr.bf16.gmra.mrb[0].mxu0 %v9900
  %v9958 = vpop.f32.mrb[0].mxu0
  %v9959 = vadd.f32 0.0, %v9958
  %v9960 = vpop.f32.mrb[0].mxu0
  %v9961 = vadd.f32 0.0, %v9960
  %v9962 = vpop.f32.mrb[0].mxu0
  %v9963 = vadd.f32 0.0, %v9962
  %v9964 = vpop.f32.mrb[0].mxu0
  %v9965 = vadd.f32 0.0, %v9964
  %9966 = vdwg.mxu0
  %9967 = vmatprep.subr.bf16.mxu0 %v9912
  %9968 = vmatpush1.bf16.msra.mxu0 %v9909
  %9969 = vmatprep.subr.bf16.mxu0 0
  %9970 = vmatpush1.bf16.msra.mxu0 0
  %9971 = vmatprep.subr.bf16.mxu0 0
  %9972 = vmatpush1.bf16.msra.mxu0 0
  %9973 = vmatprep.subr.bf16.mxu0 0
  %9974 = vmatpush1.bf16.msra.mxu0 0
  %9975 = vmatprep.subr.bf16.mxu0 0
  %9976 = vmatpush1.bf16.msra.mxu0 0
  %9977 = vmatprep.subr.bf16.mxu0 0
  %9978 = vmatpush1.bf16.msra.mxu0 0
  %9979 = vmatprep.subr.bf16.mxu0 0
  %9980 = vmatpush1.bf16.msra.mxu0 0
  %9981 = vmatprep.subr.bf16.mxu0 0
  %9982 = vmatpush1.bf16.msra.mxu0 0
  %9983 = vmatprep.subr.bf16.mxu0 0
  %9984 = vmatpush1.bf16.msra.mxu0 0
  %9985 = vmatprep.subr.bf16.mxu0 0
  %9986 = vmatpush1.bf16.msra.mxu0 0
  %9987 = vmatprep.subr.bf16.mxu0 0
  %9988 = vmatpush1.bf16.msra.mxu0 0
  %9989 = vmatprep.subr.bf16.mxu0 0
  %9990 = vmatpush1.bf16.msra.mxu0 0
  %9991 = vmatprep.subr.bf16.mxu0 0
  %9992 = vmatpush1.bf16.msra.mxu0 0
  %9993 = vmatprep.subr.bf16.mxu0 0
  %9994 = vmatpush1.bf16.msra.mxu0 0
  %9995 = vmatprep.subr.bf16.mxu0 0
  %9996 = vmatpush1.bf16.msra.mxu0 0
  %9997 = vmatprep.subr.bf16.mxu0 0
  %9998 = vmatpush1.bf16.msra.mxu0 0
  %9999 = vmatprep.mubr.bf16.mxu0 0
  %10000 = vmatmul.mubr.bf16.gmra.mrb[0].mxu0 %v9897
  %v10001 = vpop.f32.mrb[0].mxu0
  %v10002 = vadd.f32 0.0, %v10001
  %v10003 = vpop.f32.mrb[0].mxu0
  %v10004 = vadd.f32 0.0, %v10003
  %v10005 = vpop.f32.mrb[0].mxu0
  %v10006 = vadd.f32 0.0, %v10005
  %v10007 = vpop.f32.mrb[0].mxu0
  %v10008 = vadd.f32 0.0, %v10007
  %10009 = vmatprep.mubr.bf16.mxu0 0
  %10010 = vmatmul.mubr.bf16.gmra.mrb[0].mxu0 %v9900
  %v10011 = vpop.f32.mrb[0].mxu0
  %v10012 = vadd.f32 0.0, %v10011
  %v10013 = vpop.f32.mrb[0].mxu0
  %v10014 = vadd.f32 0.0, %v10013
  %v10015 = vpop.f32.mrb[0].mxu0
  %v10016 = vadd.f32 0.0, %v10015
  %v10017 = vpop.f32.mrb[0].mxu0
  %v10018 = vadd.f32 0.0, %v10017
  %10019 = vdwg.mxu0
  %v10020 = vmax.f32 %v9949, 0.0
  %v10021 = vmax.f32 %v9951, 0.0
  %v10022 = vmax.f32 %v10002, 0.0
  %v10023 = vmax.f32 %v10004, 0.0
  %v10024 = vmax.f32 %v9953, 0.0
  %v10025 = vmax.f32 %v9955, 0.0
  %v10026 = vmax.f32 %v10006, 0.0
  %v10027 = vmax.f32 %v10008, 0.0
  %v10028 = vmax.f32 %v9959, 0.0
  %v10029 = vmax.f32 %v9961, 0.0
  %v10030 = vmax.f32 %v10012, 0.0
  %v10031 = vmax.f32 %v10014, 0.0
  %v10032 = vmax.f32 %v9963, 0.0
  %v10033 = vmax.f32 %v9965, 0.0
  %v10034 = vmax.f32 %v10016, 0.0
  %v10035 = vmax.f32 %v10018, 0.0
  %s10036 = scalar_lea.vmem %s2, 108
  %v10037 = vld [vmem:[%s10036] sm:$0xf]
  %v10038 = vpack.c.bf16 %v10024, %v10020
  %v10039 = vpack.c.bf16 %v10025, %v10021
  %v10040 = vpack.c.bf16 %v10026, %v10022
  %v10041 = vpack.c.bf16 %v10027, %v10023
  %v10042 = vpack.c.bf16 %v10032, %v10028
  %v10043 = vpack.c.bf16 %v10033, %v10029
  %v10044 = vpack.c.bf16 %v10034, %v10030
  %v10045 = vpack.c.bf16 %v10035, %v10031
  %s10046 = scalar_lea.vmem %s3, 216
  %v10047 = vld [vmem:[%s10046] sm:$0xff]
  %10049 = vset.pattern.permute.xlu0 0
  %10050 = vperm.xlu0 %10049, %v10047
  %v10051 = vpop.permute.xlu0 %10050
  %v10054 = vsel %vm197, %v10037, 0
  %10056 = vmatprep.subr.bf16.mxu0 %v10039
  %10057 = vmatpush1.bf16.msra.mxu0 %v10038
  %10058 = vmatprep.subr.bf16.mxu0 %v10043
  %10059 = vmatpush1.bf16.msra.mxu0 %v10042
  %10060 = vmatprep.subr.bf16.mxu0 0
  %10061 = vmatpush1.bf16.msra.mxu0 0
  %10062 = vmatprep.subr.bf16.mxu0 0
  %10063 = vmatpush1.bf16.msra.mxu0 0
  %10064 = vmatprep.subr.bf16.mxu0 0
  %10065 = vmatpush1.bf16.msra.mxu0 0
  %10066 = vmatprep.subr.bf16.mxu0 0
  %10067 = vmatpush1.bf16.msra.mxu0 0
  %10068 = vmatprep.subr.bf16.mxu0 0
  %10069 = vmatpush1.bf16.msra.mxu0 0
  %10070 = vmatprep.subr.bf16.mxu0 0
  %10071 = vmatpush1.bf16.msra.mxu0 0
  %10072 = vmatprep.subr.bf16.mxu0 0
  %10073 = vmatpush1.bf16.msra.mxu0 0
  %10074 = vmatprep.subr.bf16.mxu0 0
  %10075 = vmatpush1.bf16.msra.mxu0 0
  %10076 = vmatprep.subr.bf16.mxu0 0
  %10077 = vmatpush1.bf16.msra.mxu0 0
  %10078 = vmatprep.subr.bf16.mxu0 0
  %10079 = vmatpush1.bf16.msra.mxu0 0
  %10080 = vmatprep.subr.bf16.mxu0 0
  %10081 = vmatpush1.bf16.msra.mxu0 0
  %10082 = vmatprep.subr.bf16.mxu0 0
  %10083 = vmatpush1.bf16.msra.mxu0 0
  %10084 = vmatprep.subr.bf16.mxu0 0
  %10085 = vmatpush1.bf16.msra.mxu0 0
  %10086 = vmatprep.subr.bf16.mxu0 0
  %10087 = vmatpush1.bf16.msra.mxu0 0
  %10088 = vmatprep.mubr.bf16.mxu0 0
  %10089 = vmatmul.mubr.bf16.gmra.mrb[0].mxu0 %v10054
  %v10090 = vpop.f32.mrb[0].mxu0
  %v10091 = vadd.f32 %v10051, %v10090
  %v10092 = vpop.f32.mrb[0].mxu0
  %v10093 = vadd.f32 %v10051, %v10092
  %v10094 = vpop.f32.mrb[0].mxu0
  %v10095 = vpop.f32.mrb[0].mxu0
  %10096 = vdwg.mxu0
  %10097 = vmatprep.subr.bf16.mxu0 %v10041
  %10098 = vmatpush1.bf16.msra.mxu0 %v10040
  %10099 = vmatprep.subr.bf16.mxu0 %v10045
  %10100 = vmatpush1.bf16.msra.mxu0 %v10044
  %10101 = vmatprep.subr.bf16.mxu0 0
  %10102 = vmatpush1.bf16.msra.mxu0 0
  %10103 = vmatprep.subr.bf16.mxu0 0
  %10104 = vmatpush1.bf16.msra.mxu0 0
  %10105 = vmatprep.subr.bf16.mxu0 0
  %10106 = vmatpush1.bf16.msra.mxu0 0
  %10107 = vmatprep.subr.bf16.mxu0 0
  %10108 = vmatpush1.bf16.msra.mxu0 0
  %10109 = vmatprep.subr.bf16.mxu0 0
  %10110 = vmatpush1.bf16.msra.mxu0 0
  %10111 = vmatprep.subr.bf16.mxu0 0
  %10112 = vmatpush1.bf16.msra.mxu0 0
  %10113 = vmatprep.subr.bf16.mxu0 0
  %10114 = vmatpush1.bf16.msra.mxu0 0
  %10115 = vmatprep.subr.bf16.mxu0 0
  %10116 = vmatpush1.bf16.msra.mxu0 0
  %10117 = vmatprep.subr.bf16.mxu0 0
  %10118 = vmatpush1.bf16.msra.mxu0 0
  %10119 = vmatprep.subr.bf16.mxu0 0
  %10120 = vmatpush1.bf16.msra.mxu0 0
  %10121 = vmatprep.subr.bf16.mxu0 0
  %10122 = vmatpush1.bf16.msra.mxu0 0
  %10123 = vmatprep.subr.bf16.mxu0 0
  %10124 = vmatpush1.bf16.msra.mxu0 0
  %10125 = vmatprep.subr.bf16.mxu0 0
  %10126 = vmatpush1.bf16.msra.mxu0 0
  %10127 = vmatprep.subr.bf16.mxu0 0
  %10128 = vmatpush1.bf16.msra.mxu0 0
  %10129 = vmatprep.mubr.bf16.mxu0 0
  %10130 = vmatmul.mubr.bf16.gmra.mrb[0].mxu0 %v10054
  %v10131 = vpop.f32.mrb[0].mxu0
  %v10132 = vadd.f32 %v10051, %v10131
  %v10133 = vpop.f32.mrb[0].mxu0
  %v10134 = vadd.f32 %v10051, %v10133
  %v10135 = vpop.f32.mrb[0].mxu0
  %v10136 = vpop.f32.mrb[0].mxu0
  %10137 = vdwg.mxu0
  %v10138 = vmul.f32 %v9873, -1.053955
  %v10139 = vmul.f32 %v9874, -1.053955
  %v10140 = vmul.f32 %v9875, -1.053955
  %v10141 = vmul.f32 %v9876, -1.053955
  %v10142 = vadd.f32 %v10091, %v10138
  %v10143 = vadd.f32 %v10093, %v10139
  %v10144 = vadd.f32 %v10132, %v10140
  %v10145 = vadd.f32 %v10134, %v10141
  %v10146 = vmul.f32 %v10142, -0.04995
  %v10147 = vmul.f32 %v10143, -0.04995
  %v10148 = vmul.f32 %v10144, -0.04995
  %v10149 = vmul.f32 %v10145, -0.04995
  %v10150 = vadd.f32 %v9873, %v10146
  %v10151 = vadd.f32 %v9874, %v10147
  %v10152 = vadd.f32 %v9875, %v10148
  %v10153 = vadd.f32 %v9876, %v10149
  %s10154 = scalar_lea.vmem %s1, 448
  %v10155 = vld [vmem:[%s10154] sm:$0xf]
  %v10156 = vld [vmem:[%s10154 + $0x4] sm:$0xf]
  %v10157 = vld [vmem:[%s10154 + $0x8] sm:$0xf]
  %v10158 = vld [vmem:[%s10154 + $0xc] sm:$0xf]
  %v10159 = vpack.c.bf16 %v10150, %v10150
  %v10160 = vpack.c.bf16 %v10151, %v10151
  %v10161 = vpack.c.bf16 %v10152, %v10152
  %v10162 = vpack.c.bf16 %v10153, %v10153
  %v10167 = vunpack.c.l.b16 %v10155
  %v10168 = vunpack.c.l.b16 %v10156
  %v10169 = vunpack.c.l.b16 %v10157
  %v10170 = vunpack.c.l.b16 %v10158
  %v10171 = vpack.c.b16 %v10168, %v10167
  %v10172 = vpack.c.b16 %v10170, %v10169
  %v10174 = vsel %vm40, %v10171, 0
  %v10177 = vsel %vm40, %v10172, 0
  %v10180 = vsel %vm47, %v10159, 0
  %v10183 = vsel %vm47, %v10160, 0
  %v10186 = vsel %vm47, %v10161, 0
  %v10189 = vsel %vm47, %v10162, 0
  %10191 = vmatprep.subr.bf16.mxu0 %v10183
  %10192 = vmatpush1.bf16.msra.mxu0 %v10180
  %10193 = vmatprep.subr.bf16.mxu0 0
  %10194 = vmatpush1.bf16.msra.mxu0 0
  %10195 = vmatprep.subr.bf16.mxu0 0
  %10196 = vmatpush1.bf16.msra.mxu0 0
  %10197 = vmatprep.subr.bf16.mxu0 0
  %10198 = vmatpush1.bf16.msra.mxu0 0
  %10199 = vmatprep.subr.bf16.mxu0 0
  %10200 = vmatpush1.bf16.msra.mxu0 0
  %10201 = vmatprep.subr.bf16.mxu0 0
  %10202 = vmatpush1.bf16.msra.mxu0 0
  %10203 = vmatprep.subr.bf16.mxu0 0
  %10204 = vmatpush1.bf16.msra.mxu0 0
  %10205 = vmatprep.subr.bf16.mxu0 0
  %10206 = vmatpush1.bf16.msra.mxu0 0
  %10207 = vmatprep.subr.bf16.mxu0 0
  %10208 = vmatpush1.bf16.msra.mxu0 0
  %10209 = vmatprep.subr.bf16.mxu0 0
  %10210 = vmatpush1.bf16.msra.mxu0 0
  %10211 = vmatprep.subr.bf16.mxu0 0
  %10212 = vmatpush1.bf16.msra.mxu0 0
  %10213 = vmatprep.subr.bf16.mxu0 0
  %10214 = vmatpush1.bf16.msra.mxu0 0
  %10215 = vmatprep.subr.bf16.mxu0 0
  %10216 = vmatpush1.bf16.msra.mxu0 0
  %10217 = vmatprep.subr.bf16.mxu0 0
  %10218 = vmatpush1.bf16.msra.mxu0 0
  %10219 = vmatprep.subr.bf16.mxu0 0
  %10220 = vmatpush1.bf16.msra.mxu0 0
  %10221 = vmatprep.subr.bf16.mxu0 0
  %10222 = vmatpush1.bf16.msra.mxu0 0
  %10223 = vmatprep.mubr.bf16.mxu0 0
  %10224 = vmatmul.mubr.bf16.gmra.mrb[0].mxu0 %v10174
  %v10225 = vpop.f32.mrb[0].mxu0
  %v10226 = vadd.f32 0.0, %v10225
  %v10227 = vpop.f32.mrb[0].mxu0
  %v10228 = vadd.f32 0.0, %v10227
  %v10229 = vpop.f32.mrb[0].mxu0
  %v10230 = vadd.f32 0.0, %v10229
  %v10231 = vpop.f32.mrb[0].mxu0
  %v10232 = vadd.f32 0.0, %v10231
  %10233 = vmatprep.mubr.bf16.mxu0 0
  %10234 = vmatmul.mubr.bf16.gmra.mrb[0].mxu0 %v10177
  %v10235 = vpop.f32.mrb[0].mxu0
  %v10236 = vadd.f32 0.0, %v10235
  %v10237 = vpop.f32.mrb[0].mxu0
  %v10238 = vadd.f32 0.0, %v10237
  %v10239 = vpop.f32.mrb[0].mxu0
  %v10240 = vadd.f32 0.0, %v10239
  %v10241 = vpop.f32.mrb[0].mxu0
  %v10242 = vadd.f32 0.0, %v10241
  %10243 = vdwg.mxu0
  %10244 = vmatprep.subr.bf16.mxu0 %v10189
  %10245 = vmatpush1.bf16.msra.mxu0 %v10186
  %10246 = vmatprep.subr.bf16.mxu0 0
  %10247 = vmatpush1.bf16.msra.mxu0 0
  %10248 = vmatprep.subr.bf16.mxu0 0
  %10249 = vmatpush1.bf16.msra.mxu0 0
  %10250 = vmatprep.subr.bf16.mxu0 0
  %10251 = vmatpush1.bf16.msra.mxu0 0
  %10252 = vmatprep.subr.bf16.mxu0 0
  %10253 = vmatpush1.bf16.msra.mxu0 0
  %10254 = vmatprep.subr.bf16.mxu0 0
  %10255 = vmatpush1.bf16.msra.mxu0 0
  %10256 = vmatprep.subr.bf16.mxu0 0
  %10257 = vmatpush1.bf16.msra.mxu0 0
  %10258 = vmatprep.subr.bf16.mxu0 0
  %10259 = vmatpush1.bf16.msra.mxu0 0
  %10260 = vmatprep.subr.bf16.mxu0 0
  %10261 = vmatpush1.bf16.msra.mxu0 0
  %10262 = vmatprep.subr.bf16.mxu0 0
  %10263 = vmatpush1.bf16.msra.mxu0 0
  %10264 = vmatprep.subr.bf16.mxu0 0
  %10265 = vmatpush1.bf16.msra.mxu0 0
  %10266 = vmatprep.subr.bf16.mxu0 0
  %10267 = vmatpush1.bf16.msra.mxu0 0
  %10268 = vmatprep.subr.bf16.mxu0 0
  %10269 = vmatpush1.bf16.msra.mxu0 0
  %10270 = vmatprep.subr.bf16.mxu0 0
  %10271 = vmatpush1.bf16.msra.mxu0 0
  %10272 = vmatprep.subr.bf16.mxu0 0
  %10273 = vmatpush1.bf16.msra.mxu0 0
  %10274 = vmatprep.subr.bf16.mxu0 0
  %10275 = vmatpush1.bf16.msra.mxu0 0
  %10276 = vmatprep.mubr.bf16.mxu0 0
  %10277 = vmatmul.mubr.bf16.gmra.mrb[0].mxu0 %v10174
  %v10278 = vpop.f32.mrb[0].mxu0
  %v10279 = vadd.f32 0.0, %v10278
  %v10280 = vpop.f32.mrb[0].mxu0
  %v10281 = vadd.f32 0.0, %v10280
  %v10282 = vpop.f32.mrb[0].mxu0
  %v10283 = vadd.f32 0.0, %v10282
  %v10284 = vpop.f32.mrb[0].mxu0
  %v10285 = vadd.f32 0.0, %v10284
  %10286 = vmatprep.mubr.bf16.mxu0 0
  %10287 = vmatmul.mubr.bf16.gmra.mrb[0].mxu0 %v10177
  %v10288 = vpop.f32.mrb[0].mxu0
  %v10289 = vadd.f32 0.0, %v10288
  %v10290 = vpop.f32.mrb[0].mxu0
  %v10291 = vadd.f32 0.0, %v10290
  %v10292 = vpop.f32.mrb[0].mxu0
  %v10293 = vadd.f32 0.0, %v10292
  %v10294 = vpop.f32.mrb[0].mxu0
  %v10295 = vadd.f32 0.0, %v10294
  %10296 = vdwg.mxu0
  %v10297 = vmax.f32 %v10226, 0.0
  %v10298 = vmax.f32 %v10228, 0.0
  %v10299 = vmax.f32 %v10279, 0.0
  %v10300 = vmax.f32 %v10281, 0.0
  %v10301 = vmax.f32 %v10230, 0.0
  %v10302 = vmax.f32 %v10232, 0.0
  %v10303 = vmax.f32 %v10283, 0.0
  %v10304 = vmax.f32 %v10285, 0.0
  %v10305 = vmax.f32 %v10236, 0.0
  %v10306 = vmax.f32 %v10238, 0.0
  %v10307 = vmax.f32 %v10289, 0.0
  %v10308 = vmax.f32 %v10291, 0.0
  %v10309 = vmax.f32 %v10240, 0.0
  %v10310 = vmax.f32 %v10242, 0.0
  %v10311 = vmax.f32 %v10293, 0.0
  %v10312 = vmax.f32 %v10295, 0.0
  %s10313 = scalar_lea.vmem %s2, 112
  %v10314 = vld [vmem:[%s10313] sm:$0xf]
  %v10315 = vpack.c.bf16 %v10301, %v10297
  %v10316 = vpack.c.bf16 %v10302, %v10298
  %v10317 = vpack.c.bf16 %v10303, %v10299
  %v10318 = vpack.c.bf16 %v10304, %v10300
  %v10319 = vpack.c.bf16 %v10309, %v10305
  %v10320 = vpack.c.bf16 %v10310, %v10306
  %v10321 = vpack.c.bf16 %v10311, %v10307
  %v10322 = vpack.c.bf16 %v10312, %v10308
  %s10323 = scalar_lea.vmem %s3, 224
  %v10324 = vld [vmem:[%s10323] sm:$0xff]
  %10326 = vset.pattern.permute.xlu0 0
  %10327 = vperm.xlu0 %10326, %v10324
  %v10328 = vpop.permute.xlu0 %10327
  %v10331 = vsel %vm197, %v10314, 0
  %10333 = vmatprep.subr.bf16.mxu0 %v10316
  %10334 = vmatpush1.bf16.msra.mxu0 %v10315
  %10335 = vmatprep.subr.bf16.mxu0 %v10320
  %10336 = vmatpush1.bf16.msra.mxu0 %v10319
  %10337 = vmatprep.subr.bf16.mxu0 0
  %10338 = vmatpush1.bf16.msra.mxu0 0
  %10339 = vmatprep.subr.bf16.mxu0 0
  %10340 = vmatpush1.bf16.msra.mxu0 0
  %10341 = vmatprep.subr.bf16.mxu0 0
  %10342 = vmatpush1.bf16.msra.mxu0 0
  %10343 = vmatprep.subr.bf16.mxu0 0
  %10344 = vmatpush1.bf16.msra.mxu0 0
  %10345 = vmatprep.subr.bf16.mxu0 0
  %10346 = vmatpush1.bf16.msra.mxu0 0
  %10347 = vmatprep.subr.bf16.mxu0 0
  %10348 = vmatpush1.bf16.msra.mxu0 0
  %10349 = vmatprep.subr.bf16.mxu0 0
  %10350 = vmatpush1.bf16.msra.mxu0 0
  %10351 = vmatprep.subr.bf16.mxu0 0
  %10352 = vmatpush1.bf16.msra.mxu0 0
  %10353 = vmatprep.subr.bf16.mxu0 0
  %10354 = vmatpush1.bf16.msra.mxu0 0
  %10355 = vmatprep.subr.bf16.mxu0 0
  %10356 = vmatpush1.bf16.msra.mxu0 0
  %10357 = vmatprep.subr.bf16.mxu0 0
  %10358 = vmatpush1.bf16.msra.mxu0 0
  %10359 = vmatprep.subr.bf16.mxu0 0
  %10360 = vmatpush1.bf16.msra.mxu0 0
  %10361 = vmatprep.subr.bf16.mxu0 0
  %10362 = vmatpush1.bf16.msra.mxu0 0
  %10363 = vmatprep.subr.bf16.mxu0 0
  %10364 = vmatpush1.bf16.msra.mxu0 0
  %10365 = vmatprep.mubr.bf16.mxu0 0
  %10366 = vmatmul.mubr.bf16.gmra.mrb[0].mxu0 %v10331
  %v10367 = vpop.f32.mrb[0].mxu0
  %v10368 = vadd.f32 %v10328, %v10367
  %v10369 = vpop.f32.mrb[0].mxu0
  %v10370 = vadd.f32 %v10328, %v10369
  %v10371 = vpop.f32.mrb[0].mxu0
  %v10372 = vpop.f32.mrb[0].mxu0
  %10373 = vdwg.mxu0
  %10374 = vmatprep.subr.bf16.mxu0 %v10318
  %10375 = vmatpush1.bf16.msra.mxu0 %v10317
  %10376 = vmatprep.subr.bf16.mxu0 %v10322
  %10377 = vmatpush1.bf16.msra.mxu0 %v10321
  %10378 = vmatprep.subr.bf16.mxu0 0
  %10379 = vmatpush1.bf16.msra.mxu0 0
  %10380 = vmatprep.subr.bf16.mxu0 0
  %10381 = vmatpush1.bf16.msra.mxu0 0
  %10382 = vmatprep.subr.bf16.mxu0 0
  %10383 = vmatpush1.bf16.msra.mxu0 0
  %10384 = vmatprep.subr.bf16.mxu0 0
  %10385 = vmatpush1.bf16.msra.mxu0 0
  %10386 = vmatprep.subr.bf16.mxu0 0
  %10387 = vmatpush1.bf16.msra.mxu0 0
  %10388 = vmatprep.subr.bf16.mxu0 0
  %10389 = vmatpush1.bf16.msra.mxu0 0
  %10390 = vmatprep.subr.bf16.mxu0 0
  %10391 = vmatpush1.bf16.msra.mxu0 0
  %10392 = vmatprep.subr.bf16.mxu0 0
  %10393 = vmatpush1.bf16.msra.mxu0 0
  %10394 = vmatprep.subr.bf16.mxu0 0
  %10395 = vmatpush1.bf16.msra.mxu0 0
  %10396 = vmatprep.subr.bf16.mxu0 0
  %10397 = vmatpush1.bf16.msra.mxu0 0
  %10398 = vmatprep.subr.bf16.mxu0 0
  %10399 = vmatpush1.bf16.msra.mxu0 0
  %10400 = vmatprep.subr.bf16.mxu0 0
  %10401 = vmatpush1.bf16.msra.mxu0 0
  %10402 = vmatprep.subr.bf16.mxu0 0
  %10403 = vmatpush1.bf16.msra.mxu0 0
  %10404 = vmatprep.subr.bf16.mxu0 0
  %10405 = vmatpush1.bf16.msra.mxu0 0
  %10406 = vmatprep.mubr.bf16.mxu0 0
  %10407 = vmatmul.mubr.bf16.gmra.mrb[0].mxu0 %v10331
  %v10408 = vpop.f32.mrb[0].mxu0
  %v10409 = vadd.f32 %v10328, %v10408
  %v10410 = vpop.f32.mrb[0].mxu0
  %v10411 = vadd.f32 %v10328, %v10410
  %v10412 = vpop.f32.mrb[0].mxu0
  %v10413 = vpop.f32.mrb[0].mxu0
  %10414 = vdwg.mxu0
  %v10415 = vmul.f32 %v10150, -0.5569525
  %v10416 = vmul.f32 %v10151, -0.5569525
  %v10417 = vmul.f32 %v10152, -0.5569525
  %v10418 = vmul.f32 %v10153, -0.5569525
  %v10419 = vadd.f32 %v10368, %v10415
  %v10420 = vadd.f32 %v10370, %v10416
  %v10421 = vadd.f32 %v10409, %v10417
  %v10422 = vadd.f32 %v10411, %v10418
  %v10423 = vmul.f32 %v10419, 2.0
  %v10424 = vmul.f32 %v10420, 2.0
  %v10425 = vmul.f32 %v10421, 2.0
  %v10426 = vmul.f32 %v10422, 2.0
  %v10427 = vadd.f32 %v10142, %v10423
  %v10428 = vadd.f32 %v10143, %v10424
  %v10429 = vadd.f32 %v10144, %v10425
  %v10430 = vadd.f32 %v10145, %v10426
  %v10431 = vmul.f32 %v10419, -0.04995
  %v10432 = vmul.f32 %v10420, -0.04995
  %v10433 = vmul.f32 %v10421, -0.04995
  %v10434 = vmul.f32 %v10422, -0.04995
  %v10435 = vadd.f32 %v9873, %v10431
  %v10436 = vadd.f32 %v9874, %v10432
  %v10437 = vadd.f32 %v9875, %v10433
  %v10438 = vadd.f32 %v9876, %v10434
  %v10439 = vpack.c.bf16 %v10435, %v10435
  %v10440 = vpack.c.bf16 %v10436, %v10436
  %v10441 = vpack.c.bf16 %v10437, %v10437
  %v10442 = vpack.c.bf16 %v10438, %v10438
  %v10444 = vsel %vm47, %v10439, 0
  %v10447 = vsel %vm47, %v10440, 0
  %v10450 = vsel %vm47, %v10441, 0
  %v10453 = vsel %vm47, %v10442, 0
  %10455 = vmatprep.subr.bf16.mxu0 %v10447
  %10456 = vmatpush1.bf16.msra.mxu0 %v10444
  %10457 = vmatprep.subr.bf16.mxu0 0
  %10458 = vmatpush1.bf16.msra.mxu0 0
  %10459 = vmatprep.subr.bf16.mxu0 0
  %10460 = vmatpush1.bf16.msra.mxu0 0
  %10461 = vmatprep.subr.bf16.mxu0 0
  %10462 = vmatpush1.bf16.msra.mxu0 0
  %10463 = vmatprep.subr.bf16.mxu0 0
  %10464 = vmatpush1.bf16.msra.mxu0 0
  %10465 = vmatprep.subr.bf16.mxu0 0
  %10466 = vmatpush1.bf16.msra.mxu0 0
  %10467 = vmatprep.subr.bf16.mxu0 0
  %10468 = vmatpush1.bf16.msra.mxu0 0
  %10469 = vmatprep.subr.bf16.mxu0 0
  %10470 = vmatpush1.bf16.msra.mxu0 0
  %10471 = vmatprep.subr.bf16.mxu0 0
  %10472 = vmatpush1.bf16.msra.mxu0 0
  %10473 = vmatprep.subr.bf16.mxu0 0
  %10474 = vmatpush1.bf16.msra.mxu0 0
  %10475 = vmatprep.subr.bf16.mxu0 0
  %10476 = vmatpush1.bf16.msra.mxu0 0
  %10477 = vmatprep.subr.bf16.mxu0 0
  %10478 = vmatpush1.bf16.msra.mxu0 0
  %10479 = vmatprep.subr.bf16.mxu0 0
  %10480 = vmatpush1.bf16.msra.mxu0 0
  %10481 = vmatprep.subr.bf16.mxu0 0
  %10482 = vmatpush1.bf16.msra.mxu0 0
  %10483 = vmatprep.subr.bf16.mxu0 0
  %10484 = vmatpush1.bf16.msra.mxu0 0
  %10485 = vmatprep.subr.bf16.mxu0 0
  %10486 = vmatpush1.bf16.msra.mxu0 0
  %10487 = vmatprep.mubr.bf16.mxu0 0
  %10488 = vmatmul.mubr.bf16.gmra.mrb[0].mxu0 %v10174
  %v10489 = vpop.f32.mrb[0].mxu0
  %v10490 = vadd.f32 0.0, %v10489
  %v10491 = vpop.f32.mrb[0].mxu0
  %v10492 = vadd.f32 0.0, %v10491
  %v10493 = vpop.f32.mrb[0].mxu0
  %v10494 = vadd.f32 0.0, %v10493
  %v10495 = vpop.f32.mrb[0].mxu0
  %v10496 = vadd.f32 0.0, %v10495
  %10497 = vmatprep.mubr.bf16.mxu0 0
  %10498 = vmatmul.mubr.bf16.gmra.mrb[0].mxu0 %v10177
  %v10499 = vpop.f32.mrb[0].mxu0
  %v10500 = vadd.f32 0.0, %v10499
  %v10501 = vpop.f32.mrb[0].mxu0
  %v10502 = vadd.f32 0.0, %v10501
  %v10503 = vpop.f32.mrb[0].mxu0
  %v10504 = vadd.f32 0.0, %v10503
  %v10505 = vpop.f32.mrb[0].mxu0
  %v10506 = vadd.f32 0.0, %v10505
  %10507 = vdwg.mxu0
  %10508 = vmatprep.subr.bf16.mxu0 %v10453
  %10509 = vmatpush1.bf16.msra.mxu0 %v10450
  %10510 = vmatprep.subr.bf16.mxu0 0
  %10511 = vmatpush1.bf16.msra.mxu0 0
  %10512 = vmatprep.subr.bf16.mxu0 0
  %10513 = vmatpush1.bf16.msra.mxu0 0
  %10514 = vmatprep.subr.bf16.mxu0 0
  %10515 = vmatpush1.bf16.msra.mxu0 0
  %10516 = vmatprep.subr.bf16.mxu0 0
  %10517 = vmatpush1.bf16.msra.mxu0 0
  %10518 = vmatprep.subr.bf16.mxu0 0
  %10519 = vmatpush1.bf16.msra.mxu0 0
  %10520 = vmatprep.subr.bf16.mxu0 0
  %10521 = vmatpush1.bf16.msra.mxu0 0
  %10522 = vmatprep.subr.bf16.mxu0 0
  %10523 = vmatpush1.bf16.msra.mxu0 0
  %10524 = vmatprep.subr.bf16.mxu0 0
  %10525 = vmatpush1.bf16.msra.mxu0 0
  %10526 = vmatprep.subr.bf16.mxu0 0
  %10527 = vmatpush1.bf16.msra.mxu0 0
  %10528 = vmatprep.subr.bf16.mxu0 0
  %10529 = vmatpush1.bf16.msra.mxu0 0
  %10530 = vmatprep.subr.bf16.mxu0 0
  %10531 = vmatpush1.bf16.msra.mxu0 0
  %10532 = vmatprep.subr.bf16.mxu0 0
  %10533 = vmatpush1.bf16.msra.mxu0 0
  %10534 = vmatprep.subr.bf16.mxu0 0
  %10535 = vmatpush1.bf16.msra.mxu0 0
  %10536 = vmatprep.subr.bf16.mxu0 0
  %10537 = vmatpush1.bf16.msra.mxu0 0
  %10538 = vmatprep.subr.bf16.mxu0 0
  %10539 = vmatpush1.bf16.msra.mxu0 0
  %10540 = vmatprep.mubr.bf16.mxu0 0
  %10541 = vmatmul.mubr.bf16.gmra.mrb[0].mxu0 %v10174
  %v10542 = vpop.f32.mrb[0].mxu0
  %v10543 = vadd.f32 0.0, %v10542
  %v10544 = vpop.f32.mrb[0].mxu0
  %v10545 = vadd.f32 0.0, %v10544
  %v10546 = vpop.f32.mrb[0].mxu0
  %v10547 = vadd.f32 0.0, %v10546
  %v10548 = vpop.f32.mrb[0].mxu0
  %v10549 = vadd.f32 0.0, %v10548
  %10550 = vmatprep.mubr.bf16.mxu0 0
  %10551 = vmatmul.mubr.bf16.gmra.mrb[0].mxu0 %v10177
  %v10552 = vpop.f32.mrb[0].mxu0
  %v10553 = vadd.f32 0.0, %v10552
  %v10554 = vpop.f32.mrb[0].mxu0
  %v10555 = vadd.f32 0.0, %v10554
  %v10556 = vpop.f32.mrb[0].mxu0
  %v10557 = vadd.f32 0.0, %v10556
  %v10558 = vpop.f32.mrb[0].mxu0
  %v10559 = vadd.f32 0.0, %v10558
  %10560 = vdwg.mxu0
  %v10561 = vmax.f32 %v10490, 0.0
  %v10562 = vmax.f32 %v10492, 0.0
  %v10563 = vmax.f32 %v10543, 0.0
  %v10564 = vmax.f32 %v10545, 0.0
  %v10565 = vmax.f32 %v10494, 0.0
  %v10566 = vmax.f32 %v10496, 0.0
  %v10567 = vmax.f32 %v10547, 0.0
  %v10568 = vmax.f32 %v10549, 0.0
  %v10569 = vmax.f32 %v10500, 0.0
  %v10570 = vmax.f32 %v10502, 0.0
  %v10571 = vmax.f32 %v10553, 0.0
  %v10572 = vmax.f32 %v10555, 0.0
  %v10573 = vmax.f32 %v10504, 0.0
  %v10574 = vmax.f32 %v10506, 0.0
  %v10575 = vmax.f32 %v10557, 0.0
  %v10576 = vmax.f32 %v10559, 0.0
  %v10577 = vpack.c.bf16 %v10565, %v10561
  %v10578 = vpack.c.bf16 %v10566, %v10562
  %v10579 = vpack.c.bf16 %v10567, %v10563
  %v10580 = vpack.c.bf16 %v10568, %v10564
  %v10581 = vpack.c.bf16 %v10573, %v10569
  %v10582 = vpack.c.bf16 %v10574, %v10570
  %v10583 = vpack.c.bf16 %v10575, %v10571
  %v10584 = vpack.c.bf16 %v10576, %v10572
  %10585 = vmatprep.subr.bf16.mxu0 %v10578
  %10586 = vmatpush1.bf16.msra.mxu0 %v10577
  %10587 = vmatprep.subr.bf16.mxu0 %v10582
  %10588 = vmatpush1.bf16.msra.mxu0 %v10581
  %10589 = vmatprep.subr.bf16.mxu0 0
  %10590 = vmatpush1.bf16.msra.mxu0 0
  %10591 = vmatprep.subr.bf16.mxu0 0
  %10592 = vmatpush1.bf16.msra.mxu0 0
  %10593 = vmatprep.subr.bf16.mxu0 0
  %10594 = vmatpush1.bf16.msra.mxu0 0
  %10595 = vmatprep.subr.bf16.mxu0 0
  %10596 = vmatpush1.bf16.msra.mxu0 0
  %10597 = vmatprep.subr.bf16.mxu0 0
  %10598 = vmatpush1.bf16.msra.mxu0 0
  %10599 = vmatprep.subr.bf16.mxu0 0
  %10600 = vmatpush1.bf16.msra.mxu0 0
  %10601 = vmatprep.subr.bf16.mxu0 0
  %10602 = vmatpush1.bf16.msra.mxu0 0
  %10603 = vmatprep.subr.bf16.mxu0 0
  %10604 = vmatpush1.bf16.msra.mxu0 0
  %10605 = vmatprep.subr.bf16.mxu0 0
  %10606 = vmatpush1.bf16.msra.mxu0 0
  %10607 = vmatprep.subr.bf16.mxu0 0
  %10608 = vmatpush1.bf16.msra.mxu0 0
  %10609 = vmatprep.subr.bf16.mxu0 0
  %10610 = vmatpush1.bf16.msra.mxu0 0
  %10611 = vmatprep.subr.bf16.mxu0 0
  %10612 = vmatpush1.bf16.msra.mxu0 0
  %10613 = vmatprep.subr.bf16.mxu0 0
  %10614 = vmatpush1.bf16.msra.mxu0 0
  %10615 = vmatprep.subr.bf16.mxu0 0
  %10616 = vmatpush1.bf16.msra.mxu0 0
  %10617 = vmatprep.mubr.bf16.mxu0 0
  %10618 = vmatmul.mubr.bf16.gmra.mrb[0].mxu0 %v10331
  %v10619 = vpop.f32.mrb[0].mxu0
  %v10620 = vadd.f32 %v10328, %v10619
  %v10621 = vpop.f32.mrb[0].mxu0
  %v10622 = vadd.f32 %v10328, %v10621
  %v10623 = vpop.f32.mrb[0].mxu0
  %v10624 = vpop.f32.mrb[0].mxu0
  %10625 = vdwg.mxu0
  %10626 = vmatprep.subr.bf16.mxu0 %v10580
  %10627 = vmatpush1.bf16.msra.mxu0 %v10579
  %10628 = vmatprep.subr.bf16.mxu0 %v10584
  %10629 = vmatpush1.bf16.msra.mxu0 %v10583
  %10630 = vmatprep.subr.bf16.mxu0 0
  %10631 = vmatpush1.bf16.msra.mxu0 0
  %10632 = vmatprep.subr.bf16.mxu0 0
  %10633 = vmatpush1.bf16.msra.mxu0 0
  %10634 = vmatprep.subr.bf16.mxu0 0
  %10635 = vmatpush1.bf16.msra.mxu0 0
  %10636 = vmatprep.subr.bf16.mxu0 0
  %10637 = vmatpush1.bf16.msra.mxu0 0
  %10638 = vmatprep.subr.bf16.mxu0 0
  %10639 = vmatpush1.bf16.msra.mxu0 0
  %10640 = vmatprep.subr.bf16.mxu0 0
  %10641 = vmatpush1.bf16.msra.mxu0 0
  %10642 = vmatprep.subr.bf16.mxu0 0
  %10643 = vmatpush1.bf16.msra.mxu0 0
  %10644 = vmatprep.subr.bf16.mxu0 0
  %10645 = vmatpush1.bf16.msra.mxu0 0
  %10646 = vmatprep.subr.bf16.mxu0 0
  %10647 = vmatpush1.bf16.msra.mxu0 0
  %10648 = vmatprep.subr.bf16.mxu0 0
  %10649 = vmatpush1.bf16.msra.mxu0 0
  %10650 = vmatprep.subr.bf16.mxu0 0
  %10651 = vmatpush1.bf16.msra.mxu0 0
  %10652 = vmatprep.subr.bf16.mxu0 0
  %10653 = vmatpush1.bf16.msra.mxu0 0
  %10654 = vmatprep.subr.bf16.mxu0 0
  %10655 = vmatpush1.bf16.msra.mxu0 0
  %10656 = vmatprep.subr.bf16.mxu0 0
  %10657 = vmatpush1.bf16.msra.mxu0 0
  %10658 = vmatprep.mubr.bf16.mxu0 0
  %10659 = vmatmul.mubr.bf16.gmra.mrb[0].mxu0 %v10331
  %v10660 = vpop.f32.mrb[0].mxu0
  %v10661 = vadd.f32 %v10328, %v10660
  %v10662 = vpop.f32.mrb[0].mxu0
  %v10663 = vadd.f32 %v10328, %v10662
  %v10664 = vpop.f32.mrb[0].mxu0
  %v10665 = vpop.f32.mrb[0].mxu0
  %10666 = vdwg.mxu0
  %v10667 = vmul.f32 %v10435, -0.5569525
  %v10668 = vmul.f32 %v10436, -0.5569525
  %v10669 = vmul.f32 %v10437, -0.5569525
  %v10670 = vmul.f32 %v10438, -0.5569525
  %v10671 = vadd.f32 %v10620, %v10667
  %v10672 = vadd.f32 %v10622, %v10668
  %v10673 = vadd.f32 %v10661, %v10669
  %v10674 = vadd.f32 %v10663, %v10670
  %v10675 = vmul.f32 %v10671, 2.0
  %v10676 = vmul.f32 %v10672, 2.0
  %v10677 = vmul.f32 %v10673, 2.0
  %v10678 = vmul.f32 %v10674, 2.0
  %v10679 = vadd.f32 %v10427, %v10675
  %v10680 = vadd.f32 %v10428, %v10676
  %v10681 = vadd.f32 %v10429, %v10677
  %v10682 = vadd.f32 %v10430, %v10678
  %v10683 = vmul.f32 %v10671, -0.0999
  %v10684 = vmul.f32 %v10672, -0.0999
  %v10685 = vmul.f32 %v10673, -0.0999
  %v10686 = vmul.f32 %v10674, -0.0999
  %v10687 = vadd.f32 %v9873, %v10683
  %v10688 = vadd.f32 %v9874, %v10684
  %v10689 = vadd.f32 %v9875, %v10685
  %v10690 = vadd.f32 %v9876, %v10686
  %s10691 = scalar_lea.vmem %s1, 464
  %v10692 = vld [vmem:[%s10691] sm:$0xf]
  %v10693 = vld [vmem:[%s10691 + $0x4] sm:$0xf]
  %v10694 = vld [vmem:[%s10691 + $0x8] sm:$0xf]
  %v10695 = vld [vmem:[%s10691 + $0xc] sm:$0xf]
  %v10696 = vpack.c.bf16 %v10687, %v10687
  %v10697 = vpack.c.bf16 %v10688, %v10688
  %v10698 = vpack.c.bf16 %v10689, %v10689
  %v10699 = vpack.c.bf16 %v10690, %v10690
  %v10704 = vunpack.c.l.b16 %v10692
  %v10705 = vunpack.c.l.b16 %v10693
  %v10706 = vunpack.c.l.b16 %v10694
  %v10707 = vunpack.c.l.b16 %v10695
  %v10708 = vpack.c.b16 %v10705, %v10704
  %v10709 = vpack.c.b16 %v10707, %v10706
  %v10711 = vsel %vm40, %v10708, 0
  %v10714 = vsel %vm40, %v10709, 0
  %v10717 = vsel %vm47, %v10696, 0
  %v10720 = vsel %vm47, %v10697, 0
  %v10723 = vsel %vm47, %v10698, 0
  %v10726 = vsel %vm47, %v10699, 0
  %10728 = vmatprep.subr.bf16.mxu0 %v10720
  %10729 = vmatpush1.bf16.msra.mxu0 %v10717
  %10730 = vmatprep.subr.bf16.mxu0 0
  %10731 = vmatpush1.bf16.msra.mxu0 0
  %10732 = vmatprep.subr.bf16.mxu0 0
  %10733 = vmatpush1.bf16.msra.mxu0 0
  %10734 = vmatprep.subr.bf16.mxu0 0
  %10735 = vmatpush1.bf16.msra.mxu0 0
  %10736 = vmatprep.subr.bf16.mxu0 0
  %10737 = vmatpush1.bf16.msra.mxu0 0
  %10738 = vmatprep.subr.bf16.mxu0 0
  %10739 = vmatpush1.bf16.msra.mxu0 0
  %10740 = vmatprep.subr.bf16.mxu0 0
  %10741 = vmatpush1.bf16.msra.mxu0 0
  %10742 = vmatprep.subr.bf16.mxu0 0
  %10743 = vmatpush1.bf16.msra.mxu0 0
  %10744 = vmatprep.subr.bf16.mxu0 0
  %10745 = vmatpush1.bf16.msra.mxu0 0
  %10746 = vmatprep.subr.bf16.mxu0 0
  %10747 = vmatpush1.bf16.msra.mxu0 0
  %10748 = vmatprep.subr.bf16.mxu0 0
  %10749 = vmatpush1.bf16.msra.mxu0 0
  %10750 = vmatprep.subr.bf16.mxu0 0
  %10751 = vmatpush1.bf16.msra.mxu0 0
  %10752 = vmatprep.subr.bf16.mxu0 0
  %10753 = vmatpush1.bf16.msra.mxu0 0
  %10754 = vmatprep.subr.bf16.mxu0 0
  %10755 = vmatpush1.bf16.msra.mxu0 0
  %10756 = vmatprep.subr.bf16.mxu0 0
  %10757 = vmatpush1.bf16.msra.mxu0 0
  %10758 = vmatprep.subr.bf16.mxu0 0
  %10759 = vmatpush1.bf16.msra.mxu0 0
  %10760 = vmatprep.mubr.bf16.mxu0 0
  %10761 = vmatmul.mubr.bf16.gmra.mrb[0].mxu0 %v10711
  %v10762 = vpop.f32.mrb[0].mxu0
  %v10763 = vadd.f32 0.0, %v10762
  %v10764 = vpop.f32.mrb[0].mxu0
  %v10765 = vadd.f32 0.0, %v10764
  %v10766 = vpop.f32.mrb[0].mxu0
  %v10767 = vadd.f32 0.0, %v10766
  %v10768 = vpop.f32.mrb[0].mxu0
  %v10769 = vadd.f32 0.0, %v10768
  %10770 = vmatprep.mubr.bf16.mxu0 0
  %10771 = vmatmul.mubr.bf16.gmra.mrb[0].mxu0 %v10714
  %v10772 = vpop.f32.mrb[0].mxu0
  %v10773 = vadd.f32 0.0, %v10772
  %v10774 = vpop.f32.mrb[0].mxu0
  %v10775 = vadd.f32 0.0, %v10774
  %v10776 = vpop.f32.mrb[0].mxu0
  %v10777 = vadd.f32 0.0, %v10776
  %v10778 = vpop.f32.mrb[0].mxu0
  %v10779 = vadd.f32 0.0, %v10778
  %10780 = vdwg.mxu0
  %10781 = vmatprep.subr.bf16.mxu0 %v10726
  %10782 = vmatpush1.bf16.msra.mxu0 %v10723
  %10783 = vmatprep.subr.bf16.mxu0 0
  %10784 = vmatpush1.bf16.msra.mxu0 0
  %10785 = vmatprep.subr.bf16.mxu0 0
  %10786 = vmatpush1.bf16.msra.mxu0 0
  %10787 = vmatprep.subr.bf16.mxu0 0
  %10788 = vmatpush1.bf16.msra.mxu0 0
  %10789 = vmatprep.subr.bf16.mxu0 0
  %10790 = vmatpush1.bf16.msra.mxu0 0
  %10791 = vmatprep.subr.bf16.mxu0 0
  %10792 = vmatpush1.bf16.msra.mxu0 0
  %10793 = vmatprep.subr.bf16.mxu0 0
  %10794 = vmatpush1.bf16.msra.mxu0 0
  %10795 = vmatprep.subr.bf16.mxu0 0
  %10796 = vmatpush1.bf16.msra.mxu0 0
  %10797 = vmatprep.subr.bf16.mxu0 0
  %10798 = vmatpush1.bf16.msra.mxu0 0
  %10799 = vmatprep.subr.bf16.mxu0 0
  %10800 = vmatpush1.bf16.msra.mxu0 0
  %10801 = vmatprep.subr.bf16.mxu0 0
  %10802 = vmatpush1.bf16.msra.mxu0 0
  %10803 = vmatprep.subr.bf16.mxu0 0
  %10804 = vmatpush1.bf16.msra.mxu0 0
  %10805 = vmatprep.subr.bf16.mxu0 0
  %10806 = vmatpush1.bf16.msra.mxu0 0
  %10807 = vmatprep.subr.bf16.mxu0 0
  %10808 = vmatpush1.bf16.msra.mxu0 0
  %10809 = vmatprep.subr.bf16.mxu0 0
  %10810 = vmatpush1.bf16.msra.mxu0 0
  %10811 = vmatprep.subr.bf16.mxu0 0
  %10812 = vmatpush1.bf16.msra.mxu0 0
  %10813 = vmatprep.mubr.bf16.mxu0 0
  %10814 = vmatmul.mubr.bf16.gmra.mrb[0].mxu0 %v10711
  %v10815 = vpop.f32.mrb[0].mxu0
  %v10816 = vadd.f32 0.0, %v10815
  %v10817 = vpop.f32.mrb[0].mxu0
  %v10818 = vadd.f32 0.0, %v10817
  %v10819 = vpop.f32.mrb[0].mxu0
  %v10820 = vadd.f32 0.0, %v10819
  %v10821 = vpop.f32.mrb[0].mxu0
  %v10822 = vadd.f32 0.0, %v10821
  %10823 = vmatprep.mubr.bf16.mxu0 0
  %10824 = vmatmul.mubr.bf16.gmra.mrb[0].mxu0 %v10714
  %v10825 = vpop.f32.mrb[0].mxu0
  %v10826 = vadd.f32 0.0, %v10825
  %v10827 = vpop.f32.mrb[0].mxu0
  %v10828 = vadd.f32 0.0, %v10827
  %v10829 = vpop.f32.mrb[0].mxu0
  %v10830 = vadd.f32 0.0, %v10829
  %v10831 = vpop.f32.mrb[0].mxu0
  %v10832 = vadd.f32 0.0, %v10831
  %10833 = vdwg.mxu0
  %v10834 = vmax.f32 %v10763, 0.0
  %v10835 = vmax.f32 %v10765, 0.0
  %v10836 = vmax.f32 %v10816, 0.0
  %v10837 = vmax.f32 %v10818, 0.0
  %v10838 = vmax.f32 %v10767, 0.0
  %v10839 = vmax.f32 %v10769, 0.0
  %v10840 = vmax.f32 %v10820, 0.0
  %v10841 = vmax.f32 %v10822, 0.0
  %v10842 = vmax.f32 %v10773, 0.0
  %v10843 = vmax.f32 %v10775, 0.0
  %v10844 = vmax.f32 %v10826, 0.0
  %v10845 = vmax.f32 %v10828, 0.0
  %v10846 = vmax.f32 %v10777, 0.0
  %v10847 = vmax.f32 %v10779, 0.0
  %v10848 = vmax.f32 %v10830, 0.0
  %v10849 = vmax.f32 %v10832, 0.0
  %s10850 = scalar_lea.vmem %s2, 116
  %v10851 = vld [vmem:[%s10850] sm:$0xf]
  %v10852 = vpack.c.bf16 %v10838, %v10834
  %v10853 = vpack.c.bf16 %v10839, %v10835
  %v10854 = vpack.c.bf16 %v10840, %v10836
  %v10855 = vpack.c.bf16 %v10841, %v10837
  %v10856 = vpack.c.bf16 %v10846, %v10842
  %v10857 = vpack.c.bf16 %v10847, %v10843
  %v10858 = vpack.c.bf16 %v10848, %v10844
  %v10859 = vpack.c.bf16 %v10849, %v10845
  %s10860 = scalar_lea.vmem %s3, 232
  %v10861 = vld [vmem:[%s10860] sm:$0xff]
  %10863 = vset.pattern.permute.xlu0 0
  %10864 = vperm.xlu0 %10863, %v10861
  %v10865 = vpop.permute.xlu0 %10864
  %v10868 = vsel %vm197, %v10851, 0
  %10870 = vmatprep.subr.bf16.mxu0 %v10853
  %10871 = vmatpush1.bf16.msra.mxu0 %v10852
  %10872 = vmatprep.subr.bf16.mxu0 %v10857
  %10873 = vmatpush1.bf16.msra.mxu0 %v10856
  %10874 = vmatprep.subr.bf16.mxu0 0
  %10875 = vmatpush1.bf16.msra.mxu0 0
  %10876 = vmatprep.subr.bf16.mxu0 0
  %10877 = vmatpush1.bf16.msra.mxu0 0
  %10878 = vmatprep.subr.bf16.mxu0 0
  %10879 = vmatpush1.bf16.msra.mxu0 0
  %10880 = vmatprep.subr.bf16.mxu0 0
  %10881 = vmatpush1.bf16.msra.mxu0 0
  %10882 = vmatprep.subr.bf16.mxu0 0
  %10883 = vmatpush1.bf16.msra.mxu0 0
  %10884 = vmatprep.subr.bf16.mxu0 0
  %10885 = vmatpush1.bf16.msra.mxu0 0
  %10886 = vmatprep.subr.bf16.mxu0 0
  %10887 = vmatpush1.bf16.msra.mxu0 0
  %10888 = vmatprep.subr.bf16.mxu0 0
  %10889 = vmatpush1.bf16.msra.mxu0 0
  %10890 = vmatprep.subr.bf16.mxu0 0
  %10891 = vmatpush1.bf16.msra.mxu0 0
  %10892 = vmatprep.subr.bf16.mxu0 0
  %10893 = vmatpush1.bf16.msra.mxu0 0
  %10894 = vmatprep.subr.bf16.mxu0 0
  %10895 = vmatpush1.bf16.msra.mxu0 0
  %10896 = vmatprep.subr.bf16.mxu0 0
  %10897 = vmatpush1.bf16.msra.mxu0 0
  %10898 = vmatprep.subr.bf16.mxu0 0
  %10899 = vmatpush1.bf16.msra.mxu0 0
  %10900 = vmatprep.subr.bf16.mxu0 0
  %10901 = vmatpush1.bf16.msra.mxu0 0
  %10902 = vmatprep.mubr.bf16.mxu0 0
  %10903 = vmatmul.mubr.bf16.gmra.mrb[0].mxu0 %v10868
  %v10904 = vpop.f32.mrb[0].mxu0
  %v10905 = vadd.f32 %v10865, %v10904
  %v10906 = vpop.f32.mrb[0].mxu0
  %v10907 = vadd.f32 %v10865, %v10906
  %v10908 = vpop.f32.mrb[0].mxu0
  %v10909 = vpop.f32.mrb[0].mxu0
  %10910 = vdwg.mxu0
  %10911 = vmatprep.subr.bf16.mxu0 %v10855
  %10912 = vmatpush1.bf16.msra.mxu0 %v10854
  %10913 = vmatprep.subr.bf16.mxu0 %v10859
  %10914 = vmatpush1.bf16.msra.mxu0 %v10858
  %10915 = vmatprep.subr.bf16.mxu0 0
  %10916 = vmatpush1.bf16.msra.mxu0 0
  %10917 = vmatprep.subr.bf16.mxu0 0
  %10918 = vmatpush1.bf16.msra.mxu0 0
  %10919 = vmatprep.subr.bf16.mxu0 0
  %10920 = vmatpush1.bf16.msra.mxu0 0
  %10921 = vmatprep.subr.bf16.mxu0 0
  %10922 = vmatpush1.bf16.msra.mxu0 0
  %10923 = vmatprep.subr.bf16.mxu0 0
  %10924 = vmatpush1.bf16.msra.mxu0 0
  %10925 = vmatprep.subr.bf16.mxu0 0
  %10926 = vmatpush1.bf16.msra.mxu0 0
  %10927 = vmatprep.subr.bf16.mxu0 0
  %10928 = vmatpush1.bf16.msra.mxu0 0
  %10929 = vmatprep.subr.bf16.mxu0 0
  %10930 = vmatpush1.bf16.msra.mxu0 0
  %10931 = vmatprep.subr.bf16.mxu0 0
  %10932 = vmatpush1.bf16.msra.mxu0 0
  %10933 = vmatprep.subr.bf16.mxu0 0
  %10934 = vmatpush1.bf16.msra.mxu0 0
  %10935 = vmatprep.subr.bf16.mxu0 0
  %10936 = vmatpush1.bf16.msra.mxu0 0
  %10937 = vmatprep.subr.bf16.mxu0 0
  %10938 = vmatpush1.bf16.msra.mxu0 0
  %10939 = vmatprep.subr.bf16.mxu0 0
  %10940 = vmatpush1.bf16.msra.mxu0 0
  %10941 = vmatprep.subr.bf16.mxu0 0
  %10942 = vmatpush1.bf16.msra.mxu0 0
  %10943 = vmatprep.mubr.bf16.mxu0 0
  %10944 = vmatmul.mubr.bf16.gmra.mrb[0].mxu0 %v10868
  %v10945 = vpop.f32.mrb[0].mxu0
  %v10946 = vadd.f32 %v10865, %v10945
  %v10947 = vpop.f32.mrb[0].mxu0
  %v10948 = vadd.f32 %v10865, %v10947
  %v10949 = vpop.f32.mrb[0].mxu0
  %v10950 = vpop.f32.mrb[0].mxu0
  %10951 = vdwg.mxu0
  %v10952 = vmul.f32 %v10687, -0.05995
  %v10953 = vmul.f32 %v10688, -0.05995
  %v10954 = vmul.f32 %v10689, -0.05995
  %v10955 = vmul.f32 %v10690, -0.05995
  %v10956 = vadd.f32 %v10905, %v10952
  %v10957 = vadd.f32 %v10907, %v10953
  %v10958 = vadd.f32 %v10946, %v10954
  %v10959 = vadd.f32 %v10948, %v10955
  %v10960 = vadd.f32 %v10679, %v10956
  %v10961 = vadd.f32 %v10680, %v10957
  %v10962 = vadd.f32 %v10681, %v10958
  %v10963 = vadd.f32 %v10682, %v10959
  %v10964 = vmul.f32 %v10960, -0.01665
  %v10965 = vmul.f32 %v10961, -0.01665
  %v10966 = vmul.f32 %v10962, -0.01665
  %v10967 = vmul.f32 %v10963, -0.01665
  %v10968 = vadd.f32 %v9873, %v10964
  %v10969 = vadd.f32 %v9874, %v10965
  %v10970 = vadd.f32 %v9875, %v10966
  %v10971 = vadd.f32 %v9876, %v10967
  %v10972 = vadd.f32 %v10968, 1.0
  %v10973 = vadd.f32 %v10969, 1.0
  %v10974 = vadd.f32 %v10970, 1.0
  %v10975 = vadd.f32 %v10971, 1.0
  %v10976 = vmul.f32 %v10972, 0.5
  %v10977 = vmul.f32 %v10973, 0.5
  %v10978 = vmul.f32 %v10974, 0.5
  %v10979 = vmul.f32 %v10975, 0.5
  %v10984 = vcombine.low %v10976, %v10977
  %v10985 = vcombine.low %v10978, %v10979
  %10988 = vst [vmem:[%s4] sm:$0xff] %v10984
  %10989 = vst [vmem:[%s4 + $0x8] sm:$0xff] %v10985
  // Predicated region
  $region18: #{probability_flow_sample.1} parent=0 // pred_check
    _
  $region19: #{probability_flow_sample.1} parent=0 // pred_check_branch
    %10991 = sbr.rel (0) target = $region21
  $region20: #{probability_flow_sample.1} parent=0 // pred_region
    _
  $region21: #{probability_flow_sample.1} parent=0 // pred_fallthru
    _
  // Predicated region
  $region22: #{probability_flow_sample.1} parent=0 // pred_check
    _
  $region23: #{probability_flow_sample.1} parent=0 // pred_check_branch
    %10993 = sbr.rel (0) target = $region25
  $region24: #{probability_flow_sample.1} parent=0 // pred_region
    _
  $region25: #{probability_flow_sample.1} parent=0 // pred_fallthru
    _

</llo_original>
